<compile_context>
chip_gen: v6e
topology: v6e:2x2x1
jax: 0.10.0
libtpu: 0.0.40
codegen_flags: <defaults>
</compile_context>

<pallas_src>
import functools

import jax
import jax.numpy as jnp
from jax.experimental import pallas as pl
from jax.experimental.pallas import tpu as pltpu


# ----------------------------- helpers --------------------------------------

def _full_spec(shape):
    """BlockSpec covering the whole array (single grid step)."""
    return pl.BlockSpec(shape, lambda i: (0,) * len(shape))


def _ln(x, gamma, beta, eps):
    """LayerNorm over the last dim (values, not refs)."""
    mean = jnp.mean(x, axis=-1, keepdims=True)
    xc = x - mean
    var = jnp.mean(xc * xc, axis=-1, keepdims=True)
    return xc * jax.lax.rsqrt(var + eps) * gamma + beta


# ----------------------------- Pallas kernels -------------------------------

def _linear_kernel(x_ref, w_ref, b_ref, o_ref):
    o_ref[...] = jnp.dot(x_ref[...], w_ref[...],
                         preferred_element_type=jnp.float32) + b_ref[...]


def pallas_linear(x, w, b):
    """x: (M, K) @ w: (K, N) + b: (N,) -> (M, N), fp32.  (patch embed only)"""
    M, K = x.shape
    _, N = w.shape
    return pl.pallas_call(
        _linear_kernel,
        out_shape=jax.ShapeDtypeStruct((M, N), jnp.float32),
        grid=(1,),
        in_specs=[_full_spec((M, K)), _full_spec((K, N)), _full_spec((1, N))],
        out_specs=_full_spec((M, N)),
        compiler_params=pltpu.CompilerParams(dimension_semantics=("arbitrary",)),
    )(x, w, b.reshape(1, N))


def _vit_block_kernel(x_ref, ln1_g_ref, ln1_b_ref, qkv_w_ref, qkv_b_ref,
                      proj_w_ref, proj_b_ref, ln2_g_ref, ln2_b_ref,
                      fc1_w_ref, fc1_b_ref, fc2_w_ref, fc2_b_ref, o_ref,
                      *, heads, eps):
    """Whole pre-norm ViT block (eval mode) in one kernel, resident in VMEM."""
    B, S, D = x_ref.shape
    Dh = D // heads
    scale = Dh ** -0.5

    # Load parameters once; reused across the (tiny, static) batch loop.
    ln1_g = ln1_g_ref[...]
    ln1_b = ln1_b_ref[...]
    qkv_w = qkv_w_ref[...]
    qkv_b = qkv_b_ref[...]
    proj_w = proj_w_ref[...]
    proj_b = proj_b_ref[...]
    ln2_g = ln2_g_ref[...]
    ln2_b = ln2_b_ref[...]
    fc1_w = fc1_w_ref[...]
    fc1_b = fc1_b_ref[...]
    fc2_w = fc2_w_ref[...]
    fc2_b = fc2_b_ref[...]

    for b in range(B):
        x_b = x_ref[b]                                        # (S, D)

        # --- LN1 fused directly into the QKV matmul input ---
        h = _ln(x_b, ln1_g, ln1_b, eps)
        qkv = jnp.dot(h, qkv_w, preferred_element_type=jnp.float32) + qkv_b

        # --- all heads in this same program (no (B, H) grid) ---
        head_outs = []
        for hh in range(heads):
            c0 = hh * Dh
            q_h = qkv[:, c0:c0 + Dh]
            k_h = qkv[:, D + c0:D + c0 + Dh]
            v_h = qkv[:, 2 * D + c0:2 * D + c0 + Dh]
            s = jax.lax.dot_general(
                q_h, k_h, (((1,), (1,)), ((), ())),
                preferred_element_type=jnp.float32) * scale
            s = s - jnp.max(s, axis=-1, keepdims=True)
            p = jnp.exp(s)
            p = p * pl.reciprocal(jnp.sum(p, axis=-1, keepdims=True),
                                  approx=True)
            head_outs.append(jnp.dot(p, v_h,
                                     preferred_element_type=jnp.float32))
        attn = jnp.concatenate(head_outs, axis=-1)            # (S, D)

        # --- projection + residual (folded into the same program) ---
        x1 = x_b + jnp.dot(attn, proj_w,
                           preferred_element_type=jnp.float32) + proj_b

        # --- LN2 -> MLP (fc1 + GELU, fc2) -> residual ---
        h2 = _ln(x1, ln2_g, ln2_b, eps)
        h2 = jnp.dot(h2, fc1_w, preferred_element_type=jnp.float32) + fc1_b
        # TODO(synk): torch nn.GELU uses exact erf; tanh approximation used here.
        h2 = jax.nn.gelu(h2, approximate=True)
        h2 = jnp.dot(h2, fc2_w, preferred_element_type=jnp.float32) + fc2_b

        o_ref[b] = x1 + h2


def fused_vit_block(x, p, num_heads, eps=1e-6):
    """x: (B, S, D) -> (B, S, D); entire ViT block in one pallas_call."""
    B, S, D = x.shape
    MLP = p["fc1_w"].shape[1]
    kern = functools.partial(_vit_block_kernel, heads=num_heads, eps=eps)
    return pl.pallas_call(
        kern,
        out_shape=jax.ShapeDtypeStruct((B, S, D), jnp.float32),
        grid=(1,),
        in_specs=[_full_spec((B, S, D)),
                  _full_spec((1, D)), _full_spec((1, D)),
                  _full_spec((D, 3 * D)), _full_spec((1, 3 * D)),
                  _full_spec((D, D)), _full_spec((1, D)),
                  _full_spec((1, D)), _full_spec((1, D)),
                  _full_spec((D, MLP)), _full_spec((1, MLP)),
                  _full_spec((MLP, D)), _full_spec((1, D))],
        out_specs=_full_spec((B, S, D)),
        compiler_params=pltpu.CompilerParams(dimension_semantics=("arbitrary",)),
    )(x,
      p["ln1_g"].reshape(1, D), p["ln1_b"].reshape(1, D),
      p["qkv_w"], p["qkv_b"].reshape(1, 3 * D),
      p["proj_w"], p["proj_b"].reshape(1, D),
      p["ln2_g"].reshape(1, D), p["ln2_b"].reshape(1, D),
      p["fc1_w"], p["fc1_b"].reshape(1, MLP),
      p["fc2_w"], p["fc2_b"].reshape(1, D))


def _query_match_kernel(cls_ref, g_ref, b_ref, key_ref, o_ref, *, eps):
    """Final LayerNorm of the cls token fused with 1 - cosine_similarity."""
    q = _ln(cls_ref[...], g_ref[...], b_ref[...], eps)        # (B, D)
    k = key_ref[...]                                          # (P, D)
    qn = jnp.maximum(jnp.sqrt(jnp.sum(q * q, axis=-1, keepdims=True)), 1e-8)
    kn = jnp.maximum(jnp.sqrt(jnp.sum(k * k, axis=-1, keepdims=True)), 1e-8)
    cos = jax.lax.dot_general(q / qn, k / kn, (((1,), (1,)), ((), ())),
                              preferred_element_type=jnp.float32)
    o_ref[...] = 1.0 - cos


def pallas_query_match(cls_tok, gamma, beta, key, eps=1e-6):
    B, D = cls_tok.shape
    P, _ = key.shape
    kern = functools.partial(_query_match_kernel, eps=eps)
    return pl.pallas_call(
        kern,
        out_shape=jax.ShapeDtypeStruct((B, P), jnp.float32),
        grid=(1,),
        in_specs=[_full_spec((B, D)), _full_spec((1, D)), _full_spec((1, D)),
                  _full_spec((P, D))],
        out_specs=_full_spec((B, P)),
        compiler_params=pltpu.CompilerParams(dimension_semantics=("arbitrary",)),
    )(cls_tok, gamma.reshape(1, D), beta.reshape(1, D), key)


def _cls_head_kernel(cls_ref, g_ref, b_ref, w_ref, hb_ref, o_ref, *, eps):
    """Final LayerNorm of the cls token fused with the classifier head."""
    h = _ln(cls_ref[...], g_ref[...], b_ref[...], eps)
    o_ref[...] = jnp.dot(h, w_ref[...],
                         preferred_element_type=jnp.float32) + hb_ref[...]


def pallas_cls_head(cls_tok, gamma, beta, w, b, eps=1e-6):
    B, D = cls_tok.shape
    _, C = w.shape
    kern = functools.partial(_cls_head_kernel, eps=eps)
    return pl.pallas_call(
        kern,
        out_shape=jax.ShapeDtypeStruct((B, C), jnp.float32),
        grid=(1,),
        in_specs=[_full_spec((B, D)), _full_spec((1, D)), _full_spec((1, D)),
                  _full_spec((D, C)), _full_spec((1, C))],
        out_specs=_full_spec((B, C)),
        compiler_params=pltpu.CompilerParams(dimension_semantics=("arbitrary",)),
    )(cls_tok, gamma.reshape(1, D), beta.reshape(1, D), w, b.reshape(1, C))


# --------------------------- model glue (plain JAX) -------------------------

CFG = dict(
    batch=2, in_chans=3, img=32, patch=16,      # -> 4 patches, 5 tokens
    dim=32, heads=2, mlp_hidden=64, depth=5, num_classes=10,
    pos_g=(0, 1), len_g=2,                      # g prompt positions / length
    pos_e=(2, 3, 4), len_e=3,                   # e prompt positions / length
    task_num=4,                                 # e_prompt pool size
)
CFG["g_length"] = len(CFG["pos_g"])
CFG["e_length"] = len(CFG["pos_e"])


def dualprompt_forward(params, inputs):
    cfg = CFG
    B, C, IMG = inputs.shape[0], inputs.shape[1], inputs.shape[2]
    P, D = cfg["patch"], cfg["dim"]
    Hn = IMG // P
    N = Hn * Hn

    # --- backbone.patch_embed (Conv2d stride=patch == patch matmul) ---
    patches = inputs.reshape(B, C, Hn, P, Hn, P)
    patches = jnp.transpose(patches, (0, 2, 4, 1, 3, 5)).reshape(B * N, C * P * P)
    x = pallas_linear(patches, params["patch_w"], params["patch_b"]).reshape(B, N, D)

    # --- cls token + pos embed (pos_drop is identity at eval) ---
    cls = jnp.broadcast_to(params["cls_token"], (B, 1, D))
    token_appended = jnp.concatenate([cls, x], axis=1)       # (B, N+1, D)
    x0 = token_appended + params["pos_embed"]                # (B, N+1, D)

    # --- frozen backbone pass -> query (torch.no_grad branch) ---
    q = x0
    for blk in params["blocks"]:
        q = fused_vit_block(q, blk, cfg["heads"])
    # query = backbone.norm(q)[:, 0] ; LN is per-token so only cls matters.
    # Fused: final LN(cls) + cosine prompt matching in one kernel.
    match = pallas_query_match(q[:, 0], params["norm_g"], params["norm_b"],
                               params["e_key"])              # (B, e_pool)

    # --- g_prompt: pool=1, take prompts[0] expanded over batch ---
    g_p = jnp.broadcast_to(params["g_prompts"][0],
                           (B,) + params["g_prompts"].shape[1:])   # (B, gL*lg, D)

    # --- e_prompt selection (Prompt.forward, selection_size=1, eval mode) ---
    topk = jnp.argmin(match, axis=-1)                        # smallest match
    e_s = jnp.take_along_axis(match, topk[:, None], axis=-1)  # (B, 1)
    e_p = params["e_prompts"][topk][:, None]                 # (B, 1, eL*le, D)
    # counter buffer side-effect of Prompt.forward (bincount over selections)
    counter = jnp.zeros((params["e_prompts"].shape[0],),
                        jnp.float32).at[topk].add(1.0)

    # --- prompt_tuning ---
    gL, lg = cfg["g_length"], cfg["len_g"]
    eL, le = cfg["e_length"], cfg["len_e"]
    pos0 = params["pos_embed"][:, :1, :]                     # (1, 1, D)
    g = g_p.reshape(B, gL, lg, D) + pos0[:, None]            # broadcast add
    e = e_p.reshape(B, eL, le, D) + pos0[:, None]

    xt = x0
    Ntok = xt.shape[1]
    for n in range(cfg["depth"]):
        if n in cfg["pos_g"]:
            xt = jnp.concatenate([xt, g[:, cfg["pos_g"].index(n)]], axis=1)
        if n in cfg["pos_e"]:
            xt = jnp.concatenate([xt, e[:, cfg["pos_e"].index(n)]], axis=1)
        xt = fused_vit_block(xt, params["blocks"][n], cfg["heads"])
        xt = xt[:, :Ntok, :]

    # --- final norm + head, fused (LN is per-token; head only needs cls) ---
    logits = pallas_cls_head(xt[:, 0], params["norm_g"], params["norm_b"],
                             params["head_w"], params["head_b"])
    similarity = jnp.mean(e_s)                               # self.similarity buffer
    return logits, similarity, counter


# ----------------------------- parameter init -------------------------------

def init_params(seed=0):
    cfg = CFG
    D, H, MLP, CLS = cfg["dim"], cfg["heads"], cfg["mlp_hidden"], cfg["num_classes"]
    patch_dim = cfg["in_chans"] * cfg["patch"] * cfg["patch"]
    n_tokens = (cfg["img"] // cfg["patch"]) ** 2 + 1

    key = jax.random.PRNGKey(seed)
    ks = iter(jax.random.split(key, 128))
    nrm = lambda shp, s=0.02: s * jax.random.normal(next(ks), shp, jnp.float32)
    uni = lambda shp: jax.random.uniform(next(ks), shp, jnp.float32, -1.0, 1.0)

    params = dict(
        patch_w=nrm((patch_dim, D)), patch_b=jnp.zeros((D,), jnp.float32),
        cls_token=nrm((1, 1, D)), pos_embed=nrm((1, n_tokens, D)),
        norm_g=jnp.ones((D,), jnp.float32), norm_b=jnp.zeros((D,), jnp.float32),
        head_w=nrm((D, CLS)), head_b=jnp.zeros((CLS,), jnp.float32),
        # Prompt modules: uniform(-1, 1) init as in the torch __init__
        g_prompts=uni((1, cfg["g_length"] * cfg["len_g"], D)),
        g_key=uni((1, D)),
        e_prompts=uni((cfg["task_num"], cfg["e_length"] * cfg["len_e"], D)),
        e_key=uni((cfg["task_num"], D)),
        blocks=[],
    )
    for _ in range(cfg["depth"]):
        params["blocks"].append(dict(
            ln1_g=jnp.ones((D,), jnp.float32), ln1_b=jnp.zeros((D,), jnp.float32),
            qkv_w=nrm((D, 3 * D)), qkv_b=jnp.zeros((3 * D,), jnp.float32),
            proj_w=nrm((D, D)), proj_b=jnp.zeros((D,), jnp.float32),
            ln2_g=jnp.ones((D,), jnp.float32), ln2_b=jnp.zeros((D,), jnp.float32),
            fc1_w=nrm((D, MLP)), fc1_b=jnp.zeros((MLP,), jnp.float32),
            fc2_w=nrm((MLP, D)), fc2_b=jnp.zeros((D,), jnp.float32),
        ))
    return params


# ---------------------------------- main -------------------------------------

if __name__ == "__main__":
    params = init_params(0)
    key = jax.random.PRNGKey(0)
    inputs = jax.random.normal(
        key, (CFG["batch"], CFG["in_chans"], CFG["img"], CFG["img"]), jnp.float32)

    fwd = jax.jit(dualprompt_forward)
    logits, similarity, counter = fwd(params, inputs)
    jax.block_until_ready((logits, similarity, counter))

    assert logits.shape == (CFG["batch"], CFG["num_classes"])
    assert similarity.shape == ()
    assert counter.shape == (CFG["task_num"],)
    assert jnp.all(jnp.isfinite(logits))
    print("KERNEL_OK")
</pallas_src>

<mosaic_0001>
module attributes {stable_mosaic.version = 11 : i64} {
  func.func @_linear_kernel(%arg0: i32, %arg1: memref<8x768xf32, #tpu.memory_space<vmem>>, %arg2: memref<768x32xf32, #tpu.memory_space<vmem>>, %arg3: memref<1x32xf32, #tpu.memory_space<vmem>>, %arg4: memref<8x32xf32, #tpu.memory_space<vmem>>) attributes {dimension_semantics = [#tpu.dimension_semantics<arbitrary>], iteration_bounds = array<i64: 1>, scalar_prefetch = 0 : i64, scratch_operands = 0 : i64, tpu.core_type = #tpu.core_type<tc>, window_params = [{pipeline_mode = #tpu.pipeline_mode<synchronous>, transform_indices = @transform_0, window_bounds = array<i64: 8, 768>}, {pipeline_mode = #tpu.pipeline_mode<synchronous>, transform_indices = @transform_1, window_bounds = array<i64: 768, 32>}, {pipeline_mode = #tpu.pipeline_mode<synchronous>, transform_indices = @transform_2, window_bounds = array<i64: 1, 32>}, {pipeline_mode = #tpu.pipeline_mode<synchronous>, transform_indices = @transform_3, window_bounds = array<i64: 8, 32>}]} {
    %c0 = arith.constant 0 : index
    %c0_0 = arith.constant 0 : index
    %0 = vector.load %arg1[%c0, %c0_0] : memref<8x768xf32, #tpu.memory_space<vmem>>, vector<8x768xf32>
    %c0_1 = arith.constant 0 : index
    %c0_2 = arith.constant 0 : index
    %1 = vector.load %arg2[%c0_1, %c0_2] : memref<768x32xf32, #tpu.memory_space<vmem>>, vector<768x32xf32>
    %cst = arith.constant dense<0.000000e+00> : vector<8x32xf32>
    %2 = tpu.matmul %0, %1, %cst {dimension_numbers = #tpu.dot_dimension_numbers<[1], [0], [0], [1], [0, 0, 1, 1], [], []>} : vector<8x768xf32>, vector<768x32xf32>, vector<8x32xf32> -> vector<8x32xf32>
    %c0_3 = arith.constant 0 : index
    %c0_4 = arith.constant 0 : index
    %3 = vector.load %arg3[%c0_3, %c0_4] : memref<1x32xf32, #tpu.memory_space<vmem>>, vector<1x32xf32>
    %4 = vector.broadcast %3 : vector<1x32xf32> to vector<8x32xf32>
    %5 = arith.addf %2, %4 : vector<8x32xf32>
    %c0_5 = arith.constant 0 : index
    %c0_6 = arith.constant 0 : index
    %6 = vector.load %arg4[%c0_5, %c0_6] : memref<8x32xf32, #tpu.memory_space<vmem>>, vector<8x32xf32>
    tpu.vector_store %arg4[%c0_5, %c0_6], %5 {strides = array<i32>} : memref<8x32xf32, #tpu.memory_space<vmem>>, vector<8x32xf32>,
    return
  }
  func.func @transform_0(%arg0: i32) -> (i32, i32) {
    %c0_i32 = arith.constant 0 : i32
    %c0_i32_0 = arith.constant 0 : i32
    %c0_i32_1 = arith.constant 0 : i32
    return %c0_i32, %c0_i32_0 : i32, i32
  }
  func.func @transform_1(%arg0: i32) -> (i32, i32) {
    %c0_i32 = arith.constant 0 : i32
    %c0_i32_0 = arith.constant 0 : i32
    %c0_i32_1 = arith.constant 0 : i32
    return %c0_i32, %c0_i32_0 : i32, i32
  }
  func.func @transform_2(%arg0: i32) -> (i32, i32) {
    %c0_i32 = arith.constant 0 : i32
    %c0_i32_0 = arith.constant 0 : i32
    %c0_i32_1 = arith.constant 0 : i32
    return %c0_i32, %c0_i32_0 : i32, i32
  }
  func.func @transform_3(%arg0: i32) -> (i32, i32) {
    %c0_i32 = arith.constant 0 : i32
    %c0_i32_0 = arith.constant 0 : i32
    %c0_i32_1 = arith.constant 0 : i32
    return %c0_i32, %c0_i32_0 : i32, i32
  }
}

module attributes {stable_mosaic.version = 11 : i64} {
  func.func @_vit_block_kernel(%arg0: i32, %arg1: memref<2x5x32xf32, #tpu.memory_space<vmem>>, %arg2: memref<1x32xf32, #tpu.memory_space<vmem>>, %arg3: memref<1x32xf32, #tpu.memory_space<vmem>>, %arg4: memref<32x96xf32, #tpu.memory_space<vmem>>, %arg5: memref<1x96xf32, #tpu.memory_space<vmem>>, %arg6: memref<32x32xf32, #tpu.memory_space<vmem>>, %arg7: memref<1x32xf32, #tpu.memory_space<vmem>>, %arg8: memref<1x32xf32, #tpu.memory_space<vmem>>, %arg9: memref<1x32xf32, #tpu.memory_space<vmem>>, %arg10: memref<32x64xf32, #tpu.memory_space<vmem>>, %arg11: memref<1x64xf32, #tpu.memory_space<vmem>>, %arg12: memref<64x32xf32, #tpu.memory_space<vmem>>, %arg13: memref<1x32xf32, #tpu.memory_space<vmem>>, %arg14: memref<2x5x32xf32, #tpu.memory_space<vmem>>) attributes {dimension_semantics = [#tpu.dimension_semantics<arbitrary>], iteration_bounds = array<i64: 1>, scalar_prefetch = 0 : i64, scratch_operands = 0 : i64, tpu.core_type = #tpu.core_type<tc>, window_params = [{pipeline_mode = #tpu.pipeline_mode<synchronous>, transform_indices = @transform_0, window_bounds = array<i64: 2, 5, 32>}, {pipeline_mode = #tpu.pipeline_mode<synchronous>, transform_indices = @transform_1, window_bounds = array<i64: 1, 32>}, {pipeline_mode = #tpu.pipeline_mode<synchronous>, transform_indices = @transform_2, window_bounds = array<i64: 1, 32>}, {pipeline_mode = #tpu.pipeline_mode<synchronous>, transform_indices = @transform_3, window_bounds = array<i64: 32, 96>}, {pipeline_mode = #tpu.pipeline_mode<synchronous>, transform_indices = @transform_4, window_bounds = array<i64: 1, 96>}, {pipeline_mode = #tpu.pipeline_mode<synchronous>, transform_indices = @transform_5, window_bounds = array<i64: 32, 32>}, {pipeline_mode = #tpu.pipeline_mode<synchronous>, transform_indices = @transform_6, window_bounds = array<i64: 1, 32>}, {pipeline_mode = #tpu.pipeline_mode<synchronous>, transform_indices = @transform_7, window_bounds = array<i64: 1, 32>}, {pipeline_mode = #tpu.pipeline_mode<synchronous>, transform_indices = @transform_8, window_bounds = array<i64: 1, 32>}, {pipeline_mode = #tpu.pipeline_mode<synchronous>, transform_indices = @transform_9, window_bounds = array<i64: 32, 64>}, {pipeline_mode = #tpu.pipeline_mode<synchronous>, transform_indices = @transform_10, window_bounds = array<i64: 1, 64>}, {pipeline_mode = #tpu.pipeline_mode<synchronous>, transform_indices = @transform_11, window_bounds = array<i64: 64, 32>}, {pipeline_mode = #tpu.pipeline_mode<synchronous>, transform_indices = @transform_12, window_bounds = array<i64: 1, 32>}, {pipeline_mode = #tpu.pipeline_mode<synchronous>, transform_indices = @transform_13, window_bounds = array<i64: 2, 5, 32>}]} {
    %c0 = arith.constant 0 : index
    %c0_0 = arith.constant 0 : index
    %0 = vector.load %arg2[%c0, %c0_0] : memref<1x32xf32, #tpu.memory_space<vmem>>, vector<1x32xf32>
    %c0_1 = arith.constant 0 : index
    %c0_2 = arith.constant 0 : index
    %1 = vector.load %arg3[%c0_1, %c0_2] : memref<1x32xf32, #tpu.memory_space<vmem>>, vector<1x32xf32>
    %c0_3 = arith.constant 0 : index
    %c0_4 = arith.constant 0 : index
    %2 = vector.load %arg4[%c0_3, %c0_4] : memref<32x96xf32, #tpu.memory_space<vmem>>, vector<32x96xf32>
    %c0_5 = arith.constant 0 : index
    %c0_6 = arith.constant 0 : index
    %3 = vector.load %arg5[%c0_5, %c0_6] : memref<1x96xf32, #tpu.memory_space<vmem>>, vector<1x96xf32>
    %c0_7 = arith.constant 0 : index
    %c0_8 = arith.constant 0 : index
    %4 = vector.load %arg6[%c0_7, %c0_8] : memref<32x32xf32, #tpu.memory_space<vmem>>, vector<32x32xf32>
    %c0_9 = arith.constant 0 : index
    %c0_10 = arith.constant 0 : index
    %5 = vector.load %arg7[%c0_9, %c0_10] : memref<1x32xf32, #tpu.memory_space<vmem>>, vector<1x32xf32>
    %c0_11 = arith.constant 0 : index
    %c0_12 = arith.constant 0 : index
    %6 = vector.load %arg8[%c0_11, %c0_12] : memref<1x32xf32, #tpu.memory_space<vmem>>, vector<1x32xf32>
    %c0_13 = arith.constant 0 : index
    %c0_14 = arith.constant 0 : index
    %7 = vector.load %arg9[%c0_13, %c0_14] : memref<1x32xf32, #tpu.memory_space<vmem>>, vector<1x32xf32>
    %c0_15 = arith.constant 0 : index
    %c0_16 = arith.constant 0 : index
    %8 = vector.load %arg10[%c0_15, %c0_16] : memref<32x64xf32, #tpu.memory_space<vmem>>, vector<32x64xf32>
    %c0_17 = arith.constant 0 : index
    %c0_18 = arith.constant 0 : index
    %9 = vector.load %arg11[%c0_17, %c0_18] : memref<1x64xf32, #tpu.memory_space<vmem>>, vector<1x64xf32>
    %c0_19 = arith.constant 0 : index
    %c0_20 = arith.constant 0 : index
    %10 = vector.load %arg12[%c0_19, %c0_20] : memref<64x32xf32, #tpu.memory_space<vmem>>, vector<64x32xf32>
    %c0_21 = arith.constant 0 : index
    %c0_22 = arith.constant 0 : index
    %11 = vector.load %arg13[%c0_21, %c0_22] : memref<1x32xf32, #tpu.memory_space<vmem>>, vector<1x32xf32>
    %c0_23 = arith.constant 0 : index
    %c0_24 = arith.constant 0 : index
    %c0_25 = arith.constant 0 : index
    %12 = vector.load %arg1[%c0_23, %c0_24, %c0_25] : memref<2x5x32xf32, #tpu.memory_space<vmem>>, vector<1x5x32xf32>
    %13 = vector.shape_cast %12 : vector<1x5x32xf32> to vector<5x32xf32>
    %cst = arith.constant dense<0.000000e+00> : vector<5xf32>
    %14 = vector.multi_reduction <add>, %13, %cst [1] : vector<5x32xf32> to vector<5xf32>
    %15 = vector.shape_cast %14 : vector<5xf32> to vector<5x1xf32>
    %cst_26 = arith.constant 3.200000e+01 : f32
    %16 = vector.broadcast %cst_26 : f32 to vector<5x1xf32>
    %17 = arith.divf %15, %16 : vector<5x1xf32>
    %18 = vector.broadcast %17 : vector<5x1xf32> to vector<5x32xf32>
    %19 = arith.subf %13, %18 : vector<5x32xf32>
    %20 = arith.mulf %19, %19 : vector<5x32xf32>
    %cst_27 = arith.constant dense<0.000000e+00> : vector<5xf32>
    %21 = vector.multi_reduction <add>, %20, %cst_27 [1] : vector<5x32xf32> to vector<5xf32>
    %22 = vector.shape_cast %21 : vector<5xf32> to vector<5x1xf32>
    %cst_28 = arith.constant 3.200000e+01 : f32
    %23 = vector.broadcast %cst_28 : f32 to vector<5x1xf32>
    %24 = arith.divf %22, %23 : vector<5x1xf32>
    %cst_29 = arith.constant 9.99999997E-7 : f32
    %25 = vector.broadcast %cst_29 : f32 to vector<5x1xf32>
    %26 = arith.addf %24, %25 : vector<5x1xf32>
    %27 = math.rsqrt %26 : vector<5x1xf32>
    %28 = vector.broadcast %27 : vector<5x1xf32> to vector<5x32xf32>
    %29 = arith.mulf %19, %28 : vector<5x32xf32>
    %30 = vector.broadcast %0 : vector<1x32xf32> to vector<5x32xf32>
    %31 = arith.mulf %29, %30 : vector<5x32xf32>
    %32 = vector.broadcast %1 : vector<1x32xf32> to vector<5x32xf32>
    %33 = arith.addf %31, %32 : vector<5x32xf32>
    %cst_30 = arith.constant dense<0.000000e+00> : vector<5x96xf32>
    %34 = tpu.matmul %33, %2, %cst_30 {dimension_numbers = #tpu.dot_dimension_numbers<[1], [0], [0], [1], [0, 0, 1, 1], [], []>} : vector<5x32xf32>, vector<32x96xf32>, vector<5x96xf32> -> vector<5x96xf32>
    %35 = vector.broadcast %3 : vector<1x96xf32> to vector<5x96xf32>
    %36 = arith.addf %34, %35 : vector<5x96xf32>
    %37 = vector.extract_strided_slice %36 {offsets = [0, 0], sizes = [5, 16], strides = [1, 1]} : vector<5x96xf32> to vector<5x16xf32>
    %38 = vector.extract_strided_slice %36 {offsets = [0, 32], sizes = [5, 16], strides = [1, 1]} : vector<5x96xf32> to vector<5x16xf32>
    %39 = vector.extract_strided_slice %36 {offsets = [0, 64], sizes = [5, 16], strides = [1, 1]} : vector<5x96xf32> to vector<5x16xf32>
    %cst_31 = arith.constant dense<0.000000e+00> : vector<5x5xf32>
    %40 = tpu.matmul %37, %38, %cst_31 {dimension_numbers = #tpu.dot_dimension_numbers<[1], [1], [0], [0], [0, 0, 1, 0], [], []>} : vector<5x16xf32>, vector<5x16xf32>, vector<5x5xf32> -> vector<5x5xf32>
    %cst_32 = arith.constant 2.500000e-01 : f32
    %41 = vector.broadcast %cst_32 : f32 to vector<5x5xf32>
    %42 = arith.mulf %40, %41 : vector<5x5xf32>
    %cst_33 = arith.constant dense<0xFF800000> : vector<5xf32>
    %43 = vector.multi_reduction <maximumf>, %42, %cst_33 [1] : vector<5x5xf32> to vector<5xf32>
    %44 = vector.shape_cast %43 : vector<5xf32> to vector<5x1xf32>
    %45 = vector.broadcast %44 : vector<5x1xf32> to vector<5x5xf32>
    %46 = arith.subf %42, %45 : vector<5x5xf32>
    %47 = math.exp %46 : vector<5x5xf32>
    %cst_34 = arith.constant dense<0.000000e+00> : vector<5xf32>
    %48 = vector.multi_reduction <add>, %47, %cst_34 [1] : vector<5x5xf32> to vector<5xf32>
    %49 = vector.shape_cast %48 : vector<5xf32> to vector<5x1xf32>
    %50 = tpu.reciprocal %49 {approx = true} : vector<5x1xf32> -> vector<5x1xf32>
    %51 = vector.broadcast %50 : vector<5x1xf32> to vector<5x5xf32>
    %52 = arith.mulf %47, %51 : vector<5x5xf32>
    %cst_35 = arith.constant dense<0.000000e+00> : vector<5x16xf32>
    %53 = tpu.matmul %52, %39, %cst_35 {dimension_numbers = #tpu.dot_dimension_numbers<[1], [0], [0], [1], [0, 0, 1, 1], [], []>} : vector<5x5xf32>, vector<5x16xf32>, vector<5x16xf32> -> vector<5x16xf32>
    %54 = vector.extract_strided_slice %36 {offsets = [0, 16], sizes = [5, 16], strides = [1, 1]} : vector<5x96xf32> to vector<5x16xf32>
    %55 = vector.extract_strided_slice %36 {offsets = [0, 48], sizes = [5, 16], strides = [1, 1]} : vector<5x96xf32> to vector<5x16xf32>
    %56 = vector.extract_strided_slice %36 {offsets = [0, 80], sizes = [5, 16], strides = [1, 1]} : vector<5x96xf32> to vector<5x16xf32>
    %cst_36 = arith.constant dense<0.000000e+00> : vector<5x5xf32>
    %57 = tpu.matmul %54, %55, %cst_36 {dimension_numbers = #tpu.dot_dimension_numbers<[1], [1], [0], [0], [0, 0, 1, 0], [], []>} : vector<5x16xf32>, vector<5x16xf32>, vector<5x5xf32> -> vector<5x5xf32>
    %cst_37 = arith.constant 2.500000e-01 : f32
    %58 = vector.broadcast %cst_37 : f32 to vector<5x5xf32>
    %59 = arith.mulf %57, %58 : vector<5x5xf32>
    %cst_38 = arith.constant dense<0xFF800000> : vector<5xf32>
    %60 = vector.multi_reduction <maximumf>, %59, %cst_38 [1] : vector<5x5xf32> to vector<5xf32>
    %61 = vector.shape_cast %60 : vector<5xf32> to vector<5x1xf32>
    %62 = vector.broadcast %61 : vector<5x1xf32> to vector<5x5xf32>
    %63 = arith.subf %59, %62 : vector<5x5xf32>
    %64 = math.exp %63 : vector<5x5xf32>
    %cst_39 = arith.constant dense<0.000000e+00> : vector<5xf32>
    %65 = vector.multi_reduction <add>, %64, %cst_39 [1] : vector<5x5xf32> to vector<5xf32>
    %66 = vector.shape_cast %65 : vector<5xf32> to vector<5x1xf32>
    %67 = tpu.reciprocal %66 {approx = true} : vector<5x1xf32> -> vector<5x1xf32>
    %68 = vector.broadcast %67 : vector<5x1xf32> to vector<5x5xf32>
    %69 = arith.mulf %64, %68 : vector<5x5xf32>
    %cst_40 = arith.constant dense<0.000000e+00> : vector<5x16xf32>
    %70 = tpu.matmul %69, %56, %cst_40 {dimension_numbers = #tpu.dot_dimension_numbers<[1], [0], [0], [1], [0, 0, 1, 1], [], []>} : vector<5x5xf32>, vector<5x16xf32>, vector<5x16xf32> -> vector<5x16xf32>
    %71 = tpu.concatenate %53, %70 in 1 : vector<5x16xf32>, vector<5x16xf32> -> vector<5x32xf32>
    %cst_41 = arith.constant dense<0.000000e+00> : vector<5x32xf32>
    %72 = tpu.matmul %71, %4, %cst_41 {dimension_numbers = #tpu.dot_dimension_numbers<[1], [0], [0], [1], [0, 0, 1, 1], [], []>} : vector<5x32xf32>, vector<32x32xf32>, vector<5x32xf32> -> vector<5x32xf32>
    %73 = arith.addf %13, %72 : vector<5x32xf32>
    %74 = vector.broadcast %5 : vector<1x32xf32> to vector<5x32xf32>
    %75 = arith.addf %73, %74 : vector<5x32xf32>
    %cst_42 = arith.constant dense<0.000000e+00> : vector<5xf32>
    %76 = vector.multi_reduction <add>, %75, %cst_42 [1] : vector<5x32xf32> to vector<5xf32>
    %77 = vector.shape_cast %76 : vector<5xf32> to vector<5x1xf32>
    %cst_43 = arith.constant 3.200000e+01 : f32
    %78 = vector.broadcast %cst_43 : f32 to vector<5x1xf32>
    %79 = arith.divf %77, %78 : vector<5x1xf32>
    %80 = vector.broadcast %79 : vector<5x1xf32> to vector<5x32xf32>
    %81 = arith.subf %75, %80 : vector<5x32xf32>
    %82 = arith.mulf %81, %81 : vector<5x32xf32>
    %cst_44 = arith.constant dense<0.000000e+00> : vector<5xf32>
    %83 = vector.multi_reduction <add>, %82, %cst_44 [1] : vector<5x32xf32> to vector<5xf32>
    %84 = vector.shape_cast %83 : vector<5xf32> to vector<5x1xf32>
    %cst_45 = arith.constant 3.200000e+01 : f32
    %85 = vector.broadcast %cst_45 : f32 to vector<5x1xf32>
    %86 = arith.divf %84, %85 : vector<5x1xf32>
    %cst_46 = arith.constant 9.99999997E-7 : f32
    %87 = vector.broadcast %cst_46 : f32 to vector<5x1xf32>
    %88 = arith.addf %86, %87 : vector<5x1xf32>
    %89 = math.rsqrt %88 : vector<5x1xf32>
    %90 = vector.broadcast %89 : vector<5x1xf32> to vector<5x32xf32>
    %91 = arith.mulf %81, %90 : vector<5x32xf32>
    %92 = vector.broadcast %6 : vector<1x32xf32> to vector<5x32xf32>
    %93 = arith.mulf %91, %92 : vector<5x32xf32>
    %94 = vector.broadcast %7 : vector<1x32xf32> to vector<5x32xf32>
    %95 = arith.addf %93, %94 : vector<5x32xf32>
    %cst_47 = arith.constant dense<0.000000e+00> : vector<5x64xf32>
    %96 = tpu.matmul %95, %8, %cst_47 {dimension_numbers = #tpu.dot_dimension_numbers<[1], [0], [0], [1], [0, 0, 1, 1], [], []>} : vector<5x32xf32>, vector<32x64xf32>, vector<5x64xf32> -> vector<5x64xf32>
    %97 = vector.broadcast %9 : vector<1x64xf32> to vector<5x64xf32>
    %98 = arith.addf %96, %97 : vector<5x64xf32>
    %99 = arith.mulf %98, %98 : vector<5x64xf32>
    %100 = arith.mulf %98, %99 : vector<5x64xf32>
    %cst_48 = arith.constant 4.471500e-02 : f32
    %101 = vector.broadcast %cst_48 : f32 to vector<5x64xf32>
    %102 = arith.mulf %101, %100 : vector<5x64xf32>
    %103 = arith.addf %98, %102 : vector<5x64xf32>
    %cst_49 = arith.constant 0.797884583 : f32
    %104 = vector.broadcast %cst_49 : f32 to vector<5x64xf32>
    %105 = arith.mulf %104, %103 : vector<5x64xf32>
    %106 = math.tanh %105 : vector<5x64xf32>
    %cst_50 = arith.constant 1.000000e+00 : f32
    %107 = vector.broadcast %cst_50 : f32 to vector<5x64xf32>
    %108 = arith.addf %107, %106 : vector<5x64xf32>
    %cst_51 = arith.constant 5.000000e-01 : f32
    %109 = vector.broadcast %cst_51 : f32 to vector<5x64xf32>
    %110 = arith.mulf %109, %108 : vector<5x64xf32>
    %111 = arith.mulf %98, %110 : vector<5x64xf32>
    %cst_52 = arith.constant dense<0.000000e+00> : vector<5x32xf32>
    %112 = tpu.matmul %111, %10, %cst_52 {dimension_numbers = #tpu.dot_dimension_numbers<[1], [0], [0], [1], [0, 0, 1, 1], [], []>} : vector<5x64xf32>, vector<64x32xf32>, vector<5x32xf32> -> vector<5x32xf32>
    %113 = vector.broadcast %11 : vector<1x32xf32> to vector<5x32xf32>
    %114 = arith.addf %112, %113 : vector<5x32xf32>
    %115 = arith.addf %75, %114 : vector<5x32xf32>
    %c0_53 = arith.constant 0 : index
    %c0_54 = arith.constant 0 : index
    %c0_55 = arith.constant 0 : index
    %116 = vector.load %arg14[%c0_53, %c0_54, %c0_55] : memref<2x5x32xf32, #tpu.memory_space<vmem>>, vector<1x5x32xf32>
    %117 = vector.shape_cast %116 : vector<1x5x32xf32> to vector<5x32xf32>
    %118 = vector.shape_cast %115 : vector<5x32xf32> to vector<1x5x32xf32>
    tpu.vector_store %arg14[%c0_53, %c0_54, %c0_55], %118 {strides = array<i32>} : memref<2x5x32xf32, #tpu.memory_space<vmem>>, vector<1x5x32xf32>,
    %c1 = arith.constant 1 : index
    %c0_56 = arith.constant 0 : index
    %c0_57 = arith.constant 0 : index
    %119 = vector.load %arg1[%c1, %c0_56, %c0_57] : memref<2x5x32xf32, #tpu.memory_space<vmem>>, vector<1x5x32xf32>
    %120 = vector.shape_cast %119 : vector<1x5x32xf32> to vector<5x32xf32>
    %cst_58 = arith.constant dense<0.000000e+00> : vector<5xf32>
    %121 = vector.multi_reduction <add>, %120, %cst_58 [1] : vector<5x32xf32> to vector<5xf32>
    %122 = vector.shape_cast %121 : vector<5xf32> to vector<5x1xf32>
    %cst_59 = arith.constant 3.200000e+01 : f32
    %123 = vector.broadcast %cst_59 : f32 to vector<5x1xf32>
    %124 = arith.divf %122, %123 : vector<5x1xf32>
    %125 = vector.broadcast %124 : vector<5x1xf32> to vector<5x32xf32>
    %126 = arith.subf %120, %125 : vector<5x32xf32>
    %127 = arith.mulf %126, %126 : vector<5x32xf32>
    %cst_60 = arith.constant dense<0.000000e+00> : vector<5xf32>
    %128 = vector.multi_reduction <add>, %127, %cst_60 [1] : vector<5x32xf32> to vector<5xf32>
    %129 = vector.shape_cast %128 : vector<5xf32> to vector<5x1xf32>
    %cst_61 = arith.constant 3.200000e+01 : f32
    %130 = vector.broadcast %cst_61 : f32 to vector<5x1xf32>
    %131 = arith.divf %129, %130 : vector<5x1xf32>
    %cst_62 = arith.constant 9.99999997E-7 : f32
    %132 = vector.broadcast %cst_62 : f32 to vector<5x1xf32>
    %133 = arith.addf %131, %132 : vector<5x1xf32>
    %134 = math.rsqrt %133 : vector<5x1xf32>
    %135 = vector.broadcast %134 : vector<5x1xf32> to vector<5x32xf32>
    %136 = arith.mulf %126, %135 : vector<5x32xf32>
    %137 = vector.broadcast %0 : vector<1x32xf32> to vector<5x32xf32>
    %138 = arith.mulf %136, %137 : vector<5x32xf32>
    %139 = vector.broadcast %1 : vector<1x32xf32> to vector<5x32xf32>
    %140 = arith.addf %138, %139 : vector<5x32xf32>
    %cst_63 = arith.constant dense<0.000000e+00> : vector<5x96xf32>
    %141 = tpu.matmul %140, %2, %cst_63 {dimension_numbers = #tpu.dot_dimension_numbers<[1], [0], [0], [1], [0, 0, 1, 1], [], []>} : vector<5x32xf32>, vector<32x96xf32>, vector<5x96xf32> -> vector<5x96xf32>
    %142 = vector.broadcast %3 : vector<1x96xf32> to vector<5x96xf32>
    %143 = arith.addf %141, %142 : vector<5x96xf32>
    %144 = vector.extract_strided_slice %143 {offsets = [0, 0], sizes = [5, 16], strides = [1, 1]} : vector<5x96xf32> to vector<5x16xf32>
    %145 = vector.extract_strided_slice %143 {offsets = [0, 32], sizes = [5, 16], strides = [1, 1]} : vector<5x96xf32> to vector<5x16xf32>
    %146 = vector.extract_strided_slice %143 {offsets = [0, 64], sizes = [5, 16], strides = [1, 1]} : vector<5x96xf32> to vector<5x16xf32>
    %cst_64 = arith.constant dense<0.000000e+00> : vector<5x5xf32>
    %147 = tpu.matmul %144, %145, %cst_64 {dimension_numbers = #tpu.dot_dimension_numbers<[1], [1], [0], [0], [0, 0, 1, 0], [], []>} : vector<5x16xf32>, vector<5x16xf32>, vector<5x5xf32> -> vector<5x5xf32>
    %cst_65 = arith.constant 2.500000e-01 : f32
    %148 = vector.broadcast %cst_65 : f32 to vector<5x5xf32>
    %149 = arith.mulf %147, %148 : vector<5x5xf32>
    %cst_66 = arith.constant dense<0xFF800000> : vector<5xf32>
    %150 = vector.multi_reduction <maximumf>, %149, %cst_66 [1] : vector<5x5xf32> to vector<5xf32>
    %151 = vector.shape_cast %150 : vector<5xf32> to vector<5x1xf32>
    %152 = vector.broadcast %151 : vector<5x1xf32> to vector<5x5xf32>
    %153 = arith.subf %149, %152 : vector<5x5xf32>
    %154 = math.exp %153 : vector<5x5xf32>
    %cst_67 = arith.constant dense<0.000000e+00> : vector<5xf32>
    %155 = vector.multi_reduction <add>, %154, %cst_67 [1] : vector<5x5xf32> to vector<5xf32>
    %156 = vector.shape_cast %155 : vector<5xf32> to vector<5x1xf32>
    %157 = tpu.reciprocal %156 {approx = true} : vector<5x1xf32> -> vector<5x1xf32>
    %158 = vector.broadcast %157 : vector<5x1xf32> to vector<5x5xf32>
    %159 = arith.mulf %154, %158 : vector<5x5xf32>
    %cst_68 = arith.constant dense<0.000000e+00> : vector<5x16xf32>
    %160 = tpu.matmul %159, %146, %cst_68 {dimension_numbers = #tpu.dot_dimension_numbers<[1], [0], [0], [1], [0, 0, 1, 1], [], []>} : vector<5x5xf32>, vector<5x16xf32>, vector<5x16xf32> -> vector<5x16xf32>
    %161 = vector.extract_strided_slice %143 {offsets = [0, 16], sizes = [5, 16], strides = [1, 1]} : vector<5x96xf32> to vector<5x16xf32>
    %162 = vector.extract_strided_slice %143 {offsets = [0, 48], sizes = [5, 16], strides = [1, 1]} : vector<5x96xf32> to vector<5x16xf32>
    %163 = vector.extract_strided_slice %143 {offsets = [0, 80], sizes = [5, 16], strides = [1, 1]} : vector<5x96xf32> to vector<5x16xf32>
    %cst_69 = arith.constant dense<0.000000e+00> : vector<5x5xf32>
    %164 = tpu.matmul %161, %162, %cst_69 {dimension_numbers = #tpu.dot_dimension_numbers<[1], [1], [0], [0], [0, 0, 1, 0], [], []>} : vector<5x16xf32>, vector<5x16xf32>, vector<5x5xf32> -> vector<5x5xf32>
    %cst_70 = arith.constant 2.500000e-01 : f32
    %165 = vector.broadcast %cst_70 : f32 to vector<5x5xf32>
    %166 = arith.mulf %164, %165 : vector<5x5xf32>
    %cst_71 = arith.constant dense<0xFF800000> : vector<5xf32>
    %167 = vector.multi_reduction <maximumf>, %166, %cst_71 [1] : vector<5x5xf32> to vector<5xf32>
    %168 = vector.shape_cast %167 : vector<5xf32> to vector<5x1xf32>
    %169 = vector.broadcast %168 : vector<5x1xf32> to vector<5x5xf32>
    %170 = arith.subf %166, %169 : vector<5x5xf32>
    %171 = math.exp %170 : vector<5x5xf32>
    %cst_72 = arith.constant dense<0.000000e+00> : vector<5xf32>
    %172 = vector.multi_reduction <add>, %171, %cst_72 [1] : vector<5x5xf32> to vector<5xf32>
    %173 = vector.shape_cast %172 : vector<5xf32> to vector<5x1xf32>
    %174 = tpu.reciprocal %173 {approx = true} : vector<5x1xf32> -> vector<5x1xf32>
    %175 = vector.broadcast %174 : vector<5x1xf32> to vector<5x5xf32>
    %176 = arith.mulf %171, %175 : vector<5x5xf32>
    %cst_73 = arith.constant dense<0.000000e+00> : vector<5x16xf32>
    %177 = tpu.matmul %176, %163, %cst_73 {dimension_numbers = #tpu.dot_dimension_numbers<[1], [0], [0], [1], [0, 0, 1, 1], [], []>} : vector<5x5xf32>, vector<5x16xf32>, vector<5x16xf32> -> vector<5x16xf32>
    %178 = tpu.concatenate %160, %177 in 1 : vector<5x16xf32>, vector<5x16xf32> -> vector<5x32xf32>
    %cst_74 = arith.constant dense<0.000000e+00> : vector<5x32xf32>
    %179 = tpu.matmul %178, %4, %cst_74 {dimension_numbers = #tpu.dot_dimension_numbers<[1], [0], [0], [1], [0, 0, 1, 1], [], []>} : vector<5x32xf32>, vector<32x32xf32>, vector<5x32xf32> -> vector<5x32xf32>
    %180 = arith.addf %120, %179 : vector<5x32xf32>
    %181 = vector.broadcast %5 : vector<1x32xf32> to vector<5x32xf32>
    %182 = arith.addf %180, %181 : vector<5x32xf32>
    %cst_75 = arith.constant dense<0.000000e+00> : vector<5xf32>
    %183 = vector.multi_reduction <add>, %182, %cst_75 [1] : vector<5x32xf32> to vector<5xf32>
    %184 = vector.shape_cast %183 : vector<5xf32> to vector<5x1xf32>
    %cst_76 = arith.constant 3.200000e+01 : f32
    %185 = vector.broadcast %cst_76 : f32 to vector<5x1xf32>
    %186 = arith.divf %184, %185 : vector<5x1xf32>
    %187 = vector.broadcast %186 : vector<5x1xf32> to vector<5x32xf32>
    %188 = arith.subf %182, %187 : vector<5x32xf32>
    %189 = arith.mulf %188, %188 : vector<5x32xf32>
    %cst_77 = arith.constant dense<0.000000e+00> : vector<5xf32>
    %190 = vector.multi_reduction <add>, %189, %cst_77 [1] : vector<5x32xf32> to vector<5xf32>
    %191 = vector.shape_cast %190 : vector<5xf32> to vector<5x1xf32>
    %cst_78 = arith.constant 3.200000e+01 : f32
    %192 = vector.broadcast %cst_78 : f32 to vector<5x1xf32>
    %193 = arith.divf %191, %192 : vector<5x1xf32>
    %cst_79 = arith.constant 9.99999997E-7 : f32
    %194 = vector.broadcast %cst_79 : f32 to vector<5x1xf32>
    %195 = arith.addf %193, %194 : vector<5x1xf32>
    %196 = math.rsqrt %195 : vector<5x1xf32>
    %197 = vector.broadcast %196 : vector<5x1xf32> to vector<5x32xf32>
    %198 = arith.mulf %188, %197 : vector<5x32xf32>
    %199 = vector.broadcast %6 : vector<1x32xf32> to vector<5x32xf32>
    %200 = arith.mulf %198, %199 : vector<5x32xf32>
    %201 = vector.broadcast %7 : vector<1x32xf32> to vector<5x32xf32>
    %202 = arith.addf %200, %201 : vector<5x32xf32>
    %cst_80 = arith.constant dense<0.000000e+00> : vector<5x64xf32>
    %203 = tpu.matmul %202, %8, %cst_80 {dimension_numbers = #tpu.dot_dimension_numbers<[1], [0], [0], [1], [0, 0, 1, 1], [], []>} : vector<5x32xf32>, vector<32x64xf32>, vector<5x64xf32> -> vector<5x64xf32>
    %204 = vector.broadcast %9 : vector<1x64xf32> to vector<5x64xf32>
    %205 = arith.addf %203, %204 : vector<5x64xf32>
    %206 = arith.mulf %205, %205 : vector<5x64xf32>
    %207 = arith.mulf %205, %206 : vector<5x64xf32>
    %cst_81 = arith.constant 4.471500e-02 : f32
    %208 = vector.broadcast %cst_81 : f32 to vector<5x64xf32>
    %209 = arith.mulf %208, %207 : vector<5x64xf32>
    %210 = arith.addf %205, %209 : vector<5x64xf32>
    %cst_82 = arith.constant 0.797884583 : f32
    %211 = vector.broadcast %cst_82 : f32 to vector<5x64xf32>
    %212 = arith.mulf %211, %210 : vector<5x64xf32>
    %213 = math.tanh %212 : vector<5x64xf32>
    %cst_83 = arith.constant 1.000000e+00 : f32
    %214 = vector.broadcast %cst_83 : f32 to vector<5x64xf32>
    %215 = arith.addf %214, %213 : vector<5x64xf32>
    %cst_84 = arith.constant 5.000000e-01 : f32
    %216 = vector.broadcast %cst_84 : f32 to vector<5x64xf32>
    %217 = arith.mulf %216, %215 : vector<5x64xf32>
    %218 = arith.mulf %205, %217 : vector<5x64xf32>
    %cst_85 = arith.constant dense<0.000000e+00> : vector<5x32xf32>
    %219 = tpu.matmul %218, %10, %cst_85 {dimension_numbers = #tpu.dot_dimension_numbers<[1], [0], [0], [1], [0, 0, 1, 1], [], []>} : vector<5x64xf32>, vector<64x32xf32>, vector<5x32xf32> -> vector<5x32xf32>
    %220 = vector.broadcast %11 : vector<1x32xf32> to vector<5x32xf32>
    %221 = arith.addf %219, %220 : vector<5x32xf32>
    %222 = arith.addf %182, %221 : vector<5x32xf32>
    %c1_86 = arith.constant 1 : index
    %c0_87 = arith.constant 0 : index
    %c0_88 = arith.constant 0 : index
    %223 = vector.load %arg14[%c1_86, %c0_87, %c0_88] : memref<2x5x32xf32, #tpu.memory_space<vmem>>, vector<1x5x32xf32>
    %224 = vector.shape_cast %223 : vector<1x5x32xf32> to vector<5x32xf32>
    %225 = vector.shape_cast %222 : vector<5x32xf32> to vector<1x5x32xf32>
    tpu.vector_store %arg14[%c1_86, %c0_87, %c0_88], %225 {strides = array<i32>} : memref<2x5x32xf32, #tpu.memory_space<vmem>>, vector<1x5x32xf32>,
    return
  }
  func.func @transform_0(%arg0: i32) -> (i32, i32, i32) {
    %c0_i32 = arith.constant 0 : i32
    %c0_i32_0 = arith.constant 0 : i32
    %c0_i32_1 = arith.constant 0 : i32
    %c0_i32_2 = arith.constant 0 : i32
    return %c0_i32, %c0_i32_0, %c0_i32_1 : i32, i32, i32
  }
  func.func @transform_1(%arg0: i32) -> (i32, i32) {
    %c0_i32 = arith.constant 0 : i32
    %c0_i32_0 = arith.constant 0 : i32
    %c0_i32_1 = arith.constant 0 : i32
    return %c0_i32, %c0_i32_0 : i32, i32
  }
  func.func @transform_2(%arg0: i32) -> (i32, i32) {
    %c0_i32 = arith.constant 0 : i32
    %c0_i32_0 = arith.constant 0 : i32
    %c0_i32_1 = arith.constant 0 : i32
    return %c0_i32, %c0_i32_0 : i32, i32
  }
  func.func @transform_3(%arg0: i32) -> (i32, i32) {
    %c0_i32 = arith.constant 0 : i32
    %c0_i32_0 = arith.constant 0 : i32
    %c0_i32_1 = arith.constant 0 : i32
    return %c0_i32, %c0_i32_0 : i32, i32
  }
  func.func @transform_4(%arg0: i32) -> (i32, i32) {
    %c0_i32 = arith.constant 0 : i32
    %c0_i32_0 = arith.constant 0 : i32
    %c0_i32_1 = arith.constant 0 : i32
    return %c0_i32, %c0_i32_0 : i32, i32
  }
  func.func @transform_5(%arg0: i32) -> (i32, i32) {
    %c0_i32 = arith.constant 0 : i32
    %c0_i32_0 = arith.constant 0 : i32
    %c0_i32_1 = arith.constant 0 : i32
    return %c0_i32, %c0_i32_0 : i32, i32
  }
  func.func @transform_6(%arg0: i32) -> (i32, i32) {
    %c0_i32 = arith.constant 0 : i32
    %c0_i32_0 = arith.constant 0 : i32
    %c0_i32_1 = arith.constant 0 : i32
    return %c0_i32, %c0_i32_0 : i32, i32
  }
  func.func @transform_7(%arg0: i32) -> (i32, i32) {
    %c0_i32 = arith.constant 0 : i32
    %c0_i32_0 = arith.constant 0 : i32
    %c0_i32_1 = arith.constant 0 : i32
    return %c0_i32, %c0_i32_0 : i32, i32
  }
  func.func @transform_8(%arg0: i32) -> (i32, i32) {
    %c0_i32 = arith.constant 0 : i32
    %c0_i32_0 = arith.constant 0 : i32
    %c0_i32_1 = arith.constant 0 : i32
    return %c0_i32, %c0_i32_0 : i32, i32
  }
  func.func @transform_9(%arg0: i32) -> (i32, i32) {
    %c0_i32 = arith.constant 0 : i32
    %c0_i32_0 = arith.constant 0 : i32
    %c0_i32_1 = arith.constant 0 : i32
    return %c0_i32, %c0_i32_0 : i32, i32
  }
  func.func @transform_10(%arg0: i32) -> (i32, i32) {
    %c0_i32 = arith.constant 0 : i32
    %c0_i32_0 = arith.constant 0 : i32
    %c0_i32_1 = arith.constant 0 : i32
    return %c0_i32, %c0_i32_0 : i32, i32
  }
  func.func @transform_11(%arg0: i32) -> (i32, i32) {
    %c0_i32 = arith.constant 0 : i32
    %c0_i32_0 = arith.constant 0 : i32
    %c0_i32_1 = arith.constant 0 : i32
    return %c0_i32, %c0_i32_0 : i32, i32
  }
  func.func @transform_12(%arg0: i32) -> (i32, i32) {
    %c0_i32 = arith.constant 0 : i32
    %c0_i32_0 = arith.constant 0 : i32
    %c0_i32_1 = arith.constant 0 : i32
    return %c0_i32, %c0_i32_0 : i32, i32
  }
  func.func @transform_13(%arg0: i32) -> (i32, i32, i32) {
    %c0_i32 = arith.constant 0 : i32
    %c0_i32_0 = arith.constant 0 : i32
    %c0_i32_1 = arith.constant 0 : i32
    %c0_i32_2 = arith.constant 0 : i32
    return %c0_i32, %c0_i32_0, %c0_i32_1 : i32, i32, i32
  }
}

module attributes {stable_mosaic.version = 11 : i64} {
  func.func @_query_match_kernel(%arg0: i32, %arg1: memref<2x32xf32, #tpu.memory_space<vmem>>, %arg2: memref<1x32xf32, #tpu.memory_space<vmem>>, %arg3: memref<1x32xf32, #tpu.memory_space<vmem>>, %arg4: memref<4x32xf32, #tpu.memory_space<vmem>>, %arg5: memref<2x4xf32, #tpu.memory_space<vmem>>) attributes {dimension_semantics = [#tpu.dimension_semantics<arbitrary>], iteration_bounds = array<i64: 1>, scalar_prefetch = 0 : i64, scratch_operands = 0 : i64, tpu.core_type = #tpu.core_type<tc>, window_params = [{pipeline_mode = #tpu.pipeline_mode<synchronous>, transform_indices = @transform_0, window_bounds = array<i64: 2, 32>}, {pipeline_mode = #tpu.pipeline_mode<synchronous>, transform_indices = @transform_1, window_bounds = array<i64: 1, 32>}, {pipeline_mode = #tpu.pipeline_mode<synchronous>, transform_indices = @transform_2, window_bounds = array<i64: 1, 32>}, {pipeline_mode = #tpu.pipeline_mode<synchronous>, transform_indices = @transform_3, window_bounds = array<i64: 4, 32>}, {pipeline_mode = #tpu.pipeline_mode<synchronous>, transform_indices = @transform_4, window_bounds = array<i64: 2, 4>}]} {
    %c0 = arith.constant 0 : index
    %c0_0 = arith.constant 0 : index
    %0 = vector.load %arg1[%c0, %c0_0] : memref<2x32xf32, #tpu.memory_space<vmem>>, vector<2x32xf32>
    %c0_1 = arith.constant 0 : index
    %c0_2 = arith.constant 0 : index
    %1 = vector.load %arg2[%c0_1, %c0_2] : memref<1x32xf32, #tpu.memory_space<vmem>>, vector<1x32xf32>
    %c0_3 = arith.constant 0 : index
    %c0_4 = arith.constant 0 : index
    %2 = vector.load %arg3[%c0_3, %c0_4] : memref<1x32xf32, #tpu.memory_space<vmem>>, vector<1x32xf32>
    %cst = arith.constant dense<0.000000e+00> : vector<2xf32>
    %3 = vector.multi_reduction <add>, %0, %cst [1] : vector<2x32xf32> to vector<2xf32>
    %4 = vector.shape_cast %3 : vector<2xf32> to vector<2x1xf32>
    %cst_5 = arith.constant 3.200000e+01 : f32
    %5 = vector.broadcast %cst_5 : f32 to vector<2x1xf32>
    %6 = arith.divf %4, %5 : vector<2x1xf32>
    %7 = vector.broadcast %6 : vector<2x1xf32> to vector<2x32xf32>
    %8 = arith.subf %0, %7 : vector<2x32xf32>
    %9 = arith.mulf %8, %8 : vector<2x32xf32>
    %cst_6 = arith.constant dense<0.000000e+00> : vector<2xf32>
    %10 = vector.multi_reduction <add>, %9, %cst_6 [1] : vector<2x32xf32> to vector<2xf32>
    %11 = vector.shape_cast %10 : vector<2xf32> to vector<2x1xf32>
    %cst_7 = arith.constant 3.200000e+01 : f32
    %12 = vector.broadcast %cst_7 : f32 to vector<2x1xf32>
    %13 = arith.divf %11, %12 : vector<2x1xf32>
    %cst_8 = arith.constant 9.99999997E-7 : f32
    %14 = vector.broadcast %cst_8 : f32 to vector<2x1xf32>
    %15 = arith.addf %13, %14 : vector<2x1xf32>
    %16 = math.rsqrt %15 : vector<2x1xf32>
    %17 = vector.broadcast %16 : vector<2x1xf32> to vector<2x32xf32>
    %18 = arith.mulf %8, %17 : vector<2x32xf32>
    %19 = vector.broadcast %1 : vector<1x32xf32> to vector<2x32xf32>
    %20 = arith.mulf %18, %19 : vector<2x32xf32>
    %21 = vector.broadcast %2 : vector<1x32xf32> to vector<2x32xf32>
    %22 = arith.addf %20, %21 : vector<2x32xf32>
    %c0_9 = arith.constant 0 : index
    %c0_10 = arith.constant 0 : index
    %23 = vector.load %arg4[%c0_9, %c0_10] : memref<4x32xf32, #tpu.memory_space<vmem>>, vector<4x32xf32>
    %24 = arith.mulf %22, %22 : vector<2x32xf32>
    %cst_11 = arith.constant dense<0.000000e+00> : vector<2xf32>
    %25 = vector.multi_reduction <add>, %24, %cst_11 [1] : vector<2x32xf32> to vector<2xf32>
    %26 = vector.shape_cast %25 : vector<2xf32> to vector<2x1xf32>
    %27 = math.sqrt %26 : vector<2x1xf32>
    %cst_12 = arith.constant 9.99999993E-9 : f32
    %28 = vector.broadcast %cst_12 : f32 to vector<2x1xf32>
    %29 = arith.maximumf %27, %28 : vector<2x1xf32>
    %30 = arith.mulf %23, %23 : vector<4x32xf32>
    %cst_13 = arith.constant dense<0.000000e+00> : vector<4xf32>
    %31 = vector.multi_reduction <add>, %30, %cst_13 [1] : vector<4x32xf32> to vector<4xf32>
    %32 = vector.shape_cast %31 : vector<4xf32> to vector<4x1xf32>
    %33 = math.sqrt %32 : vector<4x1xf32>
    %cst_14 = arith.constant 9.99999993E-9 : f32
    %34 = vector.broadcast %cst_14 : f32 to vector<4x1xf32>
    %35 = arith.maximumf %33, %34 : vector<4x1xf32>
    %36 = vector.broadcast %29 : vector<2x1xf32> to vector<2x32xf32>
    %37 = arith.divf %22, %36 : vector<2x32xf32>
    %38 = vector.broadcast %35 : vector<4x1xf32> to vector<4x32xf32>
    %39 = arith.divf %23, %38 : vector<4x32xf32>
    %cst_15 = arith.constant dense<0.000000e+00> : vector<2x4xf32>
    %40 = tpu.matmul %37, %39, %cst_15 {dimension_numbers = #tpu.dot_dimension_numbers<[1], [1], [0], [0], [0, 0, 1, 0], [], []>} : vector<2x32xf32>, vector<4x32xf32>, vector<2x4xf32> -> vector<2x4xf32>
    %cst_16 = arith.constant 1.000000e+00 : f32
    %41 = vector.broadcast %cst_16 : f32 to vector<2x4xf32>
    %42 = arith.subf %41, %40 : vector<2x4xf32>
    %c0_17 = arith.constant 0 : index
    %c0_18 = arith.constant 0 : index
    %43 = vector.load %arg5[%c0_17, %c0_18] : memref<2x4xf32, #tpu.memory_space<vmem>>, vector<2x4xf32>
    tpu.vector_store %arg5[%c0_17, %c0_18], %42 {strides = array<i32>} : memref<2x4xf32, #tpu.memory_space<vmem>>, vector<2x4xf32>,
    return
  }
  func.func @transform_0(%arg0: i32) -> (i32, i32) {
    %c0_i32 = arith.constant 0 : i32
    %c0_i32_0 = arith.constant 0 : i32
    %c0_i32_1 = arith.constant 0 : i32
    return %c0_i32, %c0_i32_0 : i32, i32
  }
  func.func @transform_1(%arg0: i32) -> (i32, i32) {
    %c0_i32 = arith.constant 0 : i32
    %c0_i32_0 = arith.constant 0 : i32
    %c0_i32_1 = arith.constant 0 : i32
    return %c0_i32, %c0_i32_0 : i32, i32
  }
  func.func @transform_2(%arg0: i32) -> (i32, i32) {
    %c0_i32 = arith.constant 0 : i32
    %c0_i32_0 = arith.constant 0 : i32
    %c0_i32_1 = arith.constant 0 : i32
    return %c0_i32, %c0_i32_0 : i32, i32
  }
  func.func @transform_3(%arg0: i32) -> (i32, i32) {
    %c0_i32 = arith.constant 0 : i32
    %c0_i32_0 = arith.constant 0 : i32
    %c0_i32_1 = arith.constant 0 : i32
    return %c0_i32, %c0_i32_0 : i32, i32
  }
  func.func @transform_4(%arg0: i32) -> (i32, i32) {
    %c0_i32 = arith.constant 0 : i32
    %c0_i32_0 = arith.constant 0 : i32
    %c0_i32_1 = arith.constant 0 : i32
    return %c0_i32, %c0_i32_0 : i32, i32
  }
}

module attributes {stable_mosaic.version = 11 : i64} {
  func.func @_vit_block_kernel(%arg0: i32, %arg1: memref<2x7x32xf32, #tpu.memory_space<vmem>>, %arg2: memref<1x32xf32, #tpu.memory_space<vmem>>, %arg3: memref<1x32xf32, #tpu.memory_space<vmem>>, %arg4: memref<32x96xf32, #tpu.memory_space<vmem>>, %arg5: memref<1x96xf32, #tpu.memory_space<vmem>>, %arg6: memref<32x32xf32, #tpu.memory_space<vmem>>, %arg7: memref<1x32xf32, #tpu.memory_space<vmem>>, %arg8: memref<1x32xf32, #tpu.memory_space<vmem>>, %arg9: memref<1x32xf32, #tpu.memory_space<vmem>>, %arg10: memref<32x64xf32, #tpu.memory_space<vmem>>, %arg11: memref<1x64xf32, #tpu.memory_space<vmem>>, %arg12: memref<64x32xf32, #tpu.memory_space<vmem>>, %arg13: memref<1x32xf32, #tpu.memory_space<vmem>>, %arg14: memref<2x7x32xf32, #tpu.memory_space<vmem>>) attributes {dimension_semantics = [#tpu.dimension_semantics<arbitrary>], iteration_bounds = array<i64: 1>, scalar_prefetch = 0 : i64, scratch_operands = 0 : i64, tpu.core_type = #tpu.core_type<tc>, window_params = [{pipeline_mode = #tpu.pipeline_mode<synchronous>, transform_indices = @transform_0, window_bounds = array<i64: 2, 7, 32>}, {pipeline_mode = #tpu.pipeline_mode<synchronous>, transform_indices = @transform_1, window_bounds = array<i64: 1, 32>}, {pipeline_mode = #tpu.pipeline_mode<synchronous>, transform_indices = @transform_2, window_bounds = array<i64: 1, 32>}, {pipeline_mode = #tpu.pipeline_mode<synchronous>, transform_indices = @transform_3, window_bounds = array<i64: 32, 96>}, {pipeline_mode = #tpu.pipeline_mode<synchronous>, transform_indices = @transform_4, window_bounds = array<i64: 1, 96>}, {pipeline_mode = #tpu.pipeline_mode<synchronous>, transform_indices = @transform_5, window_bounds = array<i64: 32, 32>}, {pipeline_mode = #tpu.pipeline_mode<synchronous>, transform_indices = @transform_6, window_bounds = array<i64: 1, 32>}, {pipeline_mode = #tpu.pipeline_mode<synchronous>, transform_indices = @transform_7, window_bounds = array<i64: 1, 32>}, {pipeline_mode = #tpu.pipeline_mode<synchronous>, transform_indices = @transform_8, window_bounds = array<i64: 1, 32>}, {pipeline_mode = #tpu.pipeline_mode<synchronous>, transform_indices = @transform_9, window_bounds = array<i64: 32, 64>}, {pipeline_mode = #tpu.pipeline_mode<synchronous>, transform_indices = @transform_10, window_bounds = array<i64: 1, 64>}, {pipeline_mode = #tpu.pipeline_mode<synchronous>, transform_indices = @transform_11, window_bounds = array<i64: 64, 32>}, {pipeline_mode = #tpu.pipeline_mode<synchronous>, transform_indices = @transform_12, window_bounds = array<i64: 1, 32>}, {pipeline_mode = #tpu.pipeline_mode<synchronous>, transform_indices = @transform_13, window_bounds = array<i64: 2, 7, 32>}]} {
    %c0 = arith.constant 0 : index
    %c0_0 = arith.constant 0 : index
    %0 = vector.load %arg2[%c0, %c0_0] : memref<1x32xf32, #tpu.memory_space<vmem>>, vector<1x32xf32>
    %c0_1 = arith.constant 0 : index
    %c0_2 = arith.constant 0 : index
    %1 = vector.load %arg3[%c0_1, %c0_2] : memref<1x32xf32, #tpu.memory_space<vmem>>, vector<1x32xf32>
    %c0_3 = arith.constant 0 : index
    %c0_4 = arith.constant 0 : index
    %2 = vector.load %arg4[%c0_3, %c0_4] : memref<32x96xf32, #tpu.memory_space<vmem>>, vector<32x96xf32>
    %c0_5 = arith.constant 0 : index
    %c0_6 = arith.constant 0 : index
    %3 = vector.load %arg5[%c0_5, %c0_6] : memref<1x96xf32, #tpu.memory_space<vmem>>, vector<1x96xf32>
    %c0_7 = arith.constant 0 : index
    %c0_8 = arith.constant 0 : index
    %4 = vector.load %arg6[%c0_7, %c0_8] : memref<32x32xf32, #tpu.memory_space<vmem>>, vector<32x32xf32>
    %c0_9 = arith.constant 0 : index
    %c0_10 = arith.constant 0 : index
    %5 = vector.load %arg7[%c0_9, %c0_10] : memref<1x32xf32, #tpu.memory_space<vmem>>, vector<1x32xf32>
    %c0_11 = arith.constant 0 : index
    %c0_12 = arith.constant 0 : index
    %6 = vector.load %arg8[%c0_11, %c0_12] : memref<1x32xf32, #tpu.memory_space<vmem>>, vector<1x32xf32>
    %c0_13 = arith.constant 0 : index
    %c0_14 = arith.constant 0 : index
    %7 = vector.load %arg9[%c0_13, %c0_14] : memref<1x32xf32, #tpu.memory_space<vmem>>, vector<1x32xf32>
    %c0_15 = arith.constant 0 : index
    %c0_16 = arith.constant 0 : index
    %8 = vector.load %arg10[%c0_15, %c0_16] : memref<32x64xf32, #tpu.memory_space<vmem>>, vector<32x64xf32>
    %c0_17 = arith.constant 0 : index
    %c0_18 = arith.constant 0 : index
    %9 = vector.load %arg11[%c0_17, %c0_18] : memref<1x64xf32, #tpu.memory_space<vmem>>, vector<1x64xf32>
    %c0_19 = arith.constant 0 : index
    %c0_20 = arith.constant 0 : index
    %10 = vector.load %arg12[%c0_19, %c0_20] : memref<64x32xf32, #tpu.memory_space<vmem>>, vector<64x32xf32>
    %c0_21 = arith.constant 0 : index
    %c0_22 = arith.constant 0 : index
    %11 = vector.load %arg13[%c0_21, %c0_22] : memref<1x32xf32, #tpu.memory_space<vmem>>, vector<1x32xf32>
    %c0_23 = arith.constant 0 : index
    %c0_24 = arith.constant 0 : index
    %c0_25 = arith.constant 0 : index
    %12 = vector.load %arg1[%c0_23, %c0_24, %c0_25] : memref<2x7x32xf32, #tpu.memory_space<vmem>>, vector<1x7x32xf32>
    %13 = vector.shape_cast %12 : vector<1x7x32xf32> to vector<7x32xf32>
    %cst = arith.constant dense<0.000000e+00> : vector<7xf32>
    %14 = vector.multi_reduction <add>, %13, %cst [1] : vector<7x32xf32> to vector<7xf32>
    %15 = vector.shape_cast %14 : vector<7xf32> to vector<7x1xf32>
    %cst_26 = arith.constant 3.200000e+01 : f32
    %16 = vector.broadcast %cst_26 : f32 to vector<7x1xf32>
    %17 = arith.divf %15, %16 : vector<7x1xf32>
    %18 = vector.broadcast %17 : vector<7x1xf32> to vector<7x32xf32>
    %19 = arith.subf %13, %18 : vector<7x32xf32>
    %20 = arith.mulf %19, %19 : vector<7x32xf32>
    %cst_27 = arith.constant dense<0.000000e+00> : vector<7xf32>
    %21 = vector.multi_reduction <add>, %20, %cst_27 [1] : vector<7x32xf32> to vector<7xf32>
    %22 = vector.shape_cast %21 : vector<7xf32> to vector<7x1xf32>
    %cst_28 = arith.constant 3.200000e+01 : f32
    %23 = vector.broadcast %cst_28 : f32 to vector<7x1xf32>
    %24 = arith.divf %22, %23 : vector<7x1xf32>
    %cst_29 = arith.constant 9.99999997E-7 : f32
    %25 = vector.broadcast %cst_29 : f32 to vector<7x1xf32>
    %26 = arith.addf %24, %25 : vector<7x1xf32>
    %27 = math.rsqrt %26 : vector<7x1xf32>
    %28 = vector.broadcast %27 : vector<7x1xf32> to vector<7x32xf32>
    %29 = arith.mulf %19, %28 : vector<7x32xf32>
    %30 = vector.broadcast %0 : vector<1x32xf32> to vector<7x32xf32>
    %31 = arith.mulf %29, %30 : vector<7x32xf32>
    %32 = vector.broadcast %1 : vector<1x32xf32> to vector<7x32xf32>
    %33 = arith.addf %31, %32 : vector<7x32xf32>
    %cst_30 = arith.constant dense<0.000000e+00> : vector<7x96xf32>
    %34 = tpu.matmul %33, %2, %cst_30 {dimension_numbers = #tpu.dot_dimension_numbers<[1], [0], [0], [1], [0, 0, 1, 1], [], []>} : vector<7x32xf32>, vector<32x96xf32>, vector<7x96xf32> -> vector<7x96xf32>
    %35 = vector.broadcast %3 : vector<1x96xf32> to vector<7x96xf32>
    %36 = arith.addf %34, %35 : vector<7x96xf32>
    %37 = vector.extract_strided_slice %36 {offsets = [0, 0], sizes = [7, 16], strides = [1, 1]} : vector<7x96xf32> to vector<7x16xf32>
    %38 = vector.extract_strided_slice %36 {offsets = [0, 32], sizes = [7, 16], strides = [1, 1]} : vector<7x96xf32> to vector<7x16xf32>
    %39 = vector.extract_strided_slice %36 {offsets = [0, 64], sizes = [7, 16], strides = [1, 1]} : vector<7x96xf32> to vector<7x16xf32>
    %cst_31 = arith.constant dense<0.000000e+00> : vector<7x7xf32>
    %40 = tpu.matmul %37, %38, %cst_31 {dimension_numbers = #tpu.dot_dimension_numbers<[1], [1], [0], [0], [0, 0, 1, 0], [], []>} : vector<7x16xf32>, vector<7x16xf32>, vector<7x7xf32> -> vector<7x7xf32>
    %cst_32 = arith.constant 2.500000e-01 : f32
    %41 = vector.broadcast %cst_32 : f32 to vector<7x7xf32>
    %42 = arith.mulf %40, %41 : vector<7x7xf32>
    %cst_33 = arith.constant dense<0xFF800000> : vector<7xf32>
    %43 = vector.multi_reduction <maximumf>, %42, %cst_33 [1] : vector<7x7xf32> to vector<7xf32>
    %44 = vector.shape_cast %43 : vector<7xf32> to vector<7x1xf32>
    %45 = vector.broadcast %44 : vector<7x1xf32> to vector<7x7xf32>
    %46 = arith.subf %42, %45 : vector<7x7xf32>
    %47 = math.exp %46 : vector<7x7xf32>
    %cst_34 = arith.constant dense<0.000000e+00> : vector<7xf32>
    %48 = vector.multi_reduction <add>, %47, %cst_34 [1] : vector<7x7xf32> to vector<7xf32>
    %49 = vector.shape_cast %48 : vector<7xf32> to vector<7x1xf32>
    %50 = tpu.reciprocal %49 {approx = true} : vector<7x1xf32> -> vector<7x1xf32>
    %51 = vector.broadcast %50 : vector<7x1xf32> to vector<7x7xf32>
    %52 = arith.mulf %47, %51 : vector<7x7xf32>
    %cst_35 = arith.constant dense<0.000000e+00> : vector<7x16xf32>
    %53 = tpu.matmul %52, %39, %cst_35 {dimension_numbers = #tpu.dot_dimension_numbers<[1], [0], [0], [1], [0, 0, 1, 1], [], []>} : vector<7x7xf32>, vector<7x16xf32>, vector<7x16xf32> -> vector<7x16xf32>
    %54 = vector.extract_strided_slice %36 {offsets = [0, 16], sizes = [7, 16], strides = [1, 1]} : vector<7x96xf32> to vector<7x16xf32>
    %55 = vector.extract_strided_slice %36 {offsets = [0, 48], sizes = [7, 16], strides = [1, 1]} : vector<7x96xf32> to vector<7x16xf32>
    %56 = vector.extract_strided_slice %36 {offsets = [0, 80], sizes = [7, 16], strides = [1, 1]} : vector<7x96xf32> to vector<7x16xf32>
    %cst_36 = arith.constant dense<0.000000e+00> : vector<7x7xf32>
    %57 = tpu.matmul %54, %55, %cst_36 {dimension_numbers = #tpu.dot_dimension_numbers<[1], [1], [0], [0], [0, 0, 1, 0], [], []>} : vector<7x16xf32>, vector<7x16xf32>, vector<7x7xf32> -> vector<7x7xf32>
    %cst_37 = arith.constant 2.500000e-01 : f32
    %58 = vector.broadcast %cst_37 : f32 to vector<7x7xf32>
    %59 = arith.mulf %57, %58 : vector<7x7xf32>
    %cst_38 = arith.constant dense<0xFF800000> : vector<7xf32>
    %60 = vector.multi_reduction <maximumf>, %59, %cst_38 [1] : vector<7x7xf32> to vector<7xf32>
    %61 = vector.shape_cast %60 : vector<7xf32> to vector<7x1xf32>
    %62 = vector.broadcast %61 : vector<7x1xf32> to vector<7x7xf32>
    %63 = arith.subf %59, %62 : vector<7x7xf32>
    %64 = math.exp %63 : vector<7x7xf32>
    %cst_39 = arith.constant dense<0.000000e+00> : vector<7xf32>
    %65 = vector.multi_reduction <add>, %64, %cst_39 [1] : vector<7x7xf32> to vector<7xf32>
    %66 = vector.shape_cast %65 : vector<7xf32> to vector<7x1xf32>
    %67 = tpu.reciprocal %66 {approx = true} : vector<7x1xf32> -> vector<7x1xf32>
    %68 = vector.broadcast %67 : vector<7x1xf32> to vector<7x7xf32>
    %69 = arith.mulf %64, %68 : vector<7x7xf32>
    %cst_40 = arith.constant dense<0.000000e+00> : vector<7x16xf32>
    %70 = tpu.matmul %69, %56, %cst_40 {dimension_numbers = #tpu.dot_dimension_numbers<[1], [0], [0], [1], [0, 0, 1, 1], [], []>} : vector<7x7xf32>, vector<7x16xf32>, vector<7x16xf32> -> vector<7x16xf32>
    %71 = tpu.concatenate %53, %70 in 1 : vector<7x16xf32>, vector<7x16xf32> -> vector<7x32xf32>
    %cst_41 = arith.constant dense<0.000000e+00> : vector<7x32xf32>
    %72 = tpu.matmul %71, %4, %cst_41 {dimension_numbers = #tpu.dot_dimension_numbers<[1], [0], [0], [1], [0, 0, 1, 1], [], []>} : vector<7x32xf32>, vector<32x32xf32>, vector<7x32xf32> -> vector<7x32xf32>
    %73 = arith.addf %13, %72 : vector<7x32xf32>
    %74 = vector.broadcast %5 : vector<1x32xf32> to vector<7x32xf32>
    %75 = arith.addf %73, %74 : vector<7x32xf32>
    %cst_42 = arith.constant dense<0.000000e+00> : vector<7xf32>
    %76 = vector.multi_reduction <add>, %75, %cst_42 [1] : vector<7x32xf32> to vector<7xf32>
    %77 = vector.shape_cast %76 : vector<7xf32> to vector<7x1xf32>
    %cst_43 = arith.constant 3.200000e+01 : f32
    %78 = vector.broadcast %cst_43 : f32 to vector<7x1xf32>
    %79 = arith.divf %77, %78 : vector<7x1xf32>
    %80 = vector.broadcast %79 : vector<7x1xf32> to vector<7x32xf32>
    %81 = arith.subf %75, %80 : vector<7x32xf32>
    %82 = arith.mulf %81, %81 : vector<7x32xf32>
    %cst_44 = arith.constant dense<0.000000e+00> : vector<7xf32>
    %83 = vector.multi_reduction <add>, %82, %cst_44 [1] : vector<7x32xf32> to vector<7xf32>
    %84 = vector.shape_cast %83 : vector<7xf32> to vector<7x1xf32>
    %cst_45 = arith.constant 3.200000e+01 : f32
    %85 = vector.broadcast %cst_45 : f32 to vector<7x1xf32>
    %86 = arith.divf %84, %85 : vector<7x1xf32>
    %cst_46 = arith.constant 9.99999997E-7 : f32
    %87 = vector.broadcast %cst_46 : f32 to vector<7x1xf32>
    %88 = arith.addf %86, %87 : vector<7x1xf32>
    %89 = math.rsqrt %88 : vector<7x1xf32>
    %90 = vector.broadcast %89 : vector<7x1xf32> to vector<7x32xf32>
    %91 = arith.mulf %81, %90 : vector<7x32xf32>
    %92 = vector.broadcast %6 : vector<1x32xf32> to vector<7x32xf32>
    %93 = arith.mulf %91, %92 : vector<7x32xf32>
    %94 = vector.broadcast %7 : vector<1x32xf32> to vector<7x32xf32>
    %95 = arith.addf %93, %94 : vector<7x32xf32>
    %cst_47 = arith.constant dense<0.000000e+00> : vector<7x64xf32>
    %96 = tpu.matmul %95, %8, %cst_47 {dimension_numbers = #tpu.dot_dimension_numbers<[1], [0], [0], [1], [0, 0, 1, 1], [], []>} : vector<7x32xf32>, vector<32x64xf32>, vector<7x64xf32> -> vector<7x64xf32>
    %97 = vector.broadcast %9 : vector<1x64xf32> to vector<7x64xf32>
    %98 = arith.addf %96, %97 : vector<7x64xf32>
    %99 = arith.mulf %98, %98 : vector<7x64xf32>
    %100 = arith.mulf %98, %99 : vector<7x64xf32>
    %cst_48 = arith.constant 4.471500e-02 : f32
    %101 = vector.broadcast %cst_48 : f32 to vector<7x64xf32>
    %102 = arith.mulf %101, %100 : vector<7x64xf32>
    %103 = arith.addf %98, %102 : vector<7x64xf32>
    %cst_49 = arith.constant 0.797884583 : f32
    %104 = vector.broadcast %cst_49 : f32 to vector<7x64xf32>
    %105 = arith.mulf %104, %103 : vector<7x64xf32>
    %106 = math.tanh %105 : vector<7x64xf32>
    %cst_50 = arith.constant 1.000000e+00 : f32
    %107 = vector.broadcast %cst_50 : f32 to vector<7x64xf32>
    %108 = arith.addf %107, %106 : vector<7x64xf32>
    %cst_51 = arith.constant 5.000000e-01 : f32
    %109 = vector.broadcast %cst_51 : f32 to vector<7x64xf32>
    %110 = arith.mulf %109, %108 : vector<7x64xf32>
    %111 = arith.mulf %98, %110 : vector<7x64xf32>
    %cst_52 = arith.constant dense<0.000000e+00> : vector<7x32xf32>
    %112 = tpu.matmul %111, %10, %cst_52 {dimension_numbers = #tpu.dot_dimension_numbers<[1], [0], [0], [1], [0, 0, 1, 1], [], []>} : vector<7x64xf32>, vector<64x32xf32>, vector<7x32xf32> -> vector<7x32xf32>
    %113 = vector.broadcast %11 : vector<1x32xf32> to vector<7x32xf32>
    %114 = arith.addf %112, %113 : vector<7x32xf32>
    %115 = arith.addf %75, %114 : vector<7x32xf32>
    %c0_53 = arith.constant 0 : index
    %c0_54 = arith.constant 0 : index
    %c0_55 = arith.constant 0 : index
    %116 = vector.load %arg14[%c0_53, %c0_54, %c0_55] : memref<2x7x32xf32, #tpu.memory_space<vmem>>, vector<1x7x32xf32>
    %117 = vector.shape_cast %116 : vector<1x7x32xf32> to vector<7x32xf32>
    %118 = vector.shape_cast %115 : vector<7x32xf32> to vector<1x7x32xf32>
    tpu.vector_store %arg14[%c0_53, %c0_54, %c0_55], %118 {strides = array<i32>} : memref<2x7x32xf32, #tpu.memory_space<vmem>>, vector<1x7x32xf32>,
    %c1 = arith.constant 1 : index
    %c0_56 = arith.constant 0 : index
    %c0_57 = arith.constant 0 : index
    %119 = vector.load %arg1[%c1, %c0_56, %c0_57] : memref<2x7x32xf32, #tpu.memory_space<vmem>>, vector<1x7x32xf32>
    %120 = vector.shape_cast %119 : vector<1x7x32xf32> to vector<7x32xf32>
    %cst_58 = arith.constant dense<0.000000e+00> : vector<7xf32>
    %121 = vector.multi_reduction <add>, %120, %cst_58 [1] : vector<7x32xf32> to vector<7xf32>
    %122 = vector.shape_cast %121 : vector<7xf32> to vector<7x1xf32>
    %cst_59 = arith.constant 3.200000e+01 : f32
    %123 = vector.broadcast %cst_59 : f32 to vector<7x1xf32>
    %124 = arith.divf %122, %123 : vector<7x1xf32>
    %125 = vector.broadcast %124 : vector<7x1xf32> to vector<7x32xf32>
    %126 = arith.subf %120, %125 : vector<7x32xf32>
    %127 = arith.mulf %126, %126 : vector<7x32xf32>
    %cst_60 = arith.constant dense<0.000000e+00> : vector<7xf32>
    %128 = vector.multi_reduction <add>, %127, %cst_60 [1] : vector<7x32xf32> to vector<7xf32>
    %129 = vector.shape_cast %128 : vector<7xf32> to vector<7x1xf32>
    %cst_61 = arith.constant 3.200000e+01 : f32
    %130 = vector.broadcast %cst_61 : f32 to vector<7x1xf32>
    %131 = arith.divf %129, %130 : vector<7x1xf32>
    %cst_62 = arith.constant 9.99999997E-7 : f32
    %132 = vector.broadcast %cst_62 : f32 to vector<7x1xf32>
    %133 = arith.addf %131, %132 : vector<7x1xf32>
    %134 = math.rsqrt %133 : vector<7x1xf32>
    %135 = vector.broadcast %134 : vector<7x1xf32> to vector<7x32xf32>
    %136 = arith.mulf %126, %135 : vector<7x32xf32>
    %137 = vector.broadcast %0 : vector<1x32xf32> to vector<7x32xf32>
    %138 = arith.mulf %136, %137 : vector<7x32xf32>
    %139 = vector.broadcast %1 : vector<1x32xf32> to vector<7x32xf32>
    %140 = arith.addf %138, %139 : vector<7x32xf32>
    %cst_63 = arith.constant dense<0.000000e+00> : vector<7x96xf32>
    %141 = tpu.matmul %140, %2, %cst_63 {dimension_numbers = #tpu.dot_dimension_numbers<[1], [0], [0], [1], [0, 0, 1, 1], [], []>} : vector<7x32xf32>, vector<32x96xf32>, vector<7x96xf32> -> vector<7x96xf32>
    %142 = vector.broadcast %3 : vector<1x96xf32> to vector<7x96xf32>
    %143 = arith.addf %141, %142 : vector<7x96xf32>
    %144 = vector.extract_strided_slice %143 {offsets = [0, 0], sizes = [7, 16], strides = [1, 1]} : vector<7x96xf32> to vector<7x16xf32>
    %145 = vector.extract_strided_slice %143 {offsets = [0, 32], sizes = [7, 16], strides = [1, 1]} : vector<7x96xf32> to vector<7x16xf32>
    %146 = vector.extract_strided_slice %143 {offsets = [0, 64], sizes = [7, 16], strides = [1, 1]} : vector<7x96xf32> to vector<7x16xf32>
    %cst_64 = arith.constant dense<0.000000e+00> : vector<7x7xf32>
    %147 = tpu.matmul %144, %145, %cst_64 {dimension_numbers = #tpu.dot_dimension_numbers<[1], [1], [0], [0], [0, 0, 1, 0], [], []>} : vector<7x16xf32>, vector<7x16xf32>, vector<7x7xf32> -> vector<7x7xf32>
    %cst_65 = arith.constant 2.500000e-01 : f32
    %148 = vector.broadcast %cst_65 : f32 to vector<7x7xf32>
    %149 = arith.mulf %147, %148 : vector<7x7xf32>
    %cst_66 = arith.constant dense<0xFF800000> : vector<7xf32>
    %150 = vector.multi_reduction <maximumf>, %149, %cst_66 [1] : vector<7x7xf32> to vector<7xf32>
    %151 = vector.shape_cast %150 : vector<7xf32> to vector<7x1xf32>
    %152 = vector.broadcast %151 : vector<7x1xf32> to vector<7x7xf32>
    %153 = arith.subf %149, %152 : vector<7x7xf32>
    %154 = math.exp %153 : vector<7x7xf32>
    %cst_67 = arith.constant dense<0.000000e+00> : vector<7xf32>
    %155 = vector.multi_reduction <add>, %154, %cst_67 [1] : vector<7x7xf32> to vector<7xf32>
    %156 = vector.shape_cast %155 : vector<7xf32> to vector<7x1xf32>
    %157 = tpu.reciprocal %156 {approx = true} : vector<7x1xf32> -> vector<7x1xf32>
    %158 = vector.broadcast %157 : vector<7x1xf32> to vector<7x7xf32>
    %159 = arith.mulf %154, %158 : vector<7x7xf32>
    %cst_68 = arith.constant dense<0.000000e+00> : vector<7x16xf32>
    %160 = tpu.matmul %159, %146, %cst_68 {dimension_numbers = #tpu.dot_dimension_numbers<[1], [0], [0], [1], [0, 0, 1, 1], [], []>} : vector<7x7xf32>, vector<7x16xf32>, vector<7x16xf32> -> vector<7x16xf32>
    %161 = vector.extract_strided_slice %143 {offsets = [0, 16], sizes = [7, 16], strides = [1, 1]} : vector<7x96xf32> to vector<7x16xf32>
    %162 = vector.extract_strided_slice %143 {offsets = [0, 48], sizes = [7, 16], strides = [1, 1]} : vector<7x96xf32> to vector<7x16xf32>
    %163 = vector.extract_strided_slice %143 {offsets = [0, 80], sizes = [7, 16], strides = [1, 1]} : vector<7x96xf32> to vector<7x16xf32>
    %cst_69 = arith.constant dense<0.000000e+00> : vector<7x7xf32>
    %164 = tpu.matmul %161, %162, %cst_69 {dimension_numbers = #tpu.dot_dimension_numbers<[1], [1], [0], [0], [0, 0, 1, 0], [], []>} : vector<7x16xf32>, vector<7x16xf32>, vector<7x7xf32> -> vector<7x7xf32>
    %cst_70 = arith.constant 2.500000e-01 : f32
    %165 = vector.broadcast %cst_70 : f32 to vector<7x7xf32>
    %166 = arith.mulf %164, %165 : vector<7x7xf32>
    %cst_71 = arith.constant dense<0xFF800000> : vector<7xf32>
    %167 = vector.multi_reduction <maximumf>, %166, %cst_71 [1] : vector<7x7xf32> to vector<7xf32>
    %168 = vector.shape_cast %167 : vector<7xf32> to vector<7x1xf32>
    %169 = vector.broadcast %168 : vector<7x1xf32> to vector<7x7xf32>
    %170 = arith.subf %166, %169 : vector<7x7xf32>
    %171 = math.exp %170 : vector<7x7xf32>
    %cst_72 = arith.constant dense<0.000000e+00> : vector<7xf32>
    %172 = vector.multi_reduction <add>, %171, %cst_72 [1] : vector<7x7xf32> to vector<7xf32>
    %173 = vector.shape_cast %172 : vector<7xf32> to vector<7x1xf32>
    %174 = tpu.reciprocal %173 {approx = true} : vector<7x1xf32> -> vector<7x1xf32>
    %175 = vector.broadcast %174 : vector<7x1xf32> to vector<7x7xf32>
    %176 = arith.mulf %171, %175 : vector<7x7xf32>
    %cst_73 = arith.constant dense<0.000000e+00> : vector<7x16xf32>
    %177 = tpu.matmul %176, %163, %cst_73 {dimension_numbers = #tpu.dot_dimension_numbers<[1], [0], [0], [1], [0, 0, 1, 1], [], []>} : vector<7x7xf32>, vector<7x16xf32>, vector<7x16xf32> -> vector<7x16xf32>
    %178 = tpu.concatenate %160, %177 in 1 : vector<7x16xf32>, vector<7x16xf32> -> vector<7x32xf32>
    %cst_74 = arith.constant dense<0.000000e+00> : vector<7x32xf32>
    %179 = tpu.matmul %178, %4, %cst_74 {dimension_numbers = #tpu.dot_dimension_numbers<[1], [0], [0], [1], [0, 0, 1, 1], [], []>} : vector<7x32xf32>, vector<32x32xf32>, vector<7x32xf32> -> vector<7x32xf32>
    %180 = arith.addf %120, %179 : vector<7x32xf32>
    %181 = vector.broadcast %5 : vector<1x32xf32> to vector<7x32xf32>
    %182 = arith.addf %180, %181 : vector<7x32xf32>
    %cst_75 = arith.constant dense<0.000000e+00> : vector<7xf32>
    %183 = vector.multi_reduction <add>, %182, %cst_75 [1] : vector<7x32xf32> to vector<7xf32>
    %184 = vector.shape_cast %183 : vector<7xf32> to vector<7x1xf32>
    %cst_76 = arith.constant 3.200000e+01 : f32
    %185 = vector.broadcast %cst_76 : f32 to vector<7x1xf32>
    %186 = arith.divf %184, %185 : vector<7x1xf32>
    %187 = vector.broadcast %186 : vector<7x1xf32> to vector<7x32xf32>
    %188 = arith.subf %182, %187 : vector<7x32xf32>
    %189 = arith.mulf %188, %188 : vector<7x32xf32>
    %cst_77 = arith.constant dense<0.000000e+00> : vector<7xf32>
    %190 = vector.multi_reduction <add>, %189, %cst_77 [1] : vector<7x32xf32> to vector<7xf32>
    %191 = vector.shape_cast %190 : vector<7xf32> to vector<7x1xf32>
    %cst_78 = arith.constant 3.200000e+01 : f32
    %192 = vector.broadcast %cst_78 : f32 to vector<7x1xf32>
    %193 = arith.divf %191, %192 : vector<7x1xf32>
    %cst_79 = arith.constant 9.99999997E-7 : f32
    %194 = vector.broadcast %cst_79 : f32 to vector<7x1xf32>
    %195 = arith.addf %193, %194 : vector<7x1xf32>
    %196 = math.rsqrt %195 : vector<7x1xf32>
    %197 = vector.broadcast %196 : vector<7x1xf32> to vector<7x32xf32>
    %198 = arith.mulf %188, %197 : vector<7x32xf32>
    %199 = vector.broadcast %6 : vector<1x32xf32> to vector<7x32xf32>
    %200 = arith.mulf %198, %199 : vector<7x32xf32>
    %201 = vector.broadcast %7 : vector<1x32xf32> to vector<7x32xf32>
    %202 = arith.addf %200, %201 : vector<7x32xf32>
    %cst_80 = arith.constant dense<0.000000e+00> : vector<7x64xf32>
    %203 = tpu.matmul %202, %8, %cst_80 {dimension_numbers = #tpu.dot_dimension_numbers<[1], [0], [0], [1], [0, 0, 1, 1], [], []>} : vector<7x32xf32>, vector<32x64xf32>, vector<7x64xf32> -> vector<7x64xf32>
    %204 = vector.broadcast %9 : vector<1x64xf32> to vector<7x64xf32>
    %205 = arith.addf %203, %204 : vector<7x64xf32>
    %206 = arith.mulf %205, %205 : vector<7x64xf32>
    %207 = arith.mulf %205, %206 : vector<7x64xf32>
    %cst_81 = arith.constant 4.471500e-02 : f32
    %208 = vector.broadcast %cst_81 : f32 to vector<7x64xf32>
    %209 = arith.mulf %208, %207 : vector<7x64xf32>
    %210 = arith.addf %205, %209 : vector<7x64xf32>
    %cst_82 = arith.constant 0.797884583 : f32
    %211 = vector.broadcast %cst_82 : f32 to vector<7x64xf32>
    %212 = arith.mulf %211, %210 : vector<7x64xf32>
    %213 = math.tanh %212 : vector<7x64xf32>
    %cst_83 = arith.constant 1.000000e+00 : f32
    %214 = vector.broadcast %cst_83 : f32 to vector<7x64xf32>
    %215 = arith.addf %214, %213 : vector<7x64xf32>
    %cst_84 = arith.constant 5.000000e-01 : f32
    %216 = vector.broadcast %cst_84 : f32 to vector<7x64xf32>
    %217 = arith.mulf %216, %215 : vector<7x64xf32>
    %218 = arith.mulf %205, %217 : vector<7x64xf32>
    %cst_85 = arith.constant dense<0.000000e+00> : vector<7x32xf32>
    %219 = tpu.matmul %218, %10, %cst_85 {dimension_numbers = #tpu.dot_dimension_numbers<[1], [0], [0], [1], [0, 0, 1, 1], [], []>} : vector<7x64xf32>, vector<64x32xf32>, vector<7x32xf32> -> vector<7x32xf32>
    %220 = vector.broadcast %11 : vector<1x32xf32> to vector<7x32xf32>
    %221 = arith.addf %219, %220 : vector<7x32xf32>
    %222 = arith.addf %182, %221 : vector<7x32xf32>
    %c1_86 = arith.constant 1 : index
    %c0_87 = arith.constant 0 : index
    %c0_88 = arith.constant 0 : index
    %223 = vector.load %arg14[%c1_86, %c0_87, %c0_88] : memref<2x7x32xf32, #tpu.memory_space<vmem>>, vector<1x7x32xf32>
    %224 = vector.shape_cast %223 : vector<1x7x32xf32> to vector<7x32xf32>
    %225 = vector.shape_cast %222 : vector<7x32xf32> to vector<1x7x32xf32>
    tpu.vector_store %arg14[%c1_86, %c0_87, %c0_88], %225 {strides = array<i32>} : memref<2x7x32xf32, #tpu.memory_space<vmem>>, vector<1x7x32xf32>,
    return
  }
  func.func @transform_0(%arg0: i32) -> (i32, i32, i32) {
    %c0_i32 = arith.constant 0 : i32
    %c0_i32_0 = arith.constant 0 : i32
    %c0_i32_1 = arith.constant 0 : i32
    %c0_i32_2 = arith.constant 0 : i32
    return %c0_i32, %c0_i32_0, %c0_i32_1 : i32, i32, i32
  }
  func.func @transform_1(%arg0: i32) -> (i32, i32) {
    %c0_i32 = arith.constant 0 : i32
    %c0_i32_0 = arith.constant 0 : i32
    %c0_i32_1 = arith.constant 0 : i32
    return %c0_i32, %c0_i32_0 : i32, i32
  }
  func.func @transform_2(%arg0: i32) -> (i32, i32) {
    %c0_i32 = arith.constant 0 : i32
    %c0_i32_0 = arith.constant 0 : i32
    %c0_i32_1 = arith.constant 0 : i32
    return %c0_i32, %c0_i32_0 : i32, i32
  }
  func.func @transform_3(%arg0: i32) -> (i32, i32) {
    %c0_i32 = arith.constant 0 : i32
    %c0_i32_0 = arith.constant 0 : i32
    %c0_i32_1 = arith.constant 0 : i32
    return %c0_i32, %c0_i32_0 : i32, i32
  }
  func.func @transform_4(%arg0: i32) -> (i32, i32) {
    %c0_i32 = arith.constant 0 : i32
    %c0_i32_0 = arith.constant 0 : i32
    %c0_i32_1 = arith.constant 0 : i32
    return %c0_i32, %c0_i32_0 : i32, i32
  }
  func.func @transform_5(%arg0: i32) -> (i32, i32) {
    %c0_i32 = arith.constant 0 : i32
    %c0_i32_0 = arith.constant 0 : i32
    %c0_i32_1 = arith.constant 0 : i32
    return %c0_i32, %c0_i32_0 : i32, i32
  }
  func.func @transform_6(%arg0: i32) -> (i32, i32) {
    %c0_i32 = arith.constant 0 : i32
    %c0_i32_0 = arith.constant 0 : i32
    %c0_i32_1 = arith.constant 0 : i32
    return %c0_i32, %c0_i32_0 : i32, i32
  }
  func.func @transform_7(%arg0: i32) -> (i32, i32) {
    %c0_i32 = arith.constant 0 : i32
    %c0_i32_0 = arith.constant 0 : i32
    %c0_i32_1 = arith.constant 0 : i32
    return %c0_i32, %c0_i32_0 : i32, i32
  }
  func.func @transform_8(%arg0: i32) -> (i32, i32) {
    %c0_i32 = arith.constant 0 : i32
    %c0_i32_0 = arith.constant 0 : i32
    %c0_i32_1 = arith.constant 0 : i32
    return %c0_i32, %c0_i32_0 : i32, i32
  }
  func.func @transform_9(%arg0: i32) -> (i32, i32) {
    %c0_i32 = arith.constant 0 : i32
    %c0_i32_0 = arith.constant 0 : i32
    %c0_i32_1 = arith.constant 0 : i32
    return %c0_i32, %c0_i32_0 : i32, i32
  }
  func.func @transform_10(%arg0: i32) -> (i32, i32) {
    %c0_i32 = arith.constant 0 : i32
    %c0_i32_0 = arith.constant 0 : i32
    %c0_i32_1 = arith.constant 0 : i32
    return %c0_i32, %c0_i32_0 : i32, i32
  }
  func.func @transform_11(%arg0: i32) -> (i32, i32) {
    %c0_i32 = arith.constant 0 : i32
    %c0_i32_0 = arith.constant 0 : i32
    %c0_i32_1 = arith.constant 0 : i32
    return %c0_i32, %c0_i32_0 : i32, i32
  }
  func.func @transform_12(%arg0: i32) -> (i32, i32) {
    %c0_i32 = arith.constant 0 : i32
    %c0_i32_0 = arith.constant 0 : i32
    %c0_i32_1 = arith.constant 0 : i32
    return %c0_i32, %c0_i32_0 : i32, i32
  }
  func.func @transform_13(%arg0: i32) -> (i32, i32, i32) {
    %c0_i32 = arith.constant 0 : i32
    %c0_i32_0 = arith.constant 0 : i32
    %c0_i32_1 = arith.constant 0 : i32
    %c0_i32_2 = arith.constant 0 : i32
    return %c0_i32, %c0_i32_0, %c0_i32_1 : i32, i32, i32
  }
}

module attributes {stable_mosaic.version = 11 : i64} {
  func.func @_cls_head_kernel(%arg0: i32, %arg1: memref<2x32xf32, #tpu.memory_space<vmem>>, %arg2: memref<1x32xf32, #tpu.memory_space<vmem>>, %arg3: memref<1x32xf32, #tpu.memory_space<vmem>>, %arg4: memref<32x10xf32, #tpu.memory_space<vmem>>, %arg5: memref<1x10xf32, #tpu.memory_space<vmem>>, %arg6: memref<2x10xf32, #tpu.memory_space<vmem>>) attributes {dimension_semantics = [#tpu.dimension_semantics<arbitrary>], iteration_bounds = array<i64: 1>, scalar_prefetch = 0 : i64, scratch_operands = 0 : i64, tpu.core_type = #tpu.core_type<tc>, window_params = [{pipeline_mode = #tpu.pipeline_mode<synchronous>, transform_indices = @transform_0, window_bounds = array<i64: 2, 32>}, {pipeline_mode = #tpu.pipeline_mode<synchronous>, transform_indices = @transform_1, window_bounds = array<i64: 1, 32>}, {pipeline_mode = #tpu.pipeline_mode<synchronous>, transform_indices = @transform_2, window_bounds = array<i64: 1, 32>}, {pipeline_mode = #tpu.pipeline_mode<synchronous>, transform_indices = @transform_3, window_bounds = array<i64: 32, 10>}, {pipeline_mode = #tpu.pipeline_mode<synchronous>, transform_indices = @transform_4, window_bounds = array<i64: 1, 10>}, {pipeline_mode = #tpu.pipeline_mode<synchronous>, transform_indices = @transform_5, window_bounds = array<i64: 2, 10>}]} {
    %c0 = arith.constant 0 : index
    %c0_0 = arith.constant 0 : index
    %0 = vector.load %arg1[%c0, %c0_0] : memref<2x32xf32, #tpu.memory_space<vmem>>, vector<2x32xf32>
    %c0_1 = arith.constant 0 : index
    %c0_2 = arith.constant 0 : index
    %1 = vector.load %arg2[%c0_1, %c0_2] : memref<1x32xf32, #tpu.memory_space<vmem>>, vector<1x32xf32>
    %c0_3 = arith.constant 0 : index
    %c0_4 = arith.constant 0 : index
    %2 = vector.load %arg3[%c0_3, %c0_4] : memref<1x32xf32, #tpu.memory_space<vmem>>, vector<1x32xf32>
    %cst = arith.constant dense<0.000000e+00> : vector<2xf32>
    %3 = vector.multi_reduction <add>, %0, %cst [1] : vector<2x32xf32> to vector<2xf32>
    %4 = vector.shape_cast %3 : vector<2xf32> to vector<2x1xf32>
    %cst_5 = arith.constant 3.200000e+01 : f32
    %5 = vector.broadcast %cst_5 : f32 to vector<2x1xf32>
    %6 = arith.divf %4, %5 : vector<2x1xf32>
    %7 = vector.broadcast %6 : vector<2x1xf32> to vector<2x32xf32>
    %8 = arith.subf %0, %7 : vector<2x32xf32>
    %9 = arith.mulf %8, %8 : vector<2x32xf32>
    %cst_6 = arith.constant dense<0.000000e+00> : vector<2xf32>
    %10 = vector.multi_reduction <add>, %9, %cst_6 [1] : vector<2x32xf32> to vector<2xf32>
    %11 = vector.shape_cast %10 : vector<2xf32> to vector<2x1xf32>
    %cst_7 = arith.constant 3.200000e+01 : f32
    %12 = vector.broadcast %cst_7 : f32 to vector<2x1xf32>
    %13 = arith.divf %11, %12 : vector<2x1xf32>
    %cst_8 = arith.constant 9.99999997E-7 : f32
    %14 = vector.broadcast %cst_8 : f32 to vector<2x1xf32>
    %15 = arith.addf %13, %14 : vector<2x1xf32>
    %16 = math.rsqrt %15 : vector<2x1xf32>
    %17 = vector.broadcast %16 : vector<2x1xf32> to vector<2x32xf32>
    %18 = arith.mulf %8, %17 : vector<2x32xf32>
    %19 = vector.broadcast %1 : vector<1x32xf32> to vector<2x32xf32>
    %20 = arith.mulf %18, %19 : vector<2x32xf32>
    %21 = vector.broadcast %2 : vector<1x32xf32> to vector<2x32xf32>
    %22 = arith.addf %20, %21 : vector<2x32xf32>
    %c0_9 = arith.constant 0 : index
    %c0_10 = arith.constant 0 : index
    %23 = vector.load %arg4[%c0_9, %c0_10] : memref<32x10xf32, #tpu.memory_space<vmem>>, vector<32x10xf32>
    %cst_11 = arith.constant dense<0.000000e+00> : vector<2x10xf32>
    %24 = tpu.matmul %22, %23, %cst_11 {dimension_numbers = #tpu.dot_dimension_numbers<[1], [0], [0], [1], [0, 0, 1, 1], [], []>} : vector<2x32xf32>, vector<32x10xf32>, vector<2x10xf32> -> vector<2x10xf32>
    %c0_12 = arith.constant 0 : index
    %c0_13 = arith.constant 0 : index
    %25 = vector.load %arg5[%c0_12, %c0_13] : memref<1x10xf32, #tpu.memory_space<vmem>>, vector<1x10xf32>
    %26 = vector.broadcast %25 : vector<1x10xf32> to vector<2x10xf32>
    %27 = arith.addf %24, %26 : vector<2x10xf32>
    %c0_14 = arith.constant 0 : index
    %c0_15 = arith.constant 0 : index
    %28 = vector.load %arg6[%c0_14, %c0_15] : memref<2x10xf32, #tpu.memory_space<vmem>>, vector<2x10xf32>
    tpu.vector_store %arg6[%c0_14, %c0_15], %27 {strides = array<i32>} : memref<2x10xf32, #tpu.memory_space<vmem>>, vector<2x10xf32>,
    return
  }
  func.func @transform_0(%arg0: i32) -> (i32, i32) {
    %c0_i32 = arith.constant 0 : i32
    %c0_i32_0 = arith.constant 0 : i32
    %c0_i32_1 = arith.constant 0 : i32
    return %c0_i32, %c0_i32_0 : i32, i32
  }
  func.func @transform_1(%arg0: i32) -> (i32, i32) {
    %c0_i32 = arith.constant 0 : i32
    %c0_i32_0 = arith.constant 0 : i32
    %c0_i32_1 = arith.constant 0 : i32
    return %c0_i32, %c0_i32_0 : i32, i32
  }
  func.func @transform_2(%arg0: i32) -> (i32, i32) {
    %c0_i32 = arith.constant 0 : i32
    %c0_i32_0 = arith.constant 0 : i32
    %c0_i32_1 = arith.constant 0 : i32
    return %c0_i32, %c0_i32_0 : i32, i32
  }
  func.func @transform_3(%arg0: i32) -> (i32, i32) {
    %c0_i32 = arith.constant 0 : i32
    %c0_i32_0 = arith.constant 0 : i32
    %c0_i32_1 = arith.constant 0 : i32
    return %c0_i32, %c0_i32_0 : i32, i32
  }
  func.func @transform_4(%arg0: i32) -> (i32, i32) {
    %c0_i32 = arith.constant 0 : i32
    %c0_i32_0 = arith.constant 0 : i32
    %c0_i32_1 = arith.constant 0 : i32
    return %c0_i32, %c0_i32_0 : i32, i32
  }
  func.func @transform_5(%arg0: i32) -> (i32, i32) {
    %c0_i32 = arith.constant 0 : i32
    %c0_i32_0 = arith.constant 0 : i32
    %c0_i32_1 = arith.constant 0 : i32
    return %c0_i32, %c0_i32_0 : i32, i32
  }
}

module attributes {stable_mosaic.version = 11 : i64} {
  func.func @_vit_block_kernel(%arg0: i32, %arg1: memref<2x8x32xf32, #tpu.memory_space<vmem>>, %arg2: memref<1x32xf32, #tpu.memory_space<vmem>>, %arg3: memref<1x32xf32, #tpu.memory_space<vmem>>, %arg4: memref<32x96xf32, #tpu.memory_space<vmem>>, %arg5: memref<1x96xf32, #tpu.memory_space<vmem>>, %arg6: memref<32x32xf32, #tpu.memory_space<vmem>>, %arg7: memref<1x32xf32, #tpu.memory_space<vmem>>, %arg8: memref<1x32xf32, #tpu.memory_space<vmem>>, %arg9: memref<1x32xf32, #tpu.memory_space<vmem>>, %arg10: memref<32x64xf32, #tpu.memory_space<vmem>>, %arg11: memref<1x64xf32, #tpu.memory_space<vmem>>, %arg12: memref<64x32xf32, #tpu.memory_space<vmem>>, %arg13: memref<1x32xf32, #tpu.memory_space<vmem>>, %arg14: memref<2x8x32xf32, #tpu.memory_space<vmem>>) attributes {dimension_semantics = [#tpu.dimension_semantics<arbitrary>], iteration_bounds = array<i64: 1>, scalar_prefetch = 0 : i64, scratch_operands = 0 : i64, tpu.core_type = #tpu.core_type<tc>, window_params = [{pipeline_mode = #tpu.pipeline_mode<synchronous>, transform_indices = @transform_0, window_bounds = array<i64: 2, 8, 32>}, {pipeline_mode = #tpu.pipeline_mode<synchronous>, transform_indices = @transform_1, window_bounds = array<i64: 1, 32>}, {pipeline_mode = #tpu.pipeline_mode<synchronous>, transform_indices = @transform_2, window_bounds = array<i64: 1, 32>}, {pipeline_mode = #tpu.pipeline_mode<synchronous>, transform_indices = @transform_3, window_bounds = array<i64: 32, 96>}, {pipeline_mode = #tpu.pipeline_mode<synchronous>, transform_indices = @transform_4, window_bounds = array<i64: 1, 96>}, {pipeline_mode = #tpu.pipeline_mode<synchronous>, transform_indices = @transform_5, window_bounds = array<i64: 32, 32>}, {pipeline_mode = #tpu.pipeline_mode<synchronous>, transform_indices = @transform_6, window_bounds = array<i64: 1, 32>}, {pipeline_mode = #tpu.pipeline_mode<synchronous>, transform_indices = @transform_7, window_bounds = array<i64: 1, 32>}, {pipeline_mode = #tpu.pipeline_mode<synchronous>, transform_indices = @transform_8, window_bounds = array<i64: 1, 32>}, {pipeline_mode = #tpu.pipeline_mode<synchronous>, transform_indices = @transform_9, window_bounds = array<i64: 32, 64>}, {pipeline_mode = #tpu.pipeline_mode<synchronous>, transform_indices = @transform_10, window_bounds = array<i64: 1, 64>}, {pipeline_mode = #tpu.pipeline_mode<synchronous>, transform_indices = @transform_11, window_bounds = array<i64: 64, 32>}, {pipeline_mode = #tpu.pipeline_mode<synchronous>, transform_indices = @transform_12, window_bounds = array<i64: 1, 32>}, {pipeline_mode = #tpu.pipeline_mode<synchronous>, transform_indices = @transform_13, window_bounds = array<i64: 2, 8, 32>}]} {
    %c0 = arith.constant 0 : index
    %c0_0 = arith.constant 0 : index
    %0 = vector.load %arg2[%c0, %c0_0] : memref<1x32xf32, #tpu.memory_space<vmem>>, vector<1x32xf32>
    %c0_1 = arith.constant 0 : index
    %c0_2 = arith.constant 0 : index
    %1 = vector.load %arg3[%c0_1, %c0_2] : memref<1x32xf32, #tpu.memory_space<vmem>>, vector<1x32xf32>
    %c0_3 = arith.constant 0 : index
    %c0_4 = arith.constant 0 : index
    %2 = vector.load %arg4[%c0_3, %c0_4] : memref<32x96xf32, #tpu.memory_space<vmem>>, vector<32x96xf32>
    %c0_5 = arith.constant 0 : index
    %c0_6 = arith.constant 0 : index
    %3 = vector.load %arg5[%c0_5, %c0_6] : memref<1x96xf32, #tpu.memory_space<vmem>>, vector<1x96xf32>
    %c0_7 = arith.constant 0 : index
    %c0_8 = arith.constant 0 : index
    %4 = vector.load %arg6[%c0_7, %c0_8] : memref<32x32xf32, #tpu.memory_space<vmem>>, vector<32x32xf32>
    %c0_9 = arith.constant 0 : index
    %c0_10 = arith.constant 0 : index
    %5 = vector.load %arg7[%c0_9, %c0_10] : memref<1x32xf32, #tpu.memory_space<vmem>>, vector<1x32xf32>
    %c0_11 = arith.constant 0 : index
    %c0_12 = arith.constant 0 : index
    %6 = vector.load %arg8[%c0_11, %c0_12] : memref<1x32xf32, #tpu.memory_space<vmem>>, vector<1x32xf32>
    %c0_13 = arith.constant 0 : index
    %c0_14 = arith.constant 0 : index
    %7 = vector.load %arg9[%c0_13, %c0_14] : memref<1x32xf32, #tpu.memory_space<vmem>>, vector<1x32xf32>
    %c0_15 = arith.constant 0 : index
    %c0_16 = arith.constant 0 : index
    %8 = vector.load %arg10[%c0_15, %c0_16] : memref<32x64xf32, #tpu.memory_space<vmem>>, vector<32x64xf32>
    %c0_17 = arith.constant 0 : index
    %c0_18 = arith.constant 0 : index
    %9 = vector.load %arg11[%c0_17, %c0_18] : memref<1x64xf32, #tpu.memory_space<vmem>>, vector<1x64xf32>
    %c0_19 = arith.constant 0 : index
    %c0_20 = arith.constant 0 : index
    %10 = vector.load %arg12[%c0_19, %c0_20] : memref<64x32xf32, #tpu.memory_space<vmem>>, vector<64x32xf32>
    %c0_21 = arith.constant 0 : index
    %c0_22 = arith.constant 0 : index
    %11 = vector.load %arg13[%c0_21, %c0_22] : memref<1x32xf32, #tpu.memory_space<vmem>>, vector<1x32xf32>
    %c0_23 = arith.constant 0 : index
    %c0_24 = arith.constant 0 : index
    %c0_25 = arith.constant 0 : index
    %12 = vector.load %arg1[%c0_23, %c0_24, %c0_25] : memref<2x8x32xf32, #tpu.memory_space<vmem>>, vector<1x8x32xf32>
    %13 = vector.shape_cast %12 : vector<1x8x32xf32> to vector<8x32xf32>
    %cst = arith.constant dense<0.000000e+00> : vector<8xf32>
    %14 = vector.multi_reduction <add>, %13, %cst [1] : vector<8x32xf32> to vector<8xf32>
    %15 = vector.shape_cast %14 : vector<8xf32> to vector<8x1xf32>
    %cst_26 = arith.constant 3.200000e+01 : f32
    %16 = vector.broadcast %cst_26 : f32 to vector<8x1xf32>
    %17 = arith.divf %15, %16 : vector<8x1xf32>
    %18 = vector.broadcast %17 : vector<8x1xf32> to vector<8x32xf32>
    %19 = arith.subf %13, %18 : vector<8x32xf32>
    %20 = arith.mulf %19, %19 : vector<8x32xf32>
    %cst_27 = arith.constant dense<0.000000e+00> : vector<8xf32>
    %21 = vector.multi_reduction <add>, %20, %cst_27 [1] : vector<8x32xf32> to vector<8xf32>
    %22 = vector.shape_cast %21 : vector<8xf32> to vector<8x1xf32>
    %cst_28 = arith.constant 3.200000e+01 : f32
    %23 = vector.broadcast %cst_28 : f32 to vector<8x1xf32>
    %24 = arith.divf %22, %23 : vector<8x1xf32>
    %cst_29 = arith.constant 9.99999997E-7 : f32
    %25 = vector.broadcast %cst_29 : f32 to vector<8x1xf32>
    %26 = arith.addf %24, %25 : vector<8x1xf32>
    %27 = math.rsqrt %26 : vector<8x1xf32>
    %28 = vector.broadcast %27 : vector<8x1xf32> to vector<8x32xf32>
    %29 = arith.mulf %19, %28 : vector<8x32xf32>
    %30 = vector.broadcast %0 : vector<1x32xf32> to vector<8x32xf32>
    %31 = arith.mulf %29, %30 : vector<8x32xf32>
    %32 = vector.broadcast %1 : vector<1x32xf32> to vector<8x32xf32>
    %33 = arith.addf %31, %32 : vector<8x32xf32>
    %cst_30 = arith.constant dense<0.000000e+00> : vector<8x96xf32>
    %34 = tpu.matmul %33, %2, %cst_30 {dimension_numbers = #tpu.dot_dimension_numbers<[1], [0], [0], [1], [0, 0, 1, 1], [], []>} : vector<8x32xf32>, vector<32x96xf32>, vector<8x96xf32> -> vector<8x96xf32>
    %35 = vector.broadcast %3 : vector<1x96xf32> to vector<8x96xf32>
    %36 = arith.addf %34, %35 : vector<8x96xf32>
    %37 = vector.extract_strided_slice %36 {offsets = [0, 0], sizes = [8, 16], strides = [1, 1]} : vector<8x96xf32> to vector<8x16xf32>
    %38 = vector.extract_strided_slice %36 {offsets = [0, 32], sizes = [8, 16], strides = [1, 1]} : vector<8x96xf32> to vector<8x16xf32>
    %39 = vector.extract_strided_slice %36 {offsets = [0, 64], sizes = [8, 16], strides = [1, 1]} : vector<8x96xf32> to vector<8x16xf32>
    %cst_31 = arith.constant dense<0.000000e+00> : vector<8x8xf32>
    %40 = tpu.matmul %37, %38, %cst_31 {dimension_numbers = #tpu.dot_dimension_numbers<[1], [1], [0], [0], [0, 0, 1, 0], [], []>} : vector<8x16xf32>, vector<8x16xf32>, vector<8x8xf32> -> vector<8x8xf32>
    %cst_32 = arith.constant 2.500000e-01 : f32
    %41 = vector.broadcast %cst_32 : f32 to vector<8x8xf32>
    %42 = arith.mulf %40, %41 : vector<8x8xf32>
    %cst_33 = arith.constant dense<0xFF800000> : vector<8xf32>
    %43 = vector.multi_reduction <maximumf>, %42, %cst_33 [1] : vector<8x8xf32> to vector<8xf32>
    %44 = vector.shape_cast %43 : vector<8xf32> to vector<8x1xf32>
    %45 = vector.broadcast %44 : vector<8x1xf32> to vector<8x8xf32>
    %46 = arith.subf %42, %45 : vector<8x8xf32>
    %47 = math.exp %46 : vector<8x8xf32>
    %cst_34 = arith.constant dense<0.000000e+00> : vector<8xf32>
    %48 = vector.multi_reduction <add>, %47, %cst_34 [1] : vector<8x8xf32> to vector<8xf32>
    %49 = vector.shape_cast %48 : vector<8xf32> to vector<8x1xf32>
    %50 = tpu.reciprocal %49 {approx = true} : vector<8x1xf32> -> vector<8x1xf32>
    %51 = vector.broadcast %50 : vector<8x1xf32> to vector<8x8xf32>
    %52 = arith.mulf %47, %51 : vector<8x8xf32>
    %cst_35 = arith.constant dense<0.000000e+00> : vector<8x16xf32>
    %53 = tpu.matmul %52, %39, %cst_35 {dimension_numbers = #tpu.dot_dimension_numbers<[1], [0], [0], [1], [0, 0, 1, 1], [], []>} : vector<8x8xf32>, vector<8x16xf32>, vector<8x16xf32> -> vector<8x16xf32>
    %54 = vector.extract_strided_slice %36 {offsets = [0, 16], sizes = [8, 16], strides = [1, 1]} : vector<8x96xf32> to vector<8x16xf32>
    %55 = vector.extract_strided_slice %36 {offsets = [0, 48], sizes = [8, 16], strides = [1, 1]} : vector<8x96xf32> to vector<8x16xf32>
    %56 = vector.extract_strided_slice %36 {offsets = [0, 80], sizes = [8, 16], strides = [1, 1]} : vector<8x96xf32> to vector<8x16xf32>
    %cst_36 = arith.constant dense<0.000000e+00> : vector<8x8xf32>
    %57 = tpu.matmul %54, %55, %cst_36 {dimension_numbers = #tpu.dot_dimension_numbers<[1], [1], [0], [0], [0, 0, 1, 0], [], []>} : vector<8x16xf32>, vector<8x16xf32>, vector<8x8xf32> -> vector<8x8xf32>
    %cst_37 = arith.constant 2.500000e-01 : f32
    %58 = vector.broadcast %cst_37 : f32 to vector<8x8xf32>
    %59 = arith.mulf %57, %58 : vector<8x8xf32>
    %cst_38 = arith.constant dense<0xFF800000> : vector<8xf32>
    %60 = vector.multi_reduction <maximumf>, %59, %cst_38 [1] : vector<8x8xf32> to vector<8xf32>
    %61 = vector.shape_cast %60 : vector<8xf32> to vector<8x1xf32>
    %62 = vector.broadcast %61 : vector<8x1xf32> to vector<8x8xf32>
    %63 = arith.subf %59, %62 : vector<8x8xf32>
    %64 = math.exp %63 : vector<8x8xf32>
    %cst_39 = arith.constant dense<0.000000e+00> : vector<8xf32>
    %65 = vector.multi_reduction <add>, %64, %cst_39 [1] : vector<8x8xf32> to vector<8xf32>
    %66 = vector.shape_cast %65 : vector<8xf32> to vector<8x1xf32>
    %67 = tpu.reciprocal %66 {approx = true} : vector<8x1xf32> -> vector<8x1xf32>
    %68 = vector.broadcast %67 : vector<8x1xf32> to vector<8x8xf32>
    %69 = arith.mulf %64, %68 : vector<8x8xf32>
    %cst_40 = arith.constant dense<0.000000e+00> : vector<8x16xf32>
    %70 = tpu.matmul %69, %56, %cst_40 {dimension_numbers = #tpu.dot_dimension_numbers<[1], [0], [0], [1], [0, 0, 1, 1], [], []>} : vector<8x8xf32>, vector<8x16xf32>, vector<8x16xf32> -> vector<8x16xf32>
    %71 = tpu.concatenate %53, %70 in 1 : vector<8x16xf32>, vector<8x16xf32> -> vector<8x32xf32>
    %cst_41 = arith.constant dense<0.000000e+00> : vector<8x32xf32>
    %72 = tpu.matmul %71, %4, %cst_41 {dimension_numbers = #tpu.dot_dimension_numbers<[1], [0], [0], [1], [0, 0, 1, 1], [], []>} : vector<8x32xf32>, vector<32x32xf32>, vector<8x32xf32> -> vector<8x32xf32>
    %73 = arith.addf %13, %72 : vector<8x32xf32>
    %74 = vector.broadcast %5 : vector<1x32xf32> to vector<8x32xf32>
    %75 = arith.addf %73, %74 : vector<8x32xf32>
    %cst_42 = arith.constant dense<0.000000e+00> : vector<8xf32>
    %76 = vector.multi_reduction <add>, %75, %cst_42 [1] : vector<8x32xf32> to vector<8xf32>
    %77 = vector.shape_cast %76 : vector<8xf32> to vector<8x1xf32>
    %cst_43 = arith.constant 3.200000e+01 : f32
    %78 = vector.broadcast %cst_43 : f32 to vector<8x1xf32>
    %79 = arith.divf %77, %78 : vector<8x1xf32>
    %80 = vector.broadcast %79 : vector<8x1xf32> to vector<8x32xf32>
    %81 = arith.subf %75, %80 : vector<8x32xf32>
    %82 = arith.mulf %81, %81 : vector<8x32xf32>
    %cst_44 = arith.constant dense<0.000000e+00> : vector<8xf32>
    %83 = vector.multi_reduction <add>, %82, %cst_44 [1] : vector<8x32xf32> to vector<8xf32>
    %84 = vector.shape_cast %83 : vector<8xf32> to vector<8x1xf32>
    %cst_45 = arith.constant 3.200000e+01 : f32
    %85 = vector.broadcast %cst_45 : f32 to vector<8x1xf32>
    %86 = arith.divf %84, %85 : vector<8x1xf32>
    %cst_46 = arith.constant 9.99999997E-7 : f32
    %87 = vector.broadcast %cst_46 : f32 to vector<8x1xf32>
    %88 = arith.addf %86, %87 : vector<8x1xf32>
    %89 = math.rsqrt %88 : vector<8x1xf32>
    %90 = vector.broadcast %89 : vector<8x1xf32> to vector<8x32xf32>
    %91 = arith.mulf %81, %90 : vector<8x32xf32>
    %92 = vector.broadcast %6 : vector<1x32xf32> to vector<8x32xf32>
    %93 = arith.mulf %91, %92 : vector<8x32xf32>
    %94 = vector.broadcast %7 : vector<1x32xf32> to vector<8x32xf32>
    %95 = arith.addf %93, %94 : vector<8x32xf32>
    %cst_47 = arith.constant dense<0.000000e+00> : vector<8x64xf32>
    %96 = tpu.matmul %95, %8, %cst_47 {dimension_numbers = #tpu.dot_dimension_numbers<[1], [0], [0], [1], [0, 0, 1, 1], [], []>} : vector<8x32xf32>, vector<32x64xf32>, vector<8x64xf32> -> vector<8x64xf32>
    %97 = vector.broadcast %9 : vector<1x64xf32> to vector<8x64xf32>
    %98 = arith.addf %96, %97 : vector<8x64xf32>
    %99 = arith.mulf %98, %98 : vector<8x64xf32>
    %100 = arith.mulf %98, %99 : vector<8x64xf32>
    %cst_48 = arith.constant 4.471500e-02 : f32
    %101 = vector.broadcast %cst_48 : f32 to vector<8x64xf32>
    %102 = arith.mulf %101, %100 : vector<8x64xf32>
    %103 = arith.addf %98, %102 : vector<8x64xf32>
    %cst_49 = arith.constant 0.797884583 : f32
    %104 = vector.broadcast %cst_49 : f32 to vector<8x64xf32>
    %105 = arith.mulf %104, %103 : vector<8x64xf32>
    %106 = math.tanh %105 : vector<8x64xf32>
    %cst_50 = arith.constant 1.000000e+00 : f32
    %107 = vector.broadcast %cst_50 : f32 to vector<8x64xf32>
    %108 = arith.addf %107, %106 : vector<8x64xf32>
    %cst_51 = arith.constant 5.000000e-01 : f32
    %109 = vector.broadcast %cst_51 : f32 to vector<8x64xf32>
    %110 = arith.mulf %109, %108 : vector<8x64xf32>
    %111 = arith.mulf %98, %110 : vector<8x64xf32>
    %cst_52 = arith.constant dense<0.000000e+00> : vector<8x32xf32>
    %112 = tpu.matmul %111, %10, %cst_52 {dimension_numbers = #tpu.dot_dimension_numbers<[1], [0], [0], [1], [0, 0, 1, 1], [], []>} : vector<8x64xf32>, vector<64x32xf32>, vector<8x32xf32> -> vector<8x32xf32>
    %113 = vector.broadcast %11 : vector<1x32xf32> to vector<8x32xf32>
    %114 = arith.addf %112, %113 : vector<8x32xf32>
    %115 = arith.addf %75, %114 : vector<8x32xf32>
    %c0_53 = arith.constant 0 : index
    %c0_54 = arith.constant 0 : index
    %c0_55 = arith.constant 0 : index
    %116 = vector.load %arg14[%c0_53, %c0_54, %c0_55] : memref<2x8x32xf32, #tpu.memory_space<vmem>>, vector<1x8x32xf32>
    %117 = vector.shape_cast %116 : vector<1x8x32xf32> to vector<8x32xf32>
    %118 = vector.shape_cast %115 : vector<8x32xf32> to vector<1x8x32xf32>
    tpu.vector_store %arg14[%c0_53, %c0_54, %c0_55], %118 {strides = array<i32>} : memref<2x8x32xf32, #tpu.memory_space<vmem>>, vector<1x8x32xf32>,
    %c1 = arith.constant 1 : index
    %c0_56 = arith.constant 0 : index
    %c0_57 = arith.constant 0 : index
    %119 = vector.load %arg1[%c1, %c0_56, %c0_57] : memref<2x8x32xf32, #tpu.memory_space<vmem>>, vector<1x8x32xf32>
    %120 = vector.shape_cast %119 : vector<1x8x32xf32> to vector<8x32xf32>
    %cst_58 = arith.constant dense<0.000000e+00> : vector<8xf32>
    %121 = vector.multi_reduction <add>, %120, %cst_58 [1] : vector<8x32xf32> to vector<8xf32>
    %122 = vector.shape_cast %121 : vector<8xf32> to vector<8x1xf32>
    %cst_59 = arith.constant 3.200000e+01 : f32
    %123 = vector.broadcast %cst_59 : f32 to vector<8x1xf32>
    %124 = arith.divf %122, %123 : vector<8x1xf32>
    %125 = vector.broadcast %124 : vector<8x1xf32> to vector<8x32xf32>
    %126 = arith.subf %120, %125 : vector<8x32xf32>
    %127 = arith.mulf %126, %126 : vector<8x32xf32>
    %cst_60 = arith.constant dense<0.000000e+00> : vector<8xf32>
    %128 = vector.multi_reduction <add>, %127, %cst_60 [1] : vector<8x32xf32> to vector<8xf32>
    %129 = vector.shape_cast %128 : vector<8xf32> to vector<8x1xf32>
    %cst_61 = arith.constant 3.200000e+01 : f32
    %130 = vector.broadcast %cst_61 : f32 to vector<8x1xf32>
    %131 = arith.divf %129, %130 : vector<8x1xf32>
    %cst_62 = arith.constant 9.99999997E-7 : f32
    %132 = vector.broadcast %cst_62 : f32 to vector<8x1xf32>
    %133 = arith.addf %131, %132 : vector<8x1xf32>
    %134 = math.rsqrt %133 : vector<8x1xf32>
    %135 = vector.broadcast %134 : vector<8x1xf32> to vector<8x32xf32>
    %136 = arith.mulf %126, %135 : vector<8x32xf32>
    %137 = vector.broadcast %0 : vector<1x32xf32> to vector<8x32xf32>
    %138 = arith.mulf %136, %137 : vector<8x32xf32>
    %139 = vector.broadcast %1 : vector<1x32xf32> to vector<8x32xf32>
    %140 = arith.addf %138, %139 : vector<8x32xf32>
    %cst_63 = arith.constant dense<0.000000e+00> : vector<8x96xf32>
    %141 = tpu.matmul %140, %2, %cst_63 {dimension_numbers = #tpu.dot_dimension_numbers<[1], [0], [0], [1], [0, 0, 1, 1], [], []>} : vector<8x32xf32>, vector<32x96xf32>, vector<8x96xf32> -> vector<8x96xf32>
    %142 = vector.broadcast %3 : vector<1x96xf32> to vector<8x96xf32>
    %143 = arith.addf %141, %142 : vector<8x96xf32>
    %144 = vector.extract_strided_slice %143 {offsets = [0, 0], sizes = [8, 16], strides = [1, 1]} : vector<8x96xf32> to vector<8x16xf32>
    %145 = vector.extract_strided_slice %143 {offsets = [0, 32], sizes = [8, 16], strides = [1, 1]} : vector<8x96xf32> to vector<8x16xf32>
    %146 = vector.extract_strided_slice %143 {offsets = [0, 64], sizes = [8, 16], strides = [1, 1]} : vector<8x96xf32> to vector<8x16xf32>
    %cst_64 = arith.constant dense<0.000000e+00> : vector<8x8xf32>
    %147 = tpu.matmul %144, %145, %cst_64 {dimension_numbers = #tpu.dot_dimension_numbers<[1], [1], [0], [0], [0, 0, 1, 0], [], []>} : vector<8x16xf32>, vector<8x16xf32>, vector<8x8xf32> -> vector<8x8xf32>
    %cst_65 = arith.constant 2.500000e-01 : f32
    %148 = vector.broadcast %cst_65 : f32 to vector<8x8xf32>
    %149 = arith.mulf %147, %148 : vector<8x8xf32>
    %cst_66 = arith.constant dense<0xFF800000> : vector<8xf32>
    %150 = vector.multi_reduction <maximumf>, %149, %cst_66 [1] : vector<8x8xf32> to vector<8xf32>
    %151 = vector.shape_cast %150 : vector<8xf32> to vector<8x1xf32>
    %152 = vector.broadcast %151 : vector<8x1xf32> to vector<8x8xf32>
    %153 = arith.subf %149, %152 : vector<8x8xf32>
    %154 = math.exp %153 : vector<8x8xf32>
    %cst_67 = arith.constant dense<0.000000e+00> : vector<8xf32>
    %155 = vector.multi_reduction <add>, %154, %cst_67 [1] : vector<8x8xf32> to vector<8xf32>
    %156 = vector.shape_cast %155 : vector<8xf32> to vector<8x1xf32>
    %157 = tpu.reciprocal %156 {approx = true} : vector<8x1xf32> -> vector<8x1xf32>
    %158 = vector.broadcast %157 : vector<8x1xf32> to vector<8x8xf32>
    %159 = arith.mulf %154, %158 : vector<8x8xf32>
    %cst_68 = arith.constant dense<0.000000e+00> : vector<8x16xf32>
    %160 = tpu.matmul %159, %146, %cst_68 {dimension_numbers = #tpu.dot_dimension_numbers<[1], [0], [0], [1], [0, 0, 1, 1], [], []>} : vector<8x8xf32>, vector<8x16xf32>, vector<8x16xf32> -> vector<8x16xf32>
    %161 = vector.extract_strided_slice %143 {offsets = [0, 16], sizes = [8, 16], strides = [1, 1]} : vector<8x96xf32> to vector<8x16xf32>
    %162 = vector.extract_strided_slice %143 {offsets = [0, 48], sizes = [8, 16], strides = [1, 1]} : vector<8x96xf32> to vector<8x16xf32>
    %163 = vector.extract_strided_slice %143 {offsets = [0, 80], sizes = [8, 16], strides = [1, 1]} : vector<8x96xf32> to vector<8x16xf32>
    %cst_69 = arith.constant dense<0.000000e+00> : vector<8x8xf32>
    %164 = tpu.matmul %161, %162, %cst_69 {dimension_numbers = #tpu.dot_dimension_numbers<[1], [1], [0], [0], [0, 0, 1, 0], [], []>} : vector<8x16xf32>, vector<8x16xf32>, vector<8x8xf32> -> vector<8x8xf32>
    %cst_70 = arith.constant 2.500000e-01 : f32
    %165 = vector.broadcast %cst_70 : f32 to vector<8x8xf32>
    %166 = arith.mulf %164, %165 : vector<8x8xf32>
    %cst_71 = arith.constant dense<0xFF800000> : vector<8xf32>
    %167 = vector.multi_reduction <maximumf>, %166, %cst_71 [1] : vector<8x8xf32> to vector<8xf32>
    %168 = vector.shape_cast %167 : vector<8xf32> to vector<8x1xf32>
    %169 = vector.broadcast %168 : vector<8x1xf32> to vector<8x8xf32>
    %170 = arith.subf %166, %169 : vector<8x8xf32>
    %171 = math.exp %170 : vector<8x8xf32>
    %cst_72 = arith.constant dense<0.000000e+00> : vector<8xf32>
    %172 = vector.multi_reduction <add>, %171, %cst_72 [1] : vector<8x8xf32> to vector<8xf32>
    %173 = vector.shape_cast %172 : vector<8xf32> to vector<8x1xf32>
    %174 = tpu.reciprocal %173 {approx = true} : vector<8x1xf32> -> vector<8x1xf32>
    %175 = vector.broadcast %174 : vector<8x1xf32> to vector<8x8xf32>
    %176 = arith.mulf %171, %175 : vector<8x8xf32>
    %cst_73 = arith.constant dense<0.000000e+00> : vector<8x16xf32>
    %177 = tpu.matmul %176, %163, %cst_73 {dimension_numbers = #tpu.dot_dimension_numbers<[1], [0], [0], [1], [0, 0, 1, 1], [], []>} : vector<8x8xf32>, vector<8x16xf32>, vector<8x16xf32> -> vector<8x16xf32>
    %178 = tpu.concatenate %160, %177 in 1 : vector<8x16xf32>, vector<8x16xf32> -> vector<8x32xf32>
    %cst_74 = arith.constant dense<0.000000e+00> : vector<8x32xf32>
    %179 = tpu.matmul %178, %4, %cst_74 {dimension_numbers = #tpu.dot_dimension_numbers<[1], [0], [0], [1], [0, 0, 1, 1], [], []>} : vector<8x32xf32>, vector<32x32xf32>, vector<8x32xf32> -> vector<8x32xf32>
    %180 = arith.addf %120, %179 : vector<8x32xf32>
    %181 = vector.broadcast %5 : vector<1x32xf32> to vector<8x32xf32>
    %182 = arith.addf %180, %181 : vector<8x32xf32>
    %cst_75 = arith.constant dense<0.000000e+00> : vector<8xf32>
    %183 = vector.multi_reduction <add>, %182, %cst_75 [1] : vector<8x32xf32> to vector<8xf32>
    %184 = vector.shape_cast %183 : vector<8xf32> to vector<8x1xf32>
    %cst_76 = arith.constant 3.200000e+01 : f32
    %185 = vector.broadcast %cst_76 : f32 to vector<8x1xf32>
    %186 = arith.divf %184, %185 : vector<8x1xf32>
    %187 = vector.broadcast %186 : vector<8x1xf32> to vector<8x32xf32>
    %188 = arith.subf %182, %187 : vector<8x32xf32>
    %189 = arith.mulf %188, %188 : vector<8x32xf32>
    %cst_77 = arith.constant dense<0.000000e+00> : vector<8xf32>
    %190 = vector.multi_reduction <add>, %189, %cst_77 [1] : vector<8x32xf32> to vector<8xf32>
    %191 = vector.shape_cast %190 : vector<8xf32> to vector<8x1xf32>
    %cst_78 = arith.constant 3.200000e+01 : f32
    %192 = vector.broadcast %cst_78 : f32 to vector<8x1xf32>
    %193 = arith.divf %191, %192 : vector<8x1xf32>
    %cst_79 = arith.constant 9.99999997E-7 : f32
    %194 = vector.broadcast %cst_79 : f32 to vector<8x1xf32>
    %195 = arith.addf %193, %194 : vector<8x1xf32>
    %196 = math.rsqrt %195 : vector<8x1xf32>
    %197 = vector.broadcast %196 : vector<8x1xf32> to vector<8x32xf32>
    %198 = arith.mulf %188, %197 : vector<8x32xf32>
    %199 = vector.broadcast %6 : vector<1x32xf32> to vector<8x32xf32>
    %200 = arith.mulf %198, %199 : vector<8x32xf32>
    %201 = vector.broadcast %7 : vector<1x32xf32> to vector<8x32xf32>
    %202 = arith.addf %200, %201 : vector<8x32xf32>
    %cst_80 = arith.constant dense<0.000000e+00> : vector<8x64xf32>
    %203 = tpu.matmul %202, %8, %cst_80 {dimension_numbers = #tpu.dot_dimension_numbers<[1], [0], [0], [1], [0, 0, 1, 1], [], []>} : vector<8x32xf32>, vector<32x64xf32>, vector<8x64xf32> -> vector<8x64xf32>
    %204 = vector.broadcast %9 : vector<1x64xf32> to vector<8x64xf32>
    %205 = arith.addf %203, %204 : vector<8x64xf32>
    %206 = arith.mulf %205, %205 : vector<8x64xf32>
    %207 = arith.mulf %205, %206 : vector<8x64xf32>
    %cst_81 = arith.constant 4.471500e-02 : f32
    %208 = vector.broadcast %cst_81 : f32 to vector<8x64xf32>
    %209 = arith.mulf %208, %207 : vector<8x64xf32>
    %210 = arith.addf %205, %209 : vector<8x64xf32>
    %cst_82 = arith.constant 0.797884583 : f32
    %211 = vector.broadcast %cst_82 : f32 to vector<8x64xf32>
    %212 = arith.mulf %211, %210 : vector<8x64xf32>
    %213 = math.tanh %212 : vector<8x64xf32>
    %cst_83 = arith.constant 1.000000e+00 : f32
    %214 = vector.broadcast %cst_83 : f32 to vector<8x64xf32>
    %215 = arith.addf %214, %213 : vector<8x64xf32>
    %cst_84 = arith.constant 5.000000e-01 : f32
    %216 = vector.broadcast %cst_84 : f32 to vector<8x64xf32>
    %217 = arith.mulf %216, %215 : vector<8x64xf32>
    %218 = arith.mulf %205, %217 : vector<8x64xf32>
    %cst_85 = arith.constant dense<0.000000e+00> : vector<8x32xf32>
    %219 = tpu.matmul %218, %10, %cst_85 {dimension_numbers = #tpu.dot_dimension_numbers<[1], [0], [0], [1], [0, 0, 1, 1], [], []>} : vector<8x64xf32>, vector<64x32xf32>, vector<8x32xf32> -> vector<8x32xf32>
    %220 = vector.broadcast %11 : vector<1x32xf32> to vector<8x32xf32>
    %221 = arith.addf %219, %220 : vector<8x32xf32>
    %222 = arith.addf %182, %221 : vector<8x32xf32>
    %c1_86 = arith.constant 1 : index
    %c0_87 = arith.constant 0 : index
    %c0_88 = arith.constant 0 : index
    %223 = vector.load %arg14[%c1_86, %c0_87, %c0_88] : memref<2x8x32xf32, #tpu.memory_space<vmem>>, vector<1x8x32xf32>
    %224 = vector.shape_cast %223 : vector<1x8x32xf32> to vector<8x32xf32>
    %225 = vector.shape_cast %222 : vector<8x32xf32> to vector<1x8x32xf32>
    tpu.vector_store %arg14[%c1_86, %c0_87, %c0_88], %225 {strides = array<i32>} : memref<2x8x32xf32, #tpu.memory_space<vmem>>, vector<1x8x32xf32>,
    return
  }
  func.func @transform_0(%arg0: i32) -> (i32, i32, i32) {
    %c0_i32 = arith.constant 0 : i32
    %c0_i32_0 = arith.constant 0 : i32
    %c0_i32_1 = arith.constant 0 : i32
    %c0_i32_2 = arith.constant 0 : i32
    return %c0_i32, %c0_i32_0, %c0_i32_1 : i32, i32, i32
  }
  func.func @transform_1(%arg0: i32) -> (i32, i32) {
    %c0_i32 = arith.constant 0 : i32
    %c0_i32_0 = arith.constant 0 : i32
    %c0_i32_1 = arith.constant 0 : i32
    return %c0_i32, %c0_i32_0 : i32, i32
  }
  func.func @transform_2(%arg0: i32) -> (i32, i32) {
    %c0_i32 = arith.constant 0 : i32
    %c0_i32_0 = arith.constant 0 : i32
    %c0_i32_1 = arith.constant 0 : i32
    return %c0_i32, %c0_i32_0 : i32, i32
  }
  func.func @transform_3(%arg0: i32) -> (i32, i32) {
    %c0_i32 = arith.constant 0 : i32
    %c0_i32_0 = arith.constant 0 : i32
    %c0_i32_1 = arith.constant 0 : i32
    return %c0_i32, %c0_i32_0 : i32, i32
  }
  func.func @transform_4(%arg0: i32) -> (i32, i32) {
    %c0_i32 = arith.constant 0 : i32
    %c0_i32_0 = arith.constant 0 : i32
    %c0_i32_1 = arith.constant 0 : i32
    return %c0_i32, %c0_i32_0 : i32, i32
  }
  func.func @transform_5(%arg0: i32) -> (i32, i32) {
    %c0_i32 = arith.constant 0 : i32
    %c0_i32_0 = arith.constant 0 : i32
    %c0_i32_1 = arith.constant 0 : i32
    return %c0_i32, %c0_i32_0 : i32, i32
  }
  func.func @transform_6(%arg0: i32) -> (i32, i32) {
    %c0_i32 = arith.constant 0 : i32
    %c0_i32_0 = arith.constant 0 : i32
    %c0_i32_1 = arith.constant 0 : i32
    return %c0_i32, %c0_i32_0 : i32, i32
  }
  func.func @transform_7(%arg0: i32) -> (i32, i32) {
    %c0_i32 = arith.constant 0 : i32
    %c0_i32_0 = arith.constant 0 : i32
    %c0_i32_1 = arith.constant 0 : i32
    return %c0_i32, %c0_i32_0 : i32, i32
  }
  func.func @transform_8(%arg0: i32) -> (i32, i32) {
    %c0_i32 = arith.constant 0 : i32
    %c0_i32_0 = arith.constant 0 : i32
    %c0_i32_1 = arith.constant 0 : i32
    return %c0_i32, %c0_i32_0 : i32, i32
  }
  func.func @transform_9(%arg0: i32) -> (i32, i32) {
    %c0_i32 = arith.constant 0 : i32
    %c0_i32_0 = arith.constant 0 : i32
    %c0_i32_1 = arith.constant 0 : i32
    return %c0_i32, %c0_i32_0 : i32, i32
  }
  func.func @transform_10(%arg0: i32) -> (i32, i32) {
    %c0_i32 = arith.constant 0 : i32
    %c0_i32_0 = arith.constant 0 : i32
    %c0_i32_1 = arith.constant 0 : i32
    return %c0_i32, %c0_i32_0 : i32, i32
  }
  func.func @transform_11(%arg0: i32) -> (i32, i32) {
    %c0_i32 = arith.constant 0 : i32
    %c0_i32_0 = arith.constant 0 : i32
    %c0_i32_1 = arith.constant 0 : i32
    return %c0_i32, %c0_i32_0 : i32, i32
  }
  func.func @transform_12(%arg0: i32) -> (i32, i32) {
    %c0_i32 = arith.constant 0 : i32
    %c0_i32_0 = arith.constant 0 : i32
    %c0_i32_1 = arith.constant 0 : i32
    return %c0_i32, %c0_i32_0 : i32, i32
  }
  func.func @transform_13(%arg0: i32) -> (i32, i32, i32) {
    %c0_i32 = arith.constant 0 : i32
    %c0_i32_0 = arith.constant 0 : i32
    %c0_i32_1 = arith.constant 0 : i32
    %c0_i32_2 = arith.constant 0 : i32
    return %c0_i32, %c0_i32_0, %c0_i32_1 : i32, i32, i32
  }
}

</mosaic_0001>

<llo_original>
// kernel: dualprompt_forward.19
$region0: #{dualprompt_forward.19}
  #allocation0 [shape = 'u32[]', space=smem, size = 0x4, offset = 0x4, fixed_abs, tag = 'smem constant byte address 0x4 - core index']
  #allocation1 [shape = 'u32[144,128]{1,0:T(1,128)}', space=vmem, size = 0x12000, scoped, tag = 'internal scratch']
  %s0 = inlined_call_operand.vmem [shape: f32[2,32], index: 0, kind: input, shape index: {}]
  %s1 = inlined_call_operand.vmem [shape: f32[1,32], index: 1, kind: input, shape index: {}]
  %s2 = inlined_call_operand.vmem [shape: f32[1,32], index: 2, kind: input, shape index: {}]
  %s3 = inlined_call_operand.vmem [shape: f32[4,32], index: 3, kind: input, shape index: {}]
  %s4 = inlined_call_operand.vmem [shape: f32[2,4], index: 4, kind: output, shape index: {}]
  %s5 = sld [smem:[#allocation0]]
  $region26: #{dualprompt_forward.19} parent=0
    _
  %s7 = ssub.s32 1, %s5
  %s8 = scalar_select 0, %s7, %s5
  // Predicated region
  $region2: #{dualprompt_forward.19} parent=0 // pred_check
    _
  $region3: #{dualprompt_forward.19} parent=0 // pred_check_branch
    %10 = sbr.rel (0) target = $region5
  $region4: #{dualprompt_forward.19} parent=0 // pred_region
    _
  $region5: #{dualprompt_forward.19} parent=0 // pred_fallthru
    _
  // Predicated region
  $region6: #{dualprompt_forward.19} parent=0 // pred_check
    _
  $region7: #{dualprompt_forward.19} parent=0 // pred_check_branch
    %12 = sbr.rel (0) target = $region9
  $region8: #{dualprompt_forward.19} parent=0 // pred_region
    _
  $region9: #{dualprompt_forward.19} parent=0 // pred_fallthru
    _
  // Predicated region
  $region10: #{dualprompt_forward.19} parent=0 // pred_check
    _
  $region11: #{dualprompt_forward.19} parent=0 // pred_check_branch
    %14 = sbr.rel (0) target = $region13
  $region12: #{dualprompt_forward.19} parent=0 // pred_region
    _
  $region13: #{dualprompt_forward.19} parent=0 // pred_fallthru
    _
  // Predicated region
  $region14: #{dualprompt_forward.19} parent=0 // pred_check
    _
  $region15: #{dualprompt_forward.19} parent=0 // pred_check_branch
    %16 = sbr.rel (0) target = $region17
  $region16: #{dualprompt_forward.19} parent=0 // pred_region
    _
  $region17: #{dualprompt_forward.19} parent=0 // pred_fallthru
    _
  %v17 = vld [vmem:[%s0] sm:$0x3]
  %v18 = vld [vmem:[%s1] sm:$0x1]
  %v19 = vld [vmem:[%s2] sm:$0x1]
  %vm20 = vcmask 254976
  %v21 = vsel %vm20, %v17, 0.0
  %22 = vadd.xlane.f32.xlu0 %v21
  %v23 = vpop.xlane.xlu0 %22
  %v24 = vrcp.pop 32.0
  %v25 = vmul.f32 %v23, %v24
  %v26 = vsub.f32 %v17, %v25
  %v27 = vmul.f32 %v26, %v26
  %v28 = vsel %vm20, %v27, 0.0
  %29 = vadd.xlane.f32.xlu0 %v28
  %v30 = vpop.xlane.xlu0 %29
  %v31 = vmul.f32 %v30, %v24
  %v32 = vadd.f32 %v31, 1e-06
  %v33 = vrsqrt.pop %v32
  %v34 = vmul.f32 %v26, %v33
  %v36 = vlaneseq
  %v37 = vshrl.u32 %v36, 7
  %v38 = vsub.s32 0, %v37
  %v39 = vrot.slane %v18, %v38
  %v41 = vmul.f32 %v34, %v39
  %v43 = vlaneseq
  %v44 = vshrl.u32 %v43, 7
  %v45 = vsub.s32 0, %v44
  %v46 = vrot.slane %v19, %v45
  %v48 = vadd.f32 %v41, %v46
  %v49 = vld [vmem:[%s3] sm:$0xf]
  %v50 = vmul.f32 %v48, %v48
  %v51 = vsel %vm20, %v50, 0.0
  %52 = vadd.xlane.f32.xlu0 %v51
  %v53 = vpop.xlane.xlu0 %52
  %v54 = vrsqrt.pop %v53
  %v55 = vmul.f32 %v53, %v54
  %vm56 = vcmp.eq.f32.partialorder %v53, inf
  %v57 = vsel %vm56, %v53, %v55
  %vm58 = vcmp.eq.f32.partialorder %v53, 0.0
  %v59 = vand.u32 %v53, 2147483648
  %v60 = vsel %vm58, %v59, %v57
  %v61 = vmax.f32 %v60, 1e-08
  %v62 = vmul.f32 %v49, %v49
  %vm63 = vcmask 257024
  %v64 = vsel %vm63, %v62, 0.0
  %65 = vadd.xlane.f32.xlu0 %v64
  %v66 = vpop.xlane.xlu0 %65
  %v67 = vrsqrt.pop %v66
  %v68 = vmul.f32 %v66, %v67
  %vm69 = vcmp.eq.f32.partialorder %v66, inf
  %v70 = vsel %vm69, %v66, %v68
  %vm71 = vcmp.eq.f32.partialorder %v66, 0.0
  %v72 = vand.u32 %v66, 2147483648
  %v73 = vsel %vm71, %v72, %v70
  %v74 = vmax.f32 %v73, 1e-08
  %v75 = vrcp.pop %v61
  %v76 = vmul.f32 %v48, %v75
  %v77 = vrcp.pop %v74
  %v78 = vmul.f32 %v49, %v77
  %vm79 = vcmask 261120
  %v81 = vsel %vm79, %v76, 0
  %v84 = vsel %vm79, %v78, 0
  %86 = vmatprep.subr.mxu0 0.0
  %87 = vmatpush1.xpose.msra.mxu0 0.0
  %88 = vmatprep.subr.mxu0 0.0
  %89 = vmatpush1.xpose.msra.mxu0 0.0
  %90 = vmatprep.subr.mxu0 0.0
  %91 = vmatpush1.xpose.msra.mxu0 0.0
  %92 = vmatprep.subr.mxu0 0.0
  %93 = vmatpush1.xpose.msra.mxu0 0.0
  %94 = vmatprep.subr.mxu0 0.0
  %95 = vmatpush1.xpose.msra.mxu0 0.0
  %96 = vmatprep.subr.mxu0 0.0
  %97 = vmatpush1.xpose.msra.mxu0 0.0
  %98 = vmatprep.subr.mxu0 0.0
  %99 = vmatpush1.xpose.msra.mxu0 0.0
  %100 = vmatprep.subr.mxu0 0.0
  %101 = vmatpush1.xpose.msra.mxu0 0.0
  %102 = vmatprep.subr.mxu0 0.0
  %103 = vmatpush1.xpose.msra.mxu0 0.0
  %104 = vmatprep.subr.mxu0 0.0
  %105 = vmatpush1.xpose.msra.mxu0 0.0
  %106 = vmatprep.subr.mxu0 0.0
  %107 = vmatpush1.xpose.msra.mxu0 0.0
  %108 = vmatprep.subr.mxu0 0.0
  %109 = vmatpush1.xpose.msra.mxu0 0.0
  %110 = vmatprep.subr.mxu0 0.0
  %111 = vmatpush1.xpose.msra.mxu0 0.0
  %112 = vmatprep.subr.mxu0 0.0
  %113 = vmatpush1.xpose.msra.mxu0 0.0
  %114 = vmatprep.subr.mxu0 0.0
  %115 = vmatpush1.xpose.msra.mxu0 0.0
  %116 = vmatprep.subr.mxu0 0.0
  %117 = vmatpush1.xpose.msra.mxu0 %v84
  %118 = vmatprep.subr.mxu0 0.0
  %119 = vmatpush2.xpose.msra.mxu0 0.0
  %120 = vmatprep.subr.mxu0 0.0
  %121 = vmatpush2.xpose.msra.mxu0 0.0
  %122 = vmatprep.subr.mxu0 0.0
  %123 = vmatpush2.xpose.msra.mxu0 0.0
  %124 = vmatprep.subr.mxu0 0.0
  %125 = vmatpush2.xpose.msra.mxu0 0.0
  %126 = vmatprep.subr.mxu0 0.0
  %127 = vmatpush2.xpose.msra.mxu0 0.0
  %128 = vmatprep.subr.mxu0 0.0
  %129 = vmatpush2.xpose.msra.mxu0 0.0
  %130 = vmatprep.subr.mxu0 0.0
  %131 = vmatpush2.xpose.msra.mxu0 0.0
  %132 = vmatprep.subr.mxu0 0.0
  %133 = vmatpush2.xpose.msra.mxu0 0.0
  %134 = vmatprep.subr.mxu0 0.0
  %135 = vmatpush2.xpose.msra.mxu0 0.0
  %136 = vmatprep.subr.mxu0 0.0
  %137 = vmatpush2.xpose.msra.mxu0 0.0
  %138 = vmatprep.subr.mxu0 0.0
  %139 = vmatpush2.xpose.msra.mxu0 0.0
  %140 = vmatprep.subr.mxu0 0.0
  %141 = vmatpush2.xpose.msra.mxu0 0.0
  %142 = vmatprep.subr.mxu0 0.0
  %143 = vmatpush2.xpose.msra.mxu0 0.0
  %144 = vmatprep.subr.mxu0 0.0
  %145 = vmatpush2.xpose.msra.mxu0 0.0
  %146 = vmatprep.subr.mxu0 0.0
  %147 = vmatpush2.xpose.msra.mxu0 0.0
  %148 = vmatprep.subr.mxu0 0.0
  %149 = vmatpush2.xpose.msra.mxu0 0.0
  %150 = vmatprep.mubr.f32.mxu0 0.0
  %151 = vmatmul.mubr.f32.gmra.mxu0 %v81
  %v152 = vpop.f32.mrf.mxu0
  %v153 = vadd.f32 0.0, %v152
  %v154 = vpop.f32.mrf.mxu0
  %155 = vdwg.mxu0
  %v156 = vsub.f32 1.0, %v153
  %vm157 = vcmask 25600
  %158 = vst.msk [vmem:[%s4] sm:$0x3] %vm157, %v156
  // Predicated region
  $region18: #{dualprompt_forward.19} parent=0 // pred_check
    _
  $region19: #{dualprompt_forward.19} parent=0 // pred_check_branch
    %160 = sbr.rel (0) target = $region21
  $region20: #{dualprompt_forward.19} parent=0 // pred_region
    _
  $region21: #{dualprompt_forward.19} parent=0 // pred_fallthru
    _
  // Predicated region
  $region22: #{dualprompt_forward.19} parent=0 // pred_check
    _
  $region23: #{dualprompt_forward.19} parent=0 // pred_check_branch
    %162 = sbr.rel (0) target = $region25
  $region24: #{dualprompt_forward.19} parent=0 // pred_region
    _
  $region25: #{dualprompt_forward.19} parent=0 // pred_fallthru
    _

// kernel: dualprompt_forward.13
$region0: #{dualprompt_forward.13}
  #allocation0 [shape = 'u32[]', space=smem, size = 0x4, offset = 0x4, fixed_abs, tag = 'smem constant byte address 0x4 - core index']
  #allocation1 [shape = 'u32[144,128]{1,0:T(1,128)}', space=vmem, size = 0x12000, scoped, tag = 'internal scratch']
  %s0 = inlined_call_operand.vmem [shape: f32[8,768], index: 0, kind: input, shape index: {}]
  %s1 = inlined_call_operand.vmem [shape: f32[768,32], index: 1, kind: input, shape index: {}]
  %s2 = inlined_call_operand.vmem [shape: f32[1,32], index: 2, kind: input, shape index: {}]
  %s3 = inlined_call_operand.vmem [shape: f32[8,32], index: 3, kind: output, shape index: {}]
  %s4 = sld [smem:[#allocation0]]
  $region22: #{dualprompt_forward.13} parent=0
    _
  %s6 = ssub.s32 1, %s4
  %s7 = scalar_select 0, %s6, %s4
  // Predicated region
  $region2: #{dualprompt_forward.13} parent=0 // pred_check
    _
  $region3: #{dualprompt_forward.13} parent=0 // pred_check_branch
    %9 = sbr.rel (0) target = $region5
  $region4: #{dualprompt_forward.13} parent=0 // pred_region
    _
  $region5: #{dualprompt_forward.13} parent=0 // pred_fallthru
    _
  // Predicated region
  $region6: #{dualprompt_forward.13} parent=0 // pred_check
    _
  $region7: #{dualprompt_forward.13} parent=0 // pred_check_branch
    %11 = sbr.rel (0) target = $region9
  $region8: #{dualprompt_forward.13} parent=0 // pred_region
    _
  $region9: #{dualprompt_forward.13} parent=0 // pred_fallthru
    _
  // Predicated region
  $region10: #{dualprompt_forward.13} parent=0 // pred_check
    _
  $region11: #{dualprompt_forward.13} parent=0 // pred_check_branch
    %13 = sbr.rel (0) target = $region13
  $region12: #{dualprompt_forward.13} parent=0 // pred_region
    _
  $region13: #{dualprompt_forward.13} parent=0 // pred_fallthru
    _
  %v14 = vld [vmem:[%s0] sm:$0xff]
  %v15 = vld [vmem:[%s0 + $0x8] sm:$0xff]
  %v16 = vld [vmem:[%s0 + $0x10] sm:$0xff]
  %v17 = vld [vmem:[%s0 + $0x18] sm:$0xff]
  %v18 = vld [vmem:[%s0 + $0x20] sm:$0xff]
  %v19 = vld [vmem:[%s0 + $0x28] sm:$0xff]
  %v20 = vld [vmem:[%s1] sm:$0xff]
  %v21 = vld [vmem:[%s1 + $0x8] sm:$0xff]
  %v22 = vld [vmem:[%s1 + $0x10] sm:$0xff]
  %v23 = vld [vmem:[%s1 + $0x18] sm:$0xff]
  %v24 = vld [vmem:[%s1 + $0x20] sm:$0xff]
  %v25 = vld [vmem:[%s1 + $0x28] sm:$0xff]
  %v26 = vld [vmem:[%s1 + $0x30] sm:$0xff]
  %v27 = vld [vmem:[%s1 + $0x38] sm:$0xff]
  %v28 = vld [vmem:[%s1 + $0x40] sm:$0xff]
  %v29 = vld [vmem:[%s1 + $0x48] sm:$0xff]
  %v30 = vld [vmem:[%s1 + $0x50] sm:$0xff]
  %v31 = vld [vmem:[%s1 + $0x58] sm:$0xff]
  %v32 = vld [vmem:[%s1 + $0x60] sm:$0xff]
  %v33 = vld [vmem:[%s1 + $0x68] sm:$0xff]
  %v34 = vld [vmem:[%s1 + $0x70] sm:$0xff]
  %v35 = vld [vmem:[%s1 + $0x78] sm:$0xff]
  %v36 = vld [vmem:[%s1 + $0x80] sm:$0xff]
  %v37 = vld [vmem:[%s1 + $0x88] sm:$0xff]
  %v38 = vld [vmem:[%s1 + $0x90] sm:$0xff]
  %v39 = vld [vmem:[%s1 + $0x98] sm:$0xff]
  %v40 = vld [vmem:[%s1 + $0xa0] sm:$0xff]
  %v41 = vld [vmem:[%s1 + $0xa8] sm:$0xff]
  %v42 = vld [vmem:[%s1 + $0xb0] sm:$0xff]
  %v43 = vld [vmem:[%s1 + $0xb8] sm:$0xff]
  %v44 = vld [vmem:[%s1 + $0xc0] sm:$0xff]
  %v45 = vld [vmem:[%s1 + $0xc8] sm:$0xff]
  %v46 = vld [vmem:[%s1 + $0xd0] sm:$0xff]
  %v47 = vld [vmem:[%s1 + $0xd8] sm:$0xff]
  %v48 = vld [vmem:[%s1 + $0xe0] sm:$0xff]
  %v49 = vld [vmem:[%s1 + $0xe8] sm:$0xff]
  %v50 = vld [vmem:[%s1 + $0xf0] sm:$0xff]
  %v51 = vld [vmem:[%s1 + $0xf8] sm:$0xff]
  %v52 = vld [vmem:[%s1 + $0x100] sm:$0xff]
  %v53 = vld [vmem:[%s1 + $0x108] sm:$0xff]
  %v54 = vld [vmem:[%s1 + $0x110] sm:$0xff]
  %v55 = vld [vmem:[%s1 + $0x118] sm:$0xff]
  %v56 = vld [vmem:[%s1 + $0x120] sm:$0xff]
  %v57 = vld [vmem:[%s1 + $0x128] sm:$0xff]
  %v58 = vld [vmem:[%s1 + $0x130] sm:$0xff]
  %v59 = vld [vmem:[%s1 + $0x138] sm:$0xff]
  %v60 = vld [vmem:[%s1 + $0x140] sm:$0xff]
  %v61 = vld [vmem:[%s1 + $0x148] sm:$0xff]
  %v62 = vld [vmem:[%s1 + $0x150] sm:$0xff]
  %v63 = vld [vmem:[%s1 + $0x158] sm:$0xff]
  %v64 = vld [vmem:[%s1 + $0x160] sm:$0xff]
  %v65 = vld [vmem:[%s1 + $0x168] sm:$0xff]
  %v66 = vld [vmem:[%s1 + $0x170] sm:$0xff]
  %v67 = vld [vmem:[%s1 + $0x178] sm:$0xff]
  %v68 = vld [vmem:[%s1 + $0x180] sm:$0xff]
  %v69 = vld [vmem:[%s1 + $0x188] sm:$0xff]
  %v70 = vld [vmem:[%s1 + $0x190] sm:$0xff]
  %v71 = vld [vmem:[%s1 + $0x198] sm:$0xff]
  %v72 = vld [vmem:[%s1 + $0x1a0] sm:$0xff]
  %v73 = vld [vmem:[%s1 + $0x1a8] sm:$0xff]
  %v74 = vld [vmem:[%s1 + $0x1b0] sm:$0xff]
  %v75 = vld [vmem:[%s1 + $0x1b8] sm:$0xff]
  %v76 = vld [vmem:[%s1 + $0x1c0] sm:$0xff]
  %v77 = vld [vmem:[%s1 + $0x1c8] sm:$0xff]
  %v78 = vld [vmem:[%s1 + $0x1d0] sm:$0xff]
  %v79 = vld [vmem:[%s1 + $0x1d8] sm:$0xff]
  %v80 = vld [vmem:[%s1 + $0x1e0] sm:$0xff]
  %v81 = vld [vmem:[%s1 + $0x1e8] sm:$0xff]
  %v82 = vld [vmem:[%s1 + $0x1f0] sm:$0xff]
  %v83 = vld [vmem:[%s1 + $0x1f8] sm:$0xff]
  %v84 = vld [vmem:[%s1 + $0x200] sm:$0xff]
  %v85 = vld [vmem:[%s1 + $0x208] sm:$0xff]
  %v86 = vld [vmem:[%s1 + $0x210] sm:$0xff]
  %v87 = vld [vmem:[%s1 + $0x218] sm:$0xff]
  %v88 = vld [vmem:[%s1 + $0x220] sm:$0xff]
  %v89 = vld [vmem:[%s1 + $0x228] sm:$0xff]
  %v90 = vld [vmem:[%s1 + $0x230] sm:$0xff]
  %v91 = vld [vmem:[%s1 + $0x238] sm:$0xff]
  %v92 = vld [vmem:[%s1 + $0x240] sm:$0xff]
  %v93 = vld [vmem:[%s1 + $0x248] sm:$0xff]
  %v94 = vld [vmem:[%s1 + $0x250] sm:$0xff]
  %v95 = vld [vmem:[%s1 + $0x258] sm:$0xff]
  %v96 = vld [vmem:[%s1 + $0x260] sm:$0xff]
  %v97 = vld [vmem:[%s1 + $0x268] sm:$0xff]
  %v98 = vld [vmem:[%s1 + $0x270] sm:$0xff]
  %v99 = vld [vmem:[%s1 + $0x278] sm:$0xff]
  %v100 = vld [vmem:[%s1 + $0x280] sm:$0xff]
  %v101 = vld [vmem:[%s1 + $0x288] sm:$0xff]
  %v102 = vld [vmem:[%s1 + $0x290] sm:$0xff]
  %v103 = vld [vmem:[%s1 + $0x298] sm:$0xff]
  %v104 = vld [vmem:[%s1 + $0x2a0] sm:$0xff]
  %v105 = vld [vmem:[%s1 + $0x2a8] sm:$0xff]
  %v106 = vld [vmem:[%s1 + $0x2b0] sm:$0xff]
  %v107 = vld [vmem:[%s1 + $0x2b8] sm:$0xff]
  %v108 = vld [vmem:[%s1 + $0x2c0] sm:$0xff]
  %v109 = vld [vmem:[%s1 + $0x2c8] sm:$0xff]
  %v110 = vld [vmem:[%s1 + $0x2d0] sm:$0xff]
  %v111 = vld [vmem:[%s1 + $0x2d8] sm:$0xff]
  %v112 = vld [vmem:[%s1 + $0x2e0] sm:$0xff]
  %v113 = vld [vmem:[%s1 + $0x2e8] sm:$0xff]
  %v114 = vld [vmem:[%s1 + $0x2f0] sm:$0xff]
  %v115 = vld [vmem:[%s1 + $0x2f8] sm:$0xff]
  %v116 = vld [vmem:[%s2] sm:$0x1]
  %v118 = vlaneseq
  %v119 = vshrl.u32 %v118, 7
  %v120 = vsub.s32 0, %v119
  %v121 = vrot.slane %v116, %v120
  %123 = vmatprep.subr.mxu0 0.0
  %124 = vmatpush1.msra.mxu0 %v35
  %125 = vmatprep.subr.mxu0 0.0
  %126 = vmatpush1.msra.mxu0 %v34
  %127 = vmatprep.subr.mxu0 0.0
  %128 = vmatpush1.msra.mxu0 %v33
  %129 = vmatprep.subr.mxu0 0.0
  %130 = vmatpush1.msra.mxu0 %v32
  %131 = vmatprep.subr.mxu0 0.0
  %132 = vmatpush1.msra.mxu0 %v31
  %133 = vmatprep.subr.mxu0 0.0
  %134 = vmatpush1.msra.mxu0 %v30
  %135 = vmatprep.subr.mxu0 0.0
  %136 = vmatpush1.msra.mxu0 %v29
  %137 = vmatprep.subr.mxu0 0.0
  %138 = vmatpush1.msra.mxu0 %v28
  %139 = vmatprep.subr.mxu0 0.0
  %140 = vmatpush1.msra.mxu0 %v27
  %141 = vmatprep.subr.mxu0 0.0
  %142 = vmatpush1.msra.mxu0 %v26
  %143 = vmatprep.subr.mxu0 0.0
  %144 = vmatpush1.msra.mxu0 %v25
  %145 = vmatprep.subr.mxu0 0.0
  %146 = vmatpush1.msra.mxu0 %v24
  %147 = vmatprep.subr.mxu0 0.0
  %148 = vmatpush1.msra.mxu0 %v23
  %149 = vmatprep.subr.mxu0 0.0
  %150 = vmatpush1.msra.mxu0 %v22
  %151 = vmatprep.subr.mxu0 0.0
  %152 = vmatpush1.msra.mxu0 %v21
  %153 = vmatprep.subr.mxu0 0.0
  %154 = vmatpush1.msra.mxu0 %v20
  %155 = vmatprep.subr.mxu0 0.0
  %156 = vmatpush2.msra.mxu0 %v51
  %157 = vmatprep.subr.mxu0 0.0
  %158 = vmatpush2.msra.mxu0 %v50
  %159 = vmatprep.subr.mxu0 0.0
  %160 = vmatpush2.msra.mxu0 %v49
  %161 = vmatprep.subr.mxu0 0.0
  %162 = vmatpush2.msra.mxu0 %v48
  %163 = vmatprep.subr.mxu0 0.0
  %164 = vmatpush2.msra.mxu0 %v47
  %165 = vmatprep.subr.mxu0 0.0
  %166 = vmatpush2.msra.mxu0 %v46
  %167 = vmatprep.subr.mxu0 0.0
  %168 = vmatpush2.msra.mxu0 %v45
  %169 = vmatprep.subr.mxu0 0.0
  %170 = vmatpush2.msra.mxu0 %v44
  %171 = vmatprep.subr.mxu0 0.0
  %172 = vmatpush2.msra.mxu0 %v43
  %173 = vmatprep.subr.mxu0 0.0
  %174 = vmatpush2.msra.mxu0 %v42
  %175 = vmatprep.subr.mxu0 0.0
  %176 = vmatpush2.msra.mxu0 %v41
  %177 = vmatprep.subr.mxu0 0.0
  %178 = vmatpush2.msra.mxu0 %v40
  %179 = vmatprep.subr.mxu0 0.0
  %180 = vmatpush2.msra.mxu0 %v39
  %181 = vmatprep.subr.mxu0 0.0
  %182 = vmatpush2.msra.mxu0 %v38
  %183 = vmatprep.subr.mxu0 0.0
  %184 = vmatpush2.msra.mxu0 %v37
  %185 = vmatprep.subr.mxu0 0.0
  %186 = vmatpush2.msra.mxu0 %v36
  %187 = vmatprep.mubr.f32.mxu0 %v15
  %188 = vmatmul.mubr.f32.gmra.mxu0 %v14
  %v189 = vpop.f32.mrf.mxu0
  %v190 = vadd.f32 %v121, %v189
  %v191 = vpop.f32.mrf.mxu0
  %192 = vdwg.mxu0
  %193 = vmatprep.subr.mxu0 0.0
  %194 = vmatpush1.msra.mxu0 %v67
  %195 = vmatprep.subr.mxu0 0.0
  %196 = vmatpush1.msra.mxu0 %v66
  %197 = vmatprep.subr.mxu0 0.0
  %198 = vmatpush1.msra.mxu0 %v65
  %199 = vmatprep.subr.mxu0 0.0
  %200 = vmatpush1.msra.mxu0 %v64
  %201 = vmatprep.subr.mxu0 0.0
  %202 = vmatpush1.msra.mxu0 %v63
  %203 = vmatprep.subr.mxu0 0.0
  %204 = vmatpush1.msra.mxu0 %v62
  %205 = vmatprep.subr.mxu0 0.0
  %206 = vmatpush1.msra.mxu0 %v61
  %207 = vmatprep.subr.mxu0 0.0
  %208 = vmatpush1.msra.mxu0 %v60
  %209 = vmatprep.subr.mxu0 0.0
  %210 = vmatpush1.msra.mxu0 %v59
  %211 = vmatprep.subr.mxu0 0.0
  %212 = vmatpush1.msra.mxu0 %v58
  %213 = vmatprep.subr.mxu0 0.0
  %214 = vmatpush1.msra.mxu0 %v57
  %215 = vmatprep.subr.mxu0 0.0
  %216 = vmatpush1.msra.mxu0 %v56
  %217 = vmatprep.subr.mxu0 0.0
  %218 = vmatpush1.msra.mxu0 %v55
  %219 = vmatprep.subr.mxu0 0.0
  %220 = vmatpush1.msra.mxu0 %v54
  %221 = vmatprep.subr.mxu0 0.0
  %222 = vmatpush1.msra.mxu0 %v53
  %223 = vmatprep.subr.mxu0 0.0
  %224 = vmatpush1.msra.mxu0 %v52
  %225 = vmatprep.subr.mxu0 0.0
  %226 = vmatpush2.msra.mxu0 %v83
  %227 = vmatprep.subr.mxu0 0.0
  %228 = vmatpush2.msra.mxu0 %v82
  %229 = vmatprep.subr.mxu0 0.0
  %230 = vmatpush2.msra.mxu0 %v81
  %231 = vmatprep.subr.mxu0 0.0
  %232 = vmatpush2.msra.mxu0 %v80
  %233 = vmatprep.subr.mxu0 0.0
  %234 = vmatpush2.msra.mxu0 %v79
  %235 = vmatprep.subr.mxu0 0.0
  %236 = vmatpush2.msra.mxu0 %v78
  %237 = vmatprep.subr.mxu0 0.0
  %238 = vmatpush2.msra.mxu0 %v77
  %239 = vmatprep.subr.mxu0 0.0
  %240 = vmatpush2.msra.mxu0 %v76
  %241 = vmatprep.subr.mxu0 0.0
  %242 = vmatpush2.msra.mxu0 %v75
  %243 = vmatprep.subr.mxu0 0.0
  %244 = vmatpush2.msra.mxu0 %v74
  %245 = vmatprep.subr.mxu0 0.0
  %246 = vmatpush2.msra.mxu0 %v73
  %247 = vmatprep.subr.mxu0 0.0
  %248 = vmatpush2.msra.mxu0 %v72
  %249 = vmatprep.subr.mxu0 0.0
  %250 = vmatpush2.msra.mxu0 %v71
  %251 = vmatprep.subr.mxu0 0.0
  %252 = vmatpush2.msra.mxu0 %v70
  %253 = vmatprep.subr.mxu0 0.0
  %254 = vmatpush2.msra.mxu0 %v69
  %255 = vmatprep.subr.mxu0 0.0
  %256 = vmatpush2.msra.mxu0 %v68
  %257 = vmatprep.mubr.f32.mxu0 %v17
  %258 = vmatmul.mubr.f32.gmra.mxu0 %v16
  %v259 = vpop.f32.mrf.mxu0
  %v260 = vadd.f32 %v190, %v259
  %v261 = vpop.f32.mrf.mxu0
  %262 = vdwg.mxu0
  %263 = vmatprep.subr.mxu0 0.0
  %264 = vmatpush1.msra.mxu0 %v99
  %265 = vmatprep.subr.mxu0 0.0
  %266 = vmatpush1.msra.mxu0 %v98
  %267 = vmatprep.subr.mxu0 0.0
  %268 = vmatpush1.msra.mxu0 %v97
  %269 = vmatprep.subr.mxu0 0.0
  %270 = vmatpush1.msra.mxu0 %v96
  %271 = vmatprep.subr.mxu0 0.0
  %272 = vmatpush1.msra.mxu0 %v95
  %273 = vmatprep.subr.mxu0 0.0
  %274 = vmatpush1.msra.mxu0 %v94
  %275 = vmatprep.subr.mxu0 0.0
  %276 = vmatpush1.msra.mxu0 %v93
  %277 = vmatprep.subr.mxu0 0.0
  %278 = vmatpush1.msra.mxu0 %v92
  %279 = vmatprep.subr.mxu0 0.0
  %280 = vmatpush1.msra.mxu0 %v91
  %281 = vmatprep.subr.mxu0 0.0
  %282 = vmatpush1.msra.mxu0 %v90
  %283 = vmatprep.subr.mxu0 0.0
  %284 = vmatpush1.msra.mxu0 %v89
  %285 = vmatprep.subr.mxu0 0.0
  %286 = vmatpush1.msra.mxu0 %v88
  %287 = vmatprep.subr.mxu0 0.0
  %288 = vmatpush1.msra.mxu0 %v87
  %289 = vmatprep.subr.mxu0 0.0
  %290 = vmatpush1.msra.mxu0 %v86
  %291 = vmatprep.subr.mxu0 0.0
  %292 = vmatpush1.msra.mxu0 %v85
  %293 = vmatprep.subr.mxu0 0.0
  %294 = vmatpush1.msra.mxu0 %v84
  %295 = vmatprep.subr.mxu0 0.0
  %296 = vmatpush2.msra.mxu0 %v115
  %297 = vmatprep.subr.mxu0 0.0
  %298 = vmatpush2.msra.mxu0 %v114
  %299 = vmatprep.subr.mxu0 0.0
  %300 = vmatpush2.msra.mxu0 %v113
  %301 = vmatprep.subr.mxu0 0.0
  %302 = vmatpush2.msra.mxu0 %v112
  %303 = vmatprep.subr.mxu0 0.0
  %304 = vmatpush2.msra.mxu0 %v111
  %305 = vmatprep.subr.mxu0 0.0
  %306 = vmatpush2.msra.mxu0 %v110
  %307 = vmatprep.subr.mxu0 0.0
  %308 = vmatpush2.msra.mxu0 %v109
  %309 = vmatprep.subr.mxu0 0.0
  %310 = vmatpush2.msra.mxu0 %v108
  %311 = vmatprep.subr.mxu0 0.0
  %312 = vmatpush2.msra.mxu0 %v107
  %313 = vmatprep.subr.mxu0 0.0
  %314 = vmatpush2.msra.mxu0 %v106
  %315 = vmatprep.subr.mxu0 0.0
  %316 = vmatpush2.msra.mxu0 %v105
  %317 = vmatprep.subr.mxu0 0.0
  %318 = vmatpush2.msra.mxu0 %v104
  %319 = vmatprep.subr.mxu0 0.0
  %320 = vmatpush2.msra.mxu0 %v103
  %321 = vmatprep.subr.mxu0 0.0
  %322 = vmatpush2.msra.mxu0 %v102
  %323 = vmatprep.subr.mxu0 0.0
  %324 = vmatpush2.msra.mxu0 %v101
  %325 = vmatprep.subr.mxu0 0.0
  %326 = vmatpush2.msra.mxu0 %v100
  %327 = vmatprep.mubr.f32.mxu0 %v19
  %328 = vmatmul.mubr.f32.gmra.mxu0 %v18
  %v329 = vpop.f32.mrf.mxu0
  %v330 = vadd.f32 %v260, %v329
  %v331 = vpop.f32.mrf.mxu0
  %332 = vdwg.mxu0
  %vm333 = vcmask 261120
  %334 = vst.msk [vmem:[%s3] sm:$0xff] %vm333, %v330
  // Predicated region
  $region14: #{dualprompt_forward.13} parent=0 // pred_check
    _
  $region15: #{dualprompt_forward.13} parent=0 // pred_check_branch
    %336 = sbr.rel (0) target = $region17
  $region16: #{dualprompt_forward.13} parent=0 // pred_region
    _
  $region17: #{dualprompt_forward.13} parent=0 // pred_fallthru
    _
  // Predicated region
  $region18: #{dualprompt_forward.13} parent=0 // pred_check
    _
  $region19: #{dualprompt_forward.13} parent=0 // pred_check_branch
    %338 = sbr.rel (0) target = $region21
  $region20: #{dualprompt_forward.13} parent=0 // pred_region
    _
  $region21: #{dualprompt_forward.13} parent=0 // pred_fallthru
    _

// kernel: dualprompt_forward.14
$region0: #{dualprompt_forward.14}
  #allocation0 [shape = 'u32[]', space=smem, size = 0x4, offset = 0x4, fixed_abs, tag = 'smem constant byte address 0x4 - core index']
  #allocation1 [shape = 'u32[144,128]{1,0:T(1,128)}', space=vmem, size = 0x12000, scoped, tag = 'internal scratch']
  %s0 = inlined_call_operand.vmem [shape: f32[2,5,32], index: 0, kind: input, shape index: {}]
  %s1 = inlined_call_operand.vmem [shape: f32[1,32], index: 1, kind: input, shape index: {}]
  %s2 = inlined_call_operand.vmem [shape: f32[1,32], index: 2, kind: input, shape index: {}]
  %s3 = inlined_call_operand.vmem [shape: f32[32,96], index: 3, kind: input, shape index: {}]
  %s4 = inlined_call_operand.vmem [shape: f32[1,96], index: 4, kind: input, shape index: {}]
  %s5 = inlined_call_operand.vmem [shape: f32[32,32], index: 5, kind: input, shape index: {}]
  %s6 = inlined_call_operand.vmem [shape: f32[1,32], index: 6, kind: input, shape index: {}]
  %s7 = inlined_call_operand.vmem [shape: f32[1,32], index: 7, kind: input, shape index: {}]
  %s8 = inlined_call_operand.vmem [shape: f32[1,32], index: 8, kind: input, shape index: {}]
  %s9 = inlined_call_operand.vmem [shape: f32[32,64], index: 9, kind: input, shape index: {}]
  %s10 = inlined_call_operand.vmem [shape: f32[1,64], index: 10, kind: input, shape index: {}]
  %s11 = inlined_call_operand.vmem [shape: f32[64,32], index: 11, kind: input, shape index: {}]
  %s12 = inlined_call_operand.vmem [shape: f32[1,32], index: 12, kind: input, shape index: {}]
  %s13 = inlined_call_operand.vmem [shape: f32[2,5,32], index: 13, kind: output, shape index: {}]
  %s14 = sld [smem:[#allocation0]]
  $region62: #{dualprompt_forward.14} parent=0
    _
  %s16 = ssub.s32 1, %s14
  %s17 = scalar_select 0, %s16, %s14
  // Predicated region
  $region2: #{dualprompt_forward.14} parent=0 // pred_check
    _
  $region3: #{dualprompt_forward.14} parent=0 // pred_check_branch
    %19 = sbr.rel (0) target = $region5
  $region4: #{dualprompt_forward.14} parent=0 // pred_region
    _
  $region5: #{dualprompt_forward.14} parent=0 // pred_fallthru
    _
  // Predicated region
  $region6: #{dualprompt_forward.14} parent=0 // pred_check
    _
  $region7: #{dualprompt_forward.14} parent=0 // pred_check_branch
    %21 = sbr.rel (0) target = $region9
  $region8: #{dualprompt_forward.14} parent=0 // pred_region
    _
  $region9: #{dualprompt_forward.14} parent=0 // pred_fallthru
    _
  // Predicated region
  $region10: #{dualprompt_forward.14} parent=0 // pred_check
    _
  $region11: #{dualprompt_forward.14} parent=0 // pred_check_branch
    %23 = sbr.rel (0) target = $region13
  $region12: #{dualprompt_forward.14} parent=0 // pred_region
    _
  $region13: #{dualprompt_forward.14} parent=0 // pred_fallthru
    _
  // Predicated region
  $region14: #{dualprompt_forward.14} parent=0 // pred_check
    _
  $region15: #{dualprompt_forward.14} parent=0 // pred_check_branch
    %25 = sbr.rel (0) target = $region17
  $region16: #{dualprompt_forward.14} parent=0 // pred_region
    _
  $region17: #{dualprompt_forward.14} parent=0 // pred_fallthru
    _
  // Predicated region
  $region18: #{dualprompt_forward.14} parent=0 // pred_check
    _
  $region19: #{dualprompt_forward.14} parent=0 // pred_check_branch
    %27 = sbr.rel (0) target = $region21
  $region20: #{dualprompt_forward.14} parent=0 // pred_region
    _
  $region21: #{dualprompt_forward.14} parent=0 // pred_fallthru
    _
  // Predicated region
  $region22: #{dualprompt_forward.14} parent=0 // pred_check
    _
  $region23: #{dualprompt_forward.14} parent=0 // pred_check_branch
    %29 = sbr.rel (0) target = $region25
  $region24: #{dualprompt_forward.14} parent=0 // pred_region
    _
  $region25: #{dualprompt_forward.14} parent=0 // pred_fallthru
    _
  // Predicated region
  $region26: #{dualprompt_forward.14} parent=0 // pred_check
    _
  $region27: #{dualprompt_forward.14} parent=0 // pred_check_branch
    %31 = sbr.rel (0) target = $region29
  $region28: #{dualprompt_forward.14} parent=0 // pred_region
    _
  $region29: #{dualprompt_forward.14} parent=0 // pred_fallthru
    _
  // Predicated region
  $region30: #{dualprompt_forward.14} parent=0 // pred_check
    _
  $region31: #{dualprompt_forward.14} parent=0 // pred_check_branch
    %33 = sbr.rel (0) target = $region33
  $region32: #{dualprompt_forward.14} parent=0 // pred_region
    _
  $region33: #{dualprompt_forward.14} parent=0 // pred_fallthru
    _
  // Predicated region
  $region34: #{dualprompt_forward.14} parent=0 // pred_check
    _
  $region35: #{dualprompt_forward.14} parent=0 // pred_check_branch
    %35 = sbr.rel (0) target = $region37
  $region36: #{dualprompt_forward.14} parent=0 // pred_region
    _
  $region37: #{dualprompt_forward.14} parent=0 // pred_fallthru
    _
  // Predicated region
  $region38: #{dualprompt_forward.14} parent=0 // pred_check
    _
  $region39: #{dualprompt_forward.14} parent=0 // pred_check_branch
    %37 = sbr.rel (0) target = $region41
  $region40: #{dualprompt_forward.14} parent=0 // pred_region
    _
  $region41: #{dualprompt_forward.14} parent=0 // pred_fallthru
    _
  // Predicated region
  $region42: #{dualprompt_forward.14} parent=0 // pred_check
    _
  $region43: #{dualprompt_forward.14} parent=0 // pred_check_branch
    %39 = sbr.rel (0) target = $region45
  $region44: #{dualprompt_forward.14} parent=0 // pred_region
    _
  $region45: #{dualprompt_forward.14} parent=0 // pred_fallthru
    _
  // Predicated region
  $region46: #{dualprompt_forward.14} parent=0 // pred_check
    _
  $region47: #{dualprompt_forward.14} parent=0 // pred_check_branch
    %41 = sbr.rel (0) target = $region49
  $region48: #{dualprompt_forward.14} parent=0 // pred_region
    _
  $region49: #{dualprompt_forward.14} parent=0 // pred_fallthru
    _
  // Predicated region
  $region50: #{dualprompt_forward.14} parent=0 // pred_check
    _
  $region51: #{dualprompt_forward.14} parent=0 // pred_check_branch
    %43 = sbr.rel (0) target = $region53
  $region52: #{dualprompt_forward.14} parent=0 // pred_region
    _
  $region53: #{dualprompt_forward.14} parent=0 // pred_fallthru
    _
  %v44 = vld [vmem:[%s1] sm:$0x1]
  %v45 = vld [vmem:[%s2] sm:$0x1]
  %v46 = vld [vmem:[%s3] sm:$0xff]
  %v47 = vld [vmem:[%s3 + $0x8] sm:$0xff]
  %v48 = vld [vmem:[%s3 + $0x10] sm:$0xff]
  %v49 = vld [vmem:[%s3 + $0x18] sm:$0xff]
  %v50 = vld [vmem:[%s4] sm:$0x1]
  %v51 = vld [vmem:[%s5] sm:$0xff]
  %v52 = vld [vmem:[%s5 + $0x8] sm:$0xff]
  %v53 = vld [vmem:[%s5 + $0x10] sm:$0xff]
  %v54 = vld [vmem:[%s5 + $0x18] sm:$0xff]
  %v55 = vld [vmem:[%s6] sm:$0x1]
  %v56 = vld [vmem:[%s7] sm:$0x1]
  %v57 = vld [vmem:[%s8] sm:$0x1]
  %v58 = vld [vmem:[%s9] sm:$0xff]
  %v59 = vld [vmem:[%s9 + $0x8] sm:$0xff]
  %v60 = vld [vmem:[%s9 + $0x10] sm:$0xff]
  %v61 = vld [vmem:[%s9 + $0x18] sm:$0xff]
  %v62 = vld [vmem:[%s10] sm:$0x1]
  %v63 = vld [vmem:[%s11] sm:$0xff]
  %v64 = vld [vmem:[%s11 + $0x8] sm:$0xff]
  %v65 = vld [vmem:[%s11 + $0x10] sm:$0xff]
  %v66 = vld [vmem:[%s11 + $0x18] sm:$0xff]
  %v67 = vld [vmem:[%s11 + $0x20] sm:$0xff]
  %v68 = vld [vmem:[%s11 + $0x28] sm:$0xff]
  %v69 = vld [vmem:[%s11 + $0x30] sm:$0xff]
  %v70 = vld [vmem:[%s11 + $0x38] sm:$0xff]
  %v71 = vld [vmem:[%s12] sm:$0x1]
  %v72 = vld [vmem:[%s0] sm:$0x1f]
  %vm73 = vcmask 258048
  %v74 = vsel %vm73, %v72, 0.0
  %75 = vadd.xlane.f32.xlu0 %v74
  %v76 = vpop.xlane.xlu0 %75
  %v77 = vrcp.pop 32.0
  %v78 = vmul.f32 %v76, %v77
  %v79 = vsub.f32 %v72, %v78
  %v80 = vmul.f32 %v79, %v79
  %v81 = vsel %vm73, %v80, 0.0
  %82 = vadd.xlane.f32.xlu0 %v81
  %v83 = vpop.xlane.xlu0 %82
  %v84 = vmul.f32 %v83, %v77
  %v85 = vadd.f32 %v84, 1e-06
  %v86 = vrsqrt.pop %v85
  %v87 = vmul.f32 %v79, %v86
  %v89 = vlaneseq
  %v90 = vshrl.u32 %v89, 7
  %v91 = vsub.s32 0, %v90
  %v92 = vrot.slane %v44, %v91
  %v94 = vmul.f32 %v87, %v92
  %v96 = vlaneseq
  %v97 = vshrl.u32 %v96, 7
  %v98 = vsub.s32 0, %v97
  %v99 = vrot.slane %v45, %v98
  %v101 = vadd.f32 %v94, %v99
  %v103 = vlaneseq
  %v104 = vshrl.u32 %v103, 7
  %v105 = vsub.s32 0, %v104
  %v106 = vrot.slane %v50, %v105
  %vm108 = vcmask 261120
  %v110 = vsel %vm108, %v101, 0
  %112 = vmatprep.subr.mxu0 0.0
  %113 = vmatpush1.msra.mxu0 0.0
  %114 = vmatprep.subr.mxu0 0.0
  %115 = vmatpush1.msra.mxu0 0.0
  %116 = vmatprep.subr.mxu0 0.0
  %117 = vmatpush1.msra.mxu0 0.0
  %118 = vmatprep.subr.mxu0 0.0
  %119 = vmatpush1.msra.mxu0 0.0
  %120 = vmatprep.subr.mxu0 0.0
  %121 = vmatpush1.msra.mxu0 0.0
  %122 = vmatprep.subr.mxu0 0.0
  %123 = vmatpush1.msra.mxu0 0.0
  %124 = vmatprep.subr.mxu0 0.0
  %125 = vmatpush1.msra.mxu0 0.0
  %126 = vmatprep.subr.mxu0 0.0
  %127 = vmatpush1.msra.mxu0 0.0
  %128 = vmatprep.subr.mxu0 0.0
  %129 = vmatpush1.msra.mxu0 0.0
  %130 = vmatprep.subr.mxu0 0.0
  %131 = vmatpush1.msra.mxu0 0.0
  %132 = vmatprep.subr.mxu0 0.0
  %133 = vmatpush1.msra.mxu0 0.0
  %134 = vmatprep.subr.mxu0 0.0
  %135 = vmatpush1.msra.mxu0 0.0
  %136 = vmatprep.subr.mxu0 0.0
  %137 = vmatpush1.msra.mxu0 %v49
  %138 = vmatprep.subr.mxu0 0.0
  %139 = vmatpush1.msra.mxu0 %v48
  %140 = vmatprep.subr.mxu0 0.0
  %141 = vmatpush1.msra.mxu0 %v47
  %142 = vmatprep.subr.mxu0 0.0
  %143 = vmatpush1.msra.mxu0 %v46
  %144 = vmatprep.subr.mxu0 0.0
  %145 = vmatpush2.msra.mxu0 0.0
  %146 = vmatprep.subr.mxu0 0.0
  %147 = vmatpush2.msra.mxu0 0.0
  %148 = vmatprep.subr.mxu0 0.0
  %149 = vmatpush2.msra.mxu0 0.0
  %150 = vmatprep.subr.mxu0 0.0
  %151 = vmatpush2.msra.mxu0 0.0
  %152 = vmatprep.subr.mxu0 0.0
  %153 = vmatpush2.msra.mxu0 0.0
  %154 = vmatprep.subr.mxu0 0.0
  %155 = vmatpush2.msra.mxu0 0.0
  %156 = vmatprep.subr.mxu0 0.0
  %157 = vmatpush2.msra.mxu0 0.0
  %158 = vmatprep.subr.mxu0 0.0
  %159 = vmatpush2.msra.mxu0 0.0
  %160 = vmatprep.subr.mxu0 0.0
  %161 = vmatpush2.msra.mxu0 0.0
  %162 = vmatprep.subr.mxu0 0.0
  %163 = vmatpush2.msra.mxu0 0.0
  %164 = vmatprep.subr.mxu0 0.0
  %165 = vmatpush2.msra.mxu0 0.0
  %166 = vmatprep.subr.mxu0 0.0
  %167 = vmatpush2.msra.mxu0 0.0
  %168 = vmatprep.subr.mxu0 0.0
  %169 = vmatpush2.msra.mxu0 0.0
  %170 = vmatprep.subr.mxu0 0.0
  %171 = vmatpush2.msra.mxu0 0.0
  %172 = vmatprep.subr.mxu0 0.0
  %173 = vmatpush2.msra.mxu0 0.0
  %174 = vmatprep.subr.mxu0 0.0
  %175 = vmatpush2.msra.mxu0 0.0
  %176 = vmatprep.mubr.f32.mxu0 0.0
  %177 = vmatmul.mubr.f32.gmra.mxu0 %v110
  %v178 = vpop.f32.mrf.mxu0
  %v179 = vadd.f32 %v106, %v178
  %v180 = vpop.f32.mrf.mxu0
  %181 = vdwg.mxu0
  %183 = vrot.lane.b32.xlu0 %v179, 96
  %v184 = vpop.permute.xlu0 %183
  %vm185 = vcmask 130048
  %v186 = vsel %vm185, %v179, 0
  %v188 = vsel %vm185, %v184, 0
  %190 = vmatprep.subr.mxu0 0.0
  %191 = vmatpush1.xpose.msra.mxu0 0.0
  %192 = vmatprep.subr.mxu0 0.0
  %193 = vmatpush1.xpose.msra.mxu0 0.0
  %194 = vmatprep.subr.mxu0 0.0
  %195 = vmatpush1.xpose.msra.mxu0 0.0
  %196 = vmatprep.subr.mxu0 0.0
  %197 = vmatpush1.xpose.msra.mxu0 0.0
  %198 = vmatprep.subr.mxu0 0.0
  %199 = vmatpush1.xpose.msra.mxu0 0.0
  %200 = vmatprep.subr.mxu0 0.0
  %201 = vmatpush1.xpose.msra.mxu0 0.0
  %202 = vmatprep.subr.mxu0 0.0
  %203 = vmatpush1.xpose.msra.mxu0 0.0
  %204 = vmatprep.subr.mxu0 0.0
  %205 = vmatpush1.xpose.msra.mxu0 0.0
  %206 = vmatprep.subr.mxu0 0.0
  %207 = vmatpush1.xpose.msra.mxu0 0.0
  %208 = vmatprep.subr.mxu0 0.0
  %209 = vmatpush1.xpose.msra.mxu0 0.0
  %210 = vmatprep.subr.mxu0 0.0
  %211 = vmatpush1.xpose.msra.mxu0 0.0
  %212 = vmatprep.subr.mxu0 0.0
  %213 = vmatpush1.xpose.msra.mxu0 0.0
  %214 = vmatprep.subr.mxu0 0.0
  %215 = vmatpush1.xpose.msra.mxu0 0.0
  %216 = vmatprep.subr.mxu0 0.0
  %217 = vmatpush1.xpose.msra.mxu0 0.0
  %218 = vmatprep.subr.mxu0 0.0
  %219 = vmatpush1.xpose.msra.mxu0 0.0
  %220 = vmatprep.subr.mxu0 0.0
  %221 = vmatpush1.xpose.msra.mxu0 %v188
  %222 = vmatprep.subr.mxu0 0.0
  %223 = vmatpush2.xpose.msra.mxu0 0.0
  %224 = vmatprep.subr.mxu0 0.0
  %225 = vmatpush2.xpose.msra.mxu0 0.0
  %226 = vmatprep.subr.mxu0 0.0
  %227 = vmatpush2.xpose.msra.mxu0 0.0
  %228 = vmatprep.subr.mxu0 0.0
  %229 = vmatpush2.xpose.msra.mxu0 0.0
  %230 = vmatprep.subr.mxu0 0.0
  %231 = vmatpush2.xpose.msra.mxu0 0.0
  %232 = vmatprep.subr.mxu0 0.0
  %233 = vmatpush2.xpose.msra.mxu0 0.0
  %234 = vmatprep.subr.mxu0 0.0
  %235 = vmatpush2.xpose.msra.mxu0 0.0
  %236 = vmatprep.subr.mxu0 0.0
  %237 = vmatpush2.xpose.msra.mxu0 0.0
  %238 = vmatprep.subr.mxu0 0.0
  %239 = vmatpush2.xpose.msra.mxu0 0.0
  %240 = vmatprep.subr.mxu0 0.0
  %241 = vmatpush2.xpose.msra.mxu0 0.0
  %242 = vmatprep.subr.mxu0 0.0
  %243 = vmatpush2.xpose.msra.mxu0 0.0
  %244 = vmatprep.subr.mxu0 0.0
  %245 = vmatpush2.xpose.msra.mxu0 0.0
  %246 = vmatprep.subr.mxu0 0.0
  %247 = vmatpush2.xpose.msra.mxu0 0.0
  %248 = vmatprep.subr.mxu0 0.0
  %249 = vmatpush2.xpose.msra.mxu0 0.0
  %250 = vmatprep.subr.mxu0 0.0
  %251 = vmatpush2.xpose.msra.mxu0 0.0
  %252 = vmatprep.subr.mxu0 0.0
  %253 = vmatpush2.xpose.msra.mxu0 0.0
  %254 = vmatprep.mubr.f32.mxu0 0.0
  %255 = vmatmul.mubr.f32.gmra.mxu0 %v186
  %v256 = vpop.f32.mrf.mxu0
  %v257 = vadd.f32 0.0, %v256
  %v258 = vpop.f32.mrf.mxu0
  %259 = vdwg.mxu0
  %v260 = vmul.f32 %v257, 0.25
  %vm261 = vcmask 36864
  %v262 = vsel %vm261, %v260, -inf
  %263 = vmax.xlane.f32.xlu0 %v262
  %v264 = vpop.xlane.xlu0 %263
  %v265 = vsub.f32 %v260, %v264
  %v266 = vmul.f32 %v265, 1.442695
  %v267 = vpow.pop %v266
  %v268 = vsel %vm261, %v267, 0.0
  %269 = vadd.xlane.f32.xlu0 %v268
  %v270 = vpop.xlane.xlu0 %269
  %v271 = vrcp.pop %v270
  %v272 = vmul.f32 %v267, %v271
  %273 = vrot.lane.b32.xlu0 %v179, 64
  %v274 = vpop.permute.xlu0 %273
  %vm275 = vcmask 39936
  %v277 = vsel %vm275, %v272, 0
  %vm279 = vcmask 1044480
  %v280 = vsel %vm279, %v274, 0
  %282 = vmatprep.subr.mxu0 0.0
  %283 = vmatpush1.msra.mxu0 0.0
  %284 = vmatprep.subr.mxu0 0.0
  %285 = vmatpush1.msra.mxu0 0.0
  %286 = vmatprep.subr.mxu0 0.0
  %287 = vmatpush1.msra.mxu0 0.0
  %288 = vmatprep.subr.mxu0 0.0
  %289 = vmatpush1.msra.mxu0 0.0
  %290 = vmatprep.subr.mxu0 0.0
  %291 = vmatpush1.msra.mxu0 0.0
  %292 = vmatprep.subr.mxu0 0.0
  %293 = vmatpush1.msra.mxu0 0.0
  %294 = vmatprep.subr.mxu0 0.0
  %295 = vmatpush1.msra.mxu0 0.0
  %296 = vmatprep.subr.mxu0 0.0
  %297 = vmatpush1.msra.mxu0 0.0
  %298 = vmatprep.subr.mxu0 0.0
  %299 = vmatpush1.msra.mxu0 0.0
  %300 = vmatprep.subr.mxu0 0.0
  %301 = vmatpush1.msra.mxu0 0.0
  %302 = vmatprep.subr.mxu0 0.0
  %303 = vmatpush1.msra.mxu0 0.0
  %304 = vmatprep.subr.mxu0 0.0
  %305 = vmatpush1.msra.mxu0 0.0
  %306 = vmatprep.subr.mxu0 0.0
  %307 = vmatpush1.msra.mxu0 0.0
  %308 = vmatprep.subr.mxu0 0.0
  %309 = vmatpush1.msra.mxu0 0.0
  %310 = vmatprep.subr.mxu0 0.0
  %311 = vmatpush1.msra.mxu0 0.0
  %312 = vmatprep.subr.mxu0 0.0
  %313 = vmatpush1.msra.mxu0 %v280
  %314 = vmatprep.subr.mxu0 0.0
  %315 = vmatpush2.msra.mxu0 0.0
  %316 = vmatprep.subr.mxu0 0.0
  %317 = vmatpush2.msra.mxu0 0.0
  %318 = vmatprep.subr.mxu0 0.0
  %319 = vmatpush2.msra.mxu0 0.0
  %320 = vmatprep.subr.mxu0 0.0
  %321 = vmatpush2.msra.mxu0 0.0
  %322 = vmatprep.subr.mxu0 0.0
  %323 = vmatpush2.msra.mxu0 0.0
  %324 = vmatprep.subr.mxu0 0.0
  %325 = vmatpush2.msra.mxu0 0.0
  %326 = vmatprep.subr.mxu0 0.0
  %327 = vmatpush2.msra.mxu0 0.0
  %328 = vmatprep.subr.mxu0 0.0
  %329 = vmatpush2.msra.mxu0 0.0
  %330 = vmatprep.subr.mxu0 0.0
  %331 = vmatpush2.msra.mxu0 0.0
  %332 = vmatprep.subr.mxu0 0.0
  %333 = vmatpush2.msra.mxu0 0.0
  %334 = vmatprep.subr.mxu0 0.0
  %335 = vmatpush2.msra.mxu0 0.0
  %336 = vmatprep.subr.mxu0 0.0
  %337 = vmatpush2.msra.mxu0 0.0
  %338 = vmatprep.subr.mxu0 0.0
  %339 = vmatpush2.msra.mxu0 0.0
  %340 = vmatprep.subr.mxu0 0.0
  %341 = vmatpush2.msra.mxu0 0.0
  %342 = vmatprep.subr.mxu0 0.0
  %343 = vmatpush2.msra.mxu0 0.0
  %344 = vmatprep.subr.mxu0 0.0
  %345 = vmatpush2.msra.mxu0 0.0
  %346 = vmatprep.mubr.f32.mxu0 0.0
  %347 = vmatmul.mubr.f32.gmra.mxu0 %v277
  %v348 = vpop.f32.mrf.mxu0
  %v349 = vadd.f32 0.0, %v348
  %v350 = vpop.f32.mrf.mxu0
  %351 = vdwg.mxu0
  %352 = vrot.lane.b32.xlu0 %v179, 112
  %v353 = vpop.permute.xlu0 %352
  %354 = vrot.lane.b32.xlu0 %v179, 80
  %v355 = vpop.permute.xlu0 %354
  %v356 = vsel %vm185, %v353, 0
  %v358 = vsel %vm185, %v355, 0
  %360 = vmatprep.subr.mxu0 0.0
  %361 = vmatpush1.xpose.msra.mxu0 0.0
  %362 = vmatprep.subr.mxu0 0.0
  %363 = vmatpush1.xpose.msra.mxu0 0.0
  %364 = vmatprep.subr.mxu0 0.0
  %365 = vmatpush1.xpose.msra.mxu0 0.0
  %366 = vmatprep.subr.mxu0 0.0
  %367 = vmatpush1.xpose.msra.mxu0 0.0
  %368 = vmatprep.subr.mxu0 0.0
  %369 = vmatpush1.xpose.msra.mxu0 0.0
  %370 = vmatprep.subr.mxu0 0.0
  %371 = vmatpush1.xpose.msra.mxu0 0.0
  %372 = vmatprep.subr.mxu0 0.0
  %373 = vmatpush1.xpose.msra.mxu0 0.0
  %374 = vmatprep.subr.mxu0 0.0
  %375 = vmatpush1.xpose.msra.mxu0 0.0
  %376 = vmatprep.subr.mxu0 0.0
  %377 = vmatpush1.xpose.msra.mxu0 0.0
  %378 = vmatprep.subr.mxu0 0.0
  %379 = vmatpush1.xpose.msra.mxu0 0.0
  %380 = vmatprep.subr.mxu0 0.0
  %381 = vmatpush1.xpose.msra.mxu0 0.0
  %382 = vmatprep.subr.mxu0 0.0
  %383 = vmatpush1.xpose.msra.mxu0 0.0
  %384 = vmatprep.subr.mxu0 0.0
  %385 = vmatpush1.xpose.msra.mxu0 0.0
  %386 = vmatprep.subr.mxu0 0.0
  %387 = vmatpush1.xpose.msra.mxu0 0.0
  %388 = vmatprep.subr.mxu0 0.0
  %389 = vmatpush1.xpose.msra.mxu0 0.0
  %390 = vmatprep.subr.mxu0 0.0
  %391 = vmatpush1.xpose.msra.mxu0 %v358
  %392 = vmatprep.subr.mxu0 0.0
  %393 = vmatpush2.xpose.msra.mxu0 0.0
  %394 = vmatprep.subr.mxu0 0.0
  %395 = vmatpush2.xpose.msra.mxu0 0.0
  %396 = vmatprep.subr.mxu0 0.0
  %397 = vmatpush2.xpose.msra.mxu0 0.0
  %398 = vmatprep.subr.mxu0 0.0
  %399 = vmatpush2.xpose.msra.mxu0 0.0
  %400 = vmatprep.subr.mxu0 0.0
  %401 = vmatpush2.xpose.msra.mxu0 0.0
  %402 = vmatprep.subr.mxu0 0.0
  %403 = vmatpush2.xpose.msra.mxu0 0.0
  %404 = vmatprep.subr.mxu0 0.0
  %405 = vmatpush2.xpose.msra.mxu0 0.0
  %406 = vmatprep.subr.mxu0 0.0
  %407 = vmatpush2.xpose.msra.mxu0 0.0
  %408 = vmatprep.subr.mxu0 0.0
  %409 = vmatpush2.xpose.msra.mxu0 0.0
  %410 = vmatprep.subr.mxu0 0.0
  %411 = vmatpush2.xpose.msra.mxu0 0.0
  %412 = vmatprep.subr.mxu0 0.0
  %413 = vmatpush2.xpose.msra.mxu0 0.0
  %414 = vmatprep.subr.mxu0 0.0
  %415 = vmatpush2.xpose.msra.mxu0 0.0
  %416 = vmatprep.subr.mxu0 0.0
  %417 = vmatpush2.xpose.msra.mxu0 0.0
  %418 = vmatprep.subr.mxu0 0.0
  %419 = vmatpush2.xpose.msra.mxu0 0.0
  %420 = vmatprep.subr.mxu0 0.0
  %421 = vmatpush2.xpose.msra.mxu0 0.0
  %422 = vmatprep.subr.mxu0 0.0
  %423 = vmatpush2.xpose.msra.mxu0 0.0
  %424 = vmatprep.mubr.f32.mxu0 0.0
  %425 = vmatmul.mubr.f32.gmra.mxu0 %v356
  %v426 = vpop.f32.mrf.mxu0
  %v427 = vadd.f32 0.0, %v426
  %v428 = vpop.f32.mrf.mxu0
  %429 = vdwg.mxu0
  %v430 = vmul.f32 %v427, 0.25
  %v431 = vsel %vm261, %v430, -inf
  %432 = vmax.xlane.f32.xlu0 %v431
  %v433 = vpop.xlane.xlu0 %432
  %v434 = vsub.f32 %v430, %v433
  %v435 = vmul.f32 %v434, 1.442695
  %v436 = vpow.pop %v435
  %v437 = vsel %vm261, %v436, 0.0
  %438 = vadd.xlane.f32.xlu0 %v437
  %v439 = vpop.xlane.xlu0 %438
  %v440 = vrcp.pop %v439
  %v441 = vmul.f32 %v436, %v440
  %442 = vrot.lane.b32.xlu0 %v179, 48
  %v443 = vpop.permute.xlu0 %442
  %v445 = vsel %vm275, %v441, 0
  %v447 = vsel %vm279, %v443, 0
  %449 = vmatprep.subr.mxu0 0.0
  %450 = vmatpush1.msra.mxu0 0.0
  %451 = vmatprep.subr.mxu0 0.0
  %452 = vmatpush1.msra.mxu0 0.0
  %453 = vmatprep.subr.mxu0 0.0
  %454 = vmatpush1.msra.mxu0 0.0
  %455 = vmatprep.subr.mxu0 0.0
  %456 = vmatpush1.msra.mxu0 0.0
  %457 = vmatprep.subr.mxu0 0.0
  %458 = vmatpush1.msra.mxu0 0.0
  %459 = vmatprep.subr.mxu0 0.0
  %460 = vmatpush1.msra.mxu0 0.0
  %461 = vmatprep.subr.mxu0 0.0
  %462 = vmatpush1.msra.mxu0 0.0
  %463 = vmatprep.subr.mxu0 0.0
  %464 = vmatpush1.msra.mxu0 0.0
  %465 = vmatprep.subr.mxu0 0.0
  %466 = vmatpush1.msra.mxu0 0.0
  %467 = vmatprep.subr.mxu0 0.0
  %468 = vmatpush1.msra.mxu0 0.0
  %469 = vmatprep.subr.mxu0 0.0
  %470 = vmatpush1.msra.mxu0 0.0
  %471 = vmatprep.subr.mxu0 0.0
  %472 = vmatpush1.msra.mxu0 0.0
  %473 = vmatprep.subr.mxu0 0.0
  %474 = vmatpush1.msra.mxu0 0.0
  %475 = vmatprep.subr.mxu0 0.0
  %476 = vmatpush1.msra.mxu0 0.0
  %477 = vmatprep.subr.mxu0 0.0
  %478 = vmatpush1.msra.mxu0 0.0
  %479 = vmatprep.subr.mxu0 0.0
  %480 = vmatpush1.msra.mxu0 %v447
  %481 = vmatprep.subr.mxu0 0.0
  %482 = vmatpush2.msra.mxu0 0.0
  %483 = vmatprep.subr.mxu0 0.0
  %484 = vmatpush2.msra.mxu0 0.0
  %485 = vmatprep.subr.mxu0 0.0
  %486 = vmatpush2.msra.mxu0 0.0
  %487 = vmatprep.subr.mxu0 0.0
  %488 = vmatpush2.msra.mxu0 0.0
  %489 = vmatprep.subr.mxu0 0.0
  %490 = vmatpush2.msra.mxu0 0.0
  %491 = vmatprep.subr.mxu0 0.0
  %492 = vmatpush2.msra.mxu0 0.0
  %493 = vmatprep.subr.mxu0 0.0
  %494 = vmatpush2.msra.mxu0 0.0
  %495 = vmatprep.subr.mxu0 0.0
  %496 = vmatpush2.msra.mxu0 0.0
  %497 = vmatprep.subr.mxu0 0.0
  %498 = vmatpush2.msra.mxu0 0.0
  %499 = vmatprep.subr.mxu0 0.0
  %500 = vmatpush2.msra.mxu0 0.0
  %501 = vmatprep.subr.mxu0 0.0
  %502 = vmatpush2.msra.mxu0 0.0
  %503 = vmatprep.subr.mxu0 0.0
  %504 = vmatpush2.msra.mxu0 0.0
  %505 = vmatprep.subr.mxu0 0.0
  %506 = vmatpush2.msra.mxu0 0.0
  %507 = vmatprep.subr.mxu0 0.0
  %508 = vmatpush2.msra.mxu0 0.0
  %509 = vmatprep.subr.mxu0 0.0
  %510 = vmatpush2.msra.mxu0 0.0
  %511 = vmatprep.subr.mxu0 0.0
  %512 = vmatpush2.msra.mxu0 0.0
  %513 = vmatprep.mubr.f32.mxu0 0.0
  %514 = vmatmul.mubr.f32.gmra.mxu0 %v445
  %v515 = vpop.f32.mrf.mxu0
  %v516 = vadd.f32 0.0, %v515
  %v517 = vpop.f32.mrf.mxu0
  %518 = vdwg.mxu0
  %520 = vrot.lane.b32.xlu0 %v516, 16
  %v521 = vpop.permute.xlu0 %520
  %v523 = vsel %vm185, %v349, %v521
  %v525 = vsel %vm108, %v523, 0
  %527 = vmatprep.subr.mxu0 0.0
  %528 = vmatpush1.msra.mxu0 0.0
  %529 = vmatprep.subr.mxu0 0.0
  %530 = vmatpush1.msra.mxu0 0.0
  %531 = vmatprep.subr.mxu0 0.0
  %532 = vmatpush1.msra.mxu0 0.0
  %533 = vmatprep.subr.mxu0 0.0
  %534 = vmatpush1.msra.mxu0 0.0
  %535 = vmatprep.subr.mxu0 0.0
  %536 = vmatpush1.msra.mxu0 0.0
  %537 = vmatprep.subr.mxu0 0.0
  %538 = vmatpush1.msra.mxu0 0.0
  %539 = vmatprep.subr.mxu0 0.0
  %540 = vmatpush1.msra.mxu0 0.0
  %541 = vmatprep.subr.mxu0 0.0
  %542 = vmatpush1.msra.mxu0 0.0
  %543 = vmatprep.subr.mxu0 0.0
  %544 = vmatpush1.msra.mxu0 0.0
  %545 = vmatprep.subr.mxu0 0.0
  %546 = vmatpush1.msra.mxu0 0.0
  %547 = vmatprep.subr.mxu0 0.0
  %548 = vmatpush1.msra.mxu0 0.0
  %549 = vmatprep.subr.mxu0 0.0
  %550 = vmatpush1.msra.mxu0 0.0
  %551 = vmatprep.subr.mxu0 0.0
  %552 = vmatpush1.msra.mxu0 %v54
  %553 = vmatprep.subr.mxu0 0.0
  %554 = vmatpush1.msra.mxu0 %v53
  %555 = vmatprep.subr.mxu0 0.0
  %556 = vmatpush1.msra.mxu0 %v52
  %557 = vmatprep.subr.mxu0 0.0
  %558 = vmatpush1.msra.mxu0 %v51
  %559 = vmatprep.subr.mxu0 0.0
  %560 = vmatpush2.msra.mxu0 0.0
  %561 = vmatprep.subr.mxu0 0.0
  %562 = vmatpush2.msra.mxu0 0.0
  %563 = vmatprep.subr.mxu0 0.0
  %564 = vmatpush2.msra.mxu0 0.0
  %565 = vmatprep.subr.mxu0 0.0
  %566 = vmatpush2.msra.mxu0 0.0
  %567 = vmatprep.subr.mxu0 0.0
  %568 = vmatpush2.msra.mxu0 0.0
  %569 = vmatprep.subr.mxu0 0.0
  %570 = vmatpush2.msra.mxu0 0.0
  %571 = vmatprep.subr.mxu0 0.0
  %572 = vmatpush2.msra.mxu0 0.0
  %573 = vmatprep.subr.mxu0 0.0
  %574 = vmatpush2.msra.mxu0 0.0
  %575 = vmatprep.subr.mxu0 0.0
  %576 = vmatpush2.msra.mxu0 0.0
  %577 = vmatprep.subr.mxu0 0.0
  %578 = vmatpush2.msra.mxu0 0.0
  %579 = vmatprep.subr.mxu0 0.0
  %580 = vmatpush2.msra.mxu0 0.0
  %581 = vmatprep.subr.mxu0 0.0
  %582 = vmatpush2.msra.mxu0 0.0
  %583 = vmatprep.subr.mxu0 0.0
  %584 = vmatpush2.msra.mxu0 0.0
  %585 = vmatprep.subr.mxu0 0.0
  %586 = vmatpush2.msra.mxu0 0.0
  %587 = vmatprep.subr.mxu0 0.0
  %588 = vmatpush2.msra.mxu0 0.0
  %589 = vmatprep.subr.mxu0 0.0
  %590 = vmatpush2.msra.mxu0 0.0
  %591 = vmatprep.mubr.f32.mxu0 0.0
  %592 = vmatmul.mubr.f32.gmra.mxu0 %v525
  %v593 = vpop.f32.mrf.mxu0
  %v594 = vadd.f32 0.0, %v593
  %v595 = vpop.f32.mrf.mxu0
  %596 = vdwg.mxu0
  %v597 = vadd.f32 %v72, %v594
  %v599 = vlaneseq
  %v600 = vshrl.u32 %v599, 7
  %v601 = vsub.s32 0, %v600
  %v602 = vrot.slane %v55, %v601
  %v604 = vadd.f32 %v597, %v602
  %v605 = vsel %vm73, %v604, 0.0
  %606 = vadd.xlane.f32.xlu0 %v605
  %v607 = vpop.xlane.xlu0 %606
  %v608 = vmul.f32 %v607, %v77
  %v609 = vsub.f32 %v604, %v608
  %v610 = vmul.f32 %v609, %v609
  %v611 = vsel %vm73, %v610, 0.0
  %612 = vadd.xlane.f32.xlu0 %v611
  %v613 = vpop.xlane.xlu0 %612
  %v614 = vmul.f32 %v613, %v77
  %v615 = vadd.f32 %v614, 1e-06
  %v616 = vrsqrt.pop %v615
  %v617 = vmul.f32 %v609, %v616
  %v619 = vlaneseq
  %v620 = vshrl.u32 %v619, 7
  %v621 = vsub.s32 0, %v620
  %v622 = vrot.slane %v56, %v621
  %v624 = vmul.f32 %v617, %v622
  %v626 = vlaneseq
  %v627 = vshrl.u32 %v626, 7
  %v628 = vsub.s32 0, %v627
  %v629 = vrot.slane %v57, %v628
  %v631 = vadd.f32 %v624, %v629
  %v633 = vlaneseq
  %v634 = vshrl.u32 %v633, 7
  %v635 = vsub.s32 0, %v634
  %v636 = vrot.slane %v62, %v635
  %v639 = vsel %vm108, %v631, 0
  %641 = vmatprep.subr.mxu0 0.0
  %642 = vmatpush1.msra.mxu0 0.0
  %643 = vmatprep.subr.mxu0 0.0
  %644 = vmatpush1.msra.mxu0 0.0
  %645 = vmatprep.subr.mxu0 0.0
  %646 = vmatpush1.msra.mxu0 0.0
  %647 = vmatprep.subr.mxu0 0.0
  %648 = vmatpush1.msra.mxu0 0.0
  %649 = vmatprep.subr.mxu0 0.0
  %650 = vmatpush1.msra.mxu0 0.0
  %651 = vmatprep.subr.mxu0 0.0
  %652 = vmatpush1.msra.mxu0 0.0
  %653 = vmatprep.subr.mxu0 0.0
  %654 = vmatpush1.msra.mxu0 0.0
  %655 = vmatprep.subr.mxu0 0.0
  %656 = vmatpush1.msra.mxu0 0.0
  %657 = vmatprep.subr.mxu0 0.0
  %658 = vmatpush1.msra.mxu0 0.0
  %659 = vmatprep.subr.mxu0 0.0
  %660 = vmatpush1.msra.mxu0 0.0
  %661 = vmatprep.subr.mxu0 0.0
  %662 = vmatpush1.msra.mxu0 0.0
  %663 = vmatprep.subr.mxu0 0.0
  %664 = vmatpush1.msra.mxu0 0.0
  %665 = vmatprep.subr.mxu0 0.0
  %666 = vmatpush1.msra.mxu0 %v61
  %667 = vmatprep.subr.mxu0 0.0
  %668 = vmatpush1.msra.mxu0 %v60
  %669 = vmatprep.subr.mxu0 0.0
  %670 = vmatpush1.msra.mxu0 %v59
  %671 = vmatprep.subr.mxu0 0.0
  %672 = vmatpush1.msra.mxu0 %v58
  %673 = vmatprep.subr.mxu0 0.0
  %674 = vmatpush2.msra.mxu0 0.0
  %675 = vmatprep.subr.mxu0 0.0
  %676 = vmatpush2.msra.mxu0 0.0
  %677 = vmatprep.subr.mxu0 0.0
  %678 = vmatpush2.msra.mxu0 0.0
  %679 = vmatprep.subr.mxu0 0.0
  %680 = vmatpush2.msra.mxu0 0.0
  %681 = vmatprep.subr.mxu0 0.0
  %682 = vmatpush2.msra.mxu0 0.0
  %683 = vmatprep.subr.mxu0 0.0
  %684 = vmatpush2.msra.mxu0 0.0
  %685 = vmatprep.subr.mxu0 0.0
  %686 = vmatpush2.msra.mxu0 0.0
  %687 = vmatprep.subr.mxu0 0.0
  %688 = vmatpush2.msra.mxu0 0.0
  %689 = vmatprep.subr.mxu0 0.0
  %690 = vmatpush2.msra.mxu0 0.0
  %691 = vmatprep.subr.mxu0 0.0
  %692 = vmatpush2.msra.mxu0 0.0
  %693 = vmatprep.subr.mxu0 0.0
  %694 = vmatpush2.msra.mxu0 0.0
  %695 = vmatprep.subr.mxu0 0.0
  %696 = vmatpush2.msra.mxu0 0.0
  %697 = vmatprep.subr.mxu0 0.0
  %698 = vmatpush2.msra.mxu0 0.0
  %699 = vmatprep.subr.mxu0 0.0
  %700 = vmatpush2.msra.mxu0 0.0
  %701 = vmatprep.subr.mxu0 0.0
  %702 = vmatpush2.msra.mxu0 0.0
  %703 = vmatprep.subr.mxu0 0.0
  %704 = vmatpush2.msra.mxu0 0.0
  %705 = vmatprep.mubr.f32.mxu0 0.0
  %706 = vmatmul.mubr.f32.gmra.mxu0 %v639
  %v707 = vpop.f32.mrf.mxu0
  %v708 = vadd.f32 %v636, %v707
  %v709 = vpop.f32.mrf.mxu0
  %710 = vdwg.mxu0
  %v711 = vmul.f32 %v708, %v708
  %v712 = vmul.f32 %v708, %v711
  %v713 = vmul.f32 %v712, 0.044715
  %v714 = vadd.f32 %v708, %v713
  %v715 = vmul.f32 %v714, 0.7978846
  %v716 = vtanh.pop %v715
  %v717 = vadd.f32 %v716, 1.0
  %v718 = vmul.f32 %v717, 0.5
  %v719 = vmul.f32 %v708, %v718
  %v721 = vlaneseq
  %v722 = vshrl.u32 %v721, 7
  %v723 = vsub.s32 0, %v722
  %v724 = vrot.slane %v71, %v723
  %vm726 = vcmask 523264
  %v728 = vsel %vm726, %v719, 0
  %730 = vmatprep.subr.mxu0 0.0
  %731 = vmatpush1.msra.mxu0 0.0
  %732 = vmatprep.subr.mxu0 0.0
  %733 = vmatpush1.msra.mxu0 0.0
  %734 = vmatprep.subr.mxu0 0.0
  %735 = vmatpush1.msra.mxu0 0.0
  %736 = vmatprep.subr.mxu0 0.0
  %737 = vmatpush1.msra.mxu0 0.0
  %738 = vmatprep.subr.mxu0 0.0
  %739 = vmatpush1.msra.mxu0 0.0
  %740 = vmatprep.subr.mxu0 0.0
  %741 = vmatpush1.msra.mxu0 0.0
  %742 = vmatprep.subr.mxu0 0.0
  %743 = vmatpush1.msra.mxu0 0.0
  %744 = vmatprep.subr.mxu0 0.0
  %745 = vmatpush1.msra.mxu0 0.0
  %746 = vmatprep.subr.mxu0 0.0
  %747 = vmatpush1.msra.mxu0 %v70
  %748 = vmatprep.subr.mxu0 0.0
  %749 = vmatpush1.msra.mxu0 %v69
  %750 = vmatprep.subr.mxu0 0.0
  %751 = vmatpush1.msra.mxu0 %v68
  %752 = vmatprep.subr.mxu0 0.0
  %753 = vmatpush1.msra.mxu0 %v67
  %754 = vmatprep.subr.mxu0 0.0
  %755 = vmatpush1.msra.mxu0 %v66
  %756 = vmatprep.subr.mxu0 0.0
  %757 = vmatpush1.msra.mxu0 %v65
  %758 = vmatprep.subr.mxu0 0.0
  %759 = vmatpush1.msra.mxu0 %v64
  %760 = vmatprep.subr.mxu0 0.0
  %761 = vmatpush1.msra.mxu0 %v63
  %762 = vmatprep.subr.mxu0 0.0
  %763 = vmatpush2.msra.mxu0 0.0
  %764 = vmatprep.subr.mxu0 0.0
  %765 = vmatpush2.msra.mxu0 0.0
  %766 = vmatprep.subr.mxu0 0.0
  %767 = vmatpush2.msra.mxu0 0.0
  %768 = vmatprep.subr.mxu0 0.0
  %769 = vmatpush2.msra.mxu0 0.0
  %770 = vmatprep.subr.mxu0 0.0
  %771 = vmatpush2.msra.mxu0 0.0
  %772 = vmatprep.subr.mxu0 0.0
  %773 = vmatpush2.msra.mxu0 0.0
  %774 = vmatprep.subr.mxu0 0.0
  %775 = vmatpush2.msra.mxu0 0.0
  %776 = vmatprep.subr.mxu0 0.0
  %777 = vmatpush2.msra.mxu0 0.0
  %778 = vmatprep.subr.mxu0 0.0
  %779 = vmatpush2.msra.mxu0 0.0
  %780 = vmatprep.subr.mxu0 0.0
  %781 = vmatpush2.msra.mxu0 0.0
  %782 = vmatprep.subr.mxu0 0.0
  %783 = vmatpush2.msra.mxu0 0.0
  %784 = vmatprep.subr.mxu0 0.0
  %785 = vmatpush2.msra.mxu0 0.0
  %786 = vmatprep.subr.mxu0 0.0
  %787 = vmatpush2.msra.mxu0 0.0
  %788 = vmatprep.subr.mxu0 0.0
  %789 = vmatpush2.msra.mxu0 0.0
  %790 = vmatprep.subr.mxu0 0.0
  %791 = vmatpush2.msra.mxu0 0.0
  %792 = vmatprep.subr.mxu0 0.0
  %793 = vmatpush2.msra.mxu0 0.0
  %794 = vmatprep.mubr.f32.mxu0 0.0
  %795 = vmatmul.mubr.f32.gmra.mxu0 %v728
  %v796 = vpop.f32.mrf.mxu0
  %v797 = vadd.f32 %v724, %v796
  %v798 = vpop.f32.mrf.mxu0
  %799 = vdwg.mxu0
  %v800 = vadd.f32 %v604, %v797
  %801 = vst.msk [vmem:[%s13] sm:$0x1f] %vm73, %v800
  %s802 = scalar_lea.vmem %s0, 8
  %v803 = vld [vmem:[%s802] sm:$0x1f]
  %v804 = vsel %vm73, %v803, 0.0
  %805 = vadd.xlane.f32.xlu0 %v804
  %v806 = vpop.xlane.xlu0 %805
  %v807 = vmul.f32 %v806, %v77
  %v808 = vsub.f32 %v803, %v807
  %v809 = vmul.f32 %v808, %v808
  %v810 = vsel %vm73, %v809, 0.0
  %811 = vadd.xlane.f32.xlu0 %v810
  %v812 = vpop.xlane.xlu0 %811
  %v813 = vmul.f32 %v812, %v77
  %v814 = vadd.f32 %v813, 1e-06
  %v815 = vrsqrt.pop %v814
  %v816 = vmul.f32 %v808, %v815
  %v817 = vmul.f32 %v816, %v92
  %v818 = vadd.f32 %v817, %v99
  %v820 = vsel %vm108, %v818, 0
  %822 = vmatprep.subr.mxu0 0.0
  %823 = vmatpush1.msra.mxu0 0.0
  %824 = vmatprep.subr.mxu0 0.0
  %825 = vmatpush1.msra.mxu0 0.0
  %826 = vmatprep.subr.mxu0 0.0
  %827 = vmatpush1.msra.mxu0 0.0
  %828 = vmatprep.subr.mxu0 0.0
  %829 = vmatpush1.msra.mxu0 0.0
  %830 = vmatprep.subr.mxu0 0.0
  %831 = vmatpush1.msra.mxu0 0.0
  %832 = vmatprep.subr.mxu0 0.0
  %833 = vmatpush1.msra.mxu0 0.0
  %834 = vmatprep.subr.mxu0 0.0
  %835 = vmatpush1.msra.mxu0 0.0
  %836 = vmatprep.subr.mxu0 0.0
  %837 = vmatpush1.msra.mxu0 0.0
  %838 = vmatprep.subr.mxu0 0.0
  %839 = vmatpush1.msra.mxu0 0.0
  %840 = vmatprep.subr.mxu0 0.0
  %841 = vmatpush1.msra.mxu0 0.0
  %842 = vmatprep.subr.mxu0 0.0
  %843 = vmatpush1.msra.mxu0 0.0
  %844 = vmatprep.subr.mxu0 0.0
  %845 = vmatpush1.msra.mxu0 0.0
  %846 = vmatprep.subr.mxu0 0.0
  %847 = vmatpush1.msra.mxu0 %v49
  %848 = vmatprep.subr.mxu0 0.0
  %849 = vmatpush1.msra.mxu0 %v48
  %850 = vmatprep.subr.mxu0 0.0
  %851 = vmatpush1.msra.mxu0 %v47
  %852 = vmatprep.subr.mxu0 0.0
  %853 = vmatpush1.msra.mxu0 %v46
  %854 = vmatprep.subr.mxu0 0.0
  %855 = vmatpush2.msra.mxu0 0.0
  %856 = vmatprep.subr.mxu0 0.0
  %857 = vmatpush2.msra.mxu0 0.0
  %858 = vmatprep.subr.mxu0 0.0
  %859 = vmatpush2.msra.mxu0 0.0
  %860 = vmatprep.subr.mxu0 0.0
  %861 = vmatpush2.msra.mxu0 0.0
  %862 = vmatprep.subr.mxu0 0.0
  %863 = vmatpush2.msra.mxu0 0.0
  %864 = vmatprep.subr.mxu0 0.0
  %865 = vmatpush2.msra.mxu0 0.0
  %866 = vmatprep.subr.mxu0 0.0
  %867 = vmatpush2.msra.mxu0 0.0
  %868 = vmatprep.subr.mxu0 0.0
  %869 = vmatpush2.msra.mxu0 0.0
  %870 = vmatprep.subr.mxu0 0.0
  %871 = vmatpush2.msra.mxu0 0.0
  %872 = vmatprep.subr.mxu0 0.0
  %873 = vmatpush2.msra.mxu0 0.0
  %874 = vmatprep.subr.mxu0 0.0
  %875 = vmatpush2.msra.mxu0 0.0
  %876 = vmatprep.subr.mxu0 0.0
  %877 = vmatpush2.msra.mxu0 0.0
  %878 = vmatprep.subr.mxu0 0.0
  %879 = vmatpush2.msra.mxu0 0.0
  %880 = vmatprep.subr.mxu0 0.0
  %881 = vmatpush2.msra.mxu0 0.0
  %882 = vmatprep.subr.mxu0 0.0
  %883 = vmatpush2.msra.mxu0 0.0
  %884 = vmatprep.subr.mxu0 0.0
  %885 = vmatpush2.msra.mxu0 0.0
  %886 = vmatprep.mubr.f32.mxu0 0.0
  %887 = vmatmul.mubr.f32.gmra.mxu0 %v820
  %v888 = vpop.f32.mrf.mxu0
  %v889 = vadd.f32 %v106, %v888
  %v890 = vpop.f32.mrf.mxu0
  %891 = vdwg.mxu0
  %893 = vrot.lane.b32.xlu0 %v889, 96
  %v894 = vpop.permute.xlu0 %893
  %v895 = vsel %vm185, %v889, 0
  %v897 = vsel %vm185, %v894, 0
  %899 = vmatprep.subr.mxu0 0.0
  %900 = vmatpush1.xpose.msra.mxu0 0.0
  %901 = vmatprep.subr.mxu0 0.0
  %902 = vmatpush1.xpose.msra.mxu0 0.0
  %903 = vmatprep.subr.mxu0 0.0
  %904 = vmatpush1.xpose.msra.mxu0 0.0
  %905 = vmatprep.subr.mxu0 0.0
  %906 = vmatpush1.xpose.msra.mxu0 0.0
  %907 = vmatprep.subr.mxu0 0.0
  %908 = vmatpush1.xpose.msra.mxu0 0.0
  %909 = vmatprep.subr.mxu0 0.0
  %910 = vmatpush1.xpose.msra.mxu0 0.0
  %911 = vmatprep.subr.mxu0 0.0
  %912 = vmatpush1.xpose.msra.mxu0 0.0
  %913 = vmatprep.subr.mxu0 0.0
  %914 = vmatpush1.xpose.msra.mxu0 0.0
  %915 = vmatprep.subr.mxu0 0.0
  %916 = vmatpush1.xpose.msra.mxu0 0.0
  %917 = vmatprep.subr.mxu0 0.0
  %918 = vmatpush1.xpose.msra.mxu0 0.0
  %919 = vmatprep.subr.mxu0 0.0
  %920 = vmatpush1.xpose.msra.mxu0 0.0
  %921 = vmatprep.subr.mxu0 0.0
  %922 = vmatpush1.xpose.msra.mxu0 0.0
  %923 = vmatprep.subr.mxu0 0.0
  %924 = vmatpush1.xpose.msra.mxu0 0.0
  %925 = vmatprep.subr.mxu0 0.0
  %926 = vmatpush1.xpose.msra.mxu0 0.0
  %927 = vmatprep.subr.mxu0 0.0
  %928 = vmatpush1.xpose.msra.mxu0 0.0
  %929 = vmatprep.subr.mxu0 0.0
  %930 = vmatpush1.xpose.msra.mxu0 %v897
  %931 = vmatprep.subr.mxu0 0.0
  %932 = vmatpush2.xpose.msra.mxu0 0.0
  %933 = vmatprep.subr.mxu0 0.0
  %934 = vmatpush2.xpose.msra.mxu0 0.0
  %935 = vmatprep.subr.mxu0 0.0
  %936 = vmatpush2.xpose.msra.mxu0 0.0
  %937 = vmatprep.subr.mxu0 0.0
  %938 = vmatpush2.xpose.msra.mxu0 0.0
  %939 = vmatprep.subr.mxu0 0.0
  %940 = vmatpush2.xpose.msra.mxu0 0.0
  %941 = vmatprep.subr.mxu0 0.0
  %942 = vmatpush2.xpose.msra.mxu0 0.0
  %943 = vmatprep.subr.mxu0 0.0
  %944 = vmatpush2.xpose.msra.mxu0 0.0
  %945 = vmatprep.subr.mxu0 0.0
  %946 = vmatpush2.xpose.msra.mxu0 0.0
  %947 = vmatprep.subr.mxu0 0.0
  %948 = vmatpush2.xpose.msra.mxu0 0.0
  %949 = vmatprep.subr.mxu0 0.0
  %950 = vmatpush2.xpose.msra.mxu0 0.0
  %951 = vmatprep.subr.mxu0 0.0
  %952 = vmatpush2.xpose.msra.mxu0 0.0
  %953 = vmatprep.subr.mxu0 0.0
  %954 = vmatpush2.xpose.msra.mxu0 0.0
  %955 = vmatprep.subr.mxu0 0.0
  %956 = vmatpush2.xpose.msra.mxu0 0.0
  %957 = vmatprep.subr.mxu0 0.0
  %958 = vmatpush2.xpose.msra.mxu0 0.0
  %959 = vmatprep.subr.mxu0 0.0
  %960 = vmatpush2.xpose.msra.mxu0 0.0
  %961 = vmatprep.subr.mxu0 0.0
  %962 = vmatpush2.xpose.msra.mxu0 0.0
  %963 = vmatprep.mubr.f32.mxu0 0.0
  %964 = vmatmul.mubr.f32.gmra.mxu0 %v895
  %v965 = vpop.f32.mrf.mxu0
  %v966 = vadd.f32 0.0, %v965
  %v967 = vpop.f32.mrf.mxu0
  %968 = vdwg.mxu0
  %v969 = vmul.f32 %v966, 0.25
  %v970 = vsel %vm261, %v969, -inf
  %971 = vmax.xlane.f32.xlu0 %v970
  %v972 = vpop.xlane.xlu0 %971
  %v973 = vsub.f32 %v969, %v972
  %v974 = vmul.f32 %v973, 1.442695
  %v975 = vpow.pop %v974
  %v976 = vsel %vm261, %v975, 0.0
  %977 = vadd.xlane.f32.xlu0 %v976
  %v978 = vpop.xlane.xlu0 %977
  %v979 = vrcp.pop %v978
  %v980 = vmul.f32 %v975, %v979
  %981 = vrot.lane.b32.xlu0 %v889, 64
  %v982 = vpop.permute.xlu0 %981
  %v984 = vsel %vm275, %v980, 0
  %v986 = vsel %vm279, %v982, 0
  %988 = vmatprep.subr.mxu0 0.0
  %989 = vmatpush1.msra.mxu0 0.0
  %990 = vmatprep.subr.mxu0 0.0
  %991 = vmatpush1.msra.mxu0 0.0
  %992 = vmatprep.subr.mxu0 0.0
  %993 = vmatpush1.msra.mxu0 0.0
  %994 = vmatprep.subr.mxu0 0.0
  %995 = vmatpush1.msra.mxu0 0.0
  %996 = vmatprep.subr.mxu0 0.0
  %997 = vmatpush1.msra.mxu0 0.0
  %998 = vmatprep.subr.mxu0 0.0
  %999 = vmatpush1.msra.mxu0 0.0
  %1000 = vmatprep.subr.mxu0 0.0
  %1001 = vmatpush1.msra.mxu0 0.0
  %1002 = vmatprep.subr.mxu0 0.0
  %1003 = vmatpush1.msra.mxu0 0.0
  %1004 = vmatprep.subr.mxu0 0.0
  %1005 = vmatpush1.msra.mxu0 0.0
  %1006 = vmatprep.subr.mxu0 0.0
  %1007 = vmatpush1.msra.mxu0 0.0
  %1008 = vmatprep.subr.mxu0 0.0
  %1009 = vmatpush1.msra.mxu0 0.0
  %1010 = vmatprep.subr.mxu0 0.0
  %1011 = vmatpush1.msra.mxu0 0.0
  %1012 = vmatprep.subr.mxu0 0.0
  %1013 = vmatpush1.msra.mxu0 0.0
  %1014 = vmatprep.subr.mxu0 0.0
  %1015 = vmatpush1.msra.mxu0 0.0
  %1016 = vmatprep.subr.mxu0 0.0
  %1017 = vmatpush1.msra.mxu0 0.0
  %1018 = vmatprep.subr.mxu0 0.0
  %1019 = vmatpush1.msra.mxu0 %v986
  %1020 = vmatprep.subr.mxu0 0.0
  %1021 = vmatpush2.msra.mxu0 0.0
  %1022 = vmatprep.subr.mxu0 0.0
  %1023 = vmatpush2.msra.mxu0 0.0
  %1024 = vmatprep.subr.mxu0 0.0
  %1025 = vmatpush2.msra.mxu0 0.0
  %1026 = vmatprep.subr.mxu0 0.0
  %1027 = vmatpush2.msra.mxu0 0.0
  %1028 = vmatprep.subr.mxu0 0.0
  %1029 = vmatpush2.msra.mxu0 0.0
  %1030 = vmatprep.subr.mxu0 0.0
  %1031 = vmatpush2.msra.mxu0 0.0
  %1032 = vmatprep.subr.mxu0 0.0
  %1033 = vmatpush2.msra.mxu0 0.0
  %1034 = vmatprep.subr.mxu0 0.0
  %1035 = vmatpush2.msra.mxu0 0.0
  %1036 = vmatprep.subr.mxu0 0.0
  %1037 = vmatpush2.msra.mxu0 0.0
  %1038 = vmatprep.subr.mxu0 0.0
  %1039 = vmatpush2.msra.mxu0 0.0
  %1040 = vmatprep.subr.mxu0 0.0
  %1041 = vmatpush2.msra.mxu0 0.0
  %1042 = vmatprep.subr.mxu0 0.0
  %1043 = vmatpush2.msra.mxu0 0.0
  %1044 = vmatprep.subr.mxu0 0.0
  %1045 = vmatpush2.msra.mxu0 0.0
  %1046 = vmatprep.subr.mxu0 0.0
  %1047 = vmatpush2.msra.mxu0 0.0
  %1048 = vmatprep.subr.mxu0 0.0
  %1049 = vmatpush2.msra.mxu0 0.0
  %1050 = vmatprep.subr.mxu0 0.0
  %1051 = vmatpush2.msra.mxu0 0.0
  %1052 = vmatprep.mubr.f32.mxu0 0.0
  %1053 = vmatmul.mubr.f32.gmra.mxu0 %v984
  %v1054 = vpop.f32.mrf.mxu0
  %v1055 = vadd.f32 0.0, %v1054
  %v1056 = vpop.f32.mrf.mxu0
  %1057 = vdwg.mxu0
  %1058 = vrot.lane.b32.xlu0 %v889, 112
  %v1059 = vpop.permute.xlu0 %1058
  %1060 = vrot.lane.b32.xlu0 %v889, 80
  %v1061 = vpop.permute.xlu0 %1060
  %v1062 = vsel %vm185, %v1059, 0
  %v1064 = vsel %vm185, %v1061, 0
  %1066 = vmatprep.subr.mxu0 0.0
  %1067 = vmatpush1.xpose.msra.mxu0 0.0
  %1068 = vmatprep.subr.mxu0 0.0
  %1069 = vmatpush1.xpose.msra.mxu0 0.0
  %1070 = vmatprep.subr.mxu0 0.0
  %1071 = vmatpush1.xpose.msra.mxu0 0.0
  %1072 = vmatprep.subr.mxu0 0.0
  %1073 = vmatpush1.xpose.msra.mxu0 0.0
  %1074 = vmatprep.subr.mxu0 0.0
  %1075 = vmatpush1.xpose.msra.mxu0 0.0
  %1076 = vmatprep.subr.mxu0 0.0
  %1077 = vmatpush1.xpose.msra.mxu0 0.0
  %1078 = vmatprep.subr.mxu0 0.0
  %1079 = vmatpush1.xpose.msra.mxu0 0.0
  %1080 = vmatprep.subr.mxu0 0.0
  %1081 = vmatpush1.xpose.msra.mxu0 0.0
  %1082 = vmatprep.subr.mxu0 0.0
  %1083 = vmatpush1.xpose.msra.mxu0 0.0
  %1084 = vmatprep.subr.mxu0 0.0
  %1085 = vmatpush1.xpose.msra.mxu0 0.0
  %1086 = vmatprep.subr.mxu0 0.0
  %1087 = vmatpush1.xpose.msra.mxu0 0.0
  %1088 = vmatprep.subr.mxu0 0.0
  %1089 = vmatpush1.xpose.msra.mxu0 0.0
  %1090 = vmatprep.subr.mxu0 0.0
  %1091 = vmatpush1.xpose.msra.mxu0 0.0
  %1092 = vmatprep.subr.mxu0 0.0
  %1093 = vmatpush1.xpose.msra.mxu0 0.0
  %1094 = vmatprep.subr.mxu0 0.0
  %1095 = vmatpush1.xpose.msra.mxu0 0.0
  %1096 = vmatprep.subr.mxu0 0.0
  %1097 = vmatpush1.xpose.msra.mxu0 %v1064
  %1098 = vmatprep.subr.mxu0 0.0
  %1099 = vmatpush2.xpose.msra.mxu0 0.0
  %1100 = vmatprep.subr.mxu0 0.0
  %1101 = vmatpush2.xpose.msra.mxu0 0.0
  %1102 = vmatprep.subr.mxu0 0.0
  %1103 = vmatpush2.xpose.msra.mxu0 0.0
  %1104 = vmatprep.subr.mxu0 0.0
  %1105 = vmatpush2.xpose.msra.mxu0 0.0
  %1106 = vmatprep.subr.mxu0 0.0
  %1107 = vmatpush2.xpose.msra.mxu0 0.0
  %1108 = vmatprep.subr.mxu0 0.0
  %1109 = vmatpush2.xpose.msra.mxu0 0.0
  %1110 = vmatprep.subr.mxu0 0.0
  %1111 = vmatpush2.xpose.msra.mxu0 0.0
  %1112 = vmatprep.subr.mxu0 0.0
  %1113 = vmatpush2.xpose.msra.mxu0 0.0
  %1114 = vmatprep.subr.mxu0 0.0
  %1115 = vmatpush2.xpose.msra.mxu0 0.0
  %1116 = vmatprep.subr.mxu0 0.0
  %1117 = vmatpush2.xpose.msra.mxu0 0.0
  %1118 = vmatprep.subr.mxu0 0.0
  %1119 = vmatpush2.xpose.msra.mxu0 0.0
  %1120 = vmatprep.subr.mxu0 0.0
  %1121 = vmatpush2.xpose.msra.mxu0 0.0
  %1122 = vmatprep.subr.mxu0 0.0
  %1123 = vmatpush2.xpose.msra.mxu0 0.0
  %1124 = vmatprep.subr.mxu0 0.0
  %1125 = vmatpush2.xpose.msra.mxu0 0.0
  %1126 = vmatprep.subr.mxu0 0.0
  %1127 = vmatpush2.xpose.msra.mxu0 0.0
  %1128 = vmatprep.subr.mxu0 0.0
  %1129 = vmatpush2.xpose.msra.mxu0 0.0
  %1130 = vmatprep.mubr.f32.mxu0 0.0
  %1131 = vmatmul.mubr.f32.gmra.mxu0 %v1062
  %v1132 = vpop.f32.mrf.mxu0
  %v1133 = vadd.f32 0.0, %v1132
  %v1134 = vpop.f32.mrf.mxu0
  %1135 = vdwg.mxu0
  %v1136 = vmul.f32 %v1133, 0.25
  %v1137 = vsel %vm261, %v1136, -inf
  %1138 = vmax.xlane.f32.xlu0 %v1137
  %v1139 = vpop.xlane.xlu0 %1138
  %v1140 = vsub.f32 %v1136, %v1139
  %v1141 = vmul.f32 %v1140, 1.442695
  %v1142 = vpow.pop %v1141
  %v1143 = vsel %vm261, %v1142, 0.0
  %1144 = vadd.xlane.f32.xlu0 %v1143
  %v1145 = vpop.xlane.xlu0 %1144
  %v1146 = vrcp.pop %v1145
  %v1147 = vmul.f32 %v1142, %v1146
  %1148 = vrot.lane.b32.xlu0 %v889, 48
  %v1149 = vpop.permute.xlu0 %1148
  %v1151 = vsel %vm275, %v1147, 0
  %v1153 = vsel %vm279, %v1149, 0
  %1155 = vmatprep.subr.mxu0 0.0
  %1156 = vmatpush1.msra.mxu0 0.0
  %1157 = vmatprep.subr.mxu0 0.0
  %1158 = vmatpush1.msra.mxu0 0.0
  %1159 = vmatprep.subr.mxu0 0.0
  %1160 = vmatpush1.msra.mxu0 0.0
  %1161 = vmatprep.subr.mxu0 0.0
  %1162 = vmatpush1.msra.mxu0 0.0
  %1163 = vmatprep.subr.mxu0 0.0
  %1164 = vmatpush1.msra.mxu0 0.0
  %1165 = vmatprep.subr.mxu0 0.0
  %1166 = vmatpush1.msra.mxu0 0.0
  %1167 = vmatprep.subr.mxu0 0.0
  %1168 = vmatpush1.msra.mxu0 0.0
  %1169 = vmatprep.subr.mxu0 0.0
  %1170 = vmatpush1.msra.mxu0 0.0
  %1171 = vmatprep.subr.mxu0 0.0
  %1172 = vmatpush1.msra.mxu0 0.0
  %1173 = vmatprep.subr.mxu0 0.0
  %1174 = vmatpush1.msra.mxu0 0.0
  %1175 = vmatprep.subr.mxu0 0.0
  %1176 = vmatpush1.msra.mxu0 0.0
  %1177 = vmatprep.subr.mxu0 0.0
  %1178 = vmatpush1.msra.mxu0 0.0
  %1179 = vmatprep.subr.mxu0 0.0
  %1180 = vmatpush1.msra.mxu0 0.0
  %1181 = vmatprep.subr.mxu0 0.0
  %1182 = vmatpush1.msra.mxu0 0.0
  %1183 = vmatprep.subr.mxu0 0.0
  %1184 = vmatpush1.msra.mxu0 0.0
  %1185 = vmatprep.subr.mxu0 0.0
  %1186 = vmatpush1.msra.mxu0 %v1153
  %1187 = vmatprep.subr.mxu0 0.0
  %1188 = vmatpush2.msra.mxu0 0.0
  %1189 = vmatprep.subr.mxu0 0.0
  %1190 = vmatpush2.msra.mxu0 0.0
  %1191 = vmatprep.subr.mxu0 0.0
  %1192 = vmatpush2.msra.mxu0 0.0
  %1193 = vmatprep.subr.mxu0 0.0
  %1194 = vmatpush2.msra.mxu0 0.0
  %1195 = vmatprep.subr.mxu0 0.0
  %1196 = vmatpush2.msra.mxu0 0.0
  %1197 = vmatprep.subr.mxu0 0.0
  %1198 = vmatpush2.msra.mxu0 0.0
  %1199 = vmatprep.subr.mxu0 0.0
  %1200 = vmatpush2.msra.mxu0 0.0
  %1201 = vmatprep.subr.mxu0 0.0
  %1202 = vmatpush2.msra.mxu0 0.0
  %1203 = vmatprep.subr.mxu0 0.0
  %1204 = vmatpush2.msra.mxu0 0.0
  %1205 = vmatprep.subr.mxu0 0.0
  %1206 = vmatpush2.msra.mxu0 0.0
  %1207 = vmatprep.subr.mxu0 0.0
  %1208 = vmatpush2.msra.mxu0 0.0
  %1209 = vmatprep.subr.mxu0 0.0
  %1210 = vmatpush2.msra.mxu0 0.0
  %1211 = vmatprep.subr.mxu0 0.0
  %1212 = vmatpush2.msra.mxu0 0.0
  %1213 = vmatprep.subr.mxu0 0.0
  %1214 = vmatpush2.msra.mxu0 0.0
  %1215 = vmatprep.subr.mxu0 0.0
  %1216 = vmatpush2.msra.mxu0 0.0
  %1217 = vmatprep.subr.mxu0 0.0
  %1218 = vmatpush2.msra.mxu0 0.0
  %1219 = vmatprep.mubr.f32.mxu0 0.0
  %1220 = vmatmul.mubr.f32.gmra.mxu0 %v1151
  %v1221 = vpop.f32.mrf.mxu0
  %v1222 = vadd.f32 0.0, %v1221
  %v1223 = vpop.f32.mrf.mxu0
  %1224 = vdwg.mxu0
  %1226 = vrot.lane.b32.xlu0 %v1222, 16
  %v1227 = vpop.permute.xlu0 %1226
  %v1229 = vsel %vm185, %v1055, %v1227
  %v1231 = vsel %vm108, %v1229, 0
  %1233 = vmatprep.subr.mxu0 0.0
  %1234 = vmatpush1.msra.mxu0 0.0
  %1235 = vmatprep.subr.mxu0 0.0
  %1236 = vmatpush1.msra.mxu0 0.0
  %1237 = vmatprep.subr.mxu0 0.0
  %1238 = vmatpush1.msra.mxu0 0.0
  %1239 = vmatprep.subr.mxu0 0.0
  %1240 = vmatpush1.msra.mxu0 0.0
  %1241 = vmatprep.subr.mxu0 0.0
  %1242 = vmatpush1.msra.mxu0 0.0
  %1243 = vmatprep.subr.mxu0 0.0
  %1244 = vmatpush1.msra.mxu0 0.0
  %1245 = vmatprep.subr.mxu0 0.0
  %1246 = vmatpush1.msra.mxu0 0.0
  %1247 = vmatprep.subr.mxu0 0.0
  %1248 = vmatpush1.msra.mxu0 0.0
  %1249 = vmatprep.subr.mxu0 0.0
  %1250 = vmatpush1.msra.mxu0 0.0
  %1251 = vmatprep.subr.mxu0 0.0
  %1252 = vmatpush1.msra.mxu0 0.0
  %1253 = vmatprep.subr.mxu0 0.0
  %1254 = vmatpush1.msra.mxu0 0.0
  %1255 = vmatprep.subr.mxu0 0.0
  %1256 = vmatpush1.msra.mxu0 0.0
  %1257 = vmatprep.subr.mxu0 0.0
  %1258 = vmatpush1.msra.mxu0 %v54
  %1259 = vmatprep.subr.mxu0 0.0
  %1260 = vmatpush1.msra.mxu0 %v53
  %1261 = vmatprep.subr.mxu0 0.0
  %1262 = vmatpush1.msra.mxu0 %v52
  %1263 = vmatprep.subr.mxu0 0.0
  %1264 = vmatpush1.msra.mxu0 %v51
  %1265 = vmatprep.subr.mxu0 0.0
  %1266 = vmatpush2.msra.mxu0 0.0
  %1267 = vmatprep.subr.mxu0 0.0
  %1268 = vmatpush2.msra.mxu0 0.0
  %1269 = vmatprep.subr.mxu0 0.0
  %1270 = vmatpush2.msra.mxu0 0.0
  %1271 = vmatprep.subr.mxu0 0.0
  %1272 = vmatpush2.msra.mxu0 0.0
  %1273 = vmatprep.subr.mxu0 0.0
  %1274 = vmatpush2.msra.mxu0 0.0
  %1275 = vmatprep.subr.mxu0 0.0
  %1276 = vmatpush2.msra.mxu0 0.0
  %1277 = vmatprep.subr.mxu0 0.0
  %1278 = vmatpush2.msra.mxu0 0.0
  %1279 = vmatprep.subr.mxu0 0.0
  %1280 = vmatpush2.msra.mxu0 0.0
  %1281 = vmatprep.subr.mxu0 0.0
  %1282 = vmatpush2.msra.mxu0 0.0
  %1283 = vmatprep.subr.mxu0 0.0
  %1284 = vmatpush2.msra.mxu0 0.0
  %1285 = vmatprep.subr.mxu0 0.0
  %1286 = vmatpush2.msra.mxu0 0.0
  %1287 = vmatprep.subr.mxu0 0.0
  %1288 = vmatpush2.msra.mxu0 0.0
  %1289 = vmatprep.subr.mxu0 0.0
  %1290 = vmatpush2.msra.mxu0 0.0
  %1291 = vmatprep.subr.mxu0 0.0
  %1292 = vmatpush2.msra.mxu0 0.0
  %1293 = vmatprep.subr.mxu0 0.0
  %1294 = vmatpush2.msra.mxu0 0.0
  %1295 = vmatprep.subr.mxu0 0.0
  %1296 = vmatpush2.msra.mxu0 0.0
  %1297 = vmatprep.mubr.f32.mxu0 0.0
  %1298 = vmatmul.mubr.f32.gmra.mxu0 %v1231
  %v1299 = vpop.f32.mrf.mxu0
  %v1300 = vadd.f32 0.0, %v1299
  %v1301 = vpop.f32.mrf.mxu0
  %1302 = vdwg.mxu0
  %v1303 = vadd.f32 %v803, %v1300
  %v1304 = vadd.f32 %v1303, %v602
  %v1305 = vsel %vm73, %v1304, 0.0
  %1306 = vadd.xlane.f32.xlu0 %v1305
  %v1307 = vpop.xlane.xlu0 %1306
  %v1308 = vmul.f32 %v1307, %v77
  %v1309 = vsub.f32 %v1304, %v1308
  %v1310 = vmul.f32 %v1309, %v1309
  %v1311 = vsel %vm73, %v1310, 0.0
  %1312 = vadd.xlane.f32.xlu0 %v1311
  %v1313 = vpop.xlane.xlu0 %1312
  %v1314 = vmul.f32 %v1313, %v77
  %v1315 = vadd.f32 %v1314, 1e-06
  %v1316 = vrsqrt.pop %v1315
  %v1317 = vmul.f32 %v1309, %v1316
  %v1318 = vmul.f32 %v1317, %v622
  %v1319 = vadd.f32 %v1318, %v629
  %v1321 = vsel %vm108, %v1319, 0
  %1323 = vmatprep.subr.mxu0 0.0
  %1324 = vmatpush1.msra.mxu0 0.0
  %1325 = vmatprep.subr.mxu0 0.0
  %1326 = vmatpush1.msra.mxu0 0.0
  %1327 = vmatprep.subr.mxu0 0.0
  %1328 = vmatpush1.msra.mxu0 0.0
  %1329 = vmatprep.subr.mxu0 0.0
  %1330 = vmatpush1.msra.mxu0 0.0
  %1331 = vmatprep.subr.mxu0 0.0
  %1332 = vmatpush1.msra.mxu0 0.0
  %1333 = vmatprep.subr.mxu0 0.0
  %1334 = vmatpush1.msra.mxu0 0.0
  %1335 = vmatprep.subr.mxu0 0.0
  %1336 = vmatpush1.msra.mxu0 0.0
  %1337 = vmatprep.subr.mxu0 0.0
  %1338 = vmatpush1.msra.mxu0 0.0
  %1339 = vmatprep.subr.mxu0 0.0
  %1340 = vmatpush1.msra.mxu0 0.0
  %1341 = vmatprep.subr.mxu0 0.0
  %1342 = vmatpush1.msra.mxu0 0.0
  %1343 = vmatprep.subr.mxu0 0.0
  %1344 = vmatpush1.msra.mxu0 0.0
  %1345 = vmatprep.subr.mxu0 0.0
  %1346 = vmatpush1.msra.mxu0 0.0
  %1347 = vmatprep.subr.mxu0 0.0
  %1348 = vmatpush1.msra.mxu0 %v61
  %1349 = vmatprep.subr.mxu0 0.0
  %1350 = vmatpush1.msra.mxu0 %v60
  %1351 = vmatprep.subr.mxu0 0.0
  %1352 = vmatpush1.msra.mxu0 %v59
  %1353 = vmatprep.subr.mxu0 0.0
  %1354 = vmatpush1.msra.mxu0 %v58
  %1355 = vmatprep.subr.mxu0 0.0
  %1356 = vmatpush2.msra.mxu0 0.0
  %1357 = vmatprep.subr.mxu0 0.0
  %1358 = vmatpush2.msra.mxu0 0.0
  %1359 = vmatprep.subr.mxu0 0.0
  %1360 = vmatpush2.msra.mxu0 0.0
  %1361 = vmatprep.subr.mxu0 0.0
  %1362 = vmatpush2.msra.mxu0 0.0
  %1363 = vmatprep.subr.mxu0 0.0
  %1364 = vmatpush2.msra.mxu0 0.0
  %1365 = vmatprep.subr.mxu0 0.0
  %1366 = vmatpush2.msra.mxu0 0.0
  %1367 = vmatprep.subr.mxu0 0.0
  %1368 = vmatpush2.msra.mxu0 0.0
  %1369 = vmatprep.subr.mxu0 0.0
  %1370 = vmatpush2.msra.mxu0 0.0
  %1371 = vmatprep.subr.mxu0 0.0
  %1372 = vmatpush2.msra.mxu0 0.0
  %1373 = vmatprep.subr.mxu0 0.0
  %1374 = vmatpush2.msra.mxu0 0.0
  %1375 = vmatprep.subr.mxu0 0.0
  %1376 = vmatpush2.msra.mxu0 0.0
  %1377 = vmatprep.subr.mxu0 0.0
  %1378 = vmatpush2.msra.mxu0 0.0
  %1379 = vmatprep.subr.mxu0 0.0
  %1380 = vmatpush2.msra.mxu0 0.0
  %1381 = vmatprep.subr.mxu0 0.0
  %1382 = vmatpush2.msra.mxu0 0.0
  %1383 = vmatprep.subr.mxu0 0.0
  %1384 = vmatpush2.msra.mxu0 0.0
  %1385 = vmatprep.subr.mxu0 0.0
  %1386 = vmatpush2.msra.mxu0 0.0
  %1387 = vmatprep.mubr.f32.mxu0 0.0
  %1388 = vmatmul.mubr.f32.gmra.mxu0 %v1321
  %v1389 = vpop.f32.mrf.mxu0
  %v1390 = vadd.f32 %v636, %v1389
  %v1391 = vpop.f32.mrf.mxu0
  %1392 = vdwg.mxu0
  %v1393 = vmul.f32 %v1390, %v1390
  %v1394 = vmul.f32 %v1390, %v1393
  %v1395 = vmul.f32 %v1394, 0.044715
  %v1396 = vadd.f32 %v1390, %v1395
  %v1397 = vmul.f32 %v1396, 0.7978846
  %v1398 = vtanh.pop %v1397
  %v1399 = vadd.f32 %v1398, 1.0
  %v1400 = vmul.f32 %v1399, 0.5
  %v1401 = vmul.f32 %v1390, %v1400
  %v1403 = vsel %vm726, %v1401, 0
  %1405 = vmatprep.subr.mxu0 0.0
  %1406 = vmatpush1.msra.mxu0 0.0
  %1407 = vmatprep.subr.mxu0 0.0
  %1408 = vmatpush1.msra.mxu0 0.0
  %1409 = vmatprep.subr.mxu0 0.0
  %1410 = vmatpush1.msra.mxu0 0.0
  %1411 = vmatprep.subr.mxu0 0.0
  %1412 = vmatpush1.msra.mxu0 0.0
  %1413 = vmatprep.subr.mxu0 0.0
  %1414 = vmatpush1.msra.mxu0 0.0
  %1415 = vmatprep.subr.mxu0 0.0
  %1416 = vmatpush1.msra.mxu0 0.0
  %1417 = vmatprep.subr.mxu0 0.0
  %1418 = vmatpush1.msra.mxu0 0.0
  %1419 = vmatprep.subr.mxu0 0.0
  %1420 = vmatpush1.msra.mxu0 0.0
  %1421 = vmatprep.subr.mxu0 0.0
  %1422 = vmatpush1.msra.mxu0 %v70
  %1423 = vmatprep.subr.mxu0 0.0
  %1424 = vmatpush1.msra.mxu0 %v69
  %1425 = vmatprep.subr.mxu0 0.0
  %1426 = vmatpush1.msra.mxu0 %v68
  %1427 = vmatprep.subr.mxu0 0.0
  %1428 = vmatpush1.msra.mxu0 %v67
  %1429 = vmatprep.subr.mxu0 0.0
  %1430 = vmatpush1.msra.mxu0 %v66
  %1431 = vmatprep.subr.mxu0 0.0
  %1432 = vmatpush1.msra.mxu0 %v65
  %1433 = vmatprep.subr.mxu0 0.0
  %1434 = vmatpush1.msra.mxu0 %v64
  %1435 = vmatprep.subr.mxu0 0.0
  %1436 = vmatpush1.msra.mxu0 %v63
  %1437 = vmatprep.subr.mxu0 0.0
  %1438 = vmatpush2.msra.mxu0 0.0
  %1439 = vmatprep.subr.mxu0 0.0
  %1440 = vmatpush2.msra.mxu0 0.0
  %1441 = vmatprep.subr.mxu0 0.0
  %1442 = vmatpush2.msra.mxu0 0.0
  %1443 = vmatprep.subr.mxu0 0.0
  %1444 = vmatpush2.msra.mxu0 0.0
  %1445 = vmatprep.subr.mxu0 0.0
  %1446 = vmatpush2.msra.mxu0 0.0
  %1447 = vmatprep.subr.mxu0 0.0
  %1448 = vmatpush2.msra.mxu0 0.0
  %1449 = vmatprep.subr.mxu0 0.0
  %1450 = vmatpush2.msra.mxu0 0.0
  %1451 = vmatprep.subr.mxu0 0.0
  %1452 = vmatpush2.msra.mxu0 0.0
  %1453 = vmatprep.subr.mxu0 0.0
  %1454 = vmatpush2.msra.mxu0 0.0
  %1455 = vmatprep.subr.mxu0 0.0
  %1456 = vmatpush2.msra.mxu0 0.0
  %1457 = vmatprep.subr.mxu0 0.0
  %1458 = vmatpush2.msra.mxu0 0.0
  %1459 = vmatprep.subr.mxu0 0.0
  %1460 = vmatpush2.msra.mxu0 0.0
  %1461 = vmatprep.subr.mxu0 0.0
  %1462 = vmatpush2.msra.mxu0 0.0
  %1463 = vmatprep.subr.mxu0 0.0
  %1464 = vmatpush2.msra.mxu0 0.0
  %1465 = vmatprep.subr.mxu0 0.0
  %1466 = vmatpush2.msra.mxu0 0.0
  %1467 = vmatprep.subr.mxu0 0.0
  %1468 = vmatpush2.msra.mxu0 0.0
  %1469 = vmatprep.mubr.f32.mxu0 0.0
  %1470 = vmatmul.mubr.f32.gmra.mxu0 %v1403
  %v1471 = vpop.f32.mrf.mxu0
  %v1472 = vadd.f32 %v724, %v1471
  %v1473 = vpop.f32.mrf.mxu0
  %1474 = vdwg.mxu0
  %v1475 = vadd.f32 %v1304, %v1472
  %s1476 = scalar_lea.vmem %s13, 8
  %1477 = vst.msk [vmem:[%s1476] sm:$0x1f] %vm73, %v1475
  // Predicated region
  $region54: #{dualprompt_forward.14} parent=0 // pred_check
    _
  $region55: #{dualprompt_forward.14} parent=0 // pred_check_branch
    %1479 = sbr.rel (0) target = $region57
  $region56: #{dualprompt_forward.14} parent=0 // pred_region
    _
  $region57: #{dualprompt_forward.14} parent=0 // pred_fallthru
    _
  // Predicated region
  $region58: #{dualprompt_forward.14} parent=0 // pred_check
    _
  $region59: #{dualprompt_forward.14} parent=0 // pred_check_branch
    %1481 = sbr.rel (0) target = $region61
  $region60: #{dualprompt_forward.14} parent=0 // pred_region
    _
  $region61: #{dualprompt_forward.14} parent=0 // pred_fallthru
    _

// kernel: dualprompt_forward.25
$region0: #{dualprompt_forward.25}
  #allocation0 [shape = 'u32[]', space=smem, size = 0x4, offset = 0x4, fixed_abs, tag = 'smem constant byte address 0x4 - core index']
  #allocation1 [shape = 'u32[144,128]{1,0:T(1,128)}', space=vmem, size = 0x12000, scoped, tag = 'internal scratch']
  %s0 = inlined_call_operand.vmem [shape: f32[2,32], index: 0, kind: input, shape index: {}]
  %s1 = inlined_call_operand.vmem [shape: f32[1,32], index: 1, kind: input, shape index: {}]
  %s2 = inlined_call_operand.vmem [shape: f32[1,32], index: 2, kind: input, shape index: {}]
  %s3 = inlined_call_operand.vmem [shape: f32[32,10], index: 3, kind: input, shape index: {}]
  %s4 = inlined_call_operand.vmem [shape: f32[1,10], index: 4, kind: input, shape index: {}]
  %s5 = inlined_call_operand.hbm [shape: f32[2,10], index: 5, kind: output, shape index: {}]
  %s6 = sld [smem:[#allocation0]]
  $region30: #{dualprompt_forward.25} parent=0
    _
  %s8 = ssub.s32 1, %s6
  %s9 = scalar_select 0, %s8, %s6
  $region1: #{dualprompt_forward.25} parent=0
    #allocation2 [shape = 'u8[1024]{0}', space=vmem, size = 0x400, scoped, tag = 'output window, operand 0, single buffered']
    #allocation3 [shape = 's32[1]{0}', space=sflag, size = 0x4, scoped, tag = 'scoped memory for dualprompt_forward.25']
    %10 = vsyncpa [#allocation3], 0
    // Predicated region
    $region2: #{dualprompt_forward.25} parent=1 // pred_check
      _
    $region3: #{dualprompt_forward.25} parent=1 // pred_check_branch
      %12 = sbr.rel (0) target = $region5
    $region4: #{dualprompt_forward.25} parent=1 // pred_region
      _
    $region5: #{dualprompt_forward.25} parent=1 // pred_fallthru
      _
    // Predicated region
    $region6: #{dualprompt_forward.25} parent=1 // pred_check
      _
    $region7: #{dualprompt_forward.25} parent=1 // pred_check_branch
      %14 = sbr.rel (0) target = $region9
    $region8: #{dualprompt_forward.25} parent=1 // pred_region
      _
    $region9: #{dualprompt_forward.25} parent=1 // pred_fallthru
      _
    // Predicated region
    $region10: #{dualprompt_forward.25} parent=1 // pred_check
      _
    $region11: #{dualprompt_forward.25} parent=1 // pred_check_branch
      %16 = sbr.rel (0) target = $region13
    $region12: #{dualprompt_forward.25} parent=1 // pred_region
      _
    $region13: #{dualprompt_forward.25} parent=1 // pred_fallthru
      _
    // Predicated region
    $region14: #{dualprompt_forward.25} parent=1 // pred_check
      _
    $region15: #{dualprompt_forward.25} parent=1 // pred_check_branch
      %18 = sbr.rel (0) target = $region17
    $region16: #{dualprompt_forward.25} parent=1 // pred_region
      _
    $region17: #{dualprompt_forward.25} parent=1 // pred_fallthru
      _
    // Predicated region
    $region18: #{dualprompt_forward.25} parent=1 // pred_check
      _
    $region19: #{dualprompt_forward.25} parent=1 // pred_check_branch
      %20 = sbr.rel (0) target = $region21
    $region20: #{dualprompt_forward.25} parent=1 // pred_region
      _
    $region21: #{dualprompt_forward.25} parent=1 // pred_fallthru
      _
    %v21 = vld [vmem:[%s0] sm:$0x3]
    %v22 = vld [vmem:[%s1] sm:$0x1]
    %v23 = vld [vmem:[%s2] sm:$0x1]
    %vm24 = vcmask 254976
    %v25 = vsel %vm24, %v21, 0.0
    %26 = vadd.xlane.f32.xlu0 %v25
    %v27 = vpop.xlane.xlu0 %26
    %v28 = vrcp.pop 32.0
    %v29 = vmul.f32 %v27, %v28
    %v30 = vsub.f32 %v21, %v29
    %v31 = vmul.f32 %v30, %v30
    %v32 = vsel %vm24, %v31, 0.0
    %33 = vadd.xlane.f32.xlu0 %v32
    %v34 = vpop.xlane.xlu0 %33
    %v35 = vmul.f32 %v34, %v28
    %v36 = vadd.f32 %v35, 1e-06
    %v37 = vrsqrt.pop %v36
    %v38 = vmul.f32 %v30, %v37
    %v40 = vlaneseq
    %v41 = vshrl.u32 %v40, 7
    %v42 = vsub.s32 0, %v41
    %v43 = vrot.slane %v22, %v42
    %v45 = vmul.f32 %v38, %v43
    %v47 = vlaneseq
    %v48 = vshrl.u32 %v47, 7
    %v49 = vsub.s32 0, %v48
    %v50 = vrot.slane %v23, %v49
    %v52 = vadd.f32 %v45, %v50
    %v53 = vld [vmem:[%s3] sm:$0xff]
    %v54 = vld [vmem:[%s3 + $0x8] sm:$0xff]
    %v55 = vld [vmem:[%s3 + $0x10] sm:$0xff]
    %v56 = vld [vmem:[%s3 + $0x18] sm:$0xff]
    %v57 = vld [vmem:[%s4] sm:$0x1]
    %v59 = vlaneseq
    %v60 = vshrl.u32 %v59, 7
    %v61 = vsub.s32 0, %v60
    %v62 = vrot.slane %v57, %v61
    %vm64 = vcmask 261120
    %v66 = vsel %vm64, %v52, 0
    %68 = vmatprep.subr.mxu0 0.0
    %69 = vmatpush1.msra.mxu0 0.0
    %70 = vmatprep.subr.mxu0 0.0
    %71 = vmatpush1.msra.mxu0 0.0
    %72 = vmatprep.subr.mxu0 0.0
    %73 = vmatpush1.msra.mxu0 0.0
    %74 = vmatprep.subr.mxu0 0.0
    %75 = vmatpush1.msra.mxu0 0.0
    %76 = vmatprep.subr.mxu0 0.0
    %77 = vmatpush1.msra.mxu0 0.0
    %78 = vmatprep.subr.mxu0 0.0
    %79 = vmatpush1.msra.mxu0 0.0
    %80 = vmatprep.subr.mxu0 0.0
    %81 = vmatpush1.msra.mxu0 0.0
    %82 = vmatprep.subr.mxu0 0.0
    %83 = vmatpush1.msra.mxu0 0.0
    %84 = vmatprep.subr.mxu0 0.0
    %85 = vmatpush1.msra.mxu0 0.0
    %86 = vmatprep.subr.mxu0 0.0
    %87 = vmatpush1.msra.mxu0 0.0
    %88 = vmatprep.subr.mxu0 0.0
    %89 = vmatpush1.msra.mxu0 0.0
    %90 = vmatprep.subr.mxu0 0.0
    %91 = vmatpush1.msra.mxu0 0.0
    %92 = vmatprep.subr.mxu0 0.0
    %93 = vmatpush1.msra.mxu0 %v56
    %94 = vmatprep.subr.mxu0 0.0
    %95 = vmatpush1.msra.mxu0 %v55
    %96 = vmatprep.subr.mxu0 0.0
    %97 = vmatpush1.msra.mxu0 %v54
    %98 = vmatprep.subr.mxu0 0.0
    %99 = vmatpush1.msra.mxu0 %v53
    %100 = vmatprep.subr.mxu0 0.0
    %101 = vmatpush2.msra.mxu0 0.0
    %102 = vmatprep.subr.mxu0 0.0
    %103 = vmatpush2.msra.mxu0 0.0
    %104 = vmatprep.subr.mxu0 0.0
    %105 = vmatpush2.msra.mxu0 0.0
    %106 = vmatprep.subr.mxu0 0.0
    %107 = vmatpush2.msra.mxu0 0.0
    %108 = vmatprep.subr.mxu0 0.0
    %109 = vmatpush2.msra.mxu0 0.0
    %110 = vmatprep.subr.mxu0 0.0
    %111 = vmatpush2.msra.mxu0 0.0
    %112 = vmatprep.subr.mxu0 0.0
    %113 = vmatpush2.msra.mxu0 0.0
    %114 = vmatprep.subr.mxu0 0.0
    %115 = vmatpush2.msra.mxu0 0.0
    %116 = vmatprep.subr.mxu0 0.0
    %117 = vmatpush2.msra.mxu0 0.0
    %118 = vmatprep.subr.mxu0 0.0
    %119 = vmatpush2.msra.mxu0 0.0
    %120 = vmatprep.subr.mxu0 0.0
    %121 = vmatpush2.msra.mxu0 0.0
    %122 = vmatprep.subr.mxu0 0.0
    %123 = vmatpush2.msra.mxu0 0.0
    %124 = vmatprep.subr.mxu0 0.0
    %125 = vmatpush2.msra.mxu0 0.0
    %126 = vmatprep.subr.mxu0 0.0
    %127 = vmatpush2.msra.mxu0 0.0
    %128 = vmatprep.subr.mxu0 0.0
    %129 = vmatpush2.msra.mxu0 0.0
    %130 = vmatprep.subr.mxu0 0.0
    %131 = vmatpush2.msra.mxu0 0.0
    %132 = vmatprep.mubr.f32.mxu0 0.0
    %133 = vmatmul.mubr.f32.gmra.mxu0 %v66
    %v134 = vpop.f32.mrf.mxu0
    %v135 = vadd.f32 %v62, %v134
    %v136 = vpop.f32.mrf.mxu0
    %137 = vdwg.mxu0
    %vm138 = vcmask 74752
    %139 = vst.msk [vmem:[#allocation2] sm:$0x3] %vm138, %v135
    // Predicated region
    $region22: #{dualprompt_forward.25} parent=1 // pred_check
      _
    $region23: #{dualprompt_forward.25} parent=1 // pred_check_branch
      %141 = sbr.rel (0) target = $region25
    $region24: #{dualprompt_forward.25} parent=1 // pred_region
      %s143 = ssub.s32 32, 32
      %144 = vsyncadd [#allocation3], %s143
      %s146 = sshll.u32 [#allocation2], 4
      %s147 = int_to_ptr.vmem [resolvable:$true] %s146
      %149 = dma.vmem_to_hbm [thread:$0]  %s147, 32, %s5, [#allocation3]
    $region25: #{dualprompt_forward.25} parent=1 // pred_fallthru
      _
    // Predicated region
    $region26: #{dualprompt_forward.25} parent=1 // pred_check
      _
    $region27: #{dualprompt_forward.25} parent=1 // pred_check_branch
      %151 = sbr.rel (0) target = $region29
    $region28: #{dualprompt_forward.25} parent=1 // pred_region
      %152 = dma.done [#allocation3], 32
    $region29: #{dualprompt_forward.25} parent=1 // pred_fallthru
      _
    %153 = vsyncpa [#allocation3], 1

// kernel: dualprompt_forward.20
$region0: #{dualprompt_forward.20}
  #allocation0 [shape = 'u32[]', space=smem, size = 0x4, offset = 0x4, fixed_abs, tag = 'smem constant byte address 0x4 - core index']
  #allocation1 [shape = 'u32[144,128]{1,0:T(1,128)}', space=vmem, size = 0x12000, scoped, tag = 'internal scratch']
  %s0 = inlined_call_operand.vmem [shape: f32[2,7,32], index: 0, kind: input, shape index: {}]
  %s1 = inlined_call_operand.vmem [shape: f32[1,32], index: 1, kind: input, shape index: {}]
  %s2 = inlined_call_operand.vmem [shape: f32[1,32], index: 2, kind: input, shape index: {}]
  %s3 = inlined_call_operand.vmem [shape: f32[32,96], index: 3, kind: input, shape index: {}]
  %s4 = inlined_call_operand.vmem [shape: f32[1,96], index: 4, kind: input, shape index: {}]
  %s5 = inlined_call_operand.vmem [shape: f32[32,32], index: 5, kind: input, shape index: {}]
  %s6 = inlined_call_operand.vmem [shape: f32[1,32], index: 6, kind: input, shape index: {}]
  %s7 = inlined_call_operand.vmem [shape: f32[1,32], index: 7, kind: input, shape index: {}]
  %s8 = inlined_call_operand.vmem [shape: f32[1,32], index: 8, kind: input, shape index: {}]
  %s9 = inlined_call_operand.vmem [shape: f32[32,64], index: 9, kind: input, shape index: {}]
  %s10 = inlined_call_operand.vmem [shape: f32[1,64], index: 10, kind: input, shape index: {}]
  %s11 = inlined_call_operand.vmem [shape: f32[64,32], index: 11, kind: input, shape index: {}]
  %s12 = inlined_call_operand.vmem [shape: f32[1,32], index: 12, kind: input, shape index: {}]
  %s13 = inlined_call_operand.vmem [shape: f32[2,7,32], index: 13, kind: output, shape index: {}]
  %s14 = sld [smem:[#allocation0]]
  $region62: #{dualprompt_forward.20} parent=0
    _
  %s16 = ssub.s32 1, %s14
  %s17 = scalar_select 0, %s16, %s14
  // Predicated region
  $region2: #{dualprompt_forward.20} parent=0 // pred_check
    _
  $region3: #{dualprompt_forward.20} parent=0 // pred_check_branch
    %19 = sbr.rel (0) target = $region5
  $region4: #{dualprompt_forward.20} parent=0 // pred_region
    _
  $region5: #{dualprompt_forward.20} parent=0 // pred_fallthru
    _
  // Predicated region
  $region6: #{dualprompt_forward.20} parent=0 // pred_check
    _
  $region7: #{dualprompt_forward.20} parent=0 // pred_check_branch
    %21 = sbr.rel (0) target = $region9
  $region8: #{dualprompt_forward.20} parent=0 // pred_region
    _
  $region9: #{dualprompt_forward.20} parent=0 // pred_fallthru
    _
  // Predicated region
  $region10: #{dualprompt_forward.20} parent=0 // pred_check
    _
  $region11: #{dualprompt_forward.20} parent=0 // pred_check_branch
    %23 = sbr.rel (0) target = $region13
  $region12: #{dualprompt_forward.20} parent=0 // pred_region
    _
  $region13: #{dualprompt_forward.20} parent=0 // pred_fallthru
    _
  // Predicated region
  $region14: #{dualprompt_forward.20} parent=0 // pred_check
    _
  $region15: #{dualprompt_forward.20} parent=0 // pred_check_branch
    %25 = sbr.rel (0) target = $region17
  $region16: #{dualprompt_forward.20} parent=0 // pred_region
    _
  $region17: #{dualprompt_forward.20} parent=0 // pred_fallthru
    _
  // Predicated region
  $region18: #{dualprompt_forward.20} parent=0 // pred_check
    _
  $region19: #{dualprompt_forward.20} parent=0 // pred_check_branch
    %27 = sbr.rel (0) target = $region21
  $region20: #{dualprompt_forward.20} parent=0 // pred_region
    _
  $region21: #{dualprompt_forward.20} parent=0 // pred_fallthru
    _
  // Predicated region
  $region22: #{dualprompt_forward.20} parent=0 // pred_check
    _
  $region23: #{dualprompt_forward.20} parent=0 // pred_check_branch
    %29 = sbr.rel (0) target = $region25
  $region24: #{dualprompt_forward.20} parent=0 // pred_region
    _
  $region25: #{dualprompt_forward.20} parent=0 // pred_fallthru
    _
  // Predicated region
  $region26: #{dualprompt_forward.20} parent=0 // pred_check
    _
  $region27: #{dualprompt_forward.20} parent=0 // pred_check_branch
    %31 = sbr.rel (0) target = $region29
  $region28: #{dualprompt_forward.20} parent=0 // pred_region
    _
  $region29: #{dualprompt_forward.20} parent=0 // pred_fallthru
    _
  // Predicated region
  $region30: #{dualprompt_forward.20} parent=0 // pred_check
    _
  $region31: #{dualprompt_forward.20} parent=0 // pred_check_branch
    %33 = sbr.rel (0) target = $region33
  $region32: #{dualprompt_forward.20} parent=0 // pred_region
    _
  $region33: #{dualprompt_forward.20} parent=0 // pred_fallthru
    _
  // Predicated region
  $region34: #{dualprompt_forward.20} parent=0 // pred_check
    _
  $region35: #{dualprompt_forward.20} parent=0 // pred_check_branch
    %35 = sbr.rel (0) target = $region37
  $region36: #{dualprompt_forward.20} parent=0 // pred_region
    _
  $region37: #{dualprompt_forward.20} parent=0 // pred_fallthru
    _
  // Predicated region
  $region38: #{dualprompt_forward.20} parent=0 // pred_check
    _
  $region39: #{dualprompt_forward.20} parent=0 // pred_check_branch
    %37 = sbr.rel (0) target = $region41
  $region40: #{dualprompt_forward.20} parent=0 // pred_region
    _
  $region41: #{dualprompt_forward.20} parent=0 // pred_fallthru
    _
  // Predicated region
  $region42: #{dualprompt_forward.20} parent=0 // pred_check
    _
  $region43: #{dualprompt_forward.20} parent=0 // pred_check_branch
    %39 = sbr.rel (0) target = $region45
  $region44: #{dualprompt_forward.20} parent=0 // pred_region
    _
  $region45: #{dualprompt_forward.20} parent=0 // pred_fallthru
    _
  // Predicated region
  $region46: #{dualprompt_forward.20} parent=0 // pred_check
    _
  $region47: #{dualprompt_forward.20} parent=0 // pred_check_branch
    %41 = sbr.rel (0) target = $region49
  $region48: #{dualprompt_forward.20} parent=0 // pred_region
    _
  $region49: #{dualprompt_forward.20} parent=0 // pred_fallthru
    _
  // Predicated region
  $region50: #{dualprompt_forward.20} parent=0 // pred_check
    _
  $region51: #{dualprompt_forward.20} parent=0 // pred_check_branch
    %43 = sbr.rel (0) target = $region53
  $region52: #{dualprompt_forward.20} parent=0 // pred_region
    _
  $region53: #{dualprompt_forward.20} parent=0 // pred_fallthru
    _
  %v44 = vld [vmem:[%s1] sm:$0x1]
  %v45 = vld [vmem:[%s2] sm:$0x1]
  %v46 = vld [vmem:[%s3] sm:$0xff]
  %v47 = vld [vmem:[%s3 + $0x8] sm:$0xff]
  %v48 = vld [vmem:[%s3 + $0x10] sm:$0xff]
  %v49 = vld [vmem:[%s3 + $0x18] sm:$0xff]
  %v50 = vld [vmem:[%s4] sm:$0x1]
  %v51 = vld [vmem:[%s5] sm:$0xff]
  %v52 = vld [vmem:[%s5 + $0x8] sm:$0xff]
  %v53 = vld [vmem:[%s5 + $0x10] sm:$0xff]
  %v54 = vld [vmem:[%s5 + $0x18] sm:$0xff]
  %v55 = vld [vmem:[%s6] sm:$0x1]
  %v56 = vld [vmem:[%s7] sm:$0x1]
  %v57 = vld [vmem:[%s8] sm:$0x1]
  %v58 = vld [vmem:[%s9] sm:$0xff]
  %v59 = vld [vmem:[%s9 + $0x8] sm:$0xff]
  %v60 = vld [vmem:[%s9 + $0x10] sm:$0xff]
  %v61 = vld [vmem:[%s9 + $0x18] sm:$0xff]
  %v62 = vld [vmem:[%s10] sm:$0x1]
  %v63 = vld [vmem:[%s11] sm:$0xff]
  %v64 = vld [vmem:[%s11 + $0x8] sm:$0xff]
  %v65 = vld [vmem:[%s11 + $0x10] sm:$0xff]
  %v66 = vld [vmem:[%s11 + $0x18] sm:$0xff]
  %v67 = vld [vmem:[%s11 + $0x20] sm:$0xff]
  %v68 = vld [vmem:[%s11 + $0x28] sm:$0xff]
  %v69 = vld [vmem:[%s11 + $0x30] sm:$0xff]
  %v70 = vld [vmem:[%s11 + $0x38] sm:$0xff]
  %v71 = vld [vmem:[%s12] sm:$0x1]
  %v72 = vld [vmem:[%s0] sm:$0x7f]
  %vm73 = vcmask 260096
  %v74 = vsel %vm73, %v72, 0.0
  %75 = vadd.xlane.f32.xlu0 %v74
  %v76 = vpop.xlane.xlu0 %75
  %v77 = vrcp.pop 32.0
  %v78 = vmul.f32 %v76, %v77
  %v79 = vsub.f32 %v72, %v78
  %v80 = vmul.f32 %v79, %v79
  %v81 = vsel %vm73, %v80, 0.0
  %82 = vadd.xlane.f32.xlu0 %v81
  %v83 = vpop.xlane.xlu0 %82
  %v84 = vmul.f32 %v83, %v77
  %v85 = vadd.f32 %v84, 1e-06
  %v86 = vrsqrt.pop %v85
  %v87 = vmul.f32 %v79, %v86
  %v89 = vlaneseq
  %v90 = vshrl.u32 %v89, 7
  %v91 = vsub.s32 0, %v90
  %v92 = vrot.slane %v44, %v91
  %v94 = vmul.f32 %v87, %v92
  %v96 = vlaneseq
  %v97 = vshrl.u32 %v96, 7
  %v98 = vsub.s32 0, %v97
  %v99 = vrot.slane %v45, %v98
  %v101 = vadd.f32 %v94, %v99
  %v103 = vlaneseq
  %v104 = vshrl.u32 %v103, 7
  %v105 = vsub.s32 0, %v104
  %v106 = vrot.slane %v50, %v105
  %vm108 = vcmask 261120
  %v110 = vsel %vm108, %v101, 0
  %112 = vmatprep.subr.mxu0 0.0
  %113 = vmatpush1.msra.mxu0 0.0
  %114 = vmatprep.subr.mxu0 0.0
  %115 = vmatpush1.msra.mxu0 0.0
  %116 = vmatprep.subr.mxu0 0.0
  %117 = vmatpush1.msra.mxu0 0.0
  %118 = vmatprep.subr.mxu0 0.0
  %119 = vmatpush1.msra.mxu0 0.0
  %120 = vmatprep.subr.mxu0 0.0
  %121 = vmatpush1.msra.mxu0 0.0
  %122 = vmatprep.subr.mxu0 0.0
  %123 = vmatpush1.msra.mxu0 0.0
  %124 = vmatprep.subr.mxu0 0.0
  %125 = vmatpush1.msra.mxu0 0.0
  %126 = vmatprep.subr.mxu0 0.0
  %127 = vmatpush1.msra.mxu0 0.0
  %128 = vmatprep.subr.mxu0 0.0
  %129 = vmatpush1.msra.mxu0 0.0
  %130 = vmatprep.subr.mxu0 0.0
  %131 = vmatpush1.msra.mxu0 0.0
  %132 = vmatprep.subr.mxu0 0.0
  %133 = vmatpush1.msra.mxu0 0.0
  %134 = vmatprep.subr.mxu0 0.0
  %135 = vmatpush1.msra.mxu0 0.0
  %136 = vmatprep.subr.mxu0 0.0
  %137 = vmatpush1.msra.mxu0 %v49
  %138 = vmatprep.subr.mxu0 0.0
  %139 = vmatpush1.msra.mxu0 %v48
  %140 = vmatprep.subr.mxu0 0.0
  %141 = vmatpush1.msra.mxu0 %v47
  %142 = vmatprep.subr.mxu0 0.0
  %143 = vmatpush1.msra.mxu0 %v46
  %144 = vmatprep.subr.mxu0 0.0
  %145 = vmatpush2.msra.mxu0 0.0
  %146 = vmatprep.subr.mxu0 0.0
  %147 = vmatpush2.msra.mxu0 0.0
  %148 = vmatprep.subr.mxu0 0.0
  %149 = vmatpush2.msra.mxu0 0.0
  %150 = vmatprep.subr.mxu0 0.0
  %151 = vmatpush2.msra.mxu0 0.0
  %152 = vmatprep.subr.mxu0 0.0
  %153 = vmatpush2.msra.mxu0 0.0
  %154 = vmatprep.subr.mxu0 0.0
  %155 = vmatpush2.msra.mxu0 0.0
  %156 = vmatprep.subr.mxu0 0.0
  %157 = vmatpush2.msra.mxu0 0.0
  %158 = vmatprep.subr.mxu0 0.0
  %159 = vmatpush2.msra.mxu0 0.0
  %160 = vmatprep.subr.mxu0 0.0
  %161 = vmatpush2.msra.mxu0 0.0
  %162 = vmatprep.subr.mxu0 0.0
  %163 = vmatpush2.msra.mxu0 0.0
  %164 = vmatprep.subr.mxu0 0.0
  %165 = vmatpush2.msra.mxu0 0.0
  %166 = vmatprep.subr.mxu0 0.0
  %167 = vmatpush2.msra.mxu0 0.0
  %168 = vmatprep.subr.mxu0 0.0
  %169 = vmatpush2.msra.mxu0 0.0
  %170 = vmatprep.subr.mxu0 0.0
  %171 = vmatpush2.msra.mxu0 0.0
  %172 = vmatprep.subr.mxu0 0.0
  %173 = vmatpush2.msra.mxu0 0.0
  %174 = vmatprep.subr.mxu0 0.0
  %175 = vmatpush2.msra.mxu0 0.0
  %176 = vmatprep.mubr.f32.mxu0 0.0
  %177 = vmatmul.mubr.f32.gmra.mxu0 %v110
  %v178 = vpop.f32.mrf.mxu0
  %v179 = vadd.f32 %v106, %v178
  %v180 = vpop.f32.mrf.mxu0
  %181 = vdwg.mxu0
  %183 = vrot.lane.b32.xlu0 %v179, 96
  %v184 = vpop.permute.xlu0 %183
  %vm185 = vcmask 130048
  %v186 = vsel %vm185, %v179, 0
  %v188 = vsel %vm185, %v184, 0
  %190 = vmatprep.subr.mxu0 0.0
  %191 = vmatpush1.xpose.msra.mxu0 0.0
  %192 = vmatprep.subr.mxu0 0.0
  %193 = vmatpush1.xpose.msra.mxu0 0.0
  %194 = vmatprep.subr.mxu0 0.0
  %195 = vmatpush1.xpose.msra.mxu0 0.0
  %196 = vmatprep.subr.mxu0 0.0
  %197 = vmatpush1.xpose.msra.mxu0 0.0
  %198 = vmatprep.subr.mxu0 0.0
  %199 = vmatpush1.xpose.msra.mxu0 0.0
  %200 = vmatprep.subr.mxu0 0.0
  %201 = vmatpush1.xpose.msra.mxu0 0.0
  %202 = vmatprep.subr.mxu0 0.0
  %203 = vmatpush1.xpose.msra.mxu0 0.0
  %204 = vmatprep.subr.mxu0 0.0
  %205 = vmatpush1.xpose.msra.mxu0 0.0
  %206 = vmatprep.subr.mxu0 0.0
  %207 = vmatpush1.xpose.msra.mxu0 0.0
  %208 = vmatprep.subr.mxu0 0.0
  %209 = vmatpush1.xpose.msra.mxu0 0.0
  %210 = vmatprep.subr.mxu0 0.0
  %211 = vmatpush1.xpose.msra.mxu0 0.0
  %212 = vmatprep.subr.mxu0 0.0
  %213 = vmatpush1.xpose.msra.mxu0 0.0
  %214 = vmatprep.subr.mxu0 0.0
  %215 = vmatpush1.xpose.msra.mxu0 0.0
  %216 = vmatprep.subr.mxu0 0.0
  %217 = vmatpush1.xpose.msra.mxu0 0.0
  %218 = vmatprep.subr.mxu0 0.0
  %219 = vmatpush1.xpose.msra.mxu0 0.0
  %220 = vmatprep.subr.mxu0 0.0
  %221 = vmatpush1.xpose.msra.mxu0 %v188
  %222 = vmatprep.subr.mxu0 0.0
  %223 = vmatpush2.xpose.msra.mxu0 0.0
  %224 = vmatprep.subr.mxu0 0.0
  %225 = vmatpush2.xpose.msra.mxu0 0.0
  %226 = vmatprep.subr.mxu0 0.0
  %227 = vmatpush2.xpose.msra.mxu0 0.0
  %228 = vmatprep.subr.mxu0 0.0
  %229 = vmatpush2.xpose.msra.mxu0 0.0
  %230 = vmatprep.subr.mxu0 0.0
  %231 = vmatpush2.xpose.msra.mxu0 0.0
  %232 = vmatprep.subr.mxu0 0.0
  %233 = vmatpush2.xpose.msra.mxu0 0.0
  %234 = vmatprep.subr.mxu0 0.0
  %235 = vmatpush2.xpose.msra.mxu0 0.0
  %236 = vmatprep.subr.mxu0 0.0
  %237 = vmatpush2.xpose.msra.mxu0 0.0
  %238 = vmatprep.subr.mxu0 0.0
  %239 = vmatpush2.xpose.msra.mxu0 0.0
  %240 = vmatprep.subr.mxu0 0.0
  %241 = vmatpush2.xpose.msra.mxu0 0.0
  %242 = vmatprep.subr.mxu0 0.0
  %243 = vmatpush2.xpose.msra.mxu0 0.0
  %244 = vmatprep.subr.mxu0 0.0
  %245 = vmatpush2.xpose.msra.mxu0 0.0
  %246 = vmatprep.subr.mxu0 0.0
  %247 = vmatpush2.xpose.msra.mxu0 0.0
  %248 = vmatprep.subr.mxu0 0.0
  %249 = vmatpush2.xpose.msra.mxu0 0.0
  %250 = vmatprep.subr.mxu0 0.0
  %251 = vmatpush2.xpose.msra.mxu0 0.0
  %252 = vmatprep.subr.mxu0 0.0
  %253 = vmatpush2.xpose.msra.mxu0 0.0
  %254 = vmatprep.mubr.f32.mxu0 0.0
  %255 = vmatmul.mubr.f32.gmra.mxu0 %v186
  %v256 = vpop.f32.mrf.mxu0
  %v257 = vadd.f32 0.0, %v256
  %v258 = vpop.f32.mrf.mxu0
  %259 = vdwg.mxu0
  %v260 = vmul.f32 %v257, 0.25
  %vm261 = vcmask 55296
  %v262 = vsel %vm261, %v260, -inf
  %263 = vmax.xlane.f32.xlu0 %v262
  %v264 = vpop.xlane.xlu0 %263
  %v265 = vsub.f32 %v260, %v264
  %v266 = vmul.f32 %v265, 1.442695
  %v267 = vpow.pop %v266
  %v268 = vsel %vm261, %v267, 0.0
  %269 = vadd.xlane.f32.xlu0 %v268
  %v270 = vpop.xlane.xlu0 %269
  %v271 = vrcp.pop %v270
  %v272 = vmul.f32 %v267, %v271
  %273 = vrot.lane.b32.xlu0 %v179, 64
  %v274 = vpop.permute.xlu0 %273
  %vm275 = vcmask 56320
  %v277 = vsel %vm275, %v272, 0
  %vm279 = vcmask 1046528
  %v280 = vsel %vm279, %v274, 0
  %282 = vmatprep.subr.mxu0 0.0
  %283 = vmatpush1.msra.mxu0 0.0
  %284 = vmatprep.subr.mxu0 0.0
  %285 = vmatpush1.msra.mxu0 0.0
  %286 = vmatprep.subr.mxu0 0.0
  %287 = vmatpush1.msra.mxu0 0.0
  %288 = vmatprep.subr.mxu0 0.0
  %289 = vmatpush1.msra.mxu0 0.0
  %290 = vmatprep.subr.mxu0 0.0
  %291 = vmatpush1.msra.mxu0 0.0
  %292 = vmatprep.subr.mxu0 0.0
  %293 = vmatpush1.msra.mxu0 0.0
  %294 = vmatprep.subr.mxu0 0.0
  %295 = vmatpush1.msra.mxu0 0.0
  %296 = vmatprep.subr.mxu0 0.0
  %297 = vmatpush1.msra.mxu0 0.0
  %298 = vmatprep.subr.mxu0 0.0
  %299 = vmatpush1.msra.mxu0 0.0
  %300 = vmatprep.subr.mxu0 0.0
  %301 = vmatpush1.msra.mxu0 0.0
  %302 = vmatprep.subr.mxu0 0.0
  %303 = vmatpush1.msra.mxu0 0.0
  %304 = vmatprep.subr.mxu0 0.0
  %305 = vmatpush1.msra.mxu0 0.0
  %306 = vmatprep.subr.mxu0 0.0
  %307 = vmatpush1.msra.mxu0 0.0
  %308 = vmatprep.subr.mxu0 0.0
  %309 = vmatpush1.msra.mxu0 0.0
  %310 = vmatprep.subr.mxu0 0.0
  %311 = vmatpush1.msra.mxu0 0.0
  %312 = vmatprep.subr.mxu0 0.0
  %313 = vmatpush1.msra.mxu0 %v280
  %314 = vmatprep.subr.mxu0 0.0
  %315 = vmatpush2.msra.mxu0 0.0
  %316 = vmatprep.subr.mxu0 0.0
  %317 = vmatpush2.msra.mxu0 0.0
  %318 = vmatprep.subr.mxu0 0.0
  %319 = vmatpush2.msra.mxu0 0.0
  %320 = vmatprep.subr.mxu0 0.0
  %321 = vmatpush2.msra.mxu0 0.0
  %322 = vmatprep.subr.mxu0 0.0
  %323 = vmatpush2.msra.mxu0 0.0
  %324 = vmatprep.subr.mxu0 0.0
  %325 = vmatpush2.msra.mxu0 0.0
  %326 = vmatprep.subr.mxu0 0.0
  %327 = vmatpush2.msra.mxu0 0.0
  %328 = vmatprep.subr.mxu0 0.0
  %329 = vmatpush2.msra.mxu0 0.0
  %330 = vmatprep.subr.mxu0 0.0
  %331 = vmatpush2.msra.mxu0 0.0
  %332 = vmatprep.subr.mxu0 0.0
  %333 = vmatpush2.msra.mxu0 0.0
  %334 = vmatprep.subr.mxu0 0.0
  %335 = vmatpush2.msra.mxu0 0.0
  %336 = vmatprep.subr.mxu0 0.0
  %337 = vmatpush2.msra.mxu0 0.0
  %338 = vmatprep.subr.mxu0 0.0
  %339 = vmatpush2.msra.mxu0 0.0
  %340 = vmatprep.subr.mxu0 0.0
  %341 = vmatpush2.msra.mxu0 0.0
  %342 = vmatprep.subr.mxu0 0.0
  %343 = vmatpush2.msra.mxu0 0.0
  %344 = vmatprep.subr.mxu0 0.0
  %345 = vmatpush2.msra.mxu0 0.0
  %346 = vmatprep.mubr.f32.mxu0 0.0
  %347 = vmatmul.mubr.f32.gmra.mxu0 %v277
  %v348 = vpop.f32.mrf.mxu0
  %v349 = vadd.f32 0.0, %v348
  %v350 = vpop.f32.mrf.mxu0
  %351 = vdwg.mxu0
  %352 = vrot.lane.b32.xlu0 %v179, 112
  %v353 = vpop.permute.xlu0 %352
  %354 = vrot.lane.b32.xlu0 %v179, 80
  %v355 = vpop.permute.xlu0 %354
  %v356 = vsel %vm185, %v353, 0
  %v358 = vsel %vm185, %v355, 0
  %360 = vmatprep.subr.mxu0 0.0
  %361 = vmatpush1.xpose.msra.mxu0 0.0
  %362 = vmatprep.subr.mxu0 0.0
  %363 = vmatpush1.xpose.msra.mxu0 0.0
  %364 = vmatprep.subr.mxu0 0.0
  %365 = vmatpush1.xpose.msra.mxu0 0.0
  %366 = vmatprep.subr.mxu0 0.0
  %367 = vmatpush1.xpose.msra.mxu0 0.0
  %368 = vmatprep.subr.mxu0 0.0
  %369 = vmatpush1.xpose.msra.mxu0 0.0
  %370 = vmatprep.subr.mxu0 0.0
  %371 = vmatpush1.xpose.msra.mxu0 0.0
  %372 = vmatprep.subr.mxu0 0.0
  %373 = vmatpush1.xpose.msra.mxu0 0.0
  %374 = vmatprep.subr.mxu0 0.0
  %375 = vmatpush1.xpose.msra.mxu0 0.0
  %376 = vmatprep.subr.mxu0 0.0
  %377 = vmatpush1.xpose.msra.mxu0 0.0
  %378 = vmatprep.subr.mxu0 0.0
  %379 = vmatpush1.xpose.msra.mxu0 0.0
  %380 = vmatprep.subr.mxu0 0.0
  %381 = vmatpush1.xpose.msra.mxu0 0.0
  %382 = vmatprep.subr.mxu0 0.0
  %383 = vmatpush1.xpose.msra.mxu0 0.0
  %384 = vmatprep.subr.mxu0 0.0
  %385 = vmatpush1.xpose.msra.mxu0 0.0
  %386 = vmatprep.subr.mxu0 0.0
  %387 = vmatpush1.xpose.msra.mxu0 0.0
  %388 = vmatprep.subr.mxu0 0.0
  %389 = vmatpush1.xpose.msra.mxu0 0.0
  %390 = vmatprep.subr.mxu0 0.0
  %391 = vmatpush1.xpose.msra.mxu0 %v358
  %392 = vmatprep.subr.mxu0 0.0
  %393 = vmatpush2.xpose.msra.mxu0 0.0
  %394 = vmatprep.subr.mxu0 0.0
  %395 = vmatpush2.xpose.msra.mxu0 0.0
  %396 = vmatprep.subr.mxu0 0.0
  %397 = vmatpush2.xpose.msra.mxu0 0.0
  %398 = vmatprep.subr.mxu0 0.0
  %399 = vmatpush2.xpose.msra.mxu0 0.0
  %400 = vmatprep.subr.mxu0 0.0
  %401 = vmatpush2.xpose.msra.mxu0 0.0
  %402 = vmatprep.subr.mxu0 0.0
  %403 = vmatpush2.xpose.msra.mxu0 0.0
  %404 = vmatprep.subr.mxu0 0.0
  %405 = vmatpush2.xpose.msra.mxu0 0.0
  %406 = vmatprep.subr.mxu0 0.0
  %407 = vmatpush2.xpose.msra.mxu0 0.0
  %408 = vmatprep.subr.mxu0 0.0
  %409 = vmatpush2.xpose.msra.mxu0 0.0
  %410 = vmatprep.subr.mxu0 0.0
  %411 = vmatpush2.xpose.msra.mxu0 0.0
  %412 = vmatprep.subr.mxu0 0.0
  %413 = vmatpush2.xpose.msra.mxu0 0.0
  %414 = vmatprep.subr.mxu0 0.0
  %415 = vmatpush2.xpose.msra.mxu0 0.0
  %416 = vmatprep.subr.mxu0 0.0
  %417 = vmatpush2.xpose.msra.mxu0 0.0
  %418 = vmatprep.subr.mxu0 0.0
  %419 = vmatpush2.xpose.msra.mxu0 0.0
  %420 = vmatprep.subr.mxu0 0.0
  %421 = vmatpush2.xpose.msra.mxu0 0.0
  %422 = vmatprep.subr.mxu0 0.0
  %423 = vmatpush2.xpose.msra.mxu0 0.0
  %424 = vmatprep.mubr.f32.mxu0 0.0
  %425 = vmatmul.mubr.f32.gmra.mxu0 %v356
  %v426 = vpop.f32.mrf.mxu0
  %v427 = vadd.f32 0.0, %v426
  %v428 = vpop.f32.mrf.mxu0
  %429 = vdwg.mxu0
  %v430 = vmul.f32 %v427, 0.25
  %v431 = vsel %vm261, %v430, -inf
  %432 = vmax.xlane.f32.xlu0 %v431
  %v433 = vpop.xlane.xlu0 %432
  %v434 = vsub.f32 %v430, %v433
  %v435 = vmul.f32 %v434, 1.442695
  %v436 = vpow.pop %v435
  %v437 = vsel %vm261, %v436, 0.0
  %438 = vadd.xlane.f32.xlu0 %v437
  %v439 = vpop.xlane.xlu0 %438
  %v440 = vrcp.pop %v439
  %v441 = vmul.f32 %v436, %v440
  %442 = vrot.lane.b32.xlu0 %v179, 48
  %v443 = vpop.permute.xlu0 %442
  %v445 = vsel %vm275, %v441, 0
  %v447 = vsel %vm279, %v443, 0
  %449 = vmatprep.subr.mxu0 0.0
  %450 = vmatpush1.msra.mxu0 0.0
  %451 = vmatprep.subr.mxu0 0.0
  %452 = vmatpush1.msra.mxu0 0.0
  %453 = vmatprep.subr.mxu0 0.0
  %454 = vmatpush1.msra.mxu0 0.0
  %455 = vmatprep.subr.mxu0 0.0
  %456 = vmatpush1.msra.mxu0 0.0
  %457 = vmatprep.subr.mxu0 0.0
  %458 = vmatpush1.msra.mxu0 0.0
  %459 = vmatprep.subr.mxu0 0.0
  %460 = vmatpush1.msra.mxu0 0.0
  %461 = vmatprep.subr.mxu0 0.0
  %462 = vmatpush1.msra.mxu0 0.0
  %463 = vmatprep.subr.mxu0 0.0
  %464 = vmatpush1.msra.mxu0 0.0
  %465 = vmatprep.subr.mxu0 0.0
  %466 = vmatpush1.msra.mxu0 0.0
  %467 = vmatprep.subr.mxu0 0.0
  %468 = vmatpush1.msra.mxu0 0.0
  %469 = vmatprep.subr.mxu0 0.0
  %470 = vmatpush1.msra.mxu0 0.0
  %471 = vmatprep.subr.mxu0 0.0
  %472 = vmatpush1.msra.mxu0 0.0
  %473 = vmatprep.subr.mxu0 0.0
  %474 = vmatpush1.msra.mxu0 0.0
  %475 = vmatprep.subr.mxu0 0.0
  %476 = vmatpush1.msra.mxu0 0.0
  %477 = vmatprep.subr.mxu0 0.0
  %478 = vmatpush1.msra.mxu0 0.0
  %479 = vmatprep.subr.mxu0 0.0
  %480 = vmatpush1.msra.mxu0 %v447
  %481 = vmatprep.subr.mxu0 0.0
  %482 = vmatpush2.msra.mxu0 0.0
  %483 = vmatprep.subr.mxu0 0.0
  %484 = vmatpush2.msra.mxu0 0.0
  %485 = vmatprep.subr.mxu0 0.0
  %486 = vmatpush2.msra.mxu0 0.0
  %487 = vmatprep.subr.mxu0 0.0
  %488 = vmatpush2.msra.mxu0 0.0
  %489 = vmatprep.subr.mxu0 0.0
  %490 = vmatpush2.msra.mxu0 0.0
  %491 = vmatprep.subr.mxu0 0.0
  %492 = vmatpush2.msra.mxu0 0.0
  %493 = vmatprep.subr.mxu0 0.0
  %494 = vmatpush2.msra.mxu0 0.0
  %495 = vmatprep.subr.mxu0 0.0
  %496 = vmatpush2.msra.mxu0 0.0
  %497 = vmatprep.subr.mxu0 0.0
  %498 = vmatpush2.msra.mxu0 0.0
  %499 = vmatprep.subr.mxu0 0.0
  %500 = vmatpush2.msra.mxu0 0.0
  %501 = vmatprep.subr.mxu0 0.0
  %502 = vmatpush2.msra.mxu0 0.0
  %503 = vmatprep.subr.mxu0 0.0
  %504 = vmatpush2.msra.mxu0 0.0
  %505 = vmatprep.subr.mxu0 0.0
  %506 = vmatpush2.msra.mxu0 0.0
  %507 = vmatprep.subr.mxu0 0.0
  %508 = vmatpush2.msra.mxu0 0.0
  %509 = vmatprep.subr.mxu0 0.0
  %510 = vmatpush2.msra.mxu0 0.0
  %511 = vmatprep.subr.mxu0 0.0
  %512 = vmatpush2.msra.mxu0 0.0
  %513 = vmatprep.mubr.f32.mxu0 0.0
  %514 = vmatmul.mubr.f32.gmra.mxu0 %v445
  %v515 = vpop.f32.mrf.mxu0
  %v516 = vadd.f32 0.0, %v515
  %v517 = vpop.f32.mrf.mxu0
  %518 = vdwg.mxu0
  %520 = vrot.lane.b32.xlu0 %v516, 16
  %v521 = vpop.permute.xlu0 %520
  %v523 = vsel %vm185, %v349, %v521
  %v525 = vsel %vm108, %v523, 0
  %527 = vmatprep.subr.mxu0 0.0
  %528 = vmatpush1.msra.mxu0 0.0
  %529 = vmatprep.subr.mxu0 0.0
  %530 = vmatpush1.msra.mxu0 0.0
  %531 = vmatprep.subr.mxu0 0.0
  %532 = vmatpush1.msra.mxu0 0.0
  %533 = vmatprep.subr.mxu0 0.0
  %534 = vmatpush1.msra.mxu0 0.0
  %535 = vmatprep.subr.mxu0 0.0
  %536 = vmatpush1.msra.mxu0 0.0
  %537 = vmatprep.subr.mxu0 0.0
  %538 = vmatpush1.msra.mxu0 0.0
  %539 = vmatprep.subr.mxu0 0.0
  %540 = vmatpush1.msra.mxu0 0.0
  %541 = vmatprep.subr.mxu0 0.0
  %542 = vmatpush1.msra.mxu0 0.0
  %543 = vmatprep.subr.mxu0 0.0
  %544 = vmatpush1.msra.mxu0 0.0
  %545 = vmatprep.subr.mxu0 0.0
  %546 = vmatpush1.msra.mxu0 0.0
  %547 = vmatprep.subr.mxu0 0.0
  %548 = vmatpush1.msra.mxu0 0.0
  %549 = vmatprep.subr.mxu0 0.0
  %550 = vmatpush1.msra.mxu0 0.0
  %551 = vmatprep.subr.mxu0 0.0
  %552 = vmatpush1.msra.mxu0 %v54
  %553 = vmatprep.subr.mxu0 0.0
  %554 = vmatpush1.msra.mxu0 %v53
  %555 = vmatprep.subr.mxu0 0.0
  %556 = vmatpush1.msra.mxu0 %v52
  %557 = vmatprep.subr.mxu0 0.0
  %558 = vmatpush1.msra.mxu0 %v51
  %559 = vmatprep.subr.mxu0 0.0
  %560 = vmatpush2.msra.mxu0 0.0
  %561 = vmatprep.subr.mxu0 0.0
  %562 = vmatpush2.msra.mxu0 0.0
  %563 = vmatprep.subr.mxu0 0.0
  %564 = vmatpush2.msra.mxu0 0.0
  %565 = vmatprep.subr.mxu0 0.0
  %566 = vmatpush2.msra.mxu0 0.0
  %567 = vmatprep.subr.mxu0 0.0
  %568 = vmatpush2.msra.mxu0 0.0
  %569 = vmatprep.subr.mxu0 0.0
  %570 = vmatpush2.msra.mxu0 0.0
  %571 = vmatprep.subr.mxu0 0.0
  %572 = vmatpush2.msra.mxu0 0.0
  %573 = vmatprep.subr.mxu0 0.0
  %574 = vmatpush2.msra.mxu0 0.0
  %575 = vmatprep.subr.mxu0 0.0
  %576 = vmatpush2.msra.mxu0 0.0
  %577 = vmatprep.subr.mxu0 0.0
  %578 = vmatpush2.msra.mxu0 0.0
  %579 = vmatprep.subr.mxu0 0.0
  %580 = vmatpush2.msra.mxu0 0.0
  %581 = vmatprep.subr.mxu0 0.0
  %582 = vmatpush2.msra.mxu0 0.0
  %583 = vmatprep.subr.mxu0 0.0
  %584 = vmatpush2.msra.mxu0 0.0
  %585 = vmatprep.subr.mxu0 0.0
  %586 = vmatpush2.msra.mxu0 0.0
  %587 = vmatprep.subr.mxu0 0.0
  %588 = vmatpush2.msra.mxu0 0.0
  %589 = vmatprep.subr.mxu0 0.0
  %590 = vmatpush2.msra.mxu0 0.0
  %591 = vmatprep.mubr.f32.mxu0 0.0
  %592 = vmatmul.mubr.f32.gmra.mxu0 %v525
  %v593 = vpop.f32.mrf.mxu0
  %v594 = vadd.f32 0.0, %v593
  %v595 = vpop.f32.mrf.mxu0
  %596 = vdwg.mxu0
  %v597 = vadd.f32 %v72, %v594
  %v599 = vlaneseq
  %v600 = vshrl.u32 %v599, 7
  %v601 = vsub.s32 0, %v600
  %v602 = vrot.slane %v55, %v601
  %v604 = vadd.f32 %v597, %v602
  %v605 = vsel %vm73, %v604, 0.0
  %606 = vadd.xlane.f32.xlu0 %v605
  %v607 = vpop.xlane.xlu0 %606
  %v608 = vmul.f32 %v607, %v77
  %v609 = vsub.f32 %v604, %v608
  %v610 = vmul.f32 %v609, %v609
  %v611 = vsel %vm73, %v610, 0.0
  %612 = vadd.xlane.f32.xlu0 %v611
  %v613 = vpop.xlane.xlu0 %612
  %v614 = vmul.f32 %v613, %v77
  %v615 = vadd.f32 %v614, 1e-06
  %v616 = vrsqrt.pop %v615
  %v617 = vmul.f32 %v609, %v616
  %v619 = vlaneseq
  %v620 = vshrl.u32 %v619, 7
  %v621 = vsub.s32 0, %v620
  %v622 = vrot.slane %v56, %v621
  %v624 = vmul.f32 %v617, %v622
  %v626 = vlaneseq
  %v627 = vshrl.u32 %v626, 7
  %v628 = vsub.s32 0, %v627
  %v629 = vrot.slane %v57, %v628
  %v631 = vadd.f32 %v624, %v629
  %v633 = vlaneseq
  %v634 = vshrl.u32 %v633, 7
  %v635 = vsub.s32 0, %v634
  %v636 = vrot.slane %v62, %v635
  %v639 = vsel %vm108, %v631, 0
  %641 = vmatprep.subr.mxu0 0.0
  %642 = vmatpush1.msra.mxu0 0.0
  %643 = vmatprep.subr.mxu0 0.0
  %644 = vmatpush1.msra.mxu0 0.0
  %645 = vmatprep.subr.mxu0 0.0
  %646 = vmatpush1.msra.mxu0 0.0
  %647 = vmatprep.subr.mxu0 0.0
  %648 = vmatpush1.msra.mxu0 0.0
  %649 = vmatprep.subr.mxu0 0.0
  %650 = vmatpush1.msra.mxu0 0.0
  %651 = vmatprep.subr.mxu0 0.0
  %652 = vmatpush1.msra.mxu0 0.0
  %653 = vmatprep.subr.mxu0 0.0
  %654 = vmatpush1.msra.mxu0 0.0
  %655 = vmatprep.subr.mxu0 0.0
  %656 = vmatpush1.msra.mxu0 0.0
  %657 = vmatprep.subr.mxu0 0.0
  %658 = vmatpush1.msra.mxu0 0.0
  %659 = vmatprep.subr.mxu0 0.0
  %660 = vmatpush1.msra.mxu0 0.0
  %661 = vmatprep.subr.mxu0 0.0
  %662 = vmatpush1.msra.mxu0 0.0
  %663 = vmatprep.subr.mxu0 0.0
  %664 = vmatpush1.msra.mxu0 0.0
  %665 = vmatprep.subr.mxu0 0.0
  %666 = vmatpush1.msra.mxu0 %v61
  %667 = vmatprep.subr.mxu0 0.0
  %668 = vmatpush1.msra.mxu0 %v60
  %669 = vmatprep.subr.mxu0 0.0
  %670 = vmatpush1.msra.mxu0 %v59
  %671 = vmatprep.subr.mxu0 0.0
  %672 = vmatpush1.msra.mxu0 %v58
  %673 = vmatprep.subr.mxu0 0.0
  %674 = vmatpush2.msra.mxu0 0.0
  %675 = vmatprep.subr.mxu0 0.0
  %676 = vmatpush2.msra.mxu0 0.0
  %677 = vmatprep.subr.mxu0 0.0
  %678 = vmatpush2.msra.mxu0 0.0
  %679 = vmatprep.subr.mxu0 0.0
  %680 = vmatpush2.msra.mxu0 0.0
  %681 = vmatprep.subr.mxu0 0.0
  %682 = vmatpush2.msra.mxu0 0.0
  %683 = vmatprep.subr.mxu0 0.0
  %684 = vmatpush2.msra.mxu0 0.0
  %685 = vmatprep.subr.mxu0 0.0
  %686 = vmatpush2.msra.mxu0 0.0
  %687 = vmatprep.subr.mxu0 0.0
  %688 = vmatpush2.msra.mxu0 0.0
  %689 = vmatprep.subr.mxu0 0.0
  %690 = vmatpush2.msra.mxu0 0.0
  %691 = vmatprep.subr.mxu0 0.0
  %692 = vmatpush2.msra.mxu0 0.0
  %693 = vmatprep.subr.mxu0 0.0
  %694 = vmatpush2.msra.mxu0 0.0
  %695 = vmatprep.subr.mxu0 0.0
  %696 = vmatpush2.msra.mxu0 0.0
  %697 = vmatprep.subr.mxu0 0.0
  %698 = vmatpush2.msra.mxu0 0.0
  %699 = vmatprep.subr.mxu0 0.0
  %700 = vmatpush2.msra.mxu0 0.0
  %701 = vmatprep.subr.mxu0 0.0
  %702 = vmatpush2.msra.mxu0 0.0
  %703 = vmatprep.subr.mxu0 0.0
  %704 = vmatpush2.msra.mxu0 0.0
  %705 = vmatprep.mubr.f32.mxu0 0.0
  %706 = vmatmul.mubr.f32.gmra.mxu0 %v639
  %v707 = vpop.f32.mrf.mxu0
  %v708 = vadd.f32 %v636, %v707
  %v709 = vpop.f32.mrf.mxu0
  %710 = vdwg.mxu0
  %v711 = vmul.f32 %v708, %v708
  %v712 = vmul.f32 %v708, %v711
  %v713 = vmul.f32 %v712, 0.044715
  %v714 = vadd.f32 %v708, %v713
  %v715 = vmul.f32 %v714, 0.7978846
  %v716 = vtanh.pop %v715
  %v717 = vadd.f32 %v716, 1.0
  %v718 = vmul.f32 %v717, 0.5
  %v719 = vmul.f32 %v708, %v718
  %v721 = vlaneseq
  %v722 = vshrl.u32 %v721, 7
  %v723 = vsub.s32 0, %v722
  %v724 = vrot.slane %v71, %v723
  %vm726 = vcmask 523264
  %v728 = vsel %vm726, %v719, 0
  %730 = vmatprep.subr.mxu0 0.0
  %731 = vmatpush1.msra.mxu0 0.0
  %732 = vmatprep.subr.mxu0 0.0
  %733 = vmatpush1.msra.mxu0 0.0
  %734 = vmatprep.subr.mxu0 0.0
  %735 = vmatpush1.msra.mxu0 0.0
  %736 = vmatprep.subr.mxu0 0.0
  %737 = vmatpush1.msra.mxu0 0.0
  %738 = vmatprep.subr.mxu0 0.0
  %739 = vmatpush1.msra.mxu0 0.0
  %740 = vmatprep.subr.mxu0 0.0
  %741 = vmatpush1.msra.mxu0 0.0
  %742 = vmatprep.subr.mxu0 0.0
  %743 = vmatpush1.msra.mxu0 0.0
  %744 = vmatprep.subr.mxu0 0.0
  %745 = vmatpush1.msra.mxu0 0.0
  %746 = vmatprep.subr.mxu0 0.0
  %747 = vmatpush1.msra.mxu0 %v70
  %748 = vmatprep.subr.mxu0 0.0
  %749 = vmatpush1.msra.mxu0 %v69
  %750 = vmatprep.subr.mxu0 0.0
  %751 = vmatpush1.msra.mxu0 %v68
  %752 = vmatprep.subr.mxu0 0.0
  %753 = vmatpush1.msra.mxu0 %v67
  %754 = vmatprep.subr.mxu0 0.0
  %755 = vmatpush1.msra.mxu0 %v66
  %756 = vmatprep.subr.mxu0 0.0
  %757 = vmatpush1.msra.mxu0 %v65
  %758 = vmatprep.subr.mxu0 0.0
  %759 = vmatpush1.msra.mxu0 %v64
  %760 = vmatprep.subr.mxu0 0.0
  %761 = vmatpush1.msra.mxu0 %v63
  %762 = vmatprep.subr.mxu0 0.0
  %763 = vmatpush2.msra.mxu0 0.0
  %764 = vmatprep.subr.mxu0 0.0
  %765 = vmatpush2.msra.mxu0 0.0
  %766 = vmatprep.subr.mxu0 0.0
  %767 = vmatpush2.msra.mxu0 0.0
  %768 = vmatprep.subr.mxu0 0.0
  %769 = vmatpush2.msra.mxu0 0.0
  %770 = vmatprep.subr.mxu0 0.0
  %771 = vmatpush2.msra.mxu0 0.0
  %772 = vmatprep.subr.mxu0 0.0
  %773 = vmatpush2.msra.mxu0 0.0
  %774 = vmatprep.subr.mxu0 0.0
  %775 = vmatpush2.msra.mxu0 0.0
  %776 = vmatprep.subr.mxu0 0.0
  %777 = vmatpush2.msra.mxu0 0.0
  %778 = vmatprep.subr.mxu0 0.0
  %779 = vmatpush2.msra.mxu0 0.0
  %780 = vmatprep.subr.mxu0 0.0
  %781 = vmatpush2.msra.mxu0 0.0
  %782 = vmatprep.subr.mxu0 0.0
  %783 = vmatpush2.msra.mxu0 0.0
  %784 = vmatprep.subr.mxu0 0.0
  %785 = vmatpush2.msra.mxu0 0.0
  %786 = vmatprep.subr.mxu0 0.0
  %787 = vmatpush2.msra.mxu0 0.0
  %788 = vmatprep.subr.mxu0 0.0
  %789 = vmatpush2.msra.mxu0 0.0
  %790 = vmatprep.subr.mxu0 0.0
  %791 = vmatpush2.msra.mxu0 0.0
  %792 = vmatprep.subr.mxu0 0.0
  %793 = vmatpush2.msra.mxu0 0.0
  %794 = vmatprep.mubr.f32.mxu0 0.0
  %795 = vmatmul.mubr.f32.gmra.mxu0 %v728
  %v796 = vpop.f32.mrf.mxu0
  %v797 = vadd.f32 %v724, %v796
  %v798 = vpop.f32.mrf.mxu0
  %799 = vdwg.mxu0
  %v800 = vadd.f32 %v604, %v797
  %801 = vst.msk [vmem:[%s13] sm:$0x7f] %vm73, %v800
  %s802 = scalar_lea.vmem %s0, 8
  %v803 = vld [vmem:[%s802] sm:$0x7f]
  %v804 = vsel %vm73, %v803, 0.0
  %805 = vadd.xlane.f32.xlu0 %v804
  %v806 = vpop.xlane.xlu0 %805
  %v807 = vmul.f32 %v806, %v77
  %v808 = vsub.f32 %v803, %v807
  %v809 = vmul.f32 %v808, %v808
  %v810 = vsel %vm73, %v809, 0.0
  %811 = vadd.xlane.f32.xlu0 %v810
  %v812 = vpop.xlane.xlu0 %811
  %v813 = vmul.f32 %v812, %v77
  %v814 = vadd.f32 %v813, 1e-06
  %v815 = vrsqrt.pop %v814
  %v816 = vmul.f32 %v808, %v815
  %v817 = vmul.f32 %v816, %v92
  %v818 = vadd.f32 %v817, %v99
  %v820 = vsel %vm108, %v818, 0
  %822 = vmatprep.subr.mxu0 0.0
  %823 = vmatpush1.msra.mxu0 0.0
  %824 = vmatprep.subr.mxu0 0.0
  %825 = vmatpush1.msra.mxu0 0.0
  %826 = vmatprep.subr.mxu0 0.0
  %827 = vmatpush1.msra.mxu0 0.0
  %828 = vmatprep.subr.mxu0 0.0
  %829 = vmatpush1.msra.mxu0 0.0
  %830 = vmatprep.subr.mxu0 0.0
  %831 = vmatpush1.msra.mxu0 0.0
  %832 = vmatprep.subr.mxu0 0.0
  %833 = vmatpush1.msra.mxu0 0.0
  %834 = vmatprep.subr.mxu0 0.0
  %835 = vmatpush1.msra.mxu0 0.0
  %836 = vmatprep.subr.mxu0 0.0
  %837 = vmatpush1.msra.mxu0 0.0
  %838 = vmatprep.subr.mxu0 0.0
  %839 = vmatpush1.msra.mxu0 0.0
  %840 = vmatprep.subr.mxu0 0.0
  %841 = vmatpush1.msra.mxu0 0.0
  %842 = vmatprep.subr.mxu0 0.0
  %843 = vmatpush1.msra.mxu0 0.0
  %844 = vmatprep.subr.mxu0 0.0
  %845 = vmatpush1.msra.mxu0 0.0
  %846 = vmatprep.subr.mxu0 0.0
  %847 = vmatpush1.msra.mxu0 %v49
  %848 = vmatprep.subr.mxu0 0.0
  %849 = vmatpush1.msra.mxu0 %v48
  %850 = vmatprep.subr.mxu0 0.0
  %851 = vmatpush1.msra.mxu0 %v47
  %852 = vmatprep.subr.mxu0 0.0
  %853 = vmatpush1.msra.mxu0 %v46
  %854 = vmatprep.subr.mxu0 0.0
  %855 = vmatpush2.msra.mxu0 0.0
  %856 = vmatprep.subr.mxu0 0.0
  %857 = vmatpush2.msra.mxu0 0.0
  %858 = vmatprep.subr.mxu0 0.0
  %859 = vmatpush2.msra.mxu0 0.0
  %860 = vmatprep.subr.mxu0 0.0
  %861 = vmatpush2.msra.mxu0 0.0
  %862 = vmatprep.subr.mxu0 0.0
  %863 = vmatpush2.msra.mxu0 0.0
  %864 = vmatprep.subr.mxu0 0.0
  %865 = vmatpush2.msra.mxu0 0.0
  %866 = vmatprep.subr.mxu0 0.0
  %867 = vmatpush2.msra.mxu0 0.0
  %868 = vmatprep.subr.mxu0 0.0
  %869 = vmatpush2.msra.mxu0 0.0
  %870 = vmatprep.subr.mxu0 0.0
  %871 = vmatpush2.msra.mxu0 0.0
  %872 = vmatprep.subr.mxu0 0.0
  %873 = vmatpush2.msra.mxu0 0.0
  %874 = vmatprep.subr.mxu0 0.0
  %875 = vmatpush2.msra.mxu0 0.0
  %876 = vmatprep.subr.mxu0 0.0
  %877 = vmatpush2.msra.mxu0 0.0
  %878 = vmatprep.subr.mxu0 0.0
  %879 = vmatpush2.msra.mxu0 0.0
  %880 = vmatprep.subr.mxu0 0.0
  %881 = vmatpush2.msra.mxu0 0.0
  %882 = vmatprep.subr.mxu0 0.0
  %883 = vmatpush2.msra.mxu0 0.0
  %884 = vmatprep.subr.mxu0 0.0
  %885 = vmatpush2.msra.mxu0 0.0
  %886 = vmatprep.mubr.f32.mxu0 0.0
  %887 = vmatmul.mubr.f32.gmra.mxu0 %v820
  %v888 = vpop.f32.mrf.mxu0
  %v889 = vadd.f32 %v106, %v888
  %v890 = vpop.f32.mrf.mxu0
  %891 = vdwg.mxu0
  %893 = vrot.lane.b32.xlu0 %v889, 96
  %v894 = vpop.permute.xlu0 %893
  %v895 = vsel %vm185, %v889, 0
  %v897 = vsel %vm185, %v894, 0
  %899 = vmatprep.subr.mxu0 0.0
  %900 = vmatpush1.xpose.msra.mxu0 0.0
  %901 = vmatprep.subr.mxu0 0.0
  %902 = vmatpush1.xpose.msra.mxu0 0.0
  %903 = vmatprep.subr.mxu0 0.0
  %904 = vmatpush1.xpose.msra.mxu0 0.0
  %905 = vmatprep.subr.mxu0 0.0
  %906 = vmatpush1.xpose.msra.mxu0 0.0
  %907 = vmatprep.subr.mxu0 0.0
  %908 = vmatpush1.xpose.msra.mxu0 0.0
  %909 = vmatprep.subr.mxu0 0.0
  %910 = vmatpush1.xpose.msra.mxu0 0.0
  %911 = vmatprep.subr.mxu0 0.0
  %912 = vmatpush1.xpose.msra.mxu0 0.0
  %913 = vmatprep.subr.mxu0 0.0
  %914 = vmatpush1.xpose.msra.mxu0 0.0
  %915 = vmatprep.subr.mxu0 0.0
  %916 = vmatpush1.xpose.msra.mxu0 0.0
  %917 = vmatprep.subr.mxu0 0.0
  %918 = vmatpush1.xpose.msra.mxu0 0.0
  %919 = vmatprep.subr.mxu0 0.0
  %920 = vmatpush1.xpose.msra.mxu0 0.0
  %921 = vmatprep.subr.mxu0 0.0
  %922 = vmatpush1.xpose.msra.mxu0 0.0
  %923 = vmatprep.subr.mxu0 0.0
  %924 = vmatpush1.xpose.msra.mxu0 0.0
  %925 = vmatprep.subr.mxu0 0.0
  %926 = vmatpush1.xpose.msra.mxu0 0.0
  %927 = vmatprep.subr.mxu0 0.0
  %928 = vmatpush1.xpose.msra.mxu0 0.0
  %929 = vmatprep.subr.mxu0 0.0
  %930 = vmatpush1.xpose.msra.mxu0 %v897
  %931 = vmatprep.subr.mxu0 0.0
  %932 = vmatpush2.xpose.msra.mxu0 0.0
  %933 = vmatprep.subr.mxu0 0.0
  %934 = vmatpush2.xpose.msra.mxu0 0.0
  %935 = vmatprep.subr.mxu0 0.0
  %936 = vmatpush2.xpose.msra.mxu0 0.0
  %937 = vmatprep.subr.mxu0 0.0
  %938 = vmatpush2.xpose.msra.mxu0 0.0
  %939 = vmatprep.subr.mxu0 0.0
  %940 = vmatpush2.xpose.msra.mxu0 0.0
  %941 = vmatprep.subr.mxu0 0.0
  %942 = vmatpush2.xpose.msra.mxu0 0.0
  %943 = vmatprep.subr.mxu0 0.0
  %944 = vmatpush2.xpose.msra.mxu0 0.0
  %945 = vmatprep.subr.mxu0 0.0
  %946 = vmatpush2.xpose.msra.mxu0 0.0
  %947 = vmatprep.subr.mxu0 0.0
  %948 = vmatpush2.xpose.msra.mxu0 0.0
  %949 = vmatprep.subr.mxu0 0.0
  %950 = vmatpush2.xpose.msra.mxu0 0.0
  %951 = vmatprep.subr.mxu0 0.0
  %952 = vmatpush2.xpose.msra.mxu0 0.0
  %953 = vmatprep.subr.mxu0 0.0
  %954 = vmatpush2.xpose.msra.mxu0 0.0
  %955 = vmatprep.subr.mxu0 0.0
  %956 = vmatpush2.xpose.msra.mxu0 0.0
  %957 = vmatprep.subr.mxu0 0.0
  %958 = vmatpush2.xpose.msra.mxu0 0.0
  %959 = vmatprep.subr.mxu0 0.0
  %960 = vmatpush2.xpose.msra.mxu0 0.0
  %961 = vmatprep.subr.mxu0 0.0
  %962 = vmatpush2.xpose.msra.mxu0 0.0
  %963 = vmatprep.mubr.f32.mxu0 0.0
  %964 = vmatmul.mubr.f32.gmra.mxu0 %v895
  %v965 = vpop.f32.mrf.mxu0
  %v966 = vadd.f32 0.0, %v965
  %v967 = vpop.f32.mrf.mxu0
  %968 = vdwg.mxu0
  %v969 = vmul.f32 %v966, 0.25
  %v970 = vsel %vm261, %v969, -inf
  %971 = vmax.xlane.f32.xlu0 %v970
  %v972 = vpop.xlane.xlu0 %971
  %v973 = vsub.f32 %v969, %v972
  %v974 = vmul.f32 %v973, 1.442695
  %v975 = vpow.pop %v974
  %v976 = vsel %vm261, %v975, 0.0
  %977 = vadd.xlane.f32.xlu0 %v976
  %v978 = vpop.xlane.xlu0 %977
  %v979 = vrcp.pop %v978
  %v980 = vmul.f32 %v975, %v979
  %981 = vrot.lane.b32.xlu0 %v889, 64
  %v982 = vpop.permute.xlu0 %981
  %v984 = vsel %vm275, %v980, 0
  %v986 = vsel %vm279, %v982, 0
  %988 = vmatprep.subr.mxu0 0.0
  %989 = vmatpush1.msra.mxu0 0.0
  %990 = vmatprep.subr.mxu0 0.0
  %991 = vmatpush1.msra.mxu0 0.0
  %992 = vmatprep.subr.mxu0 0.0
  %993 = vmatpush1.msra.mxu0 0.0
  %994 = vmatprep.subr.mxu0 0.0
  %995 = vmatpush1.msra.mxu0 0.0
  %996 = vmatprep.subr.mxu0 0.0
  %997 = vmatpush1.msra.mxu0 0.0
  %998 = vmatprep.subr.mxu0 0.0
  %999 = vmatpush1.msra.mxu0 0.0
  %1000 = vmatprep.subr.mxu0 0.0
  %1001 = vmatpush1.msra.mxu0 0.0
  %1002 = vmatprep.subr.mxu0 0.0
  %1003 = vmatpush1.msra.mxu0 0.0
  %1004 = vmatprep.subr.mxu0 0.0
  %1005 = vmatpush1.msra.mxu0 0.0
  %1006 = vmatprep.subr.mxu0 0.0
  %1007 = vmatpush1.msra.mxu0 0.0
  %1008 = vmatprep.subr.mxu0 0.0
  %1009 = vmatpush1.msra.mxu0 0.0
  %1010 = vmatprep.subr.mxu0 0.0
  %1011 = vmatpush1.msra.mxu0 0.0
  %1012 = vmatprep.subr.mxu0 0.0
  %1013 = vmatpush1.msra.mxu0 0.0
  %1014 = vmatprep.subr.mxu0 0.0
  %1015 = vmatpush1.msra.mxu0 0.0
  %1016 = vmatprep.subr.mxu0 0.0
  %1017 = vmatpush1.msra.mxu0 0.0
  %1018 = vmatprep.subr.mxu0 0.0
  %1019 = vmatpush1.msra.mxu0 %v986
  %1020 = vmatprep.subr.mxu0 0.0
  %1021 = vmatpush2.msra.mxu0 0.0
  %1022 = vmatprep.subr.mxu0 0.0
  %1023 = vmatpush2.msra.mxu0 0.0
  %1024 = vmatprep.subr.mxu0 0.0
  %1025 = vmatpush2.msra.mxu0 0.0
  %1026 = vmatprep.subr.mxu0 0.0
  %1027 = vmatpush2.msra.mxu0 0.0
  %1028 = vmatprep.subr.mxu0 0.0
  %1029 = vmatpush2.msra.mxu0 0.0
  %1030 = vmatprep.subr.mxu0 0.0
  %1031 = vmatpush2.msra.mxu0 0.0
  %1032 = vmatprep.subr.mxu0 0.0
  %1033 = vmatpush2.msra.mxu0 0.0
  %1034 = vmatprep.subr.mxu0 0.0
  %1035 = vmatpush2.msra.mxu0 0.0
  %1036 = vmatprep.subr.mxu0 0.0
  %1037 = vmatpush2.msra.mxu0 0.0
  %1038 = vmatprep.subr.mxu0 0.0
  %1039 = vmatpush2.msra.mxu0 0.0
  %1040 = vmatprep.subr.mxu0 0.0
  %1041 = vmatpush2.msra.mxu0 0.0
  %1042 = vmatprep.subr.mxu0 0.0
  %1043 = vmatpush2.msra.mxu0 0.0
  %1044 = vmatprep.subr.mxu0 0.0
  %1045 = vmatpush2.msra.mxu0 0.0
  %1046 = vmatprep.subr.mxu0 0.0
  %1047 = vmatpush2.msra.mxu0 0.0
  %1048 = vmatprep.subr.mxu0 0.0
  %1049 = vmatpush2.msra.mxu0 0.0
  %1050 = vmatprep.subr.mxu0 0.0
  %1051 = vmatpush2.msra.mxu0 0.0
  %1052 = vmatprep.mubr.f32.mxu0 0.0
  %1053 = vmatmul.mubr.f32.gmra.mxu0 %v984
  %v1054 = vpop.f32.mrf.mxu0
  %v1055 = vadd.f32 0.0, %v1054
  %v1056 = vpop.f32.mrf.mxu0
  %1057 = vdwg.mxu0
  %1058 = vrot.lane.b32.xlu0 %v889, 112
  %v1059 = vpop.permute.xlu0 %1058
  %1060 = vrot.lane.b32.xlu0 %v889, 80
  %v1061 = vpop.permute.xlu0 %1060
  %v1062 = vsel %vm185, %v1059, 0
  %v1064 = vsel %vm185, %v1061, 0
  %1066 = vmatprep.subr.mxu0 0.0
  %1067 = vmatpush1.xpose.msra.mxu0 0.0
  %1068 = vmatprep.subr.mxu0 0.0
  %1069 = vmatpush1.xpose.msra.mxu0 0.0
  %1070 = vmatprep.subr.mxu0 0.0
  %1071 = vmatpush1.xpose.msra.mxu0 0.0
  %1072 = vmatprep.subr.mxu0 0.0
  %1073 = vmatpush1.xpose.msra.mxu0 0.0
  %1074 = vmatprep.subr.mxu0 0.0
  %1075 = vmatpush1.xpose.msra.mxu0 0.0
  %1076 = vmatprep.subr.mxu0 0.0
  %1077 = vmatpush1.xpose.msra.mxu0 0.0
  %1078 = vmatprep.subr.mxu0 0.0
  %1079 = vmatpush1.xpose.msra.mxu0 0.0
  %1080 = vmatprep.subr.mxu0 0.0
  %1081 = vmatpush1.xpose.msra.mxu0 0.0
  %1082 = vmatprep.subr.mxu0 0.0
  %1083 = vmatpush1.xpose.msra.mxu0 0.0
  %1084 = vmatprep.subr.mxu0 0.0
  %1085 = vmatpush1.xpose.msra.mxu0 0.0
  %1086 = vmatprep.subr.mxu0 0.0
  %1087 = vmatpush1.xpose.msra.mxu0 0.0
  %1088 = vmatprep.subr.mxu0 0.0
  %1089 = vmatpush1.xpose.msra.mxu0 0.0
  %1090 = vmatprep.subr.mxu0 0.0
  %1091 = vmatpush1.xpose.msra.mxu0 0.0
  %1092 = vmatprep.subr.mxu0 0.0
  %1093 = vmatpush1.xpose.msra.mxu0 0.0
  %1094 = vmatprep.subr.mxu0 0.0
  %1095 = vmatpush1.xpose.msra.mxu0 0.0
  %1096 = vmatprep.subr.mxu0 0.0
  %1097 = vmatpush1.xpose.msra.mxu0 %v1064
  %1098 = vmatprep.subr.mxu0 0.0
  %1099 = vmatpush2.xpose.msra.mxu0 0.0
  %1100 = vmatprep.subr.mxu0 0.0
  %1101 = vmatpush2.xpose.msra.mxu0 0.0
  %1102 = vmatprep.subr.mxu0 0.0
  %1103 = vmatpush2.xpose.msra.mxu0 0.0
  %1104 = vmatprep.subr.mxu0 0.0
  %1105 = vmatpush2.xpose.msra.mxu0 0.0
  %1106 = vmatprep.subr.mxu0 0.0
  %1107 = vmatpush2.xpose.msra.mxu0 0.0
  %1108 = vmatprep.subr.mxu0 0.0
  %1109 = vmatpush2.xpose.msra.mxu0 0.0
  %1110 = vmatprep.subr.mxu0 0.0
  %1111 = vmatpush2.xpose.msra.mxu0 0.0
  %1112 = vmatprep.subr.mxu0 0.0
  %1113 = vmatpush2.xpose.msra.mxu0 0.0
  %1114 = vmatprep.subr.mxu0 0.0
  %1115 = vmatpush2.xpose.msra.mxu0 0.0
  %1116 = vmatprep.subr.mxu0 0.0
  %1117 = vmatpush2.xpose.msra.mxu0 0.0
  %1118 = vmatprep.subr.mxu0 0.0
  %1119 = vmatpush2.xpose.msra.mxu0 0.0
  %1120 = vmatprep.subr.mxu0 0.0
  %1121 = vmatpush2.xpose.msra.mxu0 0.0
  %1122 = vmatprep.subr.mxu0 0.0
  %1123 = vmatpush2.xpose.msra.mxu0 0.0
  %1124 = vmatprep.subr.mxu0 0.0
  %1125 = vmatpush2.xpose.msra.mxu0 0.0
  %1126 = vmatprep.subr.mxu0 0.0
  %1127 = vmatpush2.xpose.msra.mxu0 0.0
  %1128 = vmatprep.subr.mxu0 0.0
  %1129 = vmatpush2.xpose.msra.mxu0 0.0
  %1130 = vmatprep.mubr.f32.mxu0 0.0
  %1131 = vmatmul.mubr.f32.gmra.mxu0 %v1062
  %v1132 = vpop.f32.mrf.mxu0
  %v1133 = vadd.f32 0.0, %v1132
  %v1134 = vpop.f32.mrf.mxu0
  %1135 = vdwg.mxu0
  %v1136 = vmul.f32 %v1133, 0.25
  %v1137 = vsel %vm261, %v1136, -inf
  %1138 = vmax.xlane.f32.xlu0 %v1137
  %v1139 = vpop.xlane.xlu0 %1138
  %v1140 = vsub.f32 %v1136, %v1139
  %v1141 = vmul.f32 %v1140, 1.442695
  %v1142 = vpow.pop %v1141
  %v1143 = vsel %vm261, %v1142, 0.0
  %1144 = vadd.xlane.f32.xlu0 %v1143
  %v1145 = vpop.xlane.xlu0 %1144
  %v1146 = vrcp.pop %v1145
  %v1147 = vmul.f32 %v1142, %v1146
  %1148 = vrot.lane.b32.xlu0 %v889, 48
  %v1149 = vpop.permute.xlu0 %1148
  %v1151 = vsel %vm275, %v1147, 0
  %v1153 = vsel %vm279, %v1149, 0
  %1155 = vmatprep.subr.mxu0 0.0
  %1156 = vmatpush1.msra.mxu0 0.0
  %1157 = vmatprep.subr.mxu0 0.0
  %1158 = vmatpush1.msra.mxu0 0.0
  %1159 = vmatprep.subr.mxu0 0.0
  %1160 = vmatpush1.msra.mxu0 0.0
  %1161 = vmatprep.subr.mxu0 0.0
  %1162 = vmatpush1.msra.mxu0 0.0
  %1163 = vmatprep.subr.mxu0 0.0
  %1164 = vmatpush1.msra.mxu0 0.0
  %1165 = vmatprep.subr.mxu0 0.0
  %1166 = vmatpush1.msra.mxu0 0.0
  %1167 = vmatprep.subr.mxu0 0.0
  %1168 = vmatpush1.msra.mxu0 0.0
  %1169 = vmatprep.subr.mxu0 0.0
  %1170 = vmatpush1.msra.mxu0 0.0
  %1171 = vmatprep.subr.mxu0 0.0
  %1172 = vmatpush1.msra.mxu0 0.0
  %1173 = vmatprep.subr.mxu0 0.0
  %1174 = vmatpush1.msra.mxu0 0.0
  %1175 = vmatprep.subr.mxu0 0.0
  %1176 = vmatpush1.msra.mxu0 0.0
  %1177 = vmatprep.subr.mxu0 0.0
  %1178 = vmatpush1.msra.mxu0 0.0
  %1179 = vmatprep.subr.mxu0 0.0
  %1180 = vmatpush1.msra.mxu0 0.0
  %1181 = vmatprep.subr.mxu0 0.0
  %1182 = vmatpush1.msra.mxu0 0.0
  %1183 = vmatprep.subr.mxu0 0.0
  %1184 = vmatpush1.msra.mxu0 0.0
  %1185 = vmatprep.subr.mxu0 0.0
  %1186 = vmatpush1.msra.mxu0 %v1153
  %1187 = vmatprep.subr.mxu0 0.0
  %1188 = vmatpush2.msra.mxu0 0.0
  %1189 = vmatprep.subr.mxu0 0.0
  %1190 = vmatpush2.msra.mxu0 0.0
  %1191 = vmatprep.subr.mxu0 0.0
  %1192 = vmatpush2.msra.mxu0 0.0
  %1193 = vmatprep.subr.mxu0 0.0
  %1194 = vmatpush2.msra.mxu0 0.0
  %1195 = vmatprep.subr.mxu0 0.0
  %1196 = vmatpush2.msra.mxu0 0.0
  %1197 = vmatprep.subr.mxu0 0.0
  %1198 = vmatpush2.msra.mxu0 0.0
  %1199 = vmatprep.subr.mxu0 0.0
  %1200 = vmatpush2.msra.mxu0 0.0
  %1201 = vmatprep.subr.mxu0 0.0
  %1202 = vmatpush2.msra.mxu0 0.0
  %1203 = vmatprep.subr.mxu0 0.0
  %1204 = vmatpush2.msra.mxu0 0.0
  %1205 = vmatprep.subr.mxu0 0.0
  %1206 = vmatpush2.msra.mxu0 0.0
  %1207 = vmatprep.subr.mxu0 0.0
  %1208 = vmatpush2.msra.mxu0 0.0
  %1209 = vmatprep.subr.mxu0 0.0
  %1210 = vmatpush2.msra.mxu0 0.0
  %1211 = vmatprep.subr.mxu0 0.0
  %1212 = vmatpush2.msra.mxu0 0.0
  %1213 = vmatprep.subr.mxu0 0.0
  %1214 = vmatpush2.msra.mxu0 0.0
  %1215 = vmatprep.subr.mxu0 0.0
  %1216 = vmatpush2.msra.mxu0 0.0
  %1217 = vmatprep.subr.mxu0 0.0
  %1218 = vmatpush2.msra.mxu0 0.0
  %1219 = vmatprep.mubr.f32.mxu0 0.0
  %1220 = vmatmul.mubr.f32.gmra.mxu0 %v1151
  %v1221 = vpop.f32.mrf.mxu0
  %v1222 = vadd.f32 0.0, %v1221
  %v1223 = vpop.f32.mrf.mxu0
  %1224 = vdwg.mxu0
  %1226 = vrot.lane.b32.xlu0 %v1222, 16
  %v1227 = vpop.permute.xlu0 %1226
  %v1229 = vsel %vm185, %v1055, %v1227
  %v1231 = vsel %vm108, %v1229, 0
  %1233 = vmatprep.subr.mxu0 0.0
  %1234 = vmatpush1.msra.mxu0 0.0
  %1235 = vmatprep.subr.mxu0 0.0
  %1236 = vmatpush1.msra.mxu0 0.0
  %1237 = vmatprep.subr.mxu0 0.0
  %1238 = vmatpush1.msra.mxu0 0.0
  %1239 = vmatprep.subr.mxu0 0.0
  %1240 = vmatpush1.msra.mxu0 0.0
  %1241 = vmatprep.subr.mxu0 0.0
  %1242 = vmatpush1.msra.mxu0 0.0
  %1243 = vmatprep.subr.mxu0 0.0
  %1244 = vmatpush1.msra.mxu0 0.0
  %1245 = vmatprep.subr.mxu0 0.0
  %1246 = vmatpush1.msra.mxu0 0.0
  %1247 = vmatprep.subr.mxu0 0.0
  %1248 = vmatpush1.msra.mxu0 0.0
  %1249 = vmatprep.subr.mxu0 0.0
  %1250 = vmatpush1.msra.mxu0 0.0
  %1251 = vmatprep.subr.mxu0 0.0
  %1252 = vmatpush1.msra.mxu0 0.0
  %1253 = vmatprep.subr.mxu0 0.0
  %1254 = vmatpush1.msra.mxu0 0.0
  %1255 = vmatprep.subr.mxu0 0.0
  %1256 = vmatpush1.msra.mxu0 0.0
  %1257 = vmatprep.subr.mxu0 0.0
  %1258 = vmatpush1.msra.mxu0 %v54
  %1259 = vmatprep.subr.mxu0 0.0
  %1260 = vmatpush1.msra.mxu0 %v53
  %1261 = vmatprep.subr.mxu0 0.0
  %1262 = vmatpush1.msra.mxu0 %v52
  %1263 = vmatprep.subr.mxu0 0.0
  %1264 = vmatpush1.msra.mxu0 %v51
  %1265 = vmatprep.subr.mxu0 0.0
  %1266 = vmatpush2.msra.mxu0 0.0
  %1267 = vmatprep.subr.mxu0 0.0
  %1268 = vmatpush2.msra.mxu0 0.0
  %1269 = vmatprep.subr.mxu0 0.0
  %1270 = vmatpush2.msra.mxu0 0.0
  %1271 = vmatprep.subr.mxu0 0.0
  %1272 = vmatpush2.msra.mxu0 0.0
  %1273 = vmatprep.subr.mxu0 0.0
  %1274 = vmatpush2.msra.mxu0 0.0
  %1275 = vmatprep.subr.mxu0 0.0
  %1276 = vmatpush2.msra.mxu0 0.0
  %1277 = vmatprep.subr.mxu0 0.0
  %1278 = vmatpush2.msra.mxu0 0.0
  %1279 = vmatprep.subr.mxu0 0.0
  %1280 = vmatpush2.msra.mxu0 0.0
  %1281 = vmatprep.subr.mxu0 0.0
  %1282 = vmatpush2.msra.mxu0 0.0
  %1283 = vmatprep.subr.mxu0 0.0
  %1284 = vmatpush2.msra.mxu0 0.0
  %1285 = vmatprep.subr.mxu0 0.0
  %1286 = vmatpush2.msra.mxu0 0.0
  %1287 = vmatprep.subr.mxu0 0.0
  %1288 = vmatpush2.msra.mxu0 0.0
  %1289 = vmatprep.subr.mxu0 0.0
  %1290 = vmatpush2.msra.mxu0 0.0
  %1291 = vmatprep.subr.mxu0 0.0
  %1292 = vmatpush2.msra.mxu0 0.0
  %1293 = vmatprep.subr.mxu0 0.0
  %1294 = vmatpush2.msra.mxu0 0.0
  %1295 = vmatprep.subr.mxu0 0.0
  %1296 = vmatpush2.msra.mxu0 0.0
  %1297 = vmatprep.mubr.f32.mxu0 0.0
  %1298 = vmatmul.mubr.f32.gmra.mxu0 %v1231
  %v1299 = vpop.f32.mrf.mxu0
  %v1300 = vadd.f32 0.0, %v1299
  %v1301 = vpop.f32.mrf.mxu0
  %1302 = vdwg.mxu0
  %v1303 = vadd.f32 %v803, %v1300
  %v1304 = vadd.f32 %v1303, %v602
  %v1305 = vsel %vm73, %v1304, 0.0
  %1306 = vadd.xlane.f32.xlu0 %v1305
  %v1307 = vpop.xlane.xlu0 %1306
  %v1308 = vmul.f32 %v1307, %v77
  %v1309 = vsub.f32 %v1304, %v1308
  %v1310 = vmul.f32 %v1309, %v1309
  %v1311 = vsel %vm73, %v1310, 0.0
  %1312 = vadd.xlane.f32.xlu0 %v1311
  %v1313 = vpop.xlane.xlu0 %1312
  %v1314 = vmul.f32 %v1313, %v77
  %v1315 = vadd.f32 %v1314, 1e-06
  %v1316 = vrsqrt.pop %v1315
  %v1317 = vmul.f32 %v1309, %v1316
  %v1318 = vmul.f32 %v1317, %v622
  %v1319 = vadd.f32 %v1318, %v629
  %v1321 = vsel %vm108, %v1319, 0
  %1323 = vmatprep.subr.mxu0 0.0
  %1324 = vmatpush1.msra.mxu0 0.0
  %1325 = vmatprep.subr.mxu0 0.0
  %1326 = vmatpush1.msra.mxu0 0.0
  %1327 = vmatprep.subr.mxu0 0.0
  %1328 = vmatpush1.msra.mxu0 0.0
  %1329 = vmatprep.subr.mxu0 0.0
  %1330 = vmatpush1.msra.mxu0 0.0
  %1331 = vmatprep.subr.mxu0 0.0
  %1332 = vmatpush1.msra.mxu0 0.0
  %1333 = vmatprep.subr.mxu0 0.0
  %1334 = vmatpush1.msra.mxu0 0.0
  %1335 = vmatprep.subr.mxu0 0.0
  %1336 = vmatpush1.msra.mxu0 0.0
  %1337 = vmatprep.subr.mxu0 0.0
  %1338 = vmatpush1.msra.mxu0 0.0
  %1339 = vmatprep.subr.mxu0 0.0
  %1340 = vmatpush1.msra.mxu0 0.0
  %1341 = vmatprep.subr.mxu0 0.0
  %1342 = vmatpush1.msra.mxu0 0.0
  %1343 = vmatprep.subr.mxu0 0.0
  %1344 = vmatpush1.msra.mxu0 0.0
  %1345 = vmatprep.subr.mxu0 0.0
  %1346 = vmatpush1.msra.mxu0 0.0
  %1347 = vmatprep.subr.mxu0 0.0
  %1348 = vmatpush1.msra.mxu0 %v61
  %1349 = vmatprep.subr.mxu0 0.0
  %1350 = vmatpush1.msra.mxu0 %v60
  %1351 = vmatprep.subr.mxu0 0.0
  %1352 = vmatpush1.msra.mxu0 %v59
  %1353 = vmatprep.subr.mxu0 0.0
  %1354 = vmatpush1.msra.mxu0 %v58
  %1355 = vmatprep.subr.mxu0 0.0
  %1356 = vmatpush2.msra.mxu0 0.0
  %1357 = vmatprep.subr.mxu0 0.0
  %1358 = vmatpush2.msra.mxu0 0.0
  %1359 = vmatprep.subr.mxu0 0.0
  %1360 = vmatpush2.msra.mxu0 0.0
  %1361 = vmatprep.subr.mxu0 0.0
  %1362 = vmatpush2.msra.mxu0 0.0
  %1363 = vmatprep.subr.mxu0 0.0
  %1364 = vmatpush2.msra.mxu0 0.0
  %1365 = vmatprep.subr.mxu0 0.0
  %1366 = vmatpush2.msra.mxu0 0.0
  %1367 = vmatprep.subr.mxu0 0.0
  %1368 = vmatpush2.msra.mxu0 0.0
  %1369 = vmatprep.subr.mxu0 0.0
  %1370 = vmatpush2.msra.mxu0 0.0
  %1371 = vmatprep.subr.mxu0 0.0
  %1372 = vmatpush2.msra.mxu0 0.0
  %1373 = vmatprep.subr.mxu0 0.0
  %1374 = vmatpush2.msra.mxu0 0.0
  %1375 = vmatprep.subr.mxu0 0.0
  %1376 = vmatpush2.msra.mxu0 0.0
  %1377 = vmatprep.subr.mxu0 0.0
  %1378 = vmatpush2.msra.mxu0 0.0
  %1379 = vmatprep.subr.mxu0 0.0
  %1380 = vmatpush2.msra.mxu0 0.0
  %1381 = vmatprep.subr.mxu0 0.0
  %1382 = vmatpush2.msra.mxu0 0.0
  %1383 = vmatprep.subr.mxu0 0.0
  %1384 = vmatpush2.msra.mxu0 0.0
  %1385 = vmatprep.subr.mxu0 0.0
  %1386 = vmatpush2.msra.mxu0 0.0
  %1387 = vmatprep.mubr.f32.mxu0 0.0
  %1388 = vmatmul.mubr.f32.gmra.mxu0 %v1321
  %v1389 = vpop.f32.mrf.mxu0
  %v1390 = vadd.f32 %v636, %v1389
  %v1391 = vpop.f32.mrf.mxu0
  %1392 = vdwg.mxu0
  %v1393 = vmul.f32 %v1390, %v1390
  %v1394 = vmul.f32 %v1390, %v1393
  %v1395 = vmul.f32 %v1394, 0.044715
  %v1396 = vadd.f32 %v1390, %v1395
  %v1397 = vmul.f32 %v1396, 0.7978846
  %v1398 = vtanh.pop %v1397
  %v1399 = vadd.f32 %v1398, 1.0
  %v1400 = vmul.f32 %v1399, 0.5
  %v1401 = vmul.f32 %v1390, %v1400
  %v1403 = vsel %vm726, %v1401, 0
  %1405 = vmatprep.subr.mxu0 0.0
  %1406 = vmatpush1.msra.mxu0 0.0
  %1407 = vmatprep.subr.mxu0 0.0
  %1408 = vmatpush1.msra.mxu0 0.0
  %1409 = vmatprep.subr.mxu0 0.0
  %1410 = vmatpush1.msra.mxu0 0.0
  %1411 = vmatprep.subr.mxu0 0.0
  %1412 = vmatpush1.msra.mxu0 0.0
  %1413 = vmatprep.subr.mxu0 0.0
  %1414 = vmatpush1.msra.mxu0 0.0
  %1415 = vmatprep.subr.mxu0 0.0
  %1416 = vmatpush1.msra.mxu0 0.0
  %1417 = vmatprep.subr.mxu0 0.0
  %1418 = vmatpush1.msra.mxu0 0.0
  %1419 = vmatprep.subr.mxu0 0.0
  %1420 = vmatpush1.msra.mxu0 0.0
  %1421 = vmatprep.subr.mxu0 0.0
  %1422 = vmatpush1.msra.mxu0 %v70
  %1423 = vmatprep.subr.mxu0 0.0
  %1424 = vmatpush1.msra.mxu0 %v69
  %1425 = vmatprep.subr.mxu0 0.0
  %1426 = vmatpush1.msra.mxu0 %v68
  %1427 = vmatprep.subr.mxu0 0.0
  %1428 = vmatpush1.msra.mxu0 %v67
  %1429 = vmatprep.subr.mxu0 0.0
  %1430 = vmatpush1.msra.mxu0 %v66
  %1431 = vmatprep.subr.mxu0 0.0
  %1432 = vmatpush1.msra.mxu0 %v65
  %1433 = vmatprep.subr.mxu0 0.0
  %1434 = vmatpush1.msra.mxu0 %v64
  %1435 = vmatprep.subr.mxu0 0.0
  %1436 = vmatpush1.msra.mxu0 %v63
  %1437 = vmatprep.subr.mxu0 0.0
  %1438 = vmatpush2.msra.mxu0 0.0
  %1439 = vmatprep.subr.mxu0 0.0
  %1440 = vmatpush2.msra.mxu0 0.0
  %1441 = vmatprep.subr.mxu0 0.0
  %1442 = vmatpush2.msra.mxu0 0.0
  %1443 = vmatprep.subr.mxu0 0.0
  %1444 = vmatpush2.msra.mxu0 0.0
  %1445 = vmatprep.subr.mxu0 0.0
  %1446 = vmatpush2.msra.mxu0 0.0
  %1447 = vmatprep.subr.mxu0 0.0
  %1448 = vmatpush2.msra.mxu0 0.0
  %1449 = vmatprep.subr.mxu0 0.0
  %1450 = vmatpush2.msra.mxu0 0.0
  %1451 = vmatprep.subr.mxu0 0.0
  %1452 = vmatpush2.msra.mxu0 0.0
  %1453 = vmatprep.subr.mxu0 0.0
  %1454 = vmatpush2.msra.mxu0 0.0
  %1455 = vmatprep.subr.mxu0 0.0
  %1456 = vmatpush2.msra.mxu0 0.0
  %1457 = vmatprep.subr.mxu0 0.0
  %1458 = vmatpush2.msra.mxu0 0.0
  %1459 = vmatprep.subr.mxu0 0.0
  %1460 = vmatpush2.msra.mxu0 0.0
  %1461 = vmatprep.subr.mxu0 0.0
  %1462 = vmatpush2.msra.mxu0 0.0
  %1463 = vmatprep.subr.mxu0 0.0
  %1464 = vmatpush2.msra.mxu0 0.0
  %1465 = vmatprep.subr.mxu0 0.0
  %1466 = vmatpush2.msra.mxu0 0.0
  %1467 = vmatprep.subr.mxu0 0.0
  %1468 = vmatpush2.msra.mxu0 0.0
  %1469 = vmatprep.mubr.f32.mxu0 0.0
  %1470 = vmatmul.mubr.f32.gmra.mxu0 %v1403
  %v1471 = vpop.f32.mrf.mxu0
  %v1472 = vadd.f32 %v724, %v1471
  %v1473 = vpop.f32.mrf.mxu0
  %1474 = vdwg.mxu0
  %v1475 = vadd.f32 %v1304, %v1472
  %s1476 = scalar_lea.vmem %s13, 8
  %1477 = vst.msk [vmem:[%s1476] sm:$0x7f] %vm73, %v1475
  // Predicated region
  $region54: #{dualprompt_forward.20} parent=0 // pred_check
    _
  $region55: #{dualprompt_forward.20} parent=0 // pred_check_branch
    %1479 = sbr.rel (0) target = $region57
  $region56: #{dualprompt_forward.20} parent=0 // pred_region
    _
  $region57: #{dualprompt_forward.20} parent=0 // pred_fallthru
    _
  // Predicated region
  $region58: #{dualprompt_forward.20} parent=0 // pred_check
    _
  $region59: #{dualprompt_forward.20} parent=0 // pred_check_branch
    %1481 = sbr.rel (0) target = $region61
  $region60: #{dualprompt_forward.20} parent=0 // pred_region
    _
  $region61: #{dualprompt_forward.20} parent=0 // pred_fallthru
    _

// kernel: dualprompt_forward.22
$region0: #{dualprompt_forward.22}
  #allocation0 [shape = 'u32[]', space=smem, size = 0x4, offset = 0x4, fixed_abs, tag = 'smem constant byte address 0x4 - core index']
  #allocation1 [shape = 'u32[144,128]{1,0:T(1,128)}', space=vmem, size = 0x12000, scoped, tag = 'internal scratch']
  %s0 = inlined_call_operand.vmem [shape: f32[2,8,32], index: 0, kind: input, shape index: {}]
  %s1 = inlined_call_operand.vmem [shape: f32[1,32], index: 1, kind: input, shape index: {}]
  %s2 = inlined_call_operand.vmem [shape: f32[1,32], index: 2, kind: input, shape index: {}]
  %s3 = inlined_call_operand.vmem [shape: f32[32,96], index: 3, kind: input, shape index: {}]
  %s4 = inlined_call_operand.vmem [shape: f32[1,96], index: 4, kind: input, shape index: {}]
  %s5 = inlined_call_operand.vmem [shape: f32[32,32], index: 5, kind: input, shape index: {}]
  %s6 = inlined_call_operand.vmem [shape: f32[1,32], index: 6, kind: input, shape index: {}]
  %s7 = inlined_call_operand.vmem [shape: f32[1,32], index: 7, kind: input, shape index: {}]
  %s8 = inlined_call_operand.vmem [shape: f32[1,32], index: 8, kind: input, shape index: {}]
  %s9 = inlined_call_operand.vmem [shape: f32[32,64], index: 9, kind: input, shape index: {}]
  %s10 = inlined_call_operand.vmem [shape: f32[1,64], index: 10, kind: input, shape index: {}]
  %s11 = inlined_call_operand.vmem [shape: f32[64,32], index: 11, kind: input, shape index: {}]
  %s12 = inlined_call_operand.vmem [shape: f32[1,32], index: 12, kind: input, shape index: {}]
  %s13 = inlined_call_operand.vmem [shape: f32[2,8,32], index: 13, kind: output, shape index: {}]
  %s14 = sld [smem:[#allocation0]]
  $region62: #{dualprompt_forward.22} parent=0
    _
  %s16 = ssub.s32 1, %s14
  %s17 = scalar_select 0, %s16, %s14
  // Predicated region
  $region2: #{dualprompt_forward.22} parent=0 // pred_check
    _
  $region3: #{dualprompt_forward.22} parent=0 // pred_check_branch
    %19 = sbr.rel (0) target = $region5
  $region4: #{dualprompt_forward.22} parent=0 // pred_region
    _
  $region5: #{dualprompt_forward.22} parent=0 // pred_fallthru
    _
  // Predicated region
  $region6: #{dualprompt_forward.22} parent=0 // pred_check
    _
  $region7: #{dualprompt_forward.22} parent=0 // pred_check_branch
    %21 = sbr.rel (0) target = $region9
  $region8: #{dualprompt_forward.22} parent=0 // pred_region
    _
  $region9: #{dualprompt_forward.22} parent=0 // pred_fallthru
    _
  // Predicated region
  $region10: #{dualprompt_forward.22} parent=0 // pred_check
    _
  $region11: #{dualprompt_forward.22} parent=0 // pred_check_branch
    %23 = sbr.rel (0) target = $region13
  $region12: #{dualprompt_forward.22} parent=0 // pred_region
    _
  $region13: #{dualprompt_forward.22} parent=0 // pred_fallthru
    _
  // Predicated region
  $region14: #{dualprompt_forward.22} parent=0 // pred_check
    _
  $region15: #{dualprompt_forward.22} parent=0 // pred_check_branch
    %25 = sbr.rel (0) target = $region17
  $region16: #{dualprompt_forward.22} parent=0 // pred_region
    _
  $region17: #{dualprompt_forward.22} parent=0 // pred_fallthru
    _
  // Predicated region
  $region18: #{dualprompt_forward.22} parent=0 // pred_check
    _
  $region19: #{dualprompt_forward.22} parent=0 // pred_check_branch
    %27 = sbr.rel (0) target = $region21
  $region20: #{dualprompt_forward.22} parent=0 // pred_region
    _
  $region21: #{dualprompt_forward.22} parent=0 // pred_fallthru
    _
  // Predicated region
  $region22: #{dualprompt_forward.22} parent=0 // pred_check
    _
  $region23: #{dualprompt_forward.22} parent=0 // pred_check_branch
    %29 = sbr.rel (0) target = $region25
  $region24: #{dualprompt_forward.22} parent=0 // pred_region
    _
  $region25: #{dualprompt_forward.22} parent=0 // pred_fallthru
    _
  // Predicated region
  $region26: #{dualprompt_forward.22} parent=0 // pred_check
    _
  $region27: #{dualprompt_forward.22} parent=0 // pred_check_branch
    %31 = sbr.rel (0) target = $region29
  $region28: #{dualprompt_forward.22} parent=0 // pred_region
    _
  $region29: #{dualprompt_forward.22} parent=0 // pred_fallthru
    _
  // Predicated region
  $region30: #{dualprompt_forward.22} parent=0 // pred_check
    _
  $region31: #{dualprompt_forward.22} parent=0 // pred_check_branch
    %33 = sbr.rel (0) target = $region33
  $region32: #{dualprompt_forward.22} parent=0 // pred_region
    _
  $region33: #{dualprompt_forward.22} parent=0 // pred_fallthru
    _
  // Predicated region
  $region34: #{dualprompt_forward.22} parent=0 // pred_check
    _
  $region35: #{dualprompt_forward.22} parent=0 // pred_check_branch
    %35 = sbr.rel (0) target = $region37
  $region36: #{dualprompt_forward.22} parent=0 // pred_region
    _
  $region37: #{dualprompt_forward.22} parent=0 // pred_fallthru
    _
  // Predicated region
  $region38: #{dualprompt_forward.22} parent=0 // pred_check
    _
  $region39: #{dualprompt_forward.22} parent=0 // pred_check_branch
    %37 = sbr.rel (0) target = $region41
  $region40: #{dualprompt_forward.22} parent=0 // pred_region
    _
  $region41: #{dualprompt_forward.22} parent=0 // pred_fallthru
    _
  // Predicated region
  $region42: #{dualprompt_forward.22} parent=0 // pred_check
    _
  $region43: #{dualprompt_forward.22} parent=0 // pred_check_branch
    %39 = sbr.rel (0) target = $region45
  $region44: #{dualprompt_forward.22} parent=0 // pred_region
    _
  $region45: #{dualprompt_forward.22} parent=0 // pred_fallthru
    _
  // Predicated region
  $region46: #{dualprompt_forward.22} parent=0 // pred_check
    _
  $region47: #{dualprompt_forward.22} parent=0 // pred_check_branch
    %41 = sbr.rel (0) target = $region49
  $region48: #{dualprompt_forward.22} parent=0 // pred_region
    _
  $region49: #{dualprompt_forward.22} parent=0 // pred_fallthru
    _
  // Predicated region
  $region50: #{dualprompt_forward.22} parent=0 // pred_check
    _
  $region51: #{dualprompt_forward.22} parent=0 // pred_check_branch
    %43 = sbr.rel (0) target = $region53
  $region52: #{dualprompt_forward.22} parent=0 // pred_region
    _
  $region53: #{dualprompt_forward.22} parent=0 // pred_fallthru
    _
  %v44 = vld [vmem:[%s1] sm:$0x1]
  %v45 = vld [vmem:[%s2] sm:$0x1]
  %v46 = vld [vmem:[%s3] sm:$0xff]
  %v47 = vld [vmem:[%s3 + $0x8] sm:$0xff]
  %v48 = vld [vmem:[%s3 + $0x10] sm:$0xff]
  %v49 = vld [vmem:[%s3 + $0x18] sm:$0xff]
  %v50 = vld [vmem:[%s4] sm:$0x1]
  %v51 = vld [vmem:[%s5] sm:$0xff]
  %v52 = vld [vmem:[%s5 + $0x8] sm:$0xff]
  %v53 = vld [vmem:[%s5 + $0x10] sm:$0xff]
  %v54 = vld [vmem:[%s5 + $0x18] sm:$0xff]
  %v55 = vld [vmem:[%s6] sm:$0x1]
  %v56 = vld [vmem:[%s7] sm:$0x1]
  %v57 = vld [vmem:[%s8] sm:$0x1]
  %v58 = vld [vmem:[%s9] sm:$0xff]
  %v59 = vld [vmem:[%s9 + $0x8] sm:$0xff]
  %v60 = vld [vmem:[%s9 + $0x10] sm:$0xff]
  %v61 = vld [vmem:[%s9 + $0x18] sm:$0xff]
  %v62 = vld [vmem:[%s10] sm:$0x1]
  %v63 = vld [vmem:[%s11] sm:$0xff]
  %v64 = vld [vmem:[%s11 + $0x8] sm:$0xff]
  %v65 = vld [vmem:[%s11 + $0x10] sm:$0xff]
  %v66 = vld [vmem:[%s11 + $0x18] sm:$0xff]
  %v67 = vld [vmem:[%s11 + $0x20] sm:$0xff]
  %v68 = vld [vmem:[%s11 + $0x28] sm:$0xff]
  %v69 = vld [vmem:[%s11 + $0x30] sm:$0xff]
  %v70 = vld [vmem:[%s11 + $0x38] sm:$0xff]
  %v71 = vld [vmem:[%s12] sm:$0x1]
  %v72 = vld [vmem:[%s0] sm:$0xff]
  %vm73 = vcmask 261120
  %v74 = vsel %vm73, %v72, 0.0
  %75 = vadd.xlane.f32.xlu0 %v74
  %v76 = vpop.xlane.xlu0 %75
  %v77 = vrcp.pop 32.0
  %v78 = vmul.f32 %v76, %v77
  %v79 = vsub.f32 %v72, %v78
  %v80 = vmul.f32 %v79, %v79
  %v81 = vsel %vm73, %v80, 0.0
  %82 = vadd.xlane.f32.xlu0 %v81
  %v83 = vpop.xlane.xlu0 %82
  %v84 = vmul.f32 %v83, %v77
  %v85 = vadd.f32 %v84, 1e-06
  %v86 = vrsqrt.pop %v85
  %v87 = vmul.f32 %v79, %v86
  %v89 = vlaneseq
  %v90 = vshrl.u32 %v89, 7
  %v91 = vsub.s32 0, %v90
  %v92 = vrot.slane %v44, %v91
  %v94 = vmul.f32 %v87, %v92
  %v96 = vlaneseq
  %v97 = vshrl.u32 %v96, 7
  %v98 = vsub.s32 0, %v97
  %v99 = vrot.slane %v45, %v98
  %v101 = vadd.f32 %v94, %v99
  %v103 = vlaneseq
  %v104 = vshrl.u32 %v103, 7
  %v105 = vsub.s32 0, %v104
  %v106 = vrot.slane %v50, %v105
  %v109 = vsel %vm73, %v101, 0
  %111 = vmatprep.subr.mxu0 0.0
  %112 = vmatpush1.msra.mxu0 0.0
  %113 = vmatprep.subr.mxu0 0.0
  %114 = vmatpush1.msra.mxu0 0.0
  %115 = vmatprep.subr.mxu0 0.0
  %116 = vmatpush1.msra.mxu0 0.0
  %117 = vmatprep.subr.mxu0 0.0
  %118 = vmatpush1.msra.mxu0 0.0
  %119 = vmatprep.subr.mxu0 0.0
  %120 = vmatpush1.msra.mxu0 0.0
  %121 = vmatprep.subr.mxu0 0.0
  %122 = vmatpush1.msra.mxu0 0.0
  %123 = vmatprep.subr.mxu0 0.0
  %124 = vmatpush1.msra.mxu0 0.0
  %125 = vmatprep.subr.mxu0 0.0
  %126 = vmatpush1.msra.mxu0 0.0
  %127 = vmatprep.subr.mxu0 0.0
  %128 = vmatpush1.msra.mxu0 0.0
  %129 = vmatprep.subr.mxu0 0.0
  %130 = vmatpush1.msra.mxu0 0.0
  %131 = vmatprep.subr.mxu0 0.0
  %132 = vmatpush1.msra.mxu0 0.0
  %133 = vmatprep.subr.mxu0 0.0
  %134 = vmatpush1.msra.mxu0 0.0
  %135 = vmatprep.subr.mxu0 0.0
  %136 = vmatpush1.msra.mxu0 %v49
  %137 = vmatprep.subr.mxu0 0.0
  %138 = vmatpush1.msra.mxu0 %v48
  %139 = vmatprep.subr.mxu0 0.0
  %140 = vmatpush1.msra.mxu0 %v47
  %141 = vmatprep.subr.mxu0 0.0
  %142 = vmatpush1.msra.mxu0 %v46
  %143 = vmatprep.subr.mxu0 0.0
  %144 = vmatpush2.msra.mxu0 0.0
  %145 = vmatprep.subr.mxu0 0.0
  %146 = vmatpush2.msra.mxu0 0.0
  %147 = vmatprep.subr.mxu0 0.0
  %148 = vmatpush2.msra.mxu0 0.0
  %149 = vmatprep.subr.mxu0 0.0
  %150 = vmatpush2.msra.mxu0 0.0
  %151 = vmatprep.subr.mxu0 0.0
  %152 = vmatpush2.msra.mxu0 0.0
  %153 = vmatprep.subr.mxu0 0.0
  %154 = vmatpush2.msra.mxu0 0.0
  %155 = vmatprep.subr.mxu0 0.0
  %156 = vmatpush2.msra.mxu0 0.0
  %157 = vmatprep.subr.mxu0 0.0
  %158 = vmatpush2.msra.mxu0 0.0
  %159 = vmatprep.subr.mxu0 0.0
  %160 = vmatpush2.msra.mxu0 0.0
  %161 = vmatprep.subr.mxu0 0.0
  %162 = vmatpush2.msra.mxu0 0.0
  %163 = vmatprep.subr.mxu0 0.0
  %164 = vmatpush2.msra.mxu0 0.0
  %165 = vmatprep.subr.mxu0 0.0
  %166 = vmatpush2.msra.mxu0 0.0
  %167 = vmatprep.subr.mxu0 0.0
  %168 = vmatpush2.msra.mxu0 0.0
  %169 = vmatprep.subr.mxu0 0.0
  %170 = vmatpush2.msra.mxu0 0.0
  %171 = vmatprep.subr.mxu0 0.0
  %172 = vmatpush2.msra.mxu0 0.0
  %173 = vmatprep.subr.mxu0 0.0
  %174 = vmatpush2.msra.mxu0 0.0
  %175 = vmatprep.mubr.f32.mxu0 0.0
  %176 = vmatmul.mubr.f32.gmra.mxu0 %v109
  %v177 = vpop.f32.mrf.mxu0
  %v178 = vadd.f32 %v106, %v177
  %v179 = vpop.f32.mrf.mxu0
  %180 = vdwg.mxu0
  %182 = vrot.lane.b32.xlu0 %v178, 96
  %v183 = vpop.permute.xlu0 %182
  %vm184 = vcmask 130048
  %v185 = vsel %vm184, %v178, 0
  %v187 = vsel %vm184, %v183, 0
  %189 = vmatprep.subr.mxu0 0.0
  %190 = vmatpush1.xpose.msra.mxu0 0.0
  %191 = vmatprep.subr.mxu0 0.0
  %192 = vmatpush1.xpose.msra.mxu0 0.0
  %193 = vmatprep.subr.mxu0 0.0
  %194 = vmatpush1.xpose.msra.mxu0 0.0
  %195 = vmatprep.subr.mxu0 0.0
  %196 = vmatpush1.xpose.msra.mxu0 0.0
  %197 = vmatprep.subr.mxu0 0.0
  %198 = vmatpush1.xpose.msra.mxu0 0.0
  %199 = vmatprep.subr.mxu0 0.0
  %200 = vmatpush1.xpose.msra.mxu0 0.0
  %201 = vmatprep.subr.mxu0 0.0
  %202 = vmatpush1.xpose.msra.mxu0 0.0
  %203 = vmatprep.subr.mxu0 0.0
  %204 = vmatpush1.xpose.msra.mxu0 0.0
  %205 = vmatprep.subr.mxu0 0.0
  %206 = vmatpush1.xpose.msra.mxu0 0.0
  %207 = vmatprep.subr.mxu0 0.0
  %208 = vmatpush1.xpose.msra.mxu0 0.0
  %209 = vmatprep.subr.mxu0 0.0
  %210 = vmatpush1.xpose.msra.mxu0 0.0
  %211 = vmatprep.subr.mxu0 0.0
  %212 = vmatpush1.xpose.msra.mxu0 0.0
  %213 = vmatprep.subr.mxu0 0.0
  %214 = vmatpush1.xpose.msra.mxu0 0.0
  %215 = vmatprep.subr.mxu0 0.0
  %216 = vmatpush1.xpose.msra.mxu0 0.0
  %217 = vmatprep.subr.mxu0 0.0
  %218 = vmatpush1.xpose.msra.mxu0 0.0
  %219 = vmatprep.subr.mxu0 0.0
  %220 = vmatpush1.xpose.msra.mxu0 %v187
  %221 = vmatprep.subr.mxu0 0.0
  %222 = vmatpush2.xpose.msra.mxu0 0.0
  %223 = vmatprep.subr.mxu0 0.0
  %224 = vmatpush2.xpose.msra.mxu0 0.0
  %225 = vmatprep.subr.mxu0 0.0
  %226 = vmatpush2.xpose.msra.mxu0 0.0
  %227 = vmatprep.subr.mxu0 0.0
  %228 = vmatpush2.xpose.msra.mxu0 0.0
  %229 = vmatprep.subr.mxu0 0.0
  %230 = vmatpush2.xpose.msra.mxu0 0.0
  %231 = vmatprep.subr.mxu0 0.0
  %232 = vmatpush2.xpose.msra.mxu0 0.0
  %233 = vmatprep.subr.mxu0 0.0
  %234 = vmatpush2.xpose.msra.mxu0 0.0
  %235 = vmatprep.subr.mxu0 0.0
  %236 = vmatpush2.xpose.msra.mxu0 0.0
  %237 = vmatprep.subr.mxu0 0.0
  %238 = vmatpush2.xpose.msra.mxu0 0.0
  %239 = vmatprep.subr.mxu0 0.0
  %240 = vmatpush2.xpose.msra.mxu0 0.0
  %241 = vmatprep.subr.mxu0 0.0
  %242 = vmatpush2.xpose.msra.mxu0 0.0
  %243 = vmatprep.subr.mxu0 0.0
  %244 = vmatpush2.xpose.msra.mxu0 0.0
  %245 = vmatprep.subr.mxu0 0.0
  %246 = vmatpush2.xpose.msra.mxu0 0.0
  %247 = vmatprep.subr.mxu0 0.0
  %248 = vmatpush2.xpose.msra.mxu0 0.0
  %249 = vmatprep.subr.mxu0 0.0
  %250 = vmatpush2.xpose.msra.mxu0 0.0
  %251 = vmatprep.subr.mxu0 0.0
  %252 = vmatpush2.xpose.msra.mxu0 0.0
  %253 = vmatprep.mubr.f32.mxu0 0.0
  %254 = vmatmul.mubr.f32.gmra.mxu0 %v185
  %v255 = vpop.f32.mrf.mxu0
  %v256 = vadd.f32 0.0, %v255
  %v257 = vpop.f32.mrf.mxu0
  %258 = vdwg.mxu0
  %v259 = vmul.f32 %v256, 0.25
  %vm260 = vcmask 64512
  %v261 = vsel %vm260, %v259, -inf
  %262 = vmax.xlane.f32.xlu0 %v261
  %v263 = vpop.xlane.xlu0 %262
  %v264 = vsub.f32 %v259, %v263
  %v265 = vmul.f32 %v264, 1.442695
  %v266 = vpow.pop %v265
  %v267 = vsel %vm260, %v266, 0.0
  %268 = vadd.xlane.f32.xlu0 %v267
  %v269 = vpop.xlane.xlu0 %268
  %v270 = vrcp.pop %v269
  %v271 = vmul.f32 %v266, %v270
  %272 = vrot.lane.b32.xlu0 %v178, 64
  %v273 = vpop.permute.xlu0 %272
  %v276 = vsel %vm260, %v271, 0
  %278 = vmatprep.subr.mxu0 0.0
  %279 = vmatpush1.msra.mxu0 0.0
  %280 = vmatprep.subr.mxu0 0.0
  %281 = vmatpush1.msra.mxu0 0.0
  %282 = vmatprep.subr.mxu0 0.0
  %283 = vmatpush1.msra.mxu0 0.0
  %284 = vmatprep.subr.mxu0 0.0
  %285 = vmatpush1.msra.mxu0 0.0
  %286 = vmatprep.subr.mxu0 0.0
  %287 = vmatpush1.msra.mxu0 0.0
  %288 = vmatprep.subr.mxu0 0.0
  %289 = vmatpush1.msra.mxu0 0.0
  %290 = vmatprep.subr.mxu0 0.0
  %291 = vmatpush1.msra.mxu0 0.0
  %292 = vmatprep.subr.mxu0 0.0
  %293 = vmatpush1.msra.mxu0 0.0
  %294 = vmatprep.subr.mxu0 0.0
  %295 = vmatpush1.msra.mxu0 0.0
  %296 = vmatprep.subr.mxu0 0.0
  %297 = vmatpush1.msra.mxu0 0.0
  %298 = vmatprep.subr.mxu0 0.0
  %299 = vmatpush1.msra.mxu0 0.0
  %300 = vmatprep.subr.mxu0 0.0
  %301 = vmatpush1.msra.mxu0 0.0
  %302 = vmatprep.subr.mxu0 0.0
  %303 = vmatpush1.msra.mxu0 0.0
  %304 = vmatprep.subr.mxu0 0.0
  %305 = vmatpush1.msra.mxu0 0.0
  %306 = vmatprep.subr.mxu0 0.0
  %307 = vmatpush1.msra.mxu0 0.0
  %308 = vmatprep.subr.mxu0 0.0
  %309 = vmatpush1.msra.mxu0 %v273
  %310 = vmatprep.subr.mxu0 0.0
  %311 = vmatpush2.msra.mxu0 0.0
  %312 = vmatprep.subr.mxu0 0.0
  %313 = vmatpush2.msra.mxu0 0.0
  %314 = vmatprep.subr.mxu0 0.0
  %315 = vmatpush2.msra.mxu0 0.0
  %316 = vmatprep.subr.mxu0 0.0
  %317 = vmatpush2.msra.mxu0 0.0
  %318 = vmatprep.subr.mxu0 0.0
  %319 = vmatpush2.msra.mxu0 0.0
  %320 = vmatprep.subr.mxu0 0.0
  %321 = vmatpush2.msra.mxu0 0.0
  %322 = vmatprep.subr.mxu0 0.0
  %323 = vmatpush2.msra.mxu0 0.0
  %324 = vmatprep.subr.mxu0 0.0
  %325 = vmatpush2.msra.mxu0 0.0
  %326 = vmatprep.subr.mxu0 0.0
  %327 = vmatpush2.msra.mxu0 0.0
  %328 = vmatprep.subr.mxu0 0.0
  %329 = vmatpush2.msra.mxu0 0.0
  %330 = vmatprep.subr.mxu0 0.0
  %331 = vmatpush2.msra.mxu0 0.0
  %332 = vmatprep.subr.mxu0 0.0
  %333 = vmatpush2.msra.mxu0 0.0
  %334 = vmatprep.subr.mxu0 0.0
  %335 = vmatpush2.msra.mxu0 0.0
  %336 = vmatprep.subr.mxu0 0.0
  %337 = vmatpush2.msra.mxu0 0.0
  %338 = vmatprep.subr.mxu0 0.0
  %339 = vmatpush2.msra.mxu0 0.0
  %340 = vmatprep.subr.mxu0 0.0
  %341 = vmatpush2.msra.mxu0 0.0
  %342 = vmatprep.mubr.f32.mxu0 0.0
  %343 = vmatmul.mubr.f32.gmra.mxu0 %v276
  %v344 = vpop.f32.mrf.mxu0
  %v345 = vadd.f32 0.0, %v344
  %v346 = vpop.f32.mrf.mxu0
  %347 = vdwg.mxu0
  %348 = vrot.lane.b32.xlu0 %v178, 112
  %v349 = vpop.permute.xlu0 %348
  %350 = vrot.lane.b32.xlu0 %v178, 80
  %v351 = vpop.permute.xlu0 %350
  %v352 = vsel %vm184, %v349, 0
  %v354 = vsel %vm184, %v351, 0
  %356 = vmatprep.subr.mxu0 0.0
  %357 = vmatpush1.xpose.msra.mxu0 0.0
  %358 = vmatprep.subr.mxu0 0.0
  %359 = vmatpush1.xpose.msra.mxu0 0.0
  %360 = vmatprep.subr.mxu0 0.0
  %361 = vmatpush1.xpose.msra.mxu0 0.0
  %362 = vmatprep.subr.mxu0 0.0
  %363 = vmatpush1.xpose.msra.mxu0 0.0
  %364 = vmatprep.subr.mxu0 0.0
  %365 = vmatpush1.xpose.msra.mxu0 0.0
  %366 = vmatprep.subr.mxu0 0.0
  %367 = vmatpush1.xpose.msra.mxu0 0.0
  %368 = vmatprep.subr.mxu0 0.0
  %369 = vmatpush1.xpose.msra.mxu0 0.0
  %370 = vmatprep.subr.mxu0 0.0
  %371 = vmatpush1.xpose.msra.mxu0 0.0
  %372 = vmatprep.subr.mxu0 0.0
  %373 = vmatpush1.xpose.msra.mxu0 0.0
  %374 = vmatprep.subr.mxu0 0.0
  %375 = vmatpush1.xpose.msra.mxu0 0.0
  %376 = vmatprep.subr.mxu0 0.0
  %377 = vmatpush1.xpose.msra.mxu0 0.0
  %378 = vmatprep.subr.mxu0 0.0
  %379 = vmatpush1.xpose.msra.mxu0 0.0
  %380 = vmatprep.subr.mxu0 0.0
  %381 = vmatpush1.xpose.msra.mxu0 0.0
  %382 = vmatprep.subr.mxu0 0.0
  %383 = vmatpush1.xpose.msra.mxu0 0.0
  %384 = vmatprep.subr.mxu0 0.0
  %385 = vmatpush1.xpose.msra.mxu0 0.0
  %386 = vmatprep.subr.mxu0 0.0
  %387 = vmatpush1.xpose.msra.mxu0 %v354
  %388 = vmatprep.subr.mxu0 0.0
  %389 = vmatpush2.xpose.msra.mxu0 0.0
  %390 = vmatprep.subr.mxu0 0.0
  %391 = vmatpush2.xpose.msra.mxu0 0.0
  %392 = vmatprep.subr.mxu0 0.0
  %393 = vmatpush2.xpose.msra.mxu0 0.0
  %394 = vmatprep.subr.mxu0 0.0
  %395 = vmatpush2.xpose.msra.mxu0 0.0
  %396 = vmatprep.subr.mxu0 0.0
  %397 = vmatpush2.xpose.msra.mxu0 0.0
  %398 = vmatprep.subr.mxu0 0.0
  %399 = vmatpush2.xpose.msra.mxu0 0.0
  %400 = vmatprep.subr.mxu0 0.0
  %401 = vmatpush2.xpose.msra.mxu0 0.0
  %402 = vmatprep.subr.mxu0 0.0
  %403 = vmatpush2.xpose.msra.mxu0 0.0
  %404 = vmatprep.subr.mxu0 0.0
  %405 = vmatpush2.xpose.msra.mxu0 0.0
  %406 = vmatprep.subr.mxu0 0.0
  %407 = vmatpush2.xpose.msra.mxu0 0.0
  %408 = vmatprep.subr.mxu0 0.0
  %409 = vmatpush2.xpose.msra.mxu0 0.0
  %410 = vmatprep.subr.mxu0 0.0
  %411 = vmatpush2.xpose.msra.mxu0 0.0
  %412 = vmatprep.subr.mxu0 0.0
  %413 = vmatpush2.xpose.msra.mxu0 0.0
  %414 = vmatprep.subr.mxu0 0.0
  %415 = vmatpush2.xpose.msra.mxu0 0.0
  %416 = vmatprep.subr.mxu0 0.0
  %417 = vmatpush2.xpose.msra.mxu0 0.0
  %418 = vmatprep.subr.mxu0 0.0
  %419 = vmatpush2.xpose.msra.mxu0 0.0
  %420 = vmatprep.mubr.f32.mxu0 0.0
  %421 = vmatmul.mubr.f32.gmra.mxu0 %v352
  %v422 = vpop.f32.mrf.mxu0
  %v423 = vadd.f32 0.0, %v422
  %v424 = vpop.f32.mrf.mxu0
  %425 = vdwg.mxu0
  %v426 = vmul.f32 %v423, 0.25
  %v427 = vsel %vm260, %v426, -inf
  %428 = vmax.xlane.f32.xlu0 %v427
  %v429 = vpop.xlane.xlu0 %428
  %v430 = vsub.f32 %v426, %v429
  %v431 = vmul.f32 %v430, 1.442695
  %v432 = vpow.pop %v431
  %v433 = vsel %vm260, %v432, 0.0
  %434 = vadd.xlane.f32.xlu0 %v433
  %v435 = vpop.xlane.xlu0 %434
  %v436 = vrcp.pop %v435
  %v437 = vmul.f32 %v432, %v436
  %438 = vrot.lane.b32.xlu0 %v178, 48
  %v439 = vpop.permute.xlu0 %438
  %v442 = vsel %vm260, %v437, 0
  %444 = vmatprep.subr.mxu0 0.0
  %445 = vmatpush1.msra.mxu0 0.0
  %446 = vmatprep.subr.mxu0 0.0
  %447 = vmatpush1.msra.mxu0 0.0
  %448 = vmatprep.subr.mxu0 0.0
  %449 = vmatpush1.msra.mxu0 0.0
  %450 = vmatprep.subr.mxu0 0.0
  %451 = vmatpush1.msra.mxu0 0.0
  %452 = vmatprep.subr.mxu0 0.0
  %453 = vmatpush1.msra.mxu0 0.0
  %454 = vmatprep.subr.mxu0 0.0
  %455 = vmatpush1.msra.mxu0 0.0
  %456 = vmatprep.subr.mxu0 0.0
  %457 = vmatpush1.msra.mxu0 0.0
  %458 = vmatprep.subr.mxu0 0.0
  %459 = vmatpush1.msra.mxu0 0.0
  %460 = vmatprep.subr.mxu0 0.0
  %461 = vmatpush1.msra.mxu0 0.0
  %462 = vmatprep.subr.mxu0 0.0
  %463 = vmatpush1.msra.mxu0 0.0
  %464 = vmatprep.subr.mxu0 0.0
  %465 = vmatpush1.msra.mxu0 0.0
  %466 = vmatprep.subr.mxu0 0.0
  %467 = vmatpush1.msra.mxu0 0.0
  %468 = vmatprep.subr.mxu0 0.0
  %469 = vmatpush1.msra.mxu0 0.0
  %470 = vmatprep.subr.mxu0 0.0
  %471 = vmatpush1.msra.mxu0 0.0
  %472 = vmatprep.subr.mxu0 0.0
  %473 = vmatpush1.msra.mxu0 0.0
  %474 = vmatprep.subr.mxu0 0.0
  %475 = vmatpush1.msra.mxu0 %v439
  %476 = vmatprep.subr.mxu0 0.0
  %477 = vmatpush2.msra.mxu0 0.0
  %478 = vmatprep.subr.mxu0 0.0
  %479 = vmatpush2.msra.mxu0 0.0
  %480 = vmatprep.subr.mxu0 0.0
  %481 = vmatpush2.msra.mxu0 0.0
  %482 = vmatprep.subr.mxu0 0.0
  %483 = vmatpush2.msra.mxu0 0.0
  %484 = vmatprep.subr.mxu0 0.0
  %485 = vmatpush2.msra.mxu0 0.0
  %486 = vmatprep.subr.mxu0 0.0
  %487 = vmatpush2.msra.mxu0 0.0
  %488 = vmatprep.subr.mxu0 0.0
  %489 = vmatpush2.msra.mxu0 0.0
  %490 = vmatprep.subr.mxu0 0.0
  %491 = vmatpush2.msra.mxu0 0.0
  %492 = vmatprep.subr.mxu0 0.0
  %493 = vmatpush2.msra.mxu0 0.0
  %494 = vmatprep.subr.mxu0 0.0
  %495 = vmatpush2.msra.mxu0 0.0
  %496 = vmatprep.subr.mxu0 0.0
  %497 = vmatpush2.msra.mxu0 0.0
  %498 = vmatprep.subr.mxu0 0.0
  %499 = vmatpush2.msra.mxu0 0.0
  %500 = vmatprep.subr.mxu0 0.0
  %501 = vmatpush2.msra.mxu0 0.0
  %502 = vmatprep.subr.mxu0 0.0
  %503 = vmatpush2.msra.mxu0 0.0
  %504 = vmatprep.subr.mxu0 0.0
  %505 = vmatpush2.msra.mxu0 0.0
  %506 = vmatprep.subr.mxu0 0.0
  %507 = vmatpush2.msra.mxu0 0.0
  %508 = vmatprep.mubr.f32.mxu0 0.0
  %509 = vmatmul.mubr.f32.gmra.mxu0 %v442
  %v510 = vpop.f32.mrf.mxu0
  %v511 = vadd.f32 0.0, %v510
  %v512 = vpop.f32.mrf.mxu0
  %513 = vdwg.mxu0
  %515 = vrot.lane.b32.xlu0 %v511, 16
  %v516 = vpop.permute.xlu0 %515
  %v518 = vsel %vm184, %v345, %v516
  %v520 = vsel %vm73, %v518, 0
  %522 = vmatprep.subr.mxu0 0.0
  %523 = vmatpush1.msra.mxu0 0.0
  %524 = vmatprep.subr.mxu0 0.0
  %525 = vmatpush1.msra.mxu0 0.0
  %526 = vmatprep.subr.mxu0 0.0
  %527 = vmatpush1.msra.mxu0 0.0
  %528 = vmatprep.subr.mxu0 0.0
  %529 = vmatpush1.msra.mxu0 0.0
  %530 = vmatprep.subr.mxu0 0.0
  %531 = vmatpush1.msra.mxu0 0.0
  %532 = vmatprep.subr.mxu0 0.0
  %533 = vmatpush1.msra.mxu0 0.0
  %534 = vmatprep.subr.mxu0 0.0
  %535 = vmatpush1.msra.mxu0 0.0
  %536 = vmatprep.subr.mxu0 0.0
  %537 = vmatpush1.msra.mxu0 0.0
  %538 = vmatprep.subr.mxu0 0.0
  %539 = vmatpush1.msra.mxu0 0.0
  %540 = vmatprep.subr.mxu0 0.0
  %541 = vmatpush1.msra.mxu0 0.0
  %542 = vmatprep.subr.mxu0 0.0
  %543 = vmatpush1.msra.mxu0 0.0
  %544 = vmatprep.subr.mxu0 0.0
  %545 = vmatpush1.msra.mxu0 0.0
  %546 = vmatprep.subr.mxu0 0.0
  %547 = vmatpush1.msra.mxu0 %v54
  %548 = vmatprep.subr.mxu0 0.0
  %549 = vmatpush1.msra.mxu0 %v53
  %550 = vmatprep.subr.mxu0 0.0
  %551 = vmatpush1.msra.mxu0 %v52
  %552 = vmatprep.subr.mxu0 0.0
  %553 = vmatpush1.msra.mxu0 %v51
  %554 = vmatprep.subr.mxu0 0.0
  %555 = vmatpush2.msra.mxu0 0.0
  %556 = vmatprep.subr.mxu0 0.0
  %557 = vmatpush2.msra.mxu0 0.0
  %558 = vmatprep.subr.mxu0 0.0
  %559 = vmatpush2.msra.mxu0 0.0
  %560 = vmatprep.subr.mxu0 0.0
  %561 = vmatpush2.msra.mxu0 0.0
  %562 = vmatprep.subr.mxu0 0.0
  %563 = vmatpush2.msra.mxu0 0.0
  %564 = vmatprep.subr.mxu0 0.0
  %565 = vmatpush2.msra.mxu0 0.0
  %566 = vmatprep.subr.mxu0 0.0
  %567 = vmatpush2.msra.mxu0 0.0
  %568 = vmatprep.subr.mxu0 0.0
  %569 = vmatpush2.msra.mxu0 0.0
  %570 = vmatprep.subr.mxu0 0.0
  %571 = vmatpush2.msra.mxu0 0.0
  %572 = vmatprep.subr.mxu0 0.0
  %573 = vmatpush2.msra.mxu0 0.0
  %574 = vmatprep.subr.mxu0 0.0
  %575 = vmatpush2.msra.mxu0 0.0
  %576 = vmatprep.subr.mxu0 0.0
  %577 = vmatpush2.msra.mxu0 0.0
  %578 = vmatprep.subr.mxu0 0.0
  %579 = vmatpush2.msra.mxu0 0.0
  %580 = vmatprep.subr.mxu0 0.0
  %581 = vmatpush2.msra.mxu0 0.0
  %582 = vmatprep.subr.mxu0 0.0
  %583 = vmatpush2.msra.mxu0 0.0
  %584 = vmatprep.subr.mxu0 0.0
  %585 = vmatpush2.msra.mxu0 0.0
  %586 = vmatprep.mubr.f32.mxu0 0.0
  %587 = vmatmul.mubr.f32.gmra.mxu0 %v520
  %v588 = vpop.f32.mrf.mxu0
  %v589 = vadd.f32 0.0, %v588
  %v590 = vpop.f32.mrf.mxu0
  %591 = vdwg.mxu0
  %v592 = vadd.f32 %v72, %v589
  %v594 = vlaneseq
  %v595 = vshrl.u32 %v594, 7
  %v596 = vsub.s32 0, %v595
  %v597 = vrot.slane %v55, %v596
  %v599 = vadd.f32 %v592, %v597
  %v600 = vsel %vm73, %v599, 0.0
  %601 = vadd.xlane.f32.xlu0 %v600
  %v602 = vpop.xlane.xlu0 %601
  %v603 = vmul.f32 %v602, %v77
  %v604 = vsub.f32 %v599, %v603
  %v605 = vmul.f32 %v604, %v604
  %v606 = vsel %vm73, %v605, 0.0
  %607 = vadd.xlane.f32.xlu0 %v606
  %v608 = vpop.xlane.xlu0 %607
  %v609 = vmul.f32 %v608, %v77
  %v610 = vadd.f32 %v609, 1e-06
  %v611 = vrsqrt.pop %v610
  %v612 = vmul.f32 %v604, %v611
  %v614 = vlaneseq
  %v615 = vshrl.u32 %v614, 7
  %v616 = vsub.s32 0, %v615
  %v617 = vrot.slane %v56, %v616
  %v619 = vmul.f32 %v612, %v617
  %v621 = vlaneseq
  %v622 = vshrl.u32 %v621, 7
  %v623 = vsub.s32 0, %v622
  %v624 = vrot.slane %v57, %v623
  %v626 = vadd.f32 %v619, %v624
  %v628 = vlaneseq
  %v629 = vshrl.u32 %v628, 7
  %v630 = vsub.s32 0, %v629
  %v631 = vrot.slane %v62, %v630
  %v634 = vsel %vm73, %v626, 0
  %636 = vmatprep.subr.mxu0 0.0
  %637 = vmatpush1.msra.mxu0 0.0
  %638 = vmatprep.subr.mxu0 0.0
  %639 = vmatpush1.msra.mxu0 0.0
  %640 = vmatprep.subr.mxu0 0.0
  %641 = vmatpush1.msra.mxu0 0.0
  %642 = vmatprep.subr.mxu0 0.0
  %643 = vmatpush1.msra.mxu0 0.0
  %644 = vmatprep.subr.mxu0 0.0
  %645 = vmatpush1.msra.mxu0 0.0
  %646 = vmatprep.subr.mxu0 0.0
  %647 = vmatpush1.msra.mxu0 0.0
  %648 = vmatprep.subr.mxu0 0.0
  %649 = vmatpush1.msra.mxu0 0.0
  %650 = vmatprep.subr.mxu0 0.0
  %651 = vmatpush1.msra.mxu0 0.0
  %652 = vmatprep.subr.mxu0 0.0
  %653 = vmatpush1.msra.mxu0 0.0
  %654 = vmatprep.subr.mxu0 0.0
  %655 = vmatpush1.msra.mxu0 0.0
  %656 = vmatprep.subr.mxu0 0.0
  %657 = vmatpush1.msra.mxu0 0.0
  %658 = vmatprep.subr.mxu0 0.0
  %659 = vmatpush1.msra.mxu0 0.0
  %660 = vmatprep.subr.mxu0 0.0
  %661 = vmatpush1.msra.mxu0 %v61
  %662 = vmatprep.subr.mxu0 0.0
  %663 = vmatpush1.msra.mxu0 %v60
  %664 = vmatprep.subr.mxu0 0.0
  %665 = vmatpush1.msra.mxu0 %v59
  %666 = vmatprep.subr.mxu0 0.0
  %667 = vmatpush1.msra.mxu0 %v58
  %668 = vmatprep.subr.mxu0 0.0
  %669 = vmatpush2.msra.mxu0 0.0
  %670 = vmatprep.subr.mxu0 0.0
  %671 = vmatpush2.msra.mxu0 0.0
  %672 = vmatprep.subr.mxu0 0.0
  %673 = vmatpush2.msra.mxu0 0.0
  %674 = vmatprep.subr.mxu0 0.0
  %675 = vmatpush2.msra.mxu0 0.0
  %676 = vmatprep.subr.mxu0 0.0
  %677 = vmatpush2.msra.mxu0 0.0
  %678 = vmatprep.subr.mxu0 0.0
  %679 = vmatpush2.msra.mxu0 0.0
  %680 = vmatprep.subr.mxu0 0.0
  %681 = vmatpush2.msra.mxu0 0.0
  %682 = vmatprep.subr.mxu0 0.0
  %683 = vmatpush2.msra.mxu0 0.0
  %684 = vmatprep.subr.mxu0 0.0
  %685 = vmatpush2.msra.mxu0 0.0
  %686 = vmatprep.subr.mxu0 0.0
  %687 = vmatpush2.msra.mxu0 0.0
  %688 = vmatprep.subr.mxu0 0.0
  %689 = vmatpush2.msra.mxu0 0.0
  %690 = vmatprep.subr.mxu0 0.0
  %691 = vmatpush2.msra.mxu0 0.0
  %692 = vmatprep.subr.mxu0 0.0
  %693 = vmatpush2.msra.mxu0 0.0
  %694 = vmatprep.subr.mxu0 0.0
  %695 = vmatpush2.msra.mxu0 0.0
  %696 = vmatprep.subr.mxu0 0.0
  %697 = vmatpush2.msra.mxu0 0.0
  %698 = vmatprep.subr.mxu0 0.0
  %699 = vmatpush2.msra.mxu0 0.0
  %700 = vmatprep.mubr.f32.mxu0 0.0
  %701 = vmatmul.mubr.f32.gmra.mxu0 %v634
  %v702 = vpop.f32.mrf.mxu0
  %v703 = vadd.f32 %v631, %v702
  %v704 = vpop.f32.mrf.mxu0
  %705 = vdwg.mxu0
  %v706 = vmul.f32 %v703, %v703
  %v707 = vmul.f32 %v703, %v706
  %v708 = vmul.f32 %v707, 0.044715
  %v709 = vadd.f32 %v703, %v708
  %v710 = vmul.f32 %v709, 0.7978846
  %v711 = vtanh.pop %v710
  %v712 = vadd.f32 %v711, 1.0
  %v713 = vmul.f32 %v712, 0.5
  %v714 = vmul.f32 %v703, %v713
  %v716 = vlaneseq
  %v717 = vshrl.u32 %v716, 7
  %v718 = vsub.s32 0, %v717
  %v719 = vrot.slane %v71, %v718
  %vm721 = vcmask 523264
  %v723 = vsel %vm721, %v714, 0
  %725 = vmatprep.subr.mxu0 0.0
  %726 = vmatpush1.msra.mxu0 0.0
  %727 = vmatprep.subr.mxu0 0.0
  %728 = vmatpush1.msra.mxu0 0.0
  %729 = vmatprep.subr.mxu0 0.0
  %730 = vmatpush1.msra.mxu0 0.0
  %731 = vmatprep.subr.mxu0 0.0
  %732 = vmatpush1.msra.mxu0 0.0
  %733 = vmatprep.subr.mxu0 0.0
  %734 = vmatpush1.msra.mxu0 0.0
  %735 = vmatprep.subr.mxu0 0.0
  %736 = vmatpush1.msra.mxu0 0.0
  %737 = vmatprep.subr.mxu0 0.0
  %738 = vmatpush1.msra.mxu0 0.0
  %739 = vmatprep.subr.mxu0 0.0
  %740 = vmatpush1.msra.mxu0 0.0
  %741 = vmatprep.subr.mxu0 0.0
  %742 = vmatpush1.msra.mxu0 %v70
  %743 = vmatprep.subr.mxu0 0.0
  %744 = vmatpush1.msra.mxu0 %v69
  %745 = vmatprep.subr.mxu0 0.0
  %746 = vmatpush1.msra.mxu0 %v68
  %747 = vmatprep.subr.mxu0 0.0
  %748 = vmatpush1.msra.mxu0 %v67
  %749 = vmatprep.subr.mxu0 0.0
  %750 = vmatpush1.msra.mxu0 %v66
  %751 = vmatprep.subr.mxu0 0.0
  %752 = vmatpush1.msra.mxu0 %v65
  %753 = vmatprep.subr.mxu0 0.0
  %754 = vmatpush1.msra.mxu0 %v64
  %755 = vmatprep.subr.mxu0 0.0
  %756 = vmatpush1.msra.mxu0 %v63
  %757 = vmatprep.subr.mxu0 0.0
  %758 = vmatpush2.msra.mxu0 0.0
  %759 = vmatprep.subr.mxu0 0.0
  %760 = vmatpush2.msra.mxu0 0.0
  %761 = vmatprep.subr.mxu0 0.0
  %762 = vmatpush2.msra.mxu0 0.0
  %763 = vmatprep.subr.mxu0 0.0
  %764 = vmatpush2.msra.mxu0 0.0
  %765 = vmatprep.subr.mxu0 0.0
  %766 = vmatpush2.msra.mxu0 0.0
  %767 = vmatprep.subr.mxu0 0.0
  %768 = vmatpush2.msra.mxu0 0.0
  %769 = vmatprep.subr.mxu0 0.0
  %770 = vmatpush2.msra.mxu0 0.0
  %771 = vmatprep.subr.mxu0 0.0
  %772 = vmatpush2.msra.mxu0 0.0
  %773 = vmatprep.subr.mxu0 0.0
  %774 = vmatpush2.msra.mxu0 0.0
  %775 = vmatprep.subr.mxu0 0.0
  %776 = vmatpush2.msra.mxu0 0.0
  %777 = vmatprep.subr.mxu0 0.0
  %778 = vmatpush2.msra.mxu0 0.0
  %779 = vmatprep.subr.mxu0 0.0
  %780 = vmatpush2.msra.mxu0 0.0
  %781 = vmatprep.subr.mxu0 0.0
  %782 = vmatpush2.msra.mxu0 0.0
  %783 = vmatprep.subr.mxu0 0.0
  %784 = vmatpush2.msra.mxu0 0.0
  %785 = vmatprep.subr.mxu0 0.0
  %786 = vmatpush2.msra.mxu0 0.0
  %787 = vmatprep.subr.mxu0 0.0
  %788 = vmatpush2.msra.mxu0 0.0
  %789 = vmatprep.mubr.f32.mxu0 0.0
  %790 = vmatmul.mubr.f32.gmra.mxu0 %v723
  %v791 = vpop.f32.mrf.mxu0
  %v792 = vadd.f32 %v719, %v791
  %v793 = vpop.f32.mrf.mxu0
  %794 = vdwg.mxu0
  %v795 = vadd.f32 %v599, %v792
  %796 = vst.msk [vmem:[%s13] sm:$0xff] %vm73, %v795
  %s797 = scalar_lea.vmem %s0, 8
  %v798 = vld [vmem:[%s797] sm:$0xff]
  %v799 = vsel %vm73, %v798, 0.0
  %800 = vadd.xlane.f32.xlu0 %v799
  %v801 = vpop.xlane.xlu0 %800
  %v802 = vmul.f32 %v801, %v77
  %v803 = vsub.f32 %v798, %v802
  %v804 = vmul.f32 %v803, %v803
  %v805 = vsel %vm73, %v804, 0.0
  %806 = vadd.xlane.f32.xlu0 %v805
  %v807 = vpop.xlane.xlu0 %806
  %v808 = vmul.f32 %v807, %v77
  %v809 = vadd.f32 %v808, 1e-06
  %v810 = vrsqrt.pop %v809
  %v811 = vmul.f32 %v803, %v810
  %v812 = vmul.f32 %v811, %v92
  %v813 = vadd.f32 %v812, %v99
  %v815 = vsel %vm73, %v813, 0
  %817 = vmatprep.subr.mxu0 0.0
  %818 = vmatpush1.msra.mxu0 0.0
  %819 = vmatprep.subr.mxu0 0.0
  %820 = vmatpush1.msra.mxu0 0.0
  %821 = vmatprep.subr.mxu0 0.0
  %822 = vmatpush1.msra.mxu0 0.0
  %823 = vmatprep.subr.mxu0 0.0
  %824 = vmatpush1.msra.mxu0 0.0
  %825 = vmatprep.subr.mxu0 0.0
  %826 = vmatpush1.msra.mxu0 0.0
  %827 = vmatprep.subr.mxu0 0.0
  %828 = vmatpush1.msra.mxu0 0.0
  %829 = vmatprep.subr.mxu0 0.0
  %830 = vmatpush1.msra.mxu0 0.0
  %831 = vmatprep.subr.mxu0 0.0
  %832 = vmatpush1.msra.mxu0 0.0
  %833 = vmatprep.subr.mxu0 0.0
  %834 = vmatpush1.msra.mxu0 0.0
  %835 = vmatprep.subr.mxu0 0.0
  %836 = vmatpush1.msra.mxu0 0.0
  %837 = vmatprep.subr.mxu0 0.0
  %838 = vmatpush1.msra.mxu0 0.0
  %839 = vmatprep.subr.mxu0 0.0
  %840 = vmatpush1.msra.mxu0 0.0
  %841 = vmatprep.subr.mxu0 0.0
  %842 = vmatpush1.msra.mxu0 %v49
  %843 = vmatprep.subr.mxu0 0.0
  %844 = vmatpush1.msra.mxu0 %v48
  %845 = vmatprep.subr.mxu0 0.0
  %846 = vmatpush1.msra.mxu0 %v47
  %847 = vmatprep.subr.mxu0 0.0
  %848 = vmatpush1.msra.mxu0 %v46
  %849 = vmatprep.subr.mxu0 0.0
  %850 = vmatpush2.msra.mxu0 0.0
  %851 = vmatprep.subr.mxu0 0.0
  %852 = vmatpush2.msra.mxu0 0.0
  %853 = vmatprep.subr.mxu0 0.0
  %854 = vmatpush2.msra.mxu0 0.0
  %855 = vmatprep.subr.mxu0 0.0
  %856 = vmatpush2.msra.mxu0 0.0
  %857 = vmatprep.subr.mxu0 0.0
  %858 = vmatpush2.msra.mxu0 0.0
  %859 = vmatprep.subr.mxu0 0.0
  %860 = vmatpush2.msra.mxu0 0.0
  %861 = vmatprep.subr.mxu0 0.0
  %862 = vmatpush2.msra.mxu0 0.0
  %863 = vmatprep.subr.mxu0 0.0
  %864 = vmatpush2.msra.mxu0 0.0
  %865 = vmatprep.subr.mxu0 0.0
  %866 = vmatpush2.msra.mxu0 0.0
  %867 = vmatprep.subr.mxu0 0.0
  %868 = vmatpush2.msra.mxu0 0.0
  %869 = vmatprep.subr.mxu0 0.0
  %870 = vmatpush2.msra.mxu0 0.0
  %871 = vmatprep.subr.mxu0 0.0
  %872 = vmatpush2.msra.mxu0 0.0
  %873 = vmatprep.subr.mxu0 0.0
  %874 = vmatpush2.msra.mxu0 0.0
  %875 = vmatprep.subr.mxu0 0.0
  %876 = vmatpush2.msra.mxu0 0.0
  %877 = vmatprep.subr.mxu0 0.0
  %878 = vmatpush2.msra.mxu0 0.0
  %879 = vmatprep.subr.mxu0 0.0
  %880 = vmatpush2.msra.mxu0 0.0
  %881 = vmatprep.mubr.f32.mxu0 0.0
  %882 = vmatmul.mubr.f32.gmra.mxu0 %v815
  %v883 = vpop.f32.mrf.mxu0
  %v884 = vadd.f32 %v106, %v883
  %v885 = vpop.f32.mrf.mxu0
  %886 = vdwg.mxu0
  %888 = vrot.lane.b32.xlu0 %v884, 96
  %v889 = vpop.permute.xlu0 %888
  %v890 = vsel %vm184, %v884, 0
  %v892 = vsel %vm184, %v889, 0
  %894 = vmatprep.subr.mxu0 0.0
  %895 = vmatpush1.xpose.msra.mxu0 0.0
  %896 = vmatprep.subr.mxu0 0.0
  %897 = vmatpush1.xpose.msra.mxu0 0.0
  %898 = vmatprep.subr.mxu0 0.0
  %899 = vmatpush1.xpose.msra.mxu0 0.0
  %900 = vmatprep.subr.mxu0 0.0
  %901 = vmatpush1.xpose.msra.mxu0 0.0
  %902 = vmatprep.subr.mxu0 0.0
  %903 = vmatpush1.xpose.msra.mxu0 0.0
  %904 = vmatprep.subr.mxu0 0.0
  %905 = vmatpush1.xpose.msra.mxu0 0.0
  %906 = vmatprep.subr.mxu0 0.0
  %907 = vmatpush1.xpose.msra.mxu0 0.0
  %908 = vmatprep.subr.mxu0 0.0
  %909 = vmatpush1.xpose.msra.mxu0 0.0
  %910 = vmatprep.subr.mxu0 0.0
  %911 = vmatpush1.xpose.msra.mxu0 0.0
  %912 = vmatprep.subr.mxu0 0.0
  %913 = vmatpush1.xpose.msra.mxu0 0.0
  %914 = vmatprep.subr.mxu0 0.0
  %915 = vmatpush1.xpose.msra.mxu0 0.0
  %916 = vmatprep.subr.mxu0 0.0
  %917 = vmatpush1.xpose.msra.mxu0 0.0
  %918 = vmatprep.subr.mxu0 0.0
  %919 = vmatpush1.xpose.msra.mxu0 0.0
  %920 = vmatprep.subr.mxu0 0.0
  %921 = vmatpush1.xpose.msra.mxu0 0.0
  %922 = vmatprep.subr.mxu0 0.0
  %923 = vmatpush1.xpose.msra.mxu0 0.0
  %924 = vmatprep.subr.mxu0 0.0
  %925 = vmatpush1.xpose.msra.mxu0 %v892
  %926 = vmatprep.subr.mxu0 0.0
  %927 = vmatpush2.xpose.msra.mxu0 0.0
  %928 = vmatprep.subr.mxu0 0.0
  %929 = vmatpush2.xpose.msra.mxu0 0.0
  %930 = vmatprep.subr.mxu0 0.0
  %931 = vmatpush2.xpose.msra.mxu0 0.0
  %932 = vmatprep.subr.mxu0 0.0
  %933 = vmatpush2.xpose.msra.mxu0 0.0
  %934 = vmatprep.subr.mxu0 0.0
  %935 = vmatpush2.xpose.msra.mxu0 0.0
  %936 = vmatprep.subr.mxu0 0.0
  %937 = vmatpush2.xpose.msra.mxu0 0.0
  %938 = vmatprep.subr.mxu0 0.0
  %939 = vmatpush2.xpose.msra.mxu0 0.0
  %940 = vmatprep.subr.mxu0 0.0
  %941 = vmatpush2.xpose.msra.mxu0 0.0
  %942 = vmatprep.subr.mxu0 0.0
  %943 = vmatpush2.xpose.msra.mxu0 0.0
  %944 = vmatprep.subr.mxu0 0.0
  %945 = vmatpush2.xpose.msra.mxu0 0.0
  %946 = vmatprep.subr.mxu0 0.0
  %947 = vmatpush2.xpose.msra.mxu0 0.0
  %948 = vmatprep.subr.mxu0 0.0
  %949 = vmatpush2.xpose.msra.mxu0 0.0
  %950 = vmatprep.subr.mxu0 0.0
  %951 = vmatpush2.xpose.msra.mxu0 0.0
  %952 = vmatprep.subr.mxu0 0.0
  %953 = vmatpush2.xpose.msra.mxu0 0.0
  %954 = vmatprep.subr.mxu0 0.0
  %955 = vmatpush2.xpose.msra.mxu0 0.0
  %956 = vmatprep.subr.mxu0 0.0
  %957 = vmatpush2.xpose.msra.mxu0 0.0
  %958 = vmatprep.mubr.f32.mxu0 0.0
  %959 = vmatmul.mubr.f32.gmra.mxu0 %v890
  %v960 = vpop.f32.mrf.mxu0
  %v961 = vadd.f32 0.0, %v960
  %v962 = vpop.f32.mrf.mxu0
  %963 = vdwg.mxu0
  %v964 = vmul.f32 %v961, 0.25
  %v965 = vsel %vm260, %v964, -inf
  %966 = vmax.xlane.f32.xlu0 %v965
  %v967 = vpop.xlane.xlu0 %966
  %v968 = vsub.f32 %v964, %v967
  %v969 = vmul.f32 %v968, 1.442695
  %v970 = vpow.pop %v969
  %v971 = vsel %vm260, %v970, 0.0
  %972 = vadd.xlane.f32.xlu0 %v971
  %v973 = vpop.xlane.xlu0 %972
  %v974 = vrcp.pop %v973
  %v975 = vmul.f32 %v970, %v974
  %976 = vrot.lane.b32.xlu0 %v884, 64
  %v977 = vpop.permute.xlu0 %976
  %v980 = vsel %vm260, %v975, 0
  %982 = vmatprep.subr.mxu0 0.0
  %983 = vmatpush1.msra.mxu0 0.0
  %984 = vmatprep.subr.mxu0 0.0
  %985 = vmatpush1.msra.mxu0 0.0
  %986 = vmatprep.subr.mxu0 0.0
  %987 = vmatpush1.msra.mxu0 0.0
  %988 = vmatprep.subr.mxu0 0.0
  %989 = vmatpush1.msra.mxu0 0.0
  %990 = vmatprep.subr.mxu0 0.0
  %991 = vmatpush1.msra.mxu0 0.0
  %992 = vmatprep.subr.mxu0 0.0
  %993 = vmatpush1.msra.mxu0 0.0
  %994 = vmatprep.subr.mxu0 0.0
  %995 = vmatpush1.msra.mxu0 0.0
  %996 = vmatprep.subr.mxu0 0.0
  %997 = vmatpush1.msra.mxu0 0.0
  %998 = vmatprep.subr.mxu0 0.0
  %999 = vmatpush1.msra.mxu0 0.0
  %1000 = vmatprep.subr.mxu0 0.0
  %1001 = vmatpush1.msra.mxu0 0.0
  %1002 = vmatprep.subr.mxu0 0.0
  %1003 = vmatpush1.msra.mxu0 0.0
  %1004 = vmatprep.subr.mxu0 0.0
  %1005 = vmatpush1.msra.mxu0 0.0
  %1006 = vmatprep.subr.mxu0 0.0
  %1007 = vmatpush1.msra.mxu0 0.0
  %1008 = vmatprep.subr.mxu0 0.0
  %1009 = vmatpush1.msra.mxu0 0.0
  %1010 = vmatprep.subr.mxu0 0.0
  %1011 = vmatpush1.msra.mxu0 0.0
  %1012 = vmatprep.subr.mxu0 0.0
  %1013 = vmatpush1.msra.mxu0 %v977
  %1014 = vmatprep.subr.mxu0 0.0
  %1015 = vmatpush2.msra.mxu0 0.0
  %1016 = vmatprep.subr.mxu0 0.0
  %1017 = vmatpush2.msra.mxu0 0.0
  %1018 = vmatprep.subr.mxu0 0.0
  %1019 = vmatpush2.msra.mxu0 0.0
  %1020 = vmatprep.subr.mxu0 0.0
  %1021 = vmatpush2.msra.mxu0 0.0
  %1022 = vmatprep.subr.mxu0 0.0
  %1023 = vmatpush2.msra.mxu0 0.0
  %1024 = vmatprep.subr.mxu0 0.0
  %1025 = vmatpush2.msra.mxu0 0.0
  %1026 = vmatprep.subr.mxu0 0.0
  %1027 = vmatpush2.msra.mxu0 0.0
  %1028 = vmatprep.subr.mxu0 0.0
  %1029 = vmatpush2.msra.mxu0 0.0
  %1030 = vmatprep.subr.mxu0 0.0
  %1031 = vmatpush2.msra.mxu0 0.0
  %1032 = vmatprep.subr.mxu0 0.0
  %1033 = vmatpush2.msra.mxu0 0.0
  %1034 = vmatprep.subr.mxu0 0.0
  %1035 = vmatpush2.msra.mxu0 0.0
  %1036 = vmatprep.subr.mxu0 0.0
  %1037 = vmatpush2.msra.mxu0 0.0
  %1038 = vmatprep.subr.mxu0 0.0
  %1039 = vmatpush2.msra.mxu0 0.0
  %1040 = vmatprep.subr.mxu0 0.0
  %1041 = vmatpush2.msra.mxu0 0.0
  %1042 = vmatprep.subr.mxu0 0.0
  %1043 = vmatpush2.msra.mxu0 0.0
  %1044 = vmatprep.subr.mxu0 0.0
  %1045 = vmatpush2.msra.mxu0 0.0
  %1046 = vmatprep.mubr.f32.mxu0 0.0
  %1047 = vmatmul.mubr.f32.gmra.mxu0 %v980
  %v1048 = vpop.f32.mrf.mxu0
  %v1049 = vadd.f32 0.0, %v1048
  %v1050 = vpop.f32.mrf.mxu0
  %1051 = vdwg.mxu0
  %1052 = vrot.lane.b32.xlu0 %v884, 112
  %v1053 = vpop.permute.xlu0 %1052
  %1054 = vrot.lane.b32.xlu0 %v884, 80
  %v1055 = vpop.permute.xlu0 %1054
  %v1056 = vsel %vm184, %v1053, 0
  %v1058 = vsel %vm184, %v1055, 0
  %1060 = vmatprep.subr.mxu0 0.0
  %1061 = vmatpush1.xpose.msra.mxu0 0.0
  %1062 = vmatprep.subr.mxu0 0.0
  %1063 = vmatpush1.xpose.msra.mxu0 0.0
  %1064 = vmatprep.subr.mxu0 0.0
  %1065 = vmatpush1.xpose.msra.mxu0 0.0
  %1066 = vmatprep.subr.mxu0 0.0
  %1067 = vmatpush1.xpose.msra.mxu0 0.0
  %1068 = vmatprep.subr.mxu0 0.0
  %1069 = vmatpush1.xpose.msra.mxu0 0.0
  %1070 = vmatprep.subr.mxu0 0.0
  %1071 = vmatpush1.xpose.msra.mxu0 0.0
  %1072 = vmatprep.subr.mxu0 0.0
  %1073 = vmatpush1.xpose.msra.mxu0 0.0
  %1074 = vmatprep.subr.mxu0 0.0
  %1075 = vmatpush1.xpose.msra.mxu0 0.0
  %1076 = vmatprep.subr.mxu0 0.0
  %1077 = vmatpush1.xpose.msra.mxu0 0.0
  %1078 = vmatprep.subr.mxu0 0.0
  %1079 = vmatpush1.xpose.msra.mxu0 0.0
  %1080 = vmatprep.subr.mxu0 0.0
  %1081 = vmatpush1.xpose.msra.mxu0 0.0
  %1082 = vmatprep.subr.mxu0 0.0
  %1083 = vmatpush1.xpose.msra.mxu0 0.0
  %1084 = vmatprep.subr.mxu0 0.0
  %1085 = vmatpush1.xpose.msra.mxu0 0.0
  %1086 = vmatprep.subr.mxu0 0.0
  %1087 = vmatpush1.xpose.msra.mxu0 0.0
  %1088 = vmatprep.subr.mxu0 0.0
  %1089 = vmatpush1.xpose.msra.mxu0 0.0
  %1090 = vmatprep.subr.mxu0 0.0
  %1091 = vmatpush1.xpose.msra.mxu0 %v1058
  %1092 = vmatprep.subr.mxu0 0.0
  %1093 = vmatpush2.xpose.msra.mxu0 0.0
  %1094 = vmatprep.subr.mxu0 0.0
  %1095 = vmatpush2.xpose.msra.mxu0 0.0
  %1096 = vmatprep.subr.mxu0 0.0
  %1097 = vmatpush2.xpose.msra.mxu0 0.0
  %1098 = vmatprep.subr.mxu0 0.0
  %1099 = vmatpush2.xpose.msra.mxu0 0.0
  %1100 = vmatprep.subr.mxu0 0.0
  %1101 = vmatpush2.xpose.msra.mxu0 0.0
  %1102 = vmatprep.subr.mxu0 0.0
  %1103 = vmatpush2.xpose.msra.mxu0 0.0
  %1104 = vmatprep.subr.mxu0 0.0
  %1105 = vmatpush2.xpose.msra.mxu0 0.0
  %1106 = vmatprep.subr.mxu0 0.0
  %1107 = vmatpush2.xpose.msra.mxu0 0.0
  %1108 = vmatprep.subr.mxu0 0.0
  %1109 = vmatpush2.xpose.msra.mxu0 0.0
  %1110 = vmatprep.subr.mxu0 0.0
  %1111 = vmatpush2.xpose.msra.mxu0 0.0
  %1112 = vmatprep.subr.mxu0 0.0
  %1113 = vmatpush2.xpose.msra.mxu0 0.0
  %1114 = vmatprep.subr.mxu0 0.0
  %1115 = vmatpush2.xpose.msra.mxu0 0.0
  %1116 = vmatprep.subr.mxu0 0.0
  %1117 = vmatpush2.xpose.msra.mxu0 0.0
  %1118 = vmatprep.subr.mxu0 0.0
  %1119 = vmatpush2.xpose.msra.mxu0 0.0
  %1120 = vmatprep.subr.mxu0 0.0
  %1121 = vmatpush2.xpose.msra.mxu0 0.0
  %1122 = vmatprep.subr.mxu0 0.0
  %1123 = vmatpush2.xpose.msra.mxu0 0.0
  %1124 = vmatprep.mubr.f32.mxu0 0.0
  %1125 = vmatmul.mubr.f32.gmra.mxu0 %v1056
  %v1126 = vpop.f32.mrf.mxu0
  %v1127 = vadd.f32 0.0, %v1126
  %v1128 = vpop.f32.mrf.mxu0
  %1129 = vdwg.mxu0
  %v1130 = vmul.f32 %v1127, 0.25
  %v1131 = vsel %vm260, %v1130, -inf
  %1132 = vmax.xlane.f32.xlu0 %v1131
  %v1133 = vpop.xlane.xlu0 %1132
  %v1134 = vsub.f32 %v1130, %v1133
  %v1135 = vmul.f32 %v1134, 1.442695
  %v1136 = vpow.pop %v1135
  %v1137 = vsel %vm260, %v1136, 0.0
  %1138 = vadd.xlane.f32.xlu0 %v1137
  %v1139 = vpop.xlane.xlu0 %1138
  %v1140 = vrcp.pop %v1139
  %v1141 = vmul.f32 %v1136, %v1140
  %1142 = vrot.lane.b32.xlu0 %v884, 48
  %v1143 = vpop.permute.xlu0 %1142
  %v1146 = vsel %vm260, %v1141, 0
  %1148 = vmatprep.subr.mxu0 0.0
  %1149 = vmatpush1.msra.mxu0 0.0
  %1150 = vmatprep.subr.mxu0 0.0
  %1151 = vmatpush1.msra.mxu0 0.0
  %1152 = vmatprep.subr.mxu0 0.0
  %1153 = vmatpush1.msra.mxu0 0.0
  %1154 = vmatprep.subr.mxu0 0.0
  %1155 = vmatpush1.msra.mxu0 0.0
  %1156 = vmatprep.subr.mxu0 0.0
  %1157 = vmatpush1.msra.mxu0 0.0
  %1158 = vmatprep.subr.mxu0 0.0
  %1159 = vmatpush1.msra.mxu0 0.0
  %1160 = vmatprep.subr.mxu0 0.0
  %1161 = vmatpush1.msra.mxu0 0.0
  %1162 = vmatprep.subr.mxu0 0.0
  %1163 = vmatpush1.msra.mxu0 0.0
  %1164 = vmatprep.subr.mxu0 0.0
  %1165 = vmatpush1.msra.mxu0 0.0
  %1166 = vmatprep.subr.mxu0 0.0
  %1167 = vmatpush1.msra.mxu0 0.0
  %1168 = vmatprep.subr.mxu0 0.0
  %1169 = vmatpush1.msra.mxu0 0.0
  %1170 = vmatprep.subr.mxu0 0.0
  %1171 = vmatpush1.msra.mxu0 0.0
  %1172 = vmatprep.subr.mxu0 0.0
  %1173 = vmatpush1.msra.mxu0 0.0
  %1174 = vmatprep.subr.mxu0 0.0
  %1175 = vmatpush1.msra.mxu0 0.0
  %1176 = vmatprep.subr.mxu0 0.0
  %1177 = vmatpush1.msra.mxu0 0.0
  %1178 = vmatprep.subr.mxu0 0.0
  %1179 = vmatpush1.msra.mxu0 %v1143
  %1180 = vmatprep.subr.mxu0 0.0
  %1181 = vmatpush2.msra.mxu0 0.0
  %1182 = vmatprep.subr.mxu0 0.0
  %1183 = vmatpush2.msra.mxu0 0.0
  %1184 = vmatprep.subr.mxu0 0.0
  %1185 = vmatpush2.msra.mxu0 0.0
  %1186 = vmatprep.subr.mxu0 0.0
  %1187 = vmatpush2.msra.mxu0 0.0
  %1188 = vmatprep.subr.mxu0 0.0
  %1189 = vmatpush2.msra.mxu0 0.0
  %1190 = vmatprep.subr.mxu0 0.0
  %1191 = vmatpush2.msra.mxu0 0.0
  %1192 = vmatprep.subr.mxu0 0.0
  %1193 = vmatpush2.msra.mxu0 0.0
  %1194 = vmatprep.subr.mxu0 0.0
  %1195 = vmatpush2.msra.mxu0 0.0
  %1196 = vmatprep.subr.mxu0 0.0
  %1197 = vmatpush2.msra.mxu0 0.0
  %1198 = vmatprep.subr.mxu0 0.0
  %1199 = vmatpush2.msra.mxu0 0.0
  %1200 = vmatprep.subr.mxu0 0.0
  %1201 = vmatpush2.msra.mxu0 0.0
  %1202 = vmatprep.subr.mxu0 0.0
  %1203 = vmatpush2.msra.mxu0 0.0
  %1204 = vmatprep.subr.mxu0 0.0
  %1205 = vmatpush2.msra.mxu0 0.0
  %1206 = vmatprep.subr.mxu0 0.0
  %1207 = vmatpush2.msra.mxu0 0.0
  %1208 = vmatprep.subr.mxu0 0.0
  %1209 = vmatpush2.msra.mxu0 0.0
  %1210 = vmatprep.subr.mxu0 0.0
  %1211 = vmatpush2.msra.mxu0 0.0
  %1212 = vmatprep.mubr.f32.mxu0 0.0
  %1213 = vmatmul.mubr.f32.gmra.mxu0 %v1146
  %v1214 = vpop.f32.mrf.mxu0
  %v1215 = vadd.f32 0.0, %v1214
  %v1216 = vpop.f32.mrf.mxu0
  %1217 = vdwg.mxu0
  %1219 = vrot.lane.b32.xlu0 %v1215, 16
  %v1220 = vpop.permute.xlu0 %1219
  %v1222 = vsel %vm184, %v1049, %v1220
  %v1224 = vsel %vm73, %v1222, 0
  %1226 = vmatprep.subr.mxu0 0.0
  %1227 = vmatpush1.msra.mxu0 0.0
  %1228 = vmatprep.subr.mxu0 0.0
  %1229 = vmatpush1.msra.mxu0 0.0
  %1230 = vmatprep.subr.mxu0 0.0
  %1231 = vmatpush1.msra.mxu0 0.0
  %1232 = vmatprep.subr.mxu0 0.0
  %1233 = vmatpush1.msra.mxu0 0.0
  %1234 = vmatprep.subr.mxu0 0.0
  %1235 = vmatpush1.msra.mxu0 0.0
  %1236 = vmatprep.subr.mxu0 0.0
  %1237 = vmatpush1.msra.mxu0 0.0
  %1238 = vmatprep.subr.mxu0 0.0
  %1239 = vmatpush1.msra.mxu0 0.0
  %1240 = vmatprep.subr.mxu0 0.0
  %1241 = vmatpush1.msra.mxu0 0.0
  %1242 = vmatprep.subr.mxu0 0.0
  %1243 = vmatpush1.msra.mxu0 0.0
  %1244 = vmatprep.subr.mxu0 0.0
  %1245 = vmatpush1.msra.mxu0 0.0
  %1246 = vmatprep.subr.mxu0 0.0
  %1247 = vmatpush1.msra.mxu0 0.0
  %1248 = vmatprep.subr.mxu0 0.0
  %1249 = vmatpush1.msra.mxu0 0.0
  %1250 = vmatprep.subr.mxu0 0.0
  %1251 = vmatpush1.msra.mxu0 %v54
  %1252 = vmatprep.subr.mxu0 0.0
  %1253 = vmatpush1.msra.mxu0 %v53
  %1254 = vmatprep.subr.mxu0 0.0
  %1255 = vmatpush1.msra.mxu0 %v52
  %1256 = vmatprep.subr.mxu0 0.0
  %1257 = vmatpush1.msra.mxu0 %v51
  %1258 = vmatprep.subr.mxu0 0.0
  %1259 = vmatpush2.msra.mxu0 0.0
  %1260 = vmatprep.subr.mxu0 0.0
  %1261 = vmatpush2.msra.mxu0 0.0
  %1262 = vmatprep.subr.mxu0 0.0
  %1263 = vmatpush2.msra.mxu0 0.0
  %1264 = vmatprep.subr.mxu0 0.0
  %1265 = vmatpush2.msra.mxu0 0.0
  %1266 = vmatprep.subr.mxu0 0.0
  %1267 = vmatpush2.msra.mxu0 0.0
  %1268 = vmatprep.subr.mxu0 0.0
  %1269 = vmatpush2.msra.mxu0 0.0
  %1270 = vmatprep.subr.mxu0 0.0
  %1271 = vmatpush2.msra.mxu0 0.0
  %1272 = vmatprep.subr.mxu0 0.0
  %1273 = vmatpush2.msra.mxu0 0.0
  %1274 = vmatprep.subr.mxu0 0.0
  %1275 = vmatpush2.msra.mxu0 0.0
  %1276 = vmatprep.subr.mxu0 0.0
  %1277 = vmatpush2.msra.mxu0 0.0
  %1278 = vmatprep.subr.mxu0 0.0
  %1279 = vmatpush2.msra.mxu0 0.0
  %1280 = vmatprep.subr.mxu0 0.0
  %1281 = vmatpush2.msra.mxu0 0.0
  %1282 = vmatprep.subr.mxu0 0.0
  %1283 = vmatpush2.msra.mxu0 0.0
  %1284 = vmatprep.subr.mxu0 0.0
  %1285 = vmatpush2.msra.mxu0 0.0
  %1286 = vmatprep.subr.mxu0 0.0
  %1287 = vmatpush2.msra.mxu0 0.0
  %1288 = vmatprep.subr.mxu0 0.0
  %1289 = vmatpush2.msra.mxu0 0.0
  %1290 = vmatprep.mubr.f32.mxu0 0.0
  %1291 = vmatmul.mubr.f32.gmra.mxu0 %v1224
  %v1292 = vpop.f32.mrf.mxu0
  %v1293 = vadd.f32 0.0, %v1292
  %v1294 = vpop.f32.mrf.mxu0
  %1295 = vdwg.mxu0
  %v1296 = vadd.f32 %v798, %v1293
  %v1297 = vadd.f32 %v1296, %v597
  %v1298 = vsel %vm73, %v1297, 0.0
  %1299 = vadd.xlane.f32.xlu0 %v1298
  %v1300 = vpop.xlane.xlu0 %1299
  %v1301 = vmul.f32 %v1300, %v77
  %v1302 = vsub.f32 %v1297, %v1301
  %v1303 = vmul.f32 %v1302, %v1302
  %v1304 = vsel %vm73, %v1303, 0.0
  %1305 = vadd.xlane.f32.xlu0 %v1304
  %v1306 = vpop.xlane.xlu0 %1305
  %v1307 = vmul.f32 %v1306, %v77
  %v1308 = vadd.f32 %v1307, 1e-06
  %v1309 = vrsqrt.pop %v1308
  %v1310 = vmul.f32 %v1302, %v1309
  %v1311 = vmul.f32 %v1310, %v617
  %v1312 = vadd.f32 %v1311, %v624
  %v1314 = vsel %vm73, %v1312, 0
  %1316 = vmatprep.subr.mxu0 0.0
  %1317 = vmatpush1.msra.mxu0 0.0
  %1318 = vmatprep.subr.mxu0 0.0
  %1319 = vmatpush1.msra.mxu0 0.0
  %1320 = vmatprep.subr.mxu0 0.0
  %1321 = vmatpush1.msra.mxu0 0.0
  %1322 = vmatprep.subr.mxu0 0.0
  %1323 = vmatpush1.msra.mxu0 0.0
  %1324 = vmatprep.subr.mxu0 0.0
  %1325 = vmatpush1.msra.mxu0 0.0
  %1326 = vmatprep.subr.mxu0 0.0
  %1327 = vmatpush1.msra.mxu0 0.0
  %1328 = vmatprep.subr.mxu0 0.0
  %1329 = vmatpush1.msra.mxu0 0.0
  %1330 = vmatprep.subr.mxu0 0.0
  %1331 = vmatpush1.msra.mxu0 0.0
  %1332 = vmatprep.subr.mxu0 0.0
  %1333 = vmatpush1.msra.mxu0 0.0
  %1334 = vmatprep.subr.mxu0 0.0
  %1335 = vmatpush1.msra.mxu0 0.0
  %1336 = vmatprep.subr.mxu0 0.0
  %1337 = vmatpush1.msra.mxu0 0.0
  %1338 = vmatprep.subr.mxu0 0.0
  %1339 = vmatpush1.msra.mxu0 0.0
  %1340 = vmatprep.subr.mxu0 0.0
  %1341 = vmatpush1.msra.mxu0 %v61
  %1342 = vmatprep.subr.mxu0 0.0
  %1343 = vmatpush1.msra.mxu0 %v60
  %1344 = vmatprep.subr.mxu0 0.0
  %1345 = vmatpush1.msra.mxu0 %v59
  %1346 = vmatprep.subr.mxu0 0.0
  %1347 = vmatpush1.msra.mxu0 %v58
  %1348 = vmatprep.subr.mxu0 0.0
  %1349 = vmatpush2.msra.mxu0 0.0
  %1350 = vmatprep.subr.mxu0 0.0
  %1351 = vmatpush2.msra.mxu0 0.0
  %1352 = vmatprep.subr.mxu0 0.0
  %1353 = vmatpush2.msra.mxu0 0.0
  %1354 = vmatprep.subr.mxu0 0.0
  %1355 = vmatpush2.msra.mxu0 0.0
  %1356 = vmatprep.subr.mxu0 0.0
  %1357 = vmatpush2.msra.mxu0 0.0
  %1358 = vmatprep.subr.mxu0 0.0
  %1359 = vmatpush2.msra.mxu0 0.0
  %1360 = vmatprep.subr.mxu0 0.0
  %1361 = vmatpush2.msra.mxu0 0.0
  %1362 = vmatprep.subr.mxu0 0.0
  %1363 = vmatpush2.msra.mxu0 0.0
  %1364 = vmatprep.subr.mxu0 0.0
  %1365 = vmatpush2.msra.mxu0 0.0
  %1366 = vmatprep.subr.mxu0 0.0
  %1367 = vmatpush2.msra.mxu0 0.0
  %1368 = vmatprep.subr.mxu0 0.0
  %1369 = vmatpush2.msra.mxu0 0.0
  %1370 = vmatprep.subr.mxu0 0.0
  %1371 = vmatpush2.msra.mxu0 0.0
  %1372 = vmatprep.subr.mxu0 0.0
  %1373 = vmatpush2.msra.mxu0 0.0
  %1374 = vmatprep.subr.mxu0 0.0
  %1375 = vmatpush2.msra.mxu0 0.0
  %1376 = vmatprep.subr.mxu0 0.0
  %1377 = vmatpush2.msra.mxu0 0.0
  %1378 = vmatprep.subr.mxu0 0.0
  %1379 = vmatpush2.msra.mxu0 0.0
  %1380 = vmatprep.mubr.f32.mxu0 0.0
  %1381 = vmatmul.mubr.f32.gmra.mxu0 %v1314
  %v1382 = vpop.f32.mrf.mxu0
  %v1383 = vadd.f32 %v631, %v1382
  %v1384 = vpop.f32.mrf.mxu0
  %1385 = vdwg.mxu0
  %v1386 = vmul.f32 %v1383, %v1383
  %v1387 = vmul.f32 %v1383, %v1386
  %v1388 = vmul.f32 %v1387, 0.044715
  %v1389 = vadd.f32 %v1383, %v1388
  %v1390 = vmul.f32 %v1389, 0.7978846
  %v1391 = vtanh.pop %v1390
  %v1392 = vadd.f32 %v1391, 1.0
  %v1393 = vmul.f32 %v1392, 0.5
  %v1394 = vmul.f32 %v1383, %v1393
  %v1396 = vsel %vm721, %v1394, 0
  %1398 = vmatprep.subr.mxu0 0.0
  %1399 = vmatpush1.msra.mxu0 0.0
  %1400 = vmatprep.subr.mxu0 0.0
  %1401 = vmatpush1.msra.mxu0 0.0
  %1402 = vmatprep.subr.mxu0 0.0
  %1403 = vmatpush1.msra.mxu0 0.0
  %1404 = vmatprep.subr.mxu0 0.0
  %1405 = vmatpush1.msra.mxu0 0.0
  %1406 = vmatprep.subr.mxu0 0.0
  %1407 = vmatpush1.msra.mxu0 0.0
  %1408 = vmatprep.subr.mxu0 0.0
  %1409 = vmatpush1.msra.mxu0 0.0
  %1410 = vmatprep.subr.mxu0 0.0
  %1411 = vmatpush1.msra.mxu0 0.0
  %1412 = vmatprep.subr.mxu0 0.0
  %1413 = vmatpush1.msra.mxu0 0.0
  %1414 = vmatprep.subr.mxu0 0.0
  %1415 = vmatpush1.msra.mxu0 %v70
  %1416 = vmatprep.subr.mxu0 0.0
  %1417 = vmatpush1.msra.mxu0 %v69
  %1418 = vmatprep.subr.mxu0 0.0
  %1419 = vmatpush1.msra.mxu0 %v68
  %1420 = vmatprep.subr.mxu0 0.0
  %1421 = vmatpush1.msra.mxu0 %v67
  %1422 = vmatprep.subr.mxu0 0.0
  %1423 = vmatpush1.msra.mxu0 %v66
  %1424 = vmatprep.subr.mxu0 0.0
  %1425 = vmatpush1.msra.mxu0 %v65
  %1426 = vmatprep.subr.mxu0 0.0
  %1427 = vmatpush1.msra.mxu0 %v64
  %1428 = vmatprep.subr.mxu0 0.0
  %1429 = vmatpush1.msra.mxu0 %v63
  %1430 = vmatprep.subr.mxu0 0.0
  %1431 = vmatpush2.msra.mxu0 0.0
  %1432 = vmatprep.subr.mxu0 0.0
  %1433 = vmatpush2.msra.mxu0 0.0
  %1434 = vmatprep.subr.mxu0 0.0
  %1435 = vmatpush2.msra.mxu0 0.0
  %1436 = vmatprep.subr.mxu0 0.0
  %1437 = vmatpush2.msra.mxu0 0.0
  %1438 = vmatprep.subr.mxu0 0.0
  %1439 = vmatpush2.msra.mxu0 0.0
  %1440 = vmatprep.subr.mxu0 0.0
  %1441 = vmatpush2.msra.mxu0 0.0
  %1442 = vmatprep.subr.mxu0 0.0
  %1443 = vmatpush2.msra.mxu0 0.0
  %1444 = vmatprep.subr.mxu0 0.0
  %1445 = vmatpush2.msra.mxu0 0.0
  %1446 = vmatprep.subr.mxu0 0.0
  %1447 = vmatpush2.msra.mxu0 0.0
  %1448 = vmatprep.subr.mxu0 0.0
  %1449 = vmatpush2.msra.mxu0 0.0
  %1450 = vmatprep.subr.mxu0 0.0
  %1451 = vmatpush2.msra.mxu0 0.0
  %1452 = vmatprep.subr.mxu0 0.0
  %1453 = vmatpush2.msra.mxu0 0.0
  %1454 = vmatprep.subr.mxu0 0.0
  %1455 = vmatpush2.msra.mxu0 0.0
  %1456 = vmatprep.subr.mxu0 0.0
  %1457 = vmatpush2.msra.mxu0 0.0
  %1458 = vmatprep.subr.mxu0 0.0
  %1459 = vmatpush2.msra.mxu0 0.0
  %1460 = vmatprep.subr.mxu0 0.0
  %1461 = vmatpush2.msra.mxu0 0.0
  %1462 = vmatprep.mubr.f32.mxu0 0.0
  %1463 = vmatmul.mubr.f32.gmra.mxu0 %v1396
  %v1464 = vpop.f32.mrf.mxu0
  %v1465 = vadd.f32 %v719, %v1464
  %v1466 = vpop.f32.mrf.mxu0
  %1467 = vdwg.mxu0
  %v1468 = vadd.f32 %v1297, %v1465
  %s1469 = scalar_lea.vmem %s13, 8
  %1470 = vst.msk [vmem:[%s1469] sm:$0xff] %vm73, %v1468
  // Predicated region
  $region54: #{dualprompt_forward.22} parent=0 // pred_check
    _
  $region55: #{dualprompt_forward.22} parent=0 // pred_check_branch
    %1472 = sbr.rel (0) target = $region57
  $region56: #{dualprompt_forward.22} parent=0 // pred_region
    _
  $region57: #{dualprompt_forward.22} parent=0 // pred_fallthru
    _
  // Predicated region
  $region58: #{dualprompt_forward.22} parent=0 // pred_check
    _
  $region59: #{dualprompt_forward.22} parent=0 // pred_check_branch
    %1474 = sbr.rel (0) target = $region61
  $region60: #{dualprompt_forward.22} parent=0 // pred_region
    _
  $region61: #{dualprompt_forward.22} parent=0 // pred_fallthru
    _

</llo_original>
